<compile_context>
chip_gen: v7x
topology: tpu7x:2x2x1
jax: 0.10.0
libtpu: 0.0.40
codegen_flags: <defaults>
</compile_context>

<pallas_src>
import functools
import math

import jax
import jax.numpy as jnp
from jax import lax
from jax.experimental import pallas as pl
from jax.experimental.pallas import tpu as pltpu


def _layer_norm(z, gamma, beta, eps=1e-5):
    mu = jnp.mean(z, axis=-1, keepdims=True)
    var = jnp.mean(jnp.square(z - mu), axis=-1, keepdims=True)
    return (z - mu) * lax.rsqrt(var + eps) * gamma + beta


def encoder_layer_kernel(
    x_ref,      # (bb, S, D)  f32
    w_in_ref,   # (D, 3D)     matmul dtype  (= in_proj_weight.T, Q cols pre-scaled)
    w_out_ref,  # (D, D)      matmul dtype  (= out_proj.weight.T)
    w1_ref,     # (D, dff)    matmul dtype  (= linear1.weight.T)
    w2_ref,     # (dff, D)    matmul dtype  (= linear2.weight.T)
    vecd_ref,   # (8, D)      f32  rows: [b_out, g1, be1, b2, g2, be2, 0, 0]
    vecw_ref,   # (2, W)      f32  rows: [b_in (Q part pre-scaled, padded), b1 (padded)]
    o_ref,      # (bb, S, D)  f32
    *, num_heads, approx_recip,
):
    bb, S, D = x_ref.shape
    hd = D // num_heads
    dff = w1_ref.shape[1]
    cdt = w_in_ref.dtype
    f32 = jnp.float32
    rows = bb * S

    vecd = vecd_ref[...]
    b_out, g1, be1 = vecd[0:1, :], vecd[1:2, :], vecd[2:3, :]
    b2, g2, be2 = vecd[3:4, :], vecd[4:5, :], vecd[5:6, :]
    vecw = vecw_ref[...]
    b_in = vecw[0:1, :3 * D]
    b1 = vecw[1:2, :dff]

    x = x_ref[...]                               # (bb, S, D) f32
    xr = x.reshape(rows, D)                      # row = b*S + s (free: S % 8 == 0)

    # ---- QKV projection: ONE (rows, D) x (D, 3D) matmul, f32 accumulation ----
    qkv = jnp.dot(xr.astype(cdt), w_in_ref[...],
                  preferred_element_type=f32) + b_in
    q = qkv[:, :D].astype(cdt).reshape(bb, S, D)       # 1/sqrt(hd) already folded in
    k = qkv[:, D:2 * D].astype(cdt).reshape(bb, S, D)
    v = qkv[:, 2 * D:].astype(cdt).reshape(bb, S, D)

    # ---- attention: lane-aligned head slices, batched over bb ---------------
    # Softmax is normalised AFTER the PV matmul (on the (bb,S,hd) output rather
    # than the (bb,S,S) scores), using the EUP reciprocal.
    # TODO(synk): for long S, tile over key blocks with an online (flash-style)
    # softmax so the (bb,S,S) scores never fully materialise (matters on v7x).
    heads = []
    for h in range(num_heads):
        lo = h * hd
        qh = q[:, :, lo:lo + hd]
        kh = k[:, :, lo:lo + hd]
        vh = v[:, :, lo:lo + hd]
        s = jnp.einsum("bqd,bkd->bqk", qh, kh,
                       preferred_element_type=f32)        # (bb, S, S) f32
        m = jnp.max(s, axis=-1, keepdims=True)
        p = jnp.exp(s - m)
        l = jnp.sum(p, axis=-1, keepdims=True)
        ah = jnp.einsum("bqk,bkd->bqd", p.astype(cdt), vh,
                        preferred_element_type=f32)       # (bb, S, hd) f32
        heads.append(ah * pl.reciprocal(l, approx=approx_recip))
    # Head concat stays in registers/VMEM values (no scratch round-trip), so the
    # output projection keeps K = D.
    attn = jnp.concatenate(heads, axis=-1).reshape(rows, D)   # f32

    # ---- output projection: ONE (rows, D) x (D, D) matmul -------------------
    attn_out = jnp.dot(attn.astype(cdt), w_out_ref[...],
                       preferred_element_type=f32) + b_out

    # ---- residual + norm1 (dropout == identity in eval mode) ----------------
    y = _layer_norm(xr + attn_out, g1, be1)

    # ---- feed-forward (relu), M = rows --------------------------------------
    h1 = jnp.dot(y.astype(cdt), w1_ref[...], preferred_element_type=f32) + b1
    h1 = jnp.maximum(h1, 0.0)
    h2 = jnp.dot(h1.astype(cdt), w2_ref[...], preferred_element_type=f32) + b2

    # ---- residual + norm2 ----------------------------------------------------
    o_ref[...] = _layer_norm(y + h2, g2, be2).reshape(bb, S, D)


def _chip_config():
    """(usable VMEM budget bytes, minimum preferred grid steps) for this TPU."""
    cap = 128 << 20
    try:  # capability query only -- never masks kernel failures
        cap = int(getattr(pltpu.get_tpu_info(), "vmem_capacity_bytes", cap))
    except Exception:
        pass
    if cap <= (64 << 20):
        # v7x-class: 64 MiB per TensorCore; leave headroom for compiler scratch
        # and keep >= 4 grid steps so each of the 2 cores pipelines >= 2 steps.
        return min(cap * 3 // 4, 52 << 20), 4
    # v5e / v6e: 128 MiB physical VMEM -- do not stop at a 64 MiB cap.
    return min(cap * 4 // 5, 100 << 20), 2


def _estimate_vmem_bytes(bb, S, D, dff, wbytes):
    """Conservative bound on live VMEM for one grid step (incl. double buffers)."""
    rows = bb * S
    W = max(3 * D, dff)
    weights = 2 * wbytes * (3 * D * D + D * D + 2 * D * dff)   # 2x: double-buffered
    vecs = 2 * 4 * (8 * D + 2 * W)
    io = 2 * 2 * rows * D * 4                                  # x + out blocks, 2x buffered
    inter_f32 = 4 * rows * (9 * D + dff)                       # qkv/attn/y/h1/h2/z ...
    inter_cdt = wbytes * rows * (5 * D + dff)                  # q,k,v + matmul-input casts
    scores = 2 * 4 * bb * S * S                                # s + p for one head
    return weights + vecs + io + inter_f32 + inter_cdt + scores + (6 << 20)


def _pick_batch_block(B, S, D, dff, wbytes, budget, min_steps):
    """VMEM-aware bb: biggest MXU M that fits the budget while keeping the
    pipeline (and on multi-core parts, both cores) fed."""
    cands = [bb for bb in range(1, B + 1) if B % bb == 0]
    feasible = [bb for bb in cands
                if _estimate_vmem_bytes(bb, S, D, dff, wbytes) <= budget]
    if not feasible:
        feasible = [1]

    def score(bb):
        rows = bb * S
        steps = B // bb
        align = 2 if rows % 256 == 0 else (1 if rows % 128 == 0 else 0)
        return (min(steps, min_steps), align, rows)

    return max(feasible, key=score)


def _build_call(*, B, S, D, dff, bb, W, num_heads, matmul_dtype, vmem_limit):
    approx = jnp.dtype(matmul_dtype) == jnp.dtype(jnp.bfloat16)
    kernel = functools.partial(encoder_layer_kernel,
                               num_heads=num_heads, approx_recip=approx)
    const2 = lambda i: (0, 0)   # parameter blocks: constant index map, DMA'd once
    return pl.pallas_call(
        kernel,
        out_shape=jax.ShapeDtypeStruct((B, S, D), jnp.float32),
        grid=(B // bb,),
        in_specs=[
            pl.BlockSpec((bb, S, D), lambda i: (i, 0, 0)),   # x (batch-major)
            pl.BlockSpec((D, 3 * D), const2),                # w_in_t (Q pre-scaled)
            pl.BlockSpec((D, D), const2),                    # w_out_t
            pl.BlockSpec((D, dff), const2),                  # w1_t
            pl.BlockSpec((dff, D), const2),                  # w2_t
            pl.BlockSpec((8, D), const2),                    # packed D-wide vectors
            pl.BlockSpec((2, W), const2),                    # packed b_in / b1
        ],
        out_specs=pl.BlockSpec((bb, S, D), lambda i: (i, 0, 0)),
        compiler_params=pltpu.CompilerParams(
            dimension_semantics=("parallel",),
            vmem_limit_bytes=int(vmem_limit),
        ),
    )


def transformer_encoder_layer(x_sbd, params, num_heads,
                              matmul_dtype=jnp.bfloat16, batch_block=None):
    """x_sbd: (S, B, D) float32 (PyTorch seq-first layout). Returns (S, B, D)."""
    S, B, D = x_sbd.shape
    dff = params["w1"].shape[0]
    assert num_heads >= 1 and D % num_heads == 0
    hd = D // num_heads
    # Shape contract (lane / sublane alignment) -- asserted, not assumed.
    assert D % 128 == 0 and dff % 128 == 0, "d_model / d_ff must be multiples of 128"
    assert hd % 128 == 0, "head_dim must be a multiple of 128 (lane-aligned head slices)"
    assert S % 8 == 0, "sequence length must be a multiple of 8"
    # TODO(synk): attn_mask / key_padding_mask and train-mode dropout are not implemented.

    f32, cdt = jnp.float32, matmul_dtype
    wbytes = jnp.dtype(cdt).itemsize
    budget, min_steps = _chip_config()
    bb = batch_block or _pick_batch_block(B, S, D, dff, wbytes, budget, min_steps)
    assert B % bb == 0
    vmem_limit = min(max(_estimate_vmem_bytes(bb, S, D, dff, wbytes), 32 << 20), budget)

    scale = 1.0 / math.sqrt(hd)
    W = max(3 * D, dff)

    # One-time host-side parameter transforms (we transpose/cast here anyway):
    # fold the 1/sqrt(head_dim) scale into the Q columns of the in-projection.
    w_in_t = params["w_in"].T.astype(f32).at[:, :D].multiply(scale).astype(cdt)
    b_in = params["b_in"].astype(f32).at[:D].multiply(scale)
    vec_d = jnp.stack([
        params["b_out"].astype(f32), params["g1"].astype(f32), params["be1"].astype(f32),
        params["b2"].astype(f32), params["g2"].astype(f32), params["be2"].astype(f32),
        jnp.zeros((D,), f32), jnp.zeros((D,), f32)])                    # (8, D)
    vec_w = jnp.stack([
        jnp.zeros((W,), f32).at[:3 * D].set(b_in),
        jnp.zeros((W,), f32).at[:dff].set(params["b1"].astype(f32))])   # (2, W)

    # Batch-major rows inside the kernel (clean leading batch dim for attention).
    x_bsd = jnp.transpose(x_sbd, (1, 0, 2)).astype(f32)                 # (B, S, D)

    call = _build_call(B=B, S=S, D=D, dff=dff, bb=bb, W=W,
                       num_heads=num_heads, matmul_dtype=cdt, vmem_limit=vmem_limit)
    out = call(
        x_bsd,
        w_in_t,
        params["w_out"].T.astype(cdt),
        params["w1"].T.astype(cdt),
        params["w2"].T.astype(cdt),
        vec_d,
        vec_w,
    )
    return jnp.transpose(out, (1, 0, 2))   # back to (S, B, D)


def reference_forward(x_sbd, p, num_heads):
    """Pure-JAX f32 reference mirroring the PyTorch module (eval mode)."""
    S, B, D = x_sbd.shape
    hd = D // num_heads
    x = x_sbd.astype(jnp.float32)
    qkv = jnp.einsum("sbd,ed->sbe", x, p["w_in"]) + p["b_in"]
    q, k, v = qkv[..., :D], qkv[..., D:2 * D], qkv[..., 2 * D:]
    split = lambda t: t.reshape(S, B, num_heads, hd)
    q = split(q) / math.sqrt(hd)
    k, v = split(k), split(v)
    s = jnp.einsum("sbhd,tbhd->bhst", q, k)
    pattn = jax.nn.softmax(s, axis=-1)
    a = jnp.einsum("bhst,tbhd->sbhd", pattn, v).reshape(S, B, D)
    attn_out = jnp.einsum("sbd,ed->sbe", a, p["w_out"]) + p["b_out"]

    def ln(z, g, b):
        mu = z.mean(-1, keepdims=True)
        var = ((z - mu) ** 2).mean(-1, keepdims=True)
        return (z - mu) * lax.rsqrt(var + 1e-5) * g + b

    y = ln(x + attn_out, p["g1"], p["be1"])
    h1 = jax.nn.relu(jnp.einsum("sbd,fd->sbf", y, p["w1"]) + p["b1"])
    h2 = jnp.einsum("sbf,df->sbd", h1, p["w2"]) + p["b2"]
    return ln(y + h2, p["g2"], p["be2"])


def init_params(key, d_model, d_ff):
    ks = jax.random.split(key, 6)
    sc = 0.1
    return {
        "w_in": sc * jax.random.normal(ks[0], (3 * d_model, d_model), jnp.float32),
        "b_in": sc * jax.random.normal(ks[1], (3 * d_model,), jnp.float32),
        "w_out": sc * jax.random.normal(ks[2], (d_model, d_model), jnp.float32),
        "b_out": sc * jax.random.normal(ks[3], (d_model,), jnp.float32),
        "g1": jnp.ones((d_model,), jnp.float32),
        "be1": jnp.zeros((d_model,), jnp.float32),
        "w1": sc * jax.random.normal(ks[4], (d_ff, d_model), jnp.float32),
        "b1": jnp.zeros((d_ff,), jnp.float32),
        "w2": sc * jax.random.normal(ks[5], (d_model, d_ff), jnp.float32),
        "b2": jnp.zeros((d_model,), jnp.float32),
        "g2": jnp.ones((d_model,), jnp.float32),
        "be2": jnp.zeros((d_model,), jnp.float32),
    }


if __name__ == "__main__":
    # Small TPU-friendly shapes: S % 8 == 0, D % 128 == 0, head_dim = 128
    # (lane-aligned head slices), B large enough for a multi-step grid.
    S, B, D, H = 32, 16, 256, 2
    DFF = 4 * D

    key = jax.random.PRNGKey(0)
    kx, kp = jax.random.split(key)
    x = jax.random.normal(kx, (S, B, D), jnp.float32)   # (S, B, D) seq-first
    params = init_params(kp, D, DFF)

    ref = jax.block_until_ready(reference_forward(x, params, num_heads=H))

    # 1) f32-matmul mode: validates the kernel logic tightly (exact reciprocal).
    out_f32 = jax.block_until_ready(
        transformer_encoder_layer(x, params, num_heads=H,
                                  matmul_dtype=jnp.float32))
    assert out_f32.shape == (S, B, D)
    err_f32 = float(jnp.max(jnp.abs(out_f32 - ref)))
    assert err_f32 < 2e-3, f"f32 max abs error {err_f32}"

    # 2) default bf16-matmul mode (performance config): looser tolerance.
    #    Note: bf16 MXU inputs + approx EUP reciprocal are deliberate speed/accuracy
    #    trade-offs; use matmul_dtype=jnp.float32 for accuracy-sensitive runs.
    out_bf16 = jax.block_until_ready(
        transformer_encoder_layer(x, params, num_heads=H))
    assert out_bf16.shape == (S, B, D)
    err_bf16 = float(jnp.max(jnp.abs(out_bf16 - ref)))
    assert err_bf16 < 0.3, f"bf16 max abs error {err_bf16}"

    print("KERNEL_OK")
</pallas_src>

<mosaic_0001>
module attributes {stable_mosaic.version = 11 : i64} {
  func.func @encoder_layer_kernel(%arg0: i32, %arg1: memref<8x32x256xf32, #tpu.memory_space<vmem>>, %arg2: memref<256x768xf32, #tpu.memory_space<vmem>>, %arg3: memref<256x256xf32, #tpu.memory_space<vmem>>, %arg4: memref<256x1024xf32, #tpu.memory_space<vmem>>, %arg5: memref<1024x256xf32, #tpu.memory_space<vmem>>, %arg6: memref<8x256xf32, #tpu.memory_space<vmem>>, %arg7: memref<2x1024xf32, #tpu.memory_space<vmem>>, %arg8: memref<8x32x256xf32, #tpu.memory_space<vmem>>) attributes {dimension_semantics = [#tpu.dimension_semantics<parallel>], iteration_bounds = array<i64: 2>, scalar_prefetch = 0 : i64, scratch_operands = 0 : i64, tpu.core_type = #tpu.core_type<tc>, window_params = [{transform_indices = @transform_0, window_bounds = array<i64: 8, 32, 256>}, {pipeline_mode = #tpu.pipeline_mode<synchronous>, transform_indices = @transform_1, window_bounds = array<i64: 256, 768>}, {pipeline_mode = #tpu.pipeline_mode<synchronous>, transform_indices = @transform_2, window_bounds = array<i64: 256, 256>}, {pipeline_mode = #tpu.pipeline_mode<synchronous>, transform_indices = @transform_3, window_bounds = array<i64: 256, 1024>}, {pipeline_mode = #tpu.pipeline_mode<synchronous>, transform_indices = @transform_4, window_bounds = array<i64: 1024, 256>}, {pipeline_mode = #tpu.pipeline_mode<synchronous>, transform_indices = @transform_5, window_bounds = array<i64: 8, 256>}, {pipeline_mode = #tpu.pipeline_mode<synchronous>, transform_indices = @transform_6, window_bounds = array<i64: 2, 1024>}, {transform_indices = @transform_7, window_bounds = array<i64: 8, 32, 256>}]} {
    %c0 = arith.constant 0 : index
    %c0_0 = arith.constant 0 : index
    %0 = vector.load %arg6[%c0, %c0_0] : memref<8x256xf32, #tpu.memory_space<vmem>>, vector<8x256xf32>
    %1 = vector.extract_strided_slice %0 {offsets = [0, 0], sizes = [1, 256], strides = [1, 1]} : vector<8x256xf32> to vector<1x256xf32>
    %2 = vector.extract_strided_slice %0 {offsets = [1, 0], sizes = [1, 256], strides = [1, 1]} : vector<8x256xf32> to vector<1x256xf32>
    %3 = vector.extract_strided_slice %0 {offsets = [2, 0], sizes = [1, 256], strides = [1, 1]} : vector<8x256xf32> to vector<1x256xf32>
    %4 = vector.extract_strided_slice %0 {offsets = [3, 0], sizes = [1, 256], strides = [1, 1]} : vector<8x256xf32> to vector<1x256xf32>
    %5 = vector.extract_strided_slice %0 {offsets = [4, 0], sizes = [1, 256], strides = [1, 1]} : vector<8x256xf32> to vector<1x256xf32>
    %6 = vector.extract_strided_slice %0 {offsets = [5, 0], sizes = [1, 256], strides = [1, 1]} : vector<8x256xf32> to vector<1x256xf32>
    %c0_1 = arith.constant 0 : index
    %c0_2 = arith.constant 0 : index
    %7 = vector.load %arg7[%c0_1, %c0_2] : memref<2x1024xf32, #tpu.memory_space<vmem>>, vector<2x1024xf32>
    %8 = vector.extract_strided_slice %7 {offsets = [0, 0], sizes = [1, 768], strides = [1, 1]} : vector<2x1024xf32> to vector<1x768xf32>
    %9 = vector.extract_strided_slice %7 {offsets = [1, 0], sizes = [1, 1024], strides = [1, 1]} : vector<2x1024xf32> to vector<1x1024xf32>
    %c0_3 = arith.constant 0 : index
    %c0_4 = arith.constant 0 : index
    %c0_5 = arith.constant 0 : index
    %10 = vector.load %arg1[%c0_3, %c0_4, %c0_5] : memref<8x32x256xf32, #tpu.memory_space<vmem>>, vector<8x32x256xf32>
    %11 = vector.shape_cast %10 : vector<8x32x256xf32> to vector<256x256xf32>
    %c0_6 = arith.constant 0 : index
    %c0_7 = arith.constant 0 : index
    %12 = vector.load %arg2[%c0_6, %c0_7] : memref<256x768xf32, #tpu.memory_space<vmem>>, vector<256x768xf32>
    %cst = arith.constant dense<0.000000e+00> : vector<256x768xf32>
    %13 = tpu.matmul %11, %12, %cst {dimension_numbers = #tpu.dot_dimension_numbers<[1], [0], [0], [1], [0, 0, 1, 1], [], []>} : vector<256x256xf32>, vector<256x768xf32>, vector<256x768xf32> -> vector<256x768xf32>
    %14 = vector.broadcast %8 : vector<1x768xf32> to vector<256x768xf32>
    %15 = arith.addf %13, %14 : vector<256x768xf32>
    %16 = vector.extract_strided_slice %15 {offsets = [0, 0], sizes = [256, 256], strides = [1, 1]} : vector<256x768xf32> to vector<256x256xf32>
    %17 = vector.shape_cast %16 : vector<256x256xf32> to vector<8x32x256xf32>
    %18 = vector.extract_strided_slice %15 {offsets = [0, 256], sizes = [256, 256], strides = [1, 1]} : vector<256x768xf32> to vector<256x256xf32>
    %19 = vector.shape_cast %18 : vector<256x256xf32> to vector<8x32x256xf32>
    %20 = vector.extract_strided_slice %15 {offsets = [0, 512], sizes = [256, 256], strides = [1, 1]} : vector<256x768xf32> to vector<256x256xf32>
    %21 = vector.shape_cast %20 : vector<256x256xf32> to vector<8x32x256xf32>
    %22 = vector.extract_strided_slice %17 {offsets = [0, 0, 0], sizes = [8, 32, 128], strides = [1, 1, 1]} : vector<8x32x256xf32> to vector<8x32x128xf32>
    %23 = vector.extract_strided_slice %19 {offsets = [0, 0, 0], sizes = [8, 32, 128], strides = [1, 1, 1]} : vector<8x32x256xf32> to vector<8x32x128xf32>
    %24 = vector.extract_strided_slice %21 {offsets = [0, 0, 0], sizes = [8, 32, 128], strides = [1, 1, 1]} : vector<8x32x256xf32> to vector<8x32x128xf32>
    "tpu.trace_start"() <{level = 10 : i32, message = "bqd,bkd->bqk"}> : () -> ()
    %cst_8 = arith.constant dense<0.000000e+00> : vector<8x32x32xf32>
    %25 = tpu.matmul %22, %23, %cst_8 {dimension_numbers = #tpu.dot_dimension_numbers<[2], [2], [1], [1], [0, 0, 0, 1, 1, 1], [0], [0]>} : vector<8x32x128xf32>, vector<8x32x128xf32>, vector<8x32x32xf32> -> vector<8x32x32xf32>
    "tpu.trace_stop"() : () -> ()
    %cst_9 = arith.constant dense<0xFF800000> : vector<8x32xf32>
    %26 = vector.multi_reduction <maximumf>, %25, %cst_9 [2] : vector<8x32x32xf32> to vector<8x32xf32>
    %27 = vector.shape_cast %26 : vector<8x32xf32> to vector<8x32x1xf32>
    %28 = vector.broadcast %27 : vector<8x32x1xf32> to vector<8x32x32xf32>
    %29 = arith.subf %25, %28 : vector<8x32x32xf32>
    %30 = math.exp %29 : vector<8x32x32xf32>
    %cst_10 = arith.constant dense<0.000000e+00> : vector<8x32xf32>
    %31 = vector.multi_reduction <add>, %30, %cst_10 [2] : vector<8x32x32xf32> to vector<8x32xf32>
    %32 = vector.shape_cast %31 : vector<8x32xf32> to vector<8x32x1xf32>
    "tpu.trace_start"() <{level = 10 : i32, message = "bqk,bkd->bqd"}> : () -> ()
    %cst_11 = arith.constant dense<0.000000e+00> : vector<8x32x128xf32>
    %33 = tpu.matmul %30, %24, %cst_11 {dimension_numbers = #tpu.dot_dimension_numbers<[2], [1], [1], [2], [0, 0, 0, 1, 1, 2], [0], [0]>} : vector<8x32x32xf32>, vector<8x32x128xf32>, vector<8x32x128xf32> -> vector<8x32x128xf32>
    "tpu.trace_stop"() : () -> ()
    %34 = tpu.reciprocal %32 : vector<8x32x1xf32> -> vector<8x32x1xf32>
    %35 = vector.broadcast %34 : vector<8x32x1xf32> to vector<8x32x128xf32>
    %36 = arith.mulf %33, %35 : vector<8x32x128xf32>
    %37 = vector.extract_strided_slice %17 {offsets = [0, 0, 128], sizes = [8, 32, 128], strides = [1, 1, 1]} : vector<8x32x256xf32> to vector<8x32x128xf32>
    %38 = vector.extract_strided_slice %19 {offsets = [0, 0, 128], sizes = [8, 32, 128], strides = [1, 1, 1]} : vector<8x32x256xf32> to vector<8x32x128xf32>
    %39 = vector.extract_strided_slice %21 {offsets = [0, 0, 128], sizes = [8, 32, 128], strides = [1, 1, 1]} : vector<8x32x256xf32> to vector<8x32x128xf32>
    "tpu.trace_start"() <{level = 10 : i32, message = "bqd,bkd->bqk"}> : () -> ()
    %cst_12 = arith.constant dense<0.000000e+00> : vector<8x32x32xf32>
    %40 = tpu.matmul %37, %38, %cst_12 {dimension_numbers = #tpu.dot_dimension_numbers<[2], [2], [1], [1], [0, 0, 0, 1, 1, 1], [0], [0]>} : vector<8x32x128xf32>, vector<8x32x128xf32>, vector<8x32x32xf32> -> vector<8x32x32xf32>
    "tpu.trace_stop"() : () -> ()
    %cst_13 = arith.constant dense<0xFF800000> : vector<8x32xf32>
    %41 = vector.multi_reduction <maximumf>, %40, %cst_13 [2] : vector<8x32x32xf32> to vector<8x32xf32>
    %42 = vector.shape_cast %41 : vector<8x32xf32> to vector<8x32x1xf32>
    %43 = vector.broadcast %42 : vector<8x32x1xf32> to vector<8x32x32xf32>
    %44 = arith.subf %40, %43 : vector<8x32x32xf32>
    %45 = math.exp %44 : vector<8x32x32xf32>
    %cst_14 = arith.constant dense<0.000000e+00> : vector<8x32xf32>
    %46 = vector.multi_reduction <add>, %45, %cst_14 [2] : vector<8x32x32xf32> to vector<8x32xf32>
    %47 = vector.shape_cast %46 : vector<8x32xf32> to vector<8x32x1xf32>
    "tpu.trace_start"() <{level = 10 : i32, message = "bqk,bkd->bqd"}> : () -> ()
    %cst_15 = arith.constant dense<0.000000e+00> : vector<8x32x128xf32>
    %48 = tpu.matmul %45, %39, %cst_15 {dimension_numbers = #tpu.dot_dimension_numbers<[2], [1], [1], [2], [0, 0, 0, 1, 1, 2], [0], [0]>} : vector<8x32x32xf32>, vector<8x32x128xf32>, vector<8x32x128xf32> -> vector<8x32x128xf32>
    "tpu.trace_stop"() : () -> ()
    %49 = tpu.reciprocal %47 : vector<8x32x1xf32> -> vector<8x32x1xf32>
    %50 = vector.broadcast %49 : vector<8x32x1xf32> to vector<8x32x128xf32>
    %51 = arith.mulf %48, %50 : vector<8x32x128xf32>
    %52 = tpu.concatenate %36, %51 in 2 : vector<8x32x128xf32>, vector<8x32x128xf32> -> vector<8x32x256xf32>
    %53 = vector.shape_cast %52 : vector<8x32x256xf32> to vector<256x256xf32>
    %c0_16 = arith.constant 0 : index
    %c0_17 = arith.constant 0 : index
    %54 = vector.load %arg3[%c0_16, %c0_17] : memref<256x256xf32, #tpu.memory_space<vmem>>, vector<256x256xf32>
    %cst_18 = arith.constant dense<0.000000e+00> : vector<256x256xf32>
    %55 = tpu.matmul %53, %54, %cst_18 {dimension_numbers = #tpu.dot_dimension_numbers<[1], [0], [0], [1], [0, 0, 1, 1], [], []>} : vector<256x256xf32>, vector<256x256xf32>, vector<256x256xf32> -> vector<256x256xf32>
    %56 = vector.broadcast %1 : vector<1x256xf32> to vector<256x256xf32>
    %57 = arith.addf %55, %56 : vector<256x256xf32>
    %58 = arith.addf %11, %57 : vector<256x256xf32>
    %cst_19 = arith.constant dense<0.000000e+00> : vector<256xf32>
    %59 = vector.multi_reduction <add>, %58, %cst_19 [1] : vector<256x256xf32> to vector<256xf32>
    %60 = vector.shape_cast %59 : vector<256xf32> to vector<256x1xf32>
    %cst_20 = arith.constant 2.560000e+02 : f32
    %61 = vector.broadcast %cst_20 : f32 to vector<256x1xf32>
    %62 = arith.divf %60, %61 : vector<256x1xf32>
    %63 = vector.broadcast %62 : vector<256x1xf32> to vector<256x256xf32>
    %64 = arith.subf %58, %63 : vector<256x256xf32>
    %65 = arith.mulf %64, %64 : vector<256x256xf32>
    %cst_21 = arith.constant dense<0.000000e+00> : vector<256xf32>
    %66 = vector.multi_reduction <add>, %65, %cst_21 [1] : vector<256x256xf32> to vector<256xf32>
    %67 = vector.shape_cast %66 : vector<256xf32> to vector<256x1xf32>
    %cst_22 = arith.constant 2.560000e+02 : f32
    %68 = vector.broadcast %cst_22 : f32 to vector<256x1xf32>
    %69 = arith.divf %67, %68 : vector<256x1xf32>
    %70 = vector.broadcast %62 : vector<256x1xf32> to vector<256x256xf32>
    %71 = arith.subf %58, %70 : vector<256x256xf32>
    %cst_23 = arith.constant 9.99999974E-6 : f32
    %72 = vector.broadcast %cst_23 : f32 to vector<256x1xf32>
    %73 = arith.addf %69, %72 : vector<256x1xf32>
    %74 = math.rsqrt %73 : vector<256x1xf32>
    %75 = vector.broadcast %74 : vector<256x1xf32> to vector<256x256xf32>
    %76 = arith.mulf %71, %75 : vector<256x256xf32>
    %77 = vector.broadcast %2 : vector<1x256xf32> to vector<256x256xf32>
    %78 = arith.mulf %76, %77 : vector<256x256xf32>
    %79 = vector.broadcast %3 : vector<1x256xf32> to vector<256x256xf32>
    %80 = arith.addf %78, %79 : vector<256x256xf32>
    %c0_24 = arith.constant 0 : index
    %c0_25 = arith.constant 0 : index
    %81 = vector.load %arg4[%c0_24, %c0_25] : memref<256x1024xf32, #tpu.memory_space<vmem>>, vector<256x1024xf32>
    %cst_26 = arith.constant dense<0.000000e+00> : vector<256x1024xf32>
    %82 = tpu.matmul %80, %81, %cst_26 {dimension_numbers = #tpu.dot_dimension_numbers<[1], [0], [0], [1], [0, 0, 1, 1], [], []>} : vector<256x256xf32>, vector<256x1024xf32>, vector<256x1024xf32> -> vector<256x1024xf32>
    %83 = vector.broadcast %9 : vector<1x1024xf32> to vector<256x1024xf32>
    %84 = arith.addf %82, %83 : vector<256x1024xf32>
    %cst_27 = arith.constant 0.000000e+00 : f32
    %85 = vector.broadcast %cst_27 : f32 to vector<256x1024xf32>
    %86 = arith.maximumf %84, %85 : vector<256x1024xf32>
    %c0_28 = arith.constant 0 : index
    %c0_29 = arith.constant 0 : index
    %87 = vector.load %arg5[%c0_28, %c0_29] : memref<1024x256xf32, #tpu.memory_space<vmem>>, vector<1024x256xf32>
    %cst_30 = arith.constant dense<0.000000e+00> : vector<256x256xf32>
    %88 = tpu.matmul %86, %87, %cst_30 {dimension_numbers = #tpu.dot_dimension_numbers<[1], [0], [0], [1], [0, 0, 1, 1], [], []>} : vector<256x1024xf32>, vector<1024x256xf32>, vector<256x256xf32> -> vector<256x256xf32>
    %89 = vector.broadcast %4 : vector<1x256xf32> to vector<256x256xf32>
    %90 = arith.addf %88, %89 : vector<256x256xf32>
    %91 = arith.addf %80, %90 : vector<256x256xf32>
    %cst_31 = arith.constant dense<0.000000e+00> : vector<256xf32>
    %92 = vector.multi_reduction <add>, %91, %cst_31 [1] : vector<256x256xf32> to vector<256xf32>
    %93 = vector.shape_cast %92 : vector<256xf32> to vector<256x1xf32>
    %cst_32 = arith.constant 2.560000e+02 : f32
    %94 = vector.broadcast %cst_32 : f32 to vector<256x1xf32>
    %95 = arith.divf %93, %94 : vector<256x1xf32>
    %96 = vector.broadcast %95 : vector<256x1xf32> to vector<256x256xf32>
    %97 = arith.subf %91, %96 : vector<256x256xf32>
    %98 = arith.mulf %97, %97 : vector<256x256xf32>
    %cst_33 = arith.constant dense<0.000000e+00> : vector<256xf32>
    %99 = vector.multi_reduction <add>, %98, %cst_33 [1] : vector<256x256xf32> to vector<256xf32>
    %100 = vector.shape_cast %99 : vector<256xf32> to vector<256x1xf32>
    %cst_34 = arith.constant 2.560000e+02 : f32
    %101 = vector.broadcast %cst_34 : f32 to vector<256x1xf32>
    %102 = arith.divf %100, %101 : vector<256x1xf32>
    %103 = vector.broadcast %95 : vector<256x1xf32> to vector<256x256xf32>
    %104 = arith.subf %91, %103 : vector<256x256xf32>
    %cst_35 = arith.constant 9.99999974E-6 : f32
    %105 = vector.broadcast %cst_35 : f32 to vector<256x1xf32>
    %106 = arith.addf %102, %105 : vector<256x1xf32>
    %107 = math.rsqrt %106 : vector<256x1xf32>
    %108 = vector.broadcast %107 : vector<256x1xf32> to vector<256x256xf32>
    %109 = arith.mulf %104, %108 : vector<256x256xf32>
    %110 = vector.broadcast %5 : vector<1x256xf32> to vector<256x256xf32>
    %111 = arith.mulf %109, %110 : vector<256x256xf32>
    %112 = vector.broadcast %6 : vector<1x256xf32> to vector<256x256xf32>
    %113 = arith.addf %111, %112 : vector<256x256xf32>
    %114 = vector.shape_cast %113 : vector<256x256xf32> to vector<8x32x256xf32>
    %c0_36 = arith.constant 0 : index
    %c0_37 = arith.constant 0 : index
    %c0_38 = arith.constant 0 : index
    %115 = vector.load %arg8[%c0_36, %c0_37, %c0_38] : memref<8x32x256xf32, #tpu.memory_space<vmem>>, vector<8x32x256xf32>
    tpu.vector_store %arg8[%c0_36, %c0_37, %c0_38], %114 {strides = array<i32>} : memref<8x32x256xf32, #tpu.memory_space<vmem>>, vector<8x32x256xf32>,
    return
  }
  func.func @transform_0(%arg0: i32) -> (i32, i32, i32) {
    %c0_i32 = arith.constant 0 : i32
    %c0_i32_0 = arith.constant 0 : i32
    %c0_i32_1 = arith.constant 0 : i32
    return %arg0, %c0_i32, %c0_i32_0 : i32, i32, i32
  }
  func.func @transform_1(%arg0: i32) -> (i32, i32) {
    %c0_i32 = arith.constant 0 : i32
    %c0_i32_0 = arith.constant 0 : i32
    %c0_i32_1 = arith.constant 0 : i32
    return %c0_i32, %c0_i32_0 : i32, i32
  }
  func.func @transform_2(%arg0: i32) -> (i32, i32) {
    %c0_i32 = arith.constant 0 : i32
    %c0_i32_0 = arith.constant 0 : i32
    %c0_i32_1 = arith.constant 0 : i32
    return %c0_i32, %c0_i32_0 : i32, i32
  }
  func.func @transform_3(%arg0: i32) -> (i32, i32) {
    %c0_i32 = arith.constant 0 : i32
    %c0_i32_0 = arith.constant 0 : i32
    %c0_i32_1 = arith.constant 0 : i32
    return %c0_i32, %c0_i32_0 : i32, i32
  }
  func.func @transform_4(%arg0: i32) -> (i32, i32) {
    %c0_i32 = arith.constant 0 : i32
    %c0_i32_0 = arith.constant 0 : i32
    %c0_i32_1 = arith.constant 0 : i32
    return %c0_i32, %c0_i32_0 : i32, i32
  }
  func.func @transform_5(%arg0: i32) -> (i32, i32) {
    %c0_i32 = arith.constant 0 : i32
    %c0_i32_0 = arith.constant 0 : i32
    %c0_i32_1 = arith.constant 0 : i32
    return %c0_i32, %c0_i32_0 : i32, i32
  }
  func.func @transform_6(%arg0: i32) -> (i32, i32) {
    %c0_i32 = arith.constant 0 : i32
    %c0_i32_0 = arith.constant 0 : i32
    %c0_i32_1 = arith.constant 0 : i32
    return %c0_i32, %c0_i32_0 : i32, i32
  }
  func.func @transform_7(%arg0: i32) -> (i32, i32, i32) {
    %c0_i32 = arith.constant 0 : i32
    %c0_i32_0 = arith.constant 0 : i32
    %c0_i32_1 = arith.constant 0 : i32
    return %arg0, %c0_i32, %c0_i32_0 : i32, i32, i32
  }
}

</mosaic_0001>

<llo_original>
// kernel: tpu_custom_call.1
$region0: #{tpu_custom_call.1}
  #allocation0 [shape = 'u32[]', space=smem, size = 0x4, offset = 0x4, fixed_abs, tag = 'smem constant byte address 0x4 - core index']
  #allocation1 [shape = 'u32[144,128]{1,0:T(1,128)}', space=vmem, size = 0x12000, scoped, tag = 'internal scratch']
  %s0 = inlined_call_operand.hbm [shape: f32[16,32,256], index: 0, kind: input, shape index: {}]
  %s1 = inlined_call_operand.hbm [shape: f32[256,768], index: 1, kind: input, shape index: {}]
  %s2 = inlined_call_operand.hbm [shape: f32[256,256], index: 2, kind: input, shape index: {}]
  %s3 = inlined_call_operand.hbm [shape: f32[256,1024], index: 3, kind: input, shape index: {}]
  %s4 = inlined_call_operand.hbm [shape: f32[1024,256], index: 4, kind: input, shape index: {}]
  %s5 = inlined_call_operand.vmem [shape: f32[8,256], index: 5, kind: input, shape index: {}]
  %s6 = inlined_call_operand.hbm [shape: f32[2,1024], index: 6, kind: input, shape index: {}]
  %s7 = inlined_call_operand.hbm [shape: f32[16,32,256], index: 7, kind: output, shape index: {}]
  %s8 = sld [smem:[#allocation0]]
  $region85: #{tpu_custom_call.1} parent=0
    _
  %s10 = ssub.s32 1, %s8
  %s11 = scalar_select 0, %s10, %s8
  $region1: #{tpu_custom_call.1} parent=0
    #allocation2 [shape = 'u8[524288]{0}', space=vmem, size = 0x80000, scoped, tag = 'input window, operand 0']
    #allocation3 [shape = 's32[2]{0}', space=sflag, size = 0x8, scoped, tag = 'scoped memory for tpu_custom_call.1']
    #allocation4 [shape = 's32[2]{0}', space=sflag, size = 0x8, scoped, tag = 'scoped memory for tpu_custom_call.1']
    #allocation5 [shape = 'u8[786432]{0}', space=vmem, size = 0xc0000, scoped, tag = 'input window, operand 1, single buffered']
    #allocation6 [shape = 's32[1]{0}', space=sflag, size = 0x4, scoped, tag = 'scoped memory for tpu_custom_call.1']
    #allocation7 [shape = 'u8[262144]{0}', space=vmem, size = 0x40000, scoped, tag = 'input window, operand 2, single buffered']
    #allocation8 [shape = 'u8[1048576]{0}', space=vmem, size = 0x100000, scoped, tag = 'input window, operand 3, single buffered']
    #allocation9 [shape = 's32[1]{0}', space=sflag, size = 0x4, scoped, tag = 'scoped memory for tpu_custom_call.1']
    #allocation10 [shape = 'u8[1048576]{0}', space=vmem, size = 0x100000, scoped, tag = 'input window, operand 4, single buffered']
    #allocation11 [shape = 'u8[8192]{0}', space=vmem, size = 0x2000, scoped, tag = 'input window, operand 6, single buffered']
    #allocation12 [shape = 's32[1]{0}', space=sflag, size = 0x4, scoped, tag = 'scoped memory for tpu_custom_call.1']
    #allocation13 [shape = 'u8[524288]{0}', space=vmem, size = 0x80000, scoped, tag = 'output window, operand 0']
    %12 = vsyncpa [#allocation3], 0
    %s13 = scalar_lea.sflag [#allocation3], 1
    %14 = vsyncpa %s13, 0
    %15 = vsyncpa [#allocation6], 0
    %16 = vsyncpa [#allocation9], 0
    %17 = vsyncpa [#allocation12], 0
    %18 = vsyncpa [#allocation4], 0
    %s19 = scalar_lea.sflag [#allocation4], 1
    %20 = vsyncpa %s19, 0
    loop: start=0, step=1, limit=4
    $region2: #{tpu_custom_call.1} parent=1 // loop_pre_header
      _
    $region3: #{tpu_custom_call.1} parent=1 // loop_header
      %s22 = sphi 0, %s26
      %p23 = scmp.ge.s32.totalorder %s22, 4
      %s32 = sphi 0, %s34
      %s35 = sphi 0, %s32
      %s36 = sphi 0, %s35
      %s52 = sphi 0, %s36
      %s56 = sphi 0, %s56
      %s58 = sphi 0, %s56
      %s59 = sphi 0, %s58
      %s73 = sphi 0, %s59
      %s77 = sphi 0, %s77
      %s79 = sphi 0, %s77
      %s80 = sphi 0, %s79
      %s94 = sphi 0, %s80
      %s98 = sphi 0, %s98
      %s100 = sphi 0, %s98
      %s101 = sphi 0, %s100
      %s115 = sphi 0, %s101
      %s119 = sphi 0, %s119
      %s121 = sphi 0, %s119
      %s122 = sphi 0, %s121
      %s136 = sphi 0, %s122
      %s140 = sphi 0, %s140
      %s142 = sphi 0, %s140
      %s143 = sphi 0, %s142
      %s157 = sphi 0, %s143
      %s161 = sphi 0, %s161
      %s163 = sphi 0, %s161
      %s164 = sphi 0, %s163
      %s178 = sphi 0, %s164
      %s184 = sphi 0, %s186
      %s187 = sphi 0, %s184
      %s188 = sphi 0, %s187
      %s204 = sphi 0, %s188
    $region4: #{tpu_custom_call.1} parent=1 // loop_header_branch
      %25 = sbr.rel (%p23) target = $region8
    $region5: #{tpu_custom_call.1} parent=1 // loop_body
      %s27 = ssub.s32 %s22, 1
      %s28 = ssub.s32 %s22, 2
      %s29 = sadd.s32 %s22, 1
      %s30 = ssub.s32 %s22, %s29
      %p31 = scmp.eq.s32.totalorder %s30, 0
      %s33 = sadd.s32 %s32, 1
      %s34 = scalar_select %p31, %s32, %s33
      %p37 = pneg %p31
      %p38 = scmp.eq.s32.totalorder %s22, 1
      %p39 = por %p37, %p38
      %p40 = scmp.ne.s32.totalorder %s32, %s35
      %p41 = scmp.eq.s32.totalorder %s22, 0
      %p42 = por %p40, %p41
      %p43 = scmp.ne.s32.totalorder %s32, %s35
      %p44 = scmp.eq.s32.totalorder %s27, 1
      %p45 = por %p43, %p44
      %p46 = scmp.ne.s32.totalorder %s35, %s36
      %p47 = scmp.eq.s32.totalorder %s27, 0
      %p48 = por %p46, %p47
      %p49 = scmp.ne.s32.totalorder %s35, %s36
      %p50 = scmp.eq.s32.totalorder %s28, 1
      %p51 = por %p49, %p50
      %p53 = scmp.ne.s32.totalorder %s36, %s52
      %p54 = scmp.eq.s32.totalorder %s28, 0
      %p55 = por %p53, %p54
      %s57 = sadd.s32 %s56, 1
      %p60 = scmp.eq.s32.totalorder %s22, 1
      %p61 = scmp.ne.s32.totalorder %s56, %s58
      %p62 = scmp.eq.s32.totalorder %s22, 0
      %p63 = por %p61, %p62
      %p64 = scmp.ne.s32.totalorder %s56, %s58
      %p65 = scmp.eq.s32.totalorder %s27, 1
      %p66 = por %p64, %p65
      %p67 = scmp.ne.s32.totalorder %s58, %s59
      %p68 = scmp.eq.s32.totalorder %s27, 0
      %p69 = por %p67, %p68
      %p70 = scmp.ne.s32.totalorder %s58, %s59
      %p71 = scmp.eq.s32.totalorder %s28, 1
      %p72 = por %p70, %p71
      %p74 = scmp.ne.s32.totalorder %s59, %s73
      %p75 = scmp.eq.s32.totalorder %s28, 0
      %p76 = por %p74, %p75
      %s78 = sadd.s32 %s77, 1
      %p81 = scmp.eq.s32.totalorder %s22, 1
      %p82 = scmp.ne.s32.totalorder %s77, %s79
      %p83 = scmp.eq.s32.totalorder %s22, 0
      %p84 = por %p82, %p83
      %p85 = scmp.ne.s32.totalorder %s77, %s79
      %p86 = scmp.eq.s32.totalorder %s27, 1
      %p87 = por %p85, %p86
      %p88 = scmp.ne.s32.totalorder %s79, %s80
      %p89 = scmp.eq.s32.totalorder %s27, 0
      %p90 = por %p88, %p89
      %p91 = scmp.ne.s32.totalorder %s79, %s80
      %p92 = scmp.eq.s32.totalorder %s28, 1
      %p93 = por %p91, %p92
      %p95 = scmp.ne.s32.totalorder %s80, %s94
      %p96 = scmp.eq.s32.totalorder %s28, 0
      %p97 = por %p95, %p96
      %s99 = sadd.s32 %s98, 1
      %p102 = scmp.eq.s32.totalorder %s22, 1
      %p103 = scmp.ne.s32.totalorder %s98, %s100
      %p104 = scmp.eq.s32.totalorder %s22, 0
      %p105 = por %p103, %p104
      %p106 = scmp.ne.s32.totalorder %s98, %s100
      %p107 = scmp.eq.s32.totalorder %s27, 1
      %p108 = por %p106, %p107
      %p109 = scmp.ne.s32.totalorder %s100, %s101
      %p110 = scmp.eq.s32.totalorder %s27, 0
      %p111 = por %p109, %p110
      %p112 = scmp.ne.s32.totalorder %s100, %s101
      %p113 = scmp.eq.s32.totalorder %s28, 1
      %p114 = por %p112, %p113
      %p116 = scmp.ne.s32.totalorder %s101, %s115
      %p117 = scmp.eq.s32.totalorder %s28, 0
      %p118 = por %p116, %p117
      %s120 = sadd.s32 %s119, 1
      %p123 = scmp.eq.s32.totalorder %s22, 1
      %p124 = scmp.ne.s32.totalorder %s119, %s121
      %p125 = scmp.eq.s32.totalorder %s22, 0
      %p126 = por %p124, %p125
      %p127 = scmp.ne.s32.totalorder %s119, %s121
      %p128 = scmp.eq.s32.totalorder %s27, 1
      %p129 = por %p127, %p128
      %p130 = scmp.ne.s32.totalorder %s121, %s122
      %p131 = scmp.eq.s32.totalorder %s27, 0
      %p132 = por %p130, %p131
      %p133 = scmp.ne.s32.totalorder %s121, %s122
      %p134 = scmp.eq.s32.totalorder %s28, 1
      %p135 = por %p133, %p134
      %p137 = scmp.ne.s32.totalorder %s122, %s136
      %p138 = scmp.eq.s32.totalorder %s28, 0
      %p139 = por %p137, %p138
      %s141 = sadd.s32 %s140, 1
      %p144 = scmp.eq.s32.totalorder %s22, 1
      %p145 = scmp.ne.s32.totalorder %s140, %s142
      %p146 = scmp.eq.s32.totalorder %s22, 0
      %p147 = por %p145, %p146
      %p148 = scmp.ne.s32.totalorder %s140, %s142
      %p149 = scmp.eq.s32.totalorder %s27, 1
      %p150 = por %p148, %p149
      %p151 = scmp.ne.s32.totalorder %s142, %s143
      %p152 = scmp.eq.s32.totalorder %s27, 0
      %p153 = por %p151, %p152
      %p154 = scmp.ne.s32.totalorder %s142, %s143
      %p155 = scmp.eq.s32.totalorder %s28, 1
      %p156 = por %p154, %p155
      %p158 = scmp.ne.s32.totalorder %s143, %s157
      %p159 = scmp.eq.s32.totalorder %s28, 0
      %p160 = por %p158, %p159
      %s162 = sadd.s32 %s161, 1
      %p165 = scmp.eq.s32.totalorder %s22, 1
      %p166 = scmp.ne.s32.totalorder %s161, %s163
      %p167 = scmp.eq.s32.totalorder %s22, 0
      %p168 = por %p166, %p167
      %p169 = scmp.ne.s32.totalorder %s161, %s163
      %p170 = scmp.eq.s32.totalorder %s27, 1
      %p171 = por %p169, %p170
      %p172 = scmp.ne.s32.totalorder %s163, %s164
      %p173 = scmp.eq.s32.totalorder %s27, 0
      %p174 = por %p172, %p173
      %p175 = scmp.ne.s32.totalorder %s163, %s164
      %p176 = scmp.eq.s32.totalorder %s28, 1
      %p177 = por %p175, %p176
      %p179 = scmp.ne.s32.totalorder %s164, %s178
      %p180 = scmp.eq.s32.totalorder %s28, 0
      %p181 = por %p179, %p180
      %s182 = ssub.s32 %s22, %s29
      %p183 = scmp.eq.s32.totalorder %s182, 0
      %s185 = sadd.s32 %s184, 1
      %s186 = scalar_select %p183, %s184, %s185
      %p189 = pneg %p183
      %p190 = scmp.eq.s32.totalorder %s22, 1
      %p191 = por %p189, %p190
      %p192 = scmp.ne.s32.totalorder %s184, %s187
      %p193 = scmp.eq.s32.totalorder %s22, 0
      %p194 = por %p192, %p193
      %p195 = scmp.ne.s32.totalorder %s184, %s187
      %p196 = scmp.eq.s32.totalorder %s27, 1
      %p197 = por %p195, %p196
      %p198 = scmp.ne.s32.totalorder %s187, %s188
      %p199 = scmp.eq.s32.totalorder %s27, 0
      %p200 = por %p198, %p199
      %p201 = scmp.ne.s32.totalorder %s187, %s188
      %p202 = scmp.eq.s32.totalorder %s28, 1
      %p203 = por %p201, %p202
      %p205 = scmp.ne.s32.totalorder %s188, %s204
      %p206 = scmp.eq.s32.totalorder %s28, 0
      %p207 = por %p205, %p206
      %p208 = scmp.le.s32.totalorder 1, %s22
      %p209 = scmp.lt.s32.totalorder %s22, 3
      %p210 = pnand %p208, %p209
      %p211 = pneg %p210
      // Predicated region
      $region9: #{tpu_custom_call.1} parent=5 // pred_check
        _
      $region10: #{tpu_custom_call.1} parent=5 // pred_check_branch
        %213 = sbr.rel (%p210) target = $region12
      $region11: #{tpu_custom_call.1} parent=5 // pred_region
        %s214 = ssub.s32 %s22, 1
        // Predicated region
        $region13: #{tpu_custom_call.1} parent=11 // pred_check
          %p215 = pneg %p69
        $region14: #{tpu_custom_call.1} parent=11 // pred_check_branch
          %217 = sbr.rel (%p215) target = $region16
        $region15: #{tpu_custom_call.1} parent=11 // pred_region
          %s219 = ssub.s32 24576, 24576
          %220 = vsyncadd [#allocation6], %s219
          %s221 = sshll.u32 [#allocation5], 4
          %s222 = int_to_ptr.vmem [resolvable:$true] %s221
          %227 = dma.hbm_to_vmem [thread:$0]  %s1, 24576, %s222, [#allocation6], 768, 768, 48
        $region16: #{tpu_custom_call.1} parent=11 // pred_fallthru
          _
        // Predicated region
        $region17: #{tpu_custom_call.1} parent=11 // pred_check
          %p228 = pneg %p90
        $region18: #{tpu_custom_call.1} parent=11 // pred_check_branch
          %230 = sbr.rel (%p228) target = $region20
        $region19: #{tpu_custom_call.1} parent=11 // pred_region
          %s232 = ssub.s32 8192, 8192
          %233 = vsyncadd [#allocation6], %s232
          %s234 = sshll.u32 [#allocation7], 4
          %s235 = int_to_ptr.vmem [resolvable:$true] %s234
          %240 = dma.hbm_to_vmem [thread:$0]  %s2, 8192, %s235, [#allocation6], 256, 256, 16
        $region20: #{tpu_custom_call.1} parent=11 // pred_fallthru
          _
        // Predicated region
        $region21: #{tpu_custom_call.1} parent=11 // pred_check
          %p241 = pneg %p111
        $region22: #{tpu_custom_call.1} parent=11 // pred_check_branch
          %243 = sbr.rel (%p241) target = $region24
        $region23: #{tpu_custom_call.1} parent=11 // pred_region
          %s245 = ssub.s32 32768, 32768
          %246 = vsyncadd [#allocation9], %s245
          %s247 = sshll.u32 [#allocation8], 4
          %s248 = int_to_ptr.vmem [resolvable:$true] %s247
          %253 = dma.hbm_to_vmem [thread:$0]  %s3, 32768, %s248, [#allocation9], 1024, 1024, 64
        $region24: #{tpu_custom_call.1} parent=11 // pred_fallthru
          _
        // Predicated region
        $region25: #{tpu_custom_call.1} parent=11 // pred_check
          %p254 = pneg %p132
        $region26: #{tpu_custom_call.1} parent=11 // pred_check_branch
          %256 = sbr.rel (%p254) target = $region28
        $region27: #{tpu_custom_call.1} parent=11 // pred_region
          %s258 = ssub.s32 32768, 32768
          %259 = vsyncadd [#allocation9], %s258
          %s260 = sshll.u32 [#allocation10], 4
          %s261 = int_to_ptr.vmem [resolvable:$true] %s260
          %266 = dma.hbm_to_vmem [thread:$0]  %s4, 32768, %s261, [#allocation9], 256, 256, 16
        $region28: #{tpu_custom_call.1} parent=11 // pred_fallthru
          _
        // Predicated region
        $region29: #{tpu_custom_call.1} parent=11 // pred_check
          %p267 = pneg %p153
        $region30: #{tpu_custom_call.1} parent=11 // pred_check_branch
          %269 = sbr.rel (%p267) target = $region32
        $region31: #{tpu_custom_call.1} parent=11 // pred_region
          _
        $region32: #{tpu_custom_call.1} parent=11 // pred_fallthru
          _
        // Predicated region
        $region33: #{tpu_custom_call.1} parent=11 // pred_check
          %p270 = pneg %p174
        $region34: #{tpu_custom_call.1} parent=11 // pred_check_branch
          %272 = sbr.rel (%p270) target = $region36
        $region35: #{tpu_custom_call.1} parent=11 // pred_region
          %s274 = ssub.s32 256, 256
          %275 = vsyncadd [#allocation12], %s274
          %s277 = sshll.u32 [#allocation11], 4
          %s278 = int_to_ptr.vmem [resolvable:$true] %s277
          %280 = dma.hbm_to_vmem [thread:$0]  %s6, 256, %s278, [#allocation12]
        $region36: #{tpu_custom_call.1} parent=11 // pred_fallthru
          _
      $region12: #{tpu_custom_call.1} parent=5 // pred_fallthru
        _
      %p281 = scmp.lt.s32.totalorder %s22, 2
      // Predicated region
      $region37: #{tpu_custom_call.1} parent=5 // pred_check
        %p282 = pneg %p281
      $region38: #{tpu_custom_call.1} parent=5 // pred_check_branch
        %284 = sbr.rel (%p282) target = $region40
      $region39: #{tpu_custom_call.1} parent=5 // pred_region
        // Predicated region
        $region41: #{tpu_custom_call.1} parent=39 // pred_check
          %p285 = pneg %p42
        $region42: #{tpu_custom_call.1} parent=39 // pred_check_branch
          %287 = sbr.rel (%p285) target = $region44
        $region43: #{tpu_custom_call.1} parent=39 // pred_region
          %s288 = sand.u32 %s32, 1
          %s289 = scalar_lea.sflag [#allocation3], %s288
          %s290 = sand.u32 %s32, 1
          %s291 = smul.addr %s290, 512
          %s292 = scalar_lea.vmem [#allocation2], %s291
          %s293 = smul.u32 8, %s22
          %s295 = ssub.s32 8192, 8192
          %296 = vsyncadd %s289, %s295
          %s297 = smul.addr %s293, 8
          %s298 = smul.addr %s297, 128
          %s299 = scalar_lea.hbm %s0, %s298
          %s300 = sshll.u32 %s292, 4
          %s301 = int_to_ptr.vmem [resolvable:$true] %s300
          %306 = dma.hbm_to_vmem [thread:$0]  %s299, 8192, %s301, %s289, 256, 256, 16
        $region44: #{tpu_custom_call.1} parent=39 // pred_fallthru
          _
      $region40: #{tpu_custom_call.1} parent=5 // pred_fallthru
        _
      %p307 = scmp.le.s32.totalorder 1, %s22
      %p308 = scmp.lt.s32.totalorder %s22, 3
      %p309 = pnand %p307, %p308
      %p310 = pneg %p309
      // Predicated region
      $region45: #{tpu_custom_call.1} parent=5 // pred_check
        _
      $region46: #{tpu_custom_call.1} parent=5 // pred_check_branch
        %312 = sbr.rel (%p309) target = $region48
      $region47: #{tpu_custom_call.1} parent=5 // pred_region
        %s313 = ssub.s32 %s22, 1
        %s314 = sand.u32 %s35, 1
        %s315 = scalar_lea.sflag [#allocation3], %s314
        %s316 = sand.u32 %s35, 1
        %s317 = smul.addr %s316, 512
        %s318 = scalar_lea.vmem [#allocation2], %s317
        // Predicated region
        $region49: #{tpu_custom_call.1} parent=47 // pred_check
          %p319 = pneg %p48
        $region50: #{tpu_custom_call.1} parent=47 // pred_check_branch
          %321 = sbr.rel (%p319) target = $region52
        $region51: #{tpu_custom_call.1} parent=47 // pred_region
          %322 = dma.done %s315, 8192
        $region52: #{tpu_custom_call.1} parent=47 // pred_fallthru
          _
        // Predicated region
        $region53: #{tpu_custom_call.1} parent=47 // pred_check
          %p323 = pneg %p69
        $region54: #{tpu_custom_call.1} parent=47 // pred_check_branch
          %325 = sbr.rel (%p323) target = $region56
        $region55: #{tpu_custom_call.1} parent=47 // pred_region
          %326 = dma.done [#allocation6], 24576
        $region56: #{tpu_custom_call.1} parent=47 // pred_fallthru
          _
        // Predicated region
        $region57: #{tpu_custom_call.1} parent=47 // pred_check
          %p327 = pneg %p90
        $region58: #{tpu_custom_call.1} parent=47 // pred_check_branch
          %329 = sbr.rel (%p327) target = $region60
        $region59: #{tpu_custom_call.1} parent=47 // pred_region
          %330 = dma.done [#allocation6], 8192
        $region60: #{tpu_custom_call.1} parent=47 // pred_fallthru
          _
        // Predicated region
        $region61: #{tpu_custom_call.1} parent=47 // pred_check
          %p331 = pneg %p111
        $region62: #{tpu_custom_call.1} parent=47 // pred_check_branch
          %333 = sbr.rel (%p331) target = $region64
        $region63: #{tpu_custom_call.1} parent=47 // pred_region
          %334 = dma.done [#allocation9], 32768
        $region64: #{tpu_custom_call.1} parent=47 // pred_fallthru
          _
        // Predicated region
        $region65: #{tpu_custom_call.1} parent=47 // pred_check
          %p335 = pneg %p132
        $region66: #{tpu_custom_call.1} parent=47 // pred_check_branch
          %337 = sbr.rel (%p335) target = $region68
        $region67: #{tpu_custom_call.1} parent=47 // pred_region
          %338 = dma.done [#allocation9], 32768
        $region68: #{tpu_custom_call.1} parent=47 // pred_fallthru
          _
        // Predicated region
        $region69: #{tpu_custom_call.1} parent=47 // pred_check
          %p339 = pneg %p174
        $region70: #{tpu_custom_call.1} parent=47 // pred_check_branch
          %341 = sbr.rel (%p339) target = $region72
        $region71: #{tpu_custom_call.1} parent=47 // pred_region
          %342 = dma.done [#allocation12], 256
        $region72: #{tpu_custom_call.1} parent=47 // pred_fallthru
          _
        %s343 = sand.u32 %s35, 1
        %s344 = scalar_lea.sflag [#allocation3], %s343
        %s345 = sand.u32 %s35, 1
        %s346 = smul.addr %s345, 512
        %s347 = scalar_lea.vmem [#allocation2], %s346
        %p348 = pneg %p48
        %p349 = pneg %p45
        %p350 = pneg %p69
        %p351 = pneg %p66
        %p352 = pneg %p90
        %p353 = pneg %p87
        %p354 = pneg %p111
        %p355 = pneg %p108
        %p356 = pneg %p132
        %p357 = pneg %p129
        %p358 = pneg %p153
        %p359 = pneg %p150
        %p360 = pneg %p174
        %p361 = pneg %p171
        %p362 = pneg %p200
        %p363 = pneg %p197
        %s364 = sand.u32 %s187, 1
        %s365 = scalar_lea.sflag [#allocation4], %s364
        %s366 = sand.u32 %s187, 1
        %s367 = smul.addr %s366, 512
        %s368 = scalar_lea.vmem [#allocation13], %s367
        %s369 = smul.u32 8, %s27
        %s370 = smul.u32 8, %s27
        %v371 = vld [vmem:[%s5] sm:$0xff]
        %v372 = vld [vmem:[%s5 + $0x8] sm:$0xff]
        %v373 = vld [vmem:[#allocation11] sm:$0xff]
        %v374 = vld [vmem:[#allocation11 + $0x8] sm:$0xff]
        %v375 = vld [vmem:[%s318] sm:$0xff]
        %v376 = vld [vmem:[%s318 + $0x8] sm:$0xff]
        %v377 = vld [vmem:[%s318 + $0x10] sm:$0xff]
        %v378 = vld [vmem:[%s318 + $0x18] sm:$0xff]
        %v379 = vld [vmem:[%s318 + $0x20] sm:$0xff]
        %v380 = vld [vmem:[%s318 + $0x28] sm:$0xff]
        %v381 = vld [vmem:[%s318 + $0x30] sm:$0xff]
        %v382 = vld [vmem:[%s318 + $0x38] sm:$0xff]
        %v383 = vld [vmem:[%s318 + $0x40] sm:$0xff]
        %v384 = vld [vmem:[%s318 + $0x48] sm:$0xff]
        %v385 = vld [vmem:[%s318 + $0x50] sm:$0xff]
        %v386 = vld [vmem:[%s318 + $0x58] sm:$0xff]
        %v387 = vld [vmem:[%s318 + $0x60] sm:$0xff]
        %v388 = vld [vmem:[%s318 + $0x68] sm:$0xff]
        %v389 = vld [vmem:[%s318 + $0x70] sm:$0xff]
        %v390 = vld [vmem:[%s318 + $0x78] sm:$0xff]
        %v391 = vld [vmem:[%s318 + $0x80] sm:$0xff]
        %v392 = vld [vmem:[%s318 + $0x88] sm:$0xff]
        %v393 = vld [vmem:[%s318 + $0x90] sm:$0xff]
        %v394 = vld [vmem:[%s318 + $0x98] sm:$0xff]
        %v395 = vld [vmem:[%s318 + $0xa0] sm:$0xff]
        %v396 = vld [vmem:[%s318 + $0xa8] sm:$0xff]
        %v397 = vld [vmem:[%s318 + $0xb0] sm:$0xff]
        %v398 = vld [vmem:[%s318 + $0xb8] sm:$0xff]
        %v399 = vld [vmem:[%s318 + $0xc0] sm:$0xff]
        %v400 = vld [vmem:[%s318 + $0xc8] sm:$0xff]
        %v401 = vld [vmem:[%s318 + $0xd0] sm:$0xff]
        %v402 = vld [vmem:[%s318 + $0xd8] sm:$0xff]
        %v403 = vld [vmem:[%s318 + $0xe0] sm:$0xff]
        %v404 = vld [vmem:[%s318 + $0xe8] sm:$0xff]
        %v405 = vld [vmem:[%s318 + $0xf0] sm:$0xff]
        %v406 = vld [vmem:[%s318 + $0xf8] sm:$0xff]
        %v407 = vld [vmem:[%s318 + $0x100] sm:$0xff]
        %v408 = vld [vmem:[%s318 + $0x108] sm:$0xff]
        %v409 = vld [vmem:[%s318 + $0x110] sm:$0xff]
        %v410 = vld [vmem:[%s318 + $0x118] sm:$0xff]
        %v411 = vld [vmem:[%s318 + $0x120] sm:$0xff]
        %v412 = vld [vmem:[%s318 + $0x128] sm:$0xff]
        %v413 = vld [vmem:[%s318 + $0x130] sm:$0xff]
        %v414 = vld [vmem:[%s318 + $0x138] sm:$0xff]
        %v415 = vld [vmem:[%s318 + $0x140] sm:$0xff]
        %v416 = vld [vmem:[%s318 + $0x148] sm:$0xff]
        %v417 = vld [vmem:[%s318 + $0x150] sm:$0xff]
        %v418 = vld [vmem:[%s318 + $0x158] sm:$0xff]
        %v419 = vld [vmem:[%s318 + $0x160] sm:$0xff]
        %v420 = vld [vmem:[%s318 + $0x168] sm:$0xff]
        %v421 = vld [vmem:[%s318 + $0x170] sm:$0xff]
        %v422 = vld [vmem:[%s318 + $0x178] sm:$0xff]
        %v423 = vld [vmem:[%s318 + $0x180] sm:$0xff]
        %v424 = vld [vmem:[%s318 + $0x188] sm:$0xff]
        %v425 = vld [vmem:[%s318 + $0x190] sm:$0xff]
        %v426 = vld [vmem:[%s318 + $0x198] sm:$0xff]
        %v427 = vld [vmem:[%s318 + $0x1a0] sm:$0xff]
        %v428 = vld [vmem:[%s318 + $0x1a8] sm:$0xff]
        %v429 = vld [vmem:[%s318 + $0x1b0] sm:$0xff]
        %v430 = vld [vmem:[%s318 + $0x1b8] sm:$0xff]
        %v431 = vld [vmem:[%s318 + $0x1c0] sm:$0xff]
        %v432 = vld [vmem:[%s318 + $0x1c8] sm:$0xff]
        %v433 = vld [vmem:[%s318 + $0x1d0] sm:$0xff]
        %v434 = vld [vmem:[%s318 + $0x1d8] sm:$0xff]
        %v435 = vld [vmem:[%s318 + $0x1e0] sm:$0xff]
        %v436 = vld [vmem:[%s318 + $0x1e8] sm:$0xff]
        %v437 = vld [vmem:[%s318 + $0x1f0] sm:$0xff]
        %v438 = vld [vmem:[%s318 + $0x1f8] sm:$0xff]
        %v439 = vld [vmem:[#allocation5] sm:$0xff]
        %v440 = vld [vmem:[#allocation5 + $0x8] sm:$0xff]
        %v441 = vld [vmem:[#allocation5 + $0x10] sm:$0xff]
        %v442 = vld [vmem:[#allocation5 + $0x18] sm:$0xff]
        %v443 = vld [vmem:[#allocation5 + $0x20] sm:$0xff]
        %v444 = vld [vmem:[#allocation5 + $0x28] sm:$0xff]
        %v445 = vld [vmem:[#allocation5 + $0x30] sm:$0xff]
        %v446 = vld [vmem:[#allocation5 + $0x38] sm:$0xff]
        %v447 = vld [vmem:[#allocation5 + $0x40] sm:$0xff]
        %v448 = vld [vmem:[#allocation5 + $0x48] sm:$0xff]
        %v449 = vld [vmem:[#allocation5 + $0x50] sm:$0xff]
        %v450 = vld [vmem:[#allocation5 + $0x58] sm:$0xff]
        %v451 = vld [vmem:[#allocation5 + $0x60] sm:$0xff]
        %v452 = vld [vmem:[#allocation5 + $0x68] sm:$0xff]
        %v453 = vld [vmem:[#allocation5 + $0x70] sm:$0xff]
        %v454 = vld [vmem:[#allocation5 + $0x78] sm:$0xff]
        %v455 = vld [vmem:[#allocation5 + $0x80] sm:$0xff]
        %v456 = vld [vmem:[#allocation5 + $0x88] sm:$0xff]
        %v457 = vld [vmem:[#allocation5 + $0x90] sm:$0xff]
        %v458 = vld [vmem:[#allocation5 + $0x98] sm:$0xff]
        %v459 = vld [vmem:[#allocation5 + $0xa0] sm:$0xff]
        %v460 = vld [vmem:[#allocation5 + $0xa8] sm:$0xff]
        %v461 = vld [vmem:[#allocation5 + $0xb0] sm:$0xff]
        %v462 = vld [vmem:[#allocation5 + $0xb8] sm:$0xff]
        %v463 = vld [vmem:[#allocation5 + $0xc0] sm:$0xff]
        %v464 = vld [vmem:[#allocation5 + $0xc8] sm:$0xff]
        %v465 = vld [vmem:[#allocation5 + $0xd0] sm:$0xff]
        %v466 = vld [vmem:[#allocation5 + $0xd8] sm:$0xff]
        %v467 = vld [vmem:[#allocation5 + $0xe0] sm:$0xff]
        %v468 = vld [vmem:[#allocation5 + $0xe8] sm:$0xff]
        %v469 = vld [vmem:[#allocation5 + $0xf0] sm:$0xff]
        %v470 = vld [vmem:[#allocation5 + $0xf8] sm:$0xff]
        %v471 = vld [vmem:[#allocation5 + $0x100] sm:$0xff]
        %v472 = vld [vmem:[#allocation5 + $0x108] sm:$0xff]
        %v473 = vld [vmem:[#allocation5 + $0x110] sm:$0xff]
        %v474 = vld [vmem:[#allocation5 + $0x118] sm:$0xff]
        %v475 = vld [vmem:[#allocation5 + $0x120] sm:$0xff]
        %v476 = vld [vmem:[#allocation5 + $0x128] sm:$0xff]
        %v477 = vld [vmem:[#allocation5 + $0x130] sm:$0xff]
        %v478 = vld [vmem:[#allocation5 + $0x138] sm:$0xff]
        %v479 = vld [vmem:[#allocation5 + $0x140] sm:$0xff]
        %v480 = vld [vmem:[#allocation5 + $0x148] sm:$0xff]
        %v481 = vld [vmem:[#allocation5 + $0x150] sm:$0xff]
        %v482 = vld [vmem:[#allocation5 + $0x158] sm:$0xff]
        %v483 = vld [vmem:[#allocation5 + $0x160] sm:$0xff]
        %v484 = vld [vmem:[#allocation5 + $0x168] sm:$0xff]
        %v485 = vld [vmem:[#allocation5 + $0x170] sm:$0xff]
        %v486 = vld [vmem:[#allocation5 + $0x178] sm:$0xff]
        %v487 = vld [vmem:[#allocation5 + $0x180] sm:$0xff]
        %v488 = vld [vmem:[#allocation5 + $0x188] sm:$0xff]
        %v489 = vld [vmem:[#allocation5 + $0x190] sm:$0xff]
        %v490 = vld [vmem:[#allocation5 + $0x198] sm:$0xff]
        %v491 = vld [vmem:[#allocation5 + $0x1a0] sm:$0xff]
        %v492 = vld [vmem:[#allocation5 + $0x1a8] sm:$0xff]
        %v493 = vld [vmem:[#allocation5 + $0x1b0] sm:$0xff]
        %v494 = vld [vmem:[#allocation5 + $0x1b8] sm:$0xff]
        %v495 = vld [vmem:[#allocation5 + $0x1c0] sm:$0xff]
        %v496 = vld [vmem:[#allocation5 + $0x1c8] sm:$0xff]
        %v497 = vld [vmem:[#allocation5 + $0x1d0] sm:$0xff]
        %v498 = vld [vmem:[#allocation5 + $0x1d8] sm:$0xff]
        %v499 = vld [vmem:[#allocation5 + $0x1e0] sm:$0xff]
        %v500 = vld [vmem:[#allocation5 + $0x1e8] sm:$0xff]
        %v501 = vld [vmem:[#allocation5 + $0x1f0] sm:$0xff]
        %v502 = vld [vmem:[#allocation5 + $0x1f8] sm:$0xff]
        %v503 = vld [vmem:[#allocation5 + $0x200] sm:$0xff]
        %v504 = vld [vmem:[#allocation5 + $0x208] sm:$0xff]
        %v505 = vld [vmem:[#allocation5 + $0x210] sm:$0xff]
        %v506 = vld [vmem:[#allocation5 + $0x218] sm:$0xff]
        %v507 = vld [vmem:[#allocation5 + $0x220] sm:$0xff]
        %v508 = vld [vmem:[#allocation5 + $0x228] sm:$0xff]
        %v509 = vld [vmem:[#allocation5 + $0x230] sm:$0xff]
        %v510 = vld [vmem:[#allocation5 + $0x238] sm:$0xff]
        %v511 = vld [vmem:[#allocation5 + $0x240] sm:$0xff]
        %v512 = vld [vmem:[#allocation5 + $0x248] sm:$0xff]
        %v513 = vld [vmem:[#allocation5 + $0x250] sm:$0xff]
        %v514 = vld [vmem:[#allocation5 + $0x258] sm:$0xff]
        %v515 = vld [vmem:[#allocation5 + $0x260] sm:$0xff]
        %v516 = vld [vmem:[#allocation5 + $0x268] sm:$0xff]
        %v517 = vld [vmem:[#allocation5 + $0x270] sm:$0xff]
        %v518 = vld [vmem:[#allocation5 + $0x278] sm:$0xff]
        %v519 = vld [vmem:[#allocation5 + $0x280] sm:$0xff]
        %v520 = vld [vmem:[#allocation5 + $0x288] sm:$0xff]
        %v521 = vld [vmem:[#allocation5 + $0x290] sm:$0xff]
        %v522 = vld [vmem:[#allocation5 + $0x298] sm:$0xff]
        %v523 = vld [vmem:[#allocation5 + $0x2a0] sm:$0xff]
        %v524 = vld [vmem:[#allocation5 + $0x2a8] sm:$0xff]
        %v525 = vld [vmem:[#allocation5 + $0x2b0] sm:$0xff]
        %v526 = vld [vmem:[#allocation5 + $0x2b8] sm:$0xff]
        %v527 = vld [vmem:[#allocation5 + $0x2c0] sm:$0xff]
        %v528 = vld [vmem:[#allocation5 + $0x2c8] sm:$0xff]
        %v529 = vld [vmem:[#allocation5 + $0x2d0] sm:$0xff]
        %v530 = vld [vmem:[#allocation5 + $0x2d8] sm:$0xff]
        %v531 = vld [vmem:[#allocation5 + $0x2e0] sm:$0xff]
        %v532 = vld [vmem:[#allocation5 + $0x2e8] sm:$0xff]
        %v533 = vld [vmem:[#allocation5 + $0x2f0] sm:$0xff]
        %v534 = vld [vmem:[#allocation5 + $0x2f8] sm:$0xff]
        %v535 = vld [vmem:[#allocation5 + $0x300] sm:$0xff]
        %v536 = vld [vmem:[#allocation5 + $0x308] sm:$0xff]
        %v537 = vld [vmem:[#allocation5 + $0x310] sm:$0xff]
        %v538 = vld [vmem:[#allocation5 + $0x318] sm:$0xff]
        %v539 = vld [vmem:[#allocation5 + $0x320] sm:$0xff]
        %v540 = vld [vmem:[#allocation5 + $0x328] sm:$0xff]
        %v541 = vld [vmem:[#allocation5 + $0x330] sm:$0xff]
        %v542 = vld [vmem:[#allocation5 + $0x338] sm:$0xff]
        %v543 = vld [vmem:[#allocation5 + $0x340] sm:$0xff]
        %v544 = vld [vmem:[#allocation5 + $0x348] sm:$0xff]
        %v545 = vld [vmem:[#allocation5 + $0x350] sm:$0xff]
        %v546 = vld [vmem:[#allocation5 + $0x358] sm:$0xff]
        %v547 = vld [vmem:[#allocation5 + $0x360] sm:$0xff]
        %v548 = vld [vmem:[#allocation5 + $0x368] sm:$0xff]
        %v549 = vld [vmem:[#allocation5 + $0x370] sm:$0xff]
        %v550 = vld [vmem:[#allocation5 + $0x378] sm:$0xff]
        %v551 = vld [vmem:[#allocation5 + $0x380] sm:$0xff]
        %v552 = vld [vmem:[#allocation5 + $0x388] sm:$0xff]
        %v553 = vld [vmem:[#allocation5 + $0x390] sm:$0xff]
        %v554 = vld [vmem:[#allocation5 + $0x398] sm:$0xff]
        %v555 = vld [vmem:[#allocation5 + $0x3a0] sm:$0xff]
        %v556 = vld [vmem:[#allocation5 + $0x3a8] sm:$0xff]
        %v557 = vld [vmem:[#allocation5 + $0x3b0] sm:$0xff]
        %v558 = vld [vmem:[#allocation5 + $0x3b8] sm:$0xff]
        %v559 = vld [vmem:[#allocation5 + $0x3c0] sm:$0xff]
        %v560 = vld [vmem:[#allocation5 + $0x3c8] sm:$0xff]
        %v561 = vld [vmem:[#allocation5 + $0x3d0] sm:$0xff]
        %v562 = vld [vmem:[#allocation5 + $0x3d8] sm:$0xff]
        %v563 = vld [vmem:[#allocation5 + $0x3e0] sm:$0xff]
        %v564 = vld [vmem:[#allocation5 + $0x3e8] sm:$0xff]
        %v565 = vld [vmem:[#allocation5 + $0x3f0] sm:$0xff]
        %v566 = vld [vmem:[#allocation5 + $0x3f8] sm:$0xff]
        %v567 = vld [vmem:[#allocation5 + $0x400] sm:$0xff]
        %v568 = vld [vmem:[#allocation5 + $0x408] sm:$0xff]
        %v569 = vld [vmem:[#allocation5 + $0x410] sm:$0xff]
        %v570 = vld [vmem:[#allocation5 + $0x418] sm:$0xff]
        %v571 = vld [vmem:[#allocation5 + $0x420] sm:$0xff]
        %v572 = vld [vmem:[#allocation5 + $0x428] sm:$0xff]
        %v573 = vld [vmem:[#allocation5 + $0x430] sm:$0xff]
        %v574 = vld [vmem:[#allocation5 + $0x438] sm:$0xff]
        %v575 = vld [vmem:[#allocation5 + $0x440] sm:$0xff]
        %v576 = vld [vmem:[#allocation5 + $0x448] sm:$0xff]
        %v577 = vld [vmem:[#allocation5 + $0x450] sm:$0xff]
        %v578 = vld [vmem:[#allocation5 + $0x458] sm:$0xff]
        %v579 = vld [vmem:[#allocation5 + $0x460] sm:$0xff]
        %v580 = vld [vmem:[#allocation5 + $0x468] sm:$0xff]
        %v581 = vld [vmem:[#allocation5 + $0x470] sm:$0xff]
        %v582 = vld [vmem:[#allocation5 + $0x478] sm:$0xff]
        %v583 = vld [vmem:[#allocation5 + $0x480] sm:$0xff]
        %v584 = vld [vmem:[#allocation5 + $0x488] sm:$0xff]
        %v585 = vld [vmem:[#allocation5 + $0x490] sm:$0xff]
        %v586 = vld [vmem:[#allocation5 + $0x498] sm:$0xff]
        %v587 = vld [vmem:[#allocation5 + $0x4a0] sm:$0xff]
        %v588 = vld [vmem:[#allocation5 + $0x4a8] sm:$0xff]
        %v589 = vld [vmem:[#allocation5 + $0x4b0] sm:$0xff]
        %v590 = vld [vmem:[#allocation5 + $0x4b8] sm:$0xff]
        %v591 = vld [vmem:[#allocation5 + $0x4c0] sm:$0xff]
        %v592 = vld [vmem:[#allocation5 + $0x4c8] sm:$0xff]
        %v593 = vld [vmem:[#allocation5 + $0x4d0] sm:$0xff]
        %v594 = vld [vmem:[#allocation5 + $0x4d8] sm:$0xff]
        %v595 = vld [vmem:[#allocation5 + $0x4e0] sm:$0xff]
        %v596 = vld [vmem:[#allocation5 + $0x4e8] sm:$0xff]
        %v597 = vld [vmem:[#allocation5 + $0x4f0] sm:$0xff]
        %v598 = vld [vmem:[#allocation5 + $0x4f8] sm:$0xff]
        %v599 = vld [vmem:[#allocation5 + $0x500] sm:$0xff]
        %v600 = vld [vmem:[#allocation5 + $0x508] sm:$0xff]
        %v601 = vld [vmem:[#allocation5 + $0x510] sm:$0xff]
        %v602 = vld [vmem:[#allocation5 + $0x518] sm:$0xff]
        %v603 = vld [vmem:[#allocation5 + $0x520] sm:$0xff]
        %v604 = vld [vmem:[#allocation5 + $0x528] sm:$0xff]
        %v605 = vld [vmem:[#allocation5 + $0x530] sm:$0xff]
        %v606 = vld [vmem:[#allocation5 + $0x538] sm:$0xff]
        %v607 = vld [vmem:[#allocation5 + $0x540] sm:$0xff]
        %v608 = vld [vmem:[#allocation5 + $0x548] sm:$0xff]
        %v609 = vld [vmem:[#allocation5 + $0x550] sm:$0xff]
        %v610 = vld [vmem:[#allocation5 + $0x558] sm:$0xff]
        %v611 = vld [vmem:[#allocation5 + $0x560] sm:$0xff]
        %v612 = vld [vmem:[#allocation5 + $0x568] sm:$0xff]
        %v613 = vld [vmem:[#allocation5 + $0x570] sm:$0xff]
        %v614 = vld [vmem:[#allocation5 + $0x578] sm:$0xff]
        %v615 = vld [vmem:[#allocation5 + $0x580] sm:$0xff]
        %v616 = vld [vmem:[#allocation5 + $0x588] sm:$0xff]
        %v617 = vld [vmem:[#allocation5 + $0x590] sm:$0xff]
        %v618 = vld [vmem:[#allocation5 + $0x598] sm:$0xff]
        %v619 = vld [vmem:[#allocation5 + $0x5a0] sm:$0xff]
        %v620 = vld [vmem:[#allocation5 + $0x5a8] sm:$0xff]
        %v621 = vld [vmem:[#allocation5 + $0x5b0] sm:$0xff]
        %v622 = vld [vmem:[#allocation5 + $0x5b8] sm:$0xff]
        %v623 = vld [vmem:[#allocation5 + $0x5c0] sm:$0xff]
        %v624 = vld [vmem:[#allocation5 + $0x5c8] sm:$0xff]
        %v625 = vld [vmem:[#allocation5 + $0x5d0] sm:$0xff]
        %v626 = vld [vmem:[#allocation5 + $0x5d8] sm:$0xff]
        %v627 = vld [vmem:[#allocation5 + $0x5e0] sm:$0xff]
        %v628 = vld [vmem:[#allocation5 + $0x5e8] sm:$0xff]
        %v629 = vld [vmem:[#allocation5 + $0x5f0] sm:$0xff]
        %v630 = vld [vmem:[#allocation5 + $0x5f8] sm:$0xff]
        %v633 = vlaneseq
        %v634 = vshrl.u32 %v633, 7
        %v635 = vsub.s32 0, %v634
        %v636 = vrot.slane %v373, %v635
        %v637 = vlaneseq
        %v638 = vshrl.u32 %v637, 7
        %v639 = vsub.s32 2, %v638
        %v640 = vrot.slane %v373, %v639
        %v641 = vlaneseq
        %v642 = vshrl.u32 %v641, 7
        %v643 = vsub.s32 4, %v642
        %v644 = vrot.slane %v373, %v643
        %v645 = vlaneseq
        %v646 = vshrl.u32 %v645, 7
        %v647 = vsub.s32 6, %v646
        %v648 = vrot.slane %v373, %v647
        %v649 = vlaneseq
        %v650 = vshrl.u32 %v649, 7
        %v651 = vsub.s32 0, %v650
        %v652 = vrot.slane %v374, %v651
        %v653 = vlaneseq
        %v654 = vshrl.u32 %v653, 7
        %v655 = vsub.s32 2, %v654
        %v656 = vrot.slane %v374, %v655
        %v663 = vlaneseq
        %v664 = vshrl.u32 %v663, 7
        %v665 = vsub.s32 0, %v664
        %v666 = vrot.slane %v636, %v665
        %v667 = vlaneseq
        %v668 = vshrl.u32 %v667, 7
        %v669 = vsub.s32 0, %v668
        %v670 = vrot.slane %v640, %v669
        %v671 = vlaneseq
        %v672 = vshrl.u32 %v671, 7
        %v673 = vsub.s32 0, %v672
        %v674 = vrot.slane %v644, %v673
        %v675 = vlaneseq
        %v676 = vshrl.u32 %v675, 7
        %v677 = vsub.s32 0, %v676
        %v678 = vrot.slane %v648, %v677
        %v679 = vlaneseq
        %v680 = vshrl.u32 %v679, 7
        %v681 = vsub.s32 0, %v680
        %v682 = vrot.slane %v652, %v681
        %v683 = vlaneseq
        %v684 = vshrl.u32 %v683, 7
        %v685 = vsub.s32 0, %v684
        %v686 = vrot.slane %v656, %v685
        %687 = vmatprep.subr.mxu0 %v440
        %688 = vmatpush1.msra.mxu0 %v439
        %689 = vmatprep.subr.mxu0 %v446
        %690 = vmatpush1.msra.mxu0 %v445
        %691 = vmatprep.subr.mxu0 %v452
        %692 = vmatpush1.msra.mxu0 %v451
        %693 = vmatprep.subr.mxu0 %v458
        %694 = vmatpush1.msra.mxu0 %v457
        %695 = vmatprep.subr.mxu0 %v464
        %696 = vmatpush1.msra.mxu0 %v463
        %697 = vmatprep.subr.mxu0 %v470
        %698 = vmatpush1.msra.mxu0 %v469
        %699 = vmatprep.subr.mxu0 %v476
        %700 = vmatpush1.msra.mxu0 %v475
        %701 = vmatprep.subr.mxu0 %v482
        %702 = vmatpush1.msra.mxu0 %v481
        %703 = vmatprep.subr.mxu0 %v488
        %704 = vmatpush1.msra.mxu0 %v487
        %705 = vmatprep.subr.mxu0 %v494
        %706 = vmatpush1.msra.mxu0 %v493
        %707 = vmatprep.subr.mxu0 %v500
        %708 = vmatpush1.msra.mxu0 %v499
        %709 = vmatprep.subr.mxu0 %v506
        %710 = vmatpush1.msra.mxu0 %v505
        %711 = vmatprep.subr.mxu0 %v512
        %712 = vmatpush1.msra.mxu0 %v511
        %713 = vmatprep.subr.mxu0 %v518
        %714 = vmatpush1.msra.mxu0 %v517
        %715 = vmatprep.subr.mxu0 %v524
        %716 = vmatpush1.msra.mxu0 %v523
        %717 = vmatprep.subr.mxu0 %v530
        %718 = vmatpush1.msra.mxu0 %v529
        %719 = vmatprep.subr.mxu0 %v536
        %720 = vmatpush1.msra.mxu0 %v535
        %721 = vmatprep.subr.mxu0 %v542
        %722 = vmatpush1.msra.mxu0 %v541
        %723 = vmatprep.subr.mxu0 %v548
        %724 = vmatpush1.msra.mxu0 %v547
        %725 = vmatprep.subr.mxu0 %v554
        %726 = vmatpush1.msra.mxu0 %v553
        %727 = vmatprep.subr.mxu0 %v560
        %728 = vmatpush1.msra.mxu0 %v559
        %729 = vmatprep.subr.mxu0 %v566
        %730 = vmatpush1.msra.mxu0 %v565
        %731 = vmatprep.subr.mxu0 %v572
        %732 = vmatpush1.msra.mxu0 %v571
        %733 = vmatprep.subr.mxu0 %v578
        %734 = vmatpush1.msra.mxu0 %v577
        %735 = vmatprep.subr.mxu0 %v584
        %736 = vmatpush1.msra.mxu0 %v583
        %737 = vmatprep.subr.mxu0 %v590
        %738 = vmatpush1.msra.mxu0 %v589
        %739 = vmatprep.subr.mxu0 %v596
        %740 = vmatpush1.msra.mxu0 %v595
        %741 = vmatprep.subr.mxu0 %v602
        %742 = vmatpush1.msra.mxu0 %v601
        %743 = vmatprep.subr.mxu0 %v608
        %744 = vmatpush1.msra.mxu0 %v607
        %745 = vmatprep.subr.mxu0 %v614
        %746 = vmatpush1.msra.mxu0 %v613
        %747 = vmatprep.subr.mxu0 %v620
        %748 = vmatpush1.msra.mxu0 %v619
        %749 = vmatprep.subr.mxu0 %v626
        %750 = vmatpush1.msra.mxu0 %v625
        %751 = vmatprep.mubr.f32.mxu0 %v376
        %752 = vmatmul.mubr.f32.gmra.mrb[0].mxu0 %v375
        %v753 = vpop.f32.mrb[0].mxu0
        %v754 = vadd.f32 %v666, %v753
        %v755 = vpop.f32.mrb[0].mxu0
        %v756 = vadd.f32 %v670, %v755
        %757 = vmatprep.mubr.f32.mxu0 %v378
        %758 = vmatmul.mubr.f32.gmra.mrb[0].mxu0 %v377
        %v759 = vpop.f32.mrb[0].mxu0
        %v760 = vadd.f32 %v666, %v759
        %v761 = vpop.f32.mrb[0].mxu0
        %v762 = vadd.f32 %v670, %v761
        %763 = vmatprep.mubr.f32.mxu0 %v380
        %764 = vmatmul.mubr.f32.gmra.mrb[0].mxu0 %v379
        %v765 = vpop.f32.mrb[0].mxu0
        %v766 = vadd.f32 %v666, %v765
        %v767 = vpop.f32.mrb[0].mxu0
        %v768 = vadd.f32 %v670, %v767
        %769 = vmatprep.mubr.f32.mxu0 %v382
        %770 = vmatmul.mubr.f32.gmra.mrb[0].mxu0 %v381
        %v771 = vpop.f32.mrb[0].mxu0
        %v772 = vadd.f32 %v666, %v771
        %v773 = vpop.f32.mrb[0].mxu0
        %v774 = vadd.f32 %v670, %v773
        %775 = vmatprep.mubr.f32.mxu0 %v384
        %776 = vmatmul.mubr.f32.gmra.mrb[0].mxu0 %v383
        %v777 = vpop.f32.mrb[0].mxu0
        %v778 = vadd.f32 %v666, %v777
        %v779 = vpop.f32.mrb[0].mxu0
        %v780 = vadd.f32 %v670, %v779
        %781 = vmatprep.mubr.f32.mxu0 %v386
        %782 = vmatmul.mubr.f32.gmra.mrb[0].mxu0 %v385
        %v783 = vpop.f32.mrb[0].mxu0
        %v784 = vadd.f32 %v666, %v783
        %v785 = vpop.f32.mrb[0].mxu0
        %v786 = vadd.f32 %v670, %v785
        %787 = vmatprep.mubr.f32.mxu0 %v388
        %788 = vmatmul.mubr.f32.gmra.mrb[0].mxu0 %v387
        %v789 = vpop.f32.mrb[0].mxu0
        %v790 = vadd.f32 %v666, %v789
        %v791 = vpop.f32.mrb[0].mxu0
        %v792 = vadd.f32 %v670, %v791
        %793 = vmatprep.mubr.f32.mxu0 %v390
        %794 = vmatmul.mubr.f32.gmra.mrb[0].mxu0 %v389
        %v795 = vpop.f32.mrb[0].mxu0
        %v796 = vadd.f32 %v666, %v795
        %v797 = vpop.f32.mrb[0].mxu0
        %v798 = vadd.f32 %v670, %v797
        %799 = vmatprep.mubr.f32.mxu0 %v392
        %800 = vmatmul.mubr.f32.gmra.mrb[0].mxu0 %v391
        %v801 = vpop.f32.mrb[0].mxu0
        %v802 = vadd.f32 %v666, %v801
        %v803 = vpop.f32.mrb[0].mxu0
        %v804 = vadd.f32 %v670, %v803
        %805 = vmatprep.mubr.f32.mxu0 %v394
        %806 = vmatmul.mubr.f32.gmra.mrb[0].mxu0 %v393
        %v807 = vpop.f32.mrb[0].mxu0
        %v808 = vadd.f32 %v666, %v807
        %v809 = vpop.f32.mrb[0].mxu0
        %v810 = vadd.f32 %v670, %v809
        %811 = vmatprep.mubr.f32.mxu0 %v396
        %812 = vmatmul.mubr.f32.gmra.mrb[0].mxu0 %v395
        %v813 = vpop.f32.mrb[0].mxu0
        %v814 = vadd.f32 %v666, %v813
        %v815 = vpop.f32.mrb[0].mxu0
        %v816 = vadd.f32 %v670, %v815
        %817 = vmatprep.mubr.f32.mxu0 %v398
        %818 = vmatmul.mubr.f32.gmra.mrb[0].mxu0 %v397
        %v819 = vpop.f32.mrb[0].mxu0
        %v820 = vadd.f32 %v666, %v819
        %v821 = vpop.f32.mrb[0].mxu0
        %v822 = vadd.f32 %v670, %v821
        %823 = vmatprep.mubr.f32.mxu0 %v400
        %824 = vmatmul.mubr.f32.gmra.mrb[0].mxu0 %v399
        %v825 = vpop.f32.mrb[0].mxu0
        %v826 = vadd.f32 %v666, %v825
        %v827 = vpop.f32.mrb[0].mxu0
        %v828 = vadd.f32 %v670, %v827
        %829 = vmatprep.mubr.f32.mxu0 %v402
        %830 = vmatmul.mubr.f32.gmra.mrb[0].mxu0 %v401
        %v831 = vpop.f32.mrb[0].mxu0
        %v832 = vadd.f32 %v666, %v831
        %v833 = vpop.f32.mrb[0].mxu0
        %v834 = vadd.f32 %v670, %v833
        %835 = vmatprep.mubr.f32.mxu0 %v404
        %836 = vmatmul.mubr.f32.gmra.mrb[0].mxu0 %v403
        %v837 = vpop.f32.mrb[0].mxu0
        %v838 = vadd.f32 %v666, %v837
        %v839 = vpop.f32.mrb[0].mxu0
        %v840 = vadd.f32 %v670, %v839
        %841 = vmatprep.mubr.f32.mxu0 %v406
        %842 = vmatmul.mubr.f32.gmra.mrb[0].mxu0 %v405
        %v843 = vpop.f32.mrb[0].mxu0
        %v844 = vadd.f32 %v666, %v843
        %v845 = vpop.f32.mrb[0].mxu0
        %v846 = vadd.f32 %v670, %v845
        %847 = vmatprep.mubr.f32.mxu0 %v408
        %848 = vmatmul.mubr.f32.gmra.mrb[0].mxu0 %v407
        %v849 = vpop.f32.mrb[0].mxu0
        %v850 = vadd.f32 %v666, %v849
        %v851 = vpop.f32.mrb[0].mxu0
        %v852 = vadd.f32 %v670, %v851
        %853 = vmatprep.mubr.f32.mxu0 %v410
        %854 = vmatmul.mubr.f32.gmra.mrb[0].mxu0 %v409
        %v855 = vpop.f32.mrb[0].mxu0
        %v856 = vadd.f32 %v666, %v855
        %v857 = vpop.f32.mrb[0].mxu0
        %v858 = vadd.f32 %v670, %v857
        %859 = vmatprep.mubr.f32.mxu0 %v412
        %860 = vmatmul.mubr.f32.gmra.mrb[0].mxu0 %v411
        %v861 = vpop.f32.mrb[0].mxu0
        %v862 = vadd.f32 %v666, %v861
        %v863 = vpop.f32.mrb[0].mxu0
        %v864 = vadd.f32 %v670, %v863
        %865 = vmatprep.mubr.f32.mxu0 %v414
        %866 = vmatmul.mubr.f32.gmra.mrb[0].mxu0 %v413
        %v867 = vpop.f32.mrb[0].mxu0
        %v868 = vadd.f32 %v666, %v867
        %v869 = vpop.f32.mrb[0].mxu0
        %v870 = vadd.f32 %v670, %v869
        %871 = vmatprep.mubr.f32.mxu0 %v416
        %872 = vmatmul.mubr.f32.gmra.mrb[0].mxu0 %v415
        %v873 = vpop.f32.mrb[0].mxu0
        %v874 = vadd.f32 %v666, %v873
        %v875 = vpop.f32.mrb[0].mxu0
        %v876 = vadd.f32 %v670, %v875
        %877 = vmatprep.mubr.f32.mxu0 %v418
        %878 = vmatmul.mubr.f32.gmra.mrb[0].mxu0 %v417
        %v879 = vpop.f32.mrb[0].mxu0
        %v880 = vadd.f32 %v666, %v879
        %v881 = vpop.f32.mrb[0].mxu0
        %v882 = vadd.f32 %v670, %v881
        %883 = vmatprep.mubr.f32.mxu0 %v420
        %884 = vmatmul.mubr.f32.gmra.mrb[0].mxu0 %v419
        %v885 = vpop.f32.mrb[0].mxu0
        %v886 = vadd.f32 %v666, %v885
        %v887 = vpop.f32.mrb[0].mxu0
        %v888 = vadd.f32 %v670, %v887
        %889 = vmatprep.mubr.f32.mxu0 %v422
        %890 = vmatmul.mubr.f32.gmra.mrb[0].mxu0 %v421
        %v891 = vpop.f32.mrb[0].mxu0
        %v892 = vadd.f32 %v666, %v891
        %v893 = vpop.f32.mrb[0].mxu0
        %v894 = vadd.f32 %v670, %v893
        %895 = vmatprep.mubr.f32.mxu0 %v424
        %896 = vmatmul.mubr.f32.gmra.mrb[0].mxu0 %v423
        %v897 = vpop.f32.mrb[0].mxu0
        %v898 = vadd.f32 %v666, %v897
        %v899 = vpop.f32.mrb[0].mxu0
        %v900 = vadd.f32 %v670, %v899
        %901 = vmatprep.mubr.f32.mxu0 %v426
        %902 = vmatmul.mubr.f32.gmra.mrb[0].mxu0 %v425
        %v903 = vpop.f32.mrb[0].mxu0
        %v904 = vadd.f32 %v666, %v903
        %v905 = vpop.f32.mrb[0].mxu0
        %v906 = vadd.f32 %v670, %v905
        %907 = vmatprep.mubr.f32.mxu0 %v428
        %908 = vmatmul.mubr.f32.gmra.mrb[0].mxu0 %v427
        %v909 = vpop.f32.mrb[0].mxu0
        %v910 = vadd.f32 %v666, %v909
        %v911 = vpop.f32.mrb[0].mxu0
        %v912 = vadd.f32 %v670, %v911
        %913 = vmatprep.mubr.f32.mxu0 %v430
        %914 = vmatmul.mubr.f32.gmra.mrb[0].mxu0 %v429
        %v915 = vpop.f32.mrb[0].mxu0
        %v916 = vadd.f32 %v666, %v915
        %v917 = vpop.f32.mrb[0].mxu0
        %v918 = vadd.f32 %v670, %v917
        %919 = vmatprep.mubr.f32.mxu0 %v432
        %920 = vmatmul.mubr.f32.gmra.mrb[0].mxu0 %v431
        %v921 = vpop.f32.mrb[0].mxu0
        %v922 = vadd.f32 %v666, %v921
        %v923 = vpop.f32.mrb[0].mxu0
        %v924 = vadd.f32 %v670, %v923
        %925 = vmatprep.mubr.f32.mxu0 %v434
        %926 = vmatmul.mubr.f32.gmra.mrb[0].mxu0 %v433
        %v927 = vpop.f32.mrb[0].mxu0
        %v928 = vadd.f32 %v666, %v927
        %v929 = vpop.f32.mrb[0].mxu0
        %v930 = vadd.f32 %v670, %v929
        %931 = vmatprep.mubr.f32.mxu0 %v436
        %932 = vmatmul.mubr.f32.gmra.mrb[0].mxu0 %v435
        %v933 = vpop.f32.mrb[0].mxu0
        %v934 = vadd.f32 %v666, %v933
        %v935 = vpop.f32.mrb[0].mxu0
        %v936 = vadd.f32 %v670, %v935
        %937 = vmatprep.mubr.f32.mxu0 %v438
        %938 = vmatmul.mubr.f32.gmra.mrb[0].mxu0 %v437
        %v939 = vpop.f32.mrb[0].mxu0
        %v940 = vadd.f32 %v666, %v939
        %v941 = vpop.f32.mrb[0].mxu0
        %v942 = vadd.f32 %v670, %v941
        %943 = vdwg.mxu0
        %944 = vmatprep.subr.mxu0 %v442
        %945 = vmatpush1.msra.mxu0 %v441
        %946 = vmatprep.subr.mxu0 %v448
        %947 = vmatpush1.msra.mxu0 %v447
        %948 = vmatprep.subr.mxu0 %v454
        %949 = vmatpush1.msra.mxu0 %v453
        %950 = vmatprep.subr.mxu0 %v460
        %951 = vmatpush1.msra.mxu0 %v459
        %952 = vmatprep.subr.mxu0 %v466
        %953 = vmatpush1.msra.mxu0 %v465
        %954 = vmatprep.subr.mxu0 %v472
        %955 = vmatpush1.msra.mxu0 %v471
        %956 = vmatprep.subr.mxu0 %v478
        %957 = vmatpush1.msra.mxu0 %v477
        %958 = vmatprep.subr.mxu0 %v484
        %959 = vmatpush1.msra.mxu0 %v483
        %960 = vmatprep.subr.mxu0 %v490
        %961 = vmatpush1.msra.mxu0 %v489
        %962 = vmatprep.subr.mxu0 %v496
        %963 = vmatpush1.msra.mxu0 %v495
        %964 = vmatprep.subr.mxu0 %v502
        %965 = vmatpush1.msra.mxu0 %v501
        %966 = vmatprep.subr.mxu0 %v508
        %967 = vmatpush1.msra.mxu0 %v507
        %968 = vmatprep.subr.mxu0 %v514
        %969 = vmatpush1.msra.mxu0 %v513
        %970 = vmatprep.subr.mxu0 %v520
        %971 = vmatpush1.msra.mxu0 %v519
        %972 = vmatprep.subr.mxu0 %v526
        %973 = vmatpush1.msra.mxu0 %v525
        %974 = vmatprep.subr.mxu0 %v532
        %975 = vmatpush1.msra.mxu0 %v531
        %976 = vmatprep.subr.mxu0 %v538
        %977 = vmatpush1.msra.mxu0 %v537
        %978 = vmatprep.subr.mxu0 %v544
        %979 = vmatpush1.msra.mxu0 %v543
        %980 = vmatprep.subr.mxu0 %v550
        %981 = vmatpush1.msra.mxu0 %v549
        %982 = vmatprep.subr.mxu0 %v556
        %983 = vmatpush1.msra.mxu0 %v555
        %984 = vmatprep.subr.mxu0 %v562
        %985 = vmatpush1.msra.mxu0 %v561
        %986 = vmatprep.subr.mxu0 %v568
        %987 = vmatpush1.msra.mxu0 %v567
        %988 = vmatprep.subr.mxu0 %v574
        %989 = vmatpush1.msra.mxu0 %v573
        %990 = vmatprep.subr.mxu0 %v580
        %991 = vmatpush1.msra.mxu0 %v579
        %992 = vmatprep.subr.mxu0 %v586
        %993 = vmatpush1.msra.mxu0 %v585
        %994 = vmatprep.subr.mxu0 %v592
        %995 = vmatpush1.msra.mxu0 %v591
        %996 = vmatprep.subr.mxu0 %v598
        %997 = vmatpush1.msra.mxu0 %v597
        %998 = vmatprep.subr.mxu0 %v604
        %999 = vmatpush1.msra.mxu0 %v603
        %1000 = vmatprep.subr.mxu0 %v610
        %1001 = vmatpush1.msra.mxu0 %v609
        %1002 = vmatprep.subr.mxu0 %v616
        %1003 = vmatpush1.msra.mxu0 %v615
        %1004 = vmatprep.subr.mxu0 %v622
        %1005 = vmatpush1.msra.mxu0 %v621
        %1006 = vmatprep.subr.mxu0 %v628
        %1007 = vmatpush1.msra.mxu0 %v627
        %1008 = vmatprep.mubr.f32.mxu0 %v376
        %1009 = vmatmul.mubr.f32.gmra.mrb[0].mxu0 %v375
        %v1010 = vpop.f32.mrb[0].mxu0
        %v1011 = vadd.f32 %v674, %v1010
        %v1012 = vpop.f32.mrb[0].mxu0
        %v1013 = vadd.f32 %v678, %v1012
        %1014 = vmatprep.mubr.f32.mxu0 %v378
        %1015 = vmatmul.mubr.f32.gmra.mrb[0].mxu0 %v377
        %v1016 = vpop.f32.mrb[0].mxu0
        %v1017 = vadd.f32 %v674, %v1016
        %v1018 = vpop.f32.mrb[0].mxu0
        %v1019 = vadd.f32 %v678, %v1018
        %1020 = vmatprep.mubr.f32.mxu0 %v380
        %1021 = vmatmul.mubr.f32.gmra.mrb[0].mxu0 %v379
        %v1022 = vpop.f32.mrb[0].mxu0
        %v1023 = vadd.f32 %v674, %v1022
        %v1024 = vpop.f32.mrb[0].mxu0
        %v1025 = vadd.f32 %v678, %v1024
        %1026 = vmatprep.mubr.f32.mxu0 %v382
        %1027 = vmatmul.mubr.f32.gmra.mrb[0].mxu0 %v381
        %v1028 = vpop.f32.mrb[0].mxu0
        %v1029 = vadd.f32 %v674, %v1028
        %v1030 = vpop.f32.mrb[0].mxu0
        %v1031 = vadd.f32 %v678, %v1030
        %1032 = vmatprep.mubr.f32.mxu0 %v384
        %1033 = vmatmul.mubr.f32.gmra.mrb[0].mxu0 %v383
        %v1034 = vpop.f32.mrb[0].mxu0
        %v1035 = vadd.f32 %v674, %v1034
        %v1036 = vpop.f32.mrb[0].mxu0
        %v1037 = vadd.f32 %v678, %v1036
        %1038 = vmatprep.mubr.f32.mxu0 %v386
        %1039 = vmatmul.mubr.f32.gmra.mrb[0].mxu0 %v385
        %v1040 = vpop.f32.mrb[0].mxu0
        %v1041 = vadd.f32 %v674, %v1040
        %v1042 = vpop.f32.mrb[0].mxu0
        %v1043 = vadd.f32 %v678, %v1042
        %1044 = vmatprep.mubr.f32.mxu0 %v388
        %1045 = vmatmul.mubr.f32.gmra.mrb[0].mxu0 %v387
        %v1046 = vpop.f32.mrb[0].mxu0
        %v1047 = vadd.f32 %v674, %v1046
        %v1048 = vpop.f32.mrb[0].mxu0
        %v1049 = vadd.f32 %v678, %v1048
        %1050 = vmatprep.mubr.f32.mxu0 %v390
        %1051 = vmatmul.mubr.f32.gmra.mrb[0].mxu0 %v389
        %v1052 = vpop.f32.mrb[0].mxu0
        %v1053 = vadd.f32 %v674, %v1052
        %v1054 = vpop.f32.mrb[0].mxu0
        %v1055 = vadd.f32 %v678, %v1054
        %1056 = vmatprep.mubr.f32.mxu0 %v392
        %1057 = vmatmul.mubr.f32.gmra.mrb[0].mxu0 %v391
        %v1058 = vpop.f32.mrb[0].mxu0
        %v1059 = vadd.f32 %v674, %v1058
        %v1060 = vpop.f32.mrb[0].mxu0
        %v1061 = vadd.f32 %v678, %v1060
        %1062 = vmatprep.mubr.f32.mxu0 %v394
        %1063 = vmatmul.mubr.f32.gmra.mrb[0].mxu0 %v393
        %v1064 = vpop.f32.mrb[0].mxu0
        %v1065 = vadd.f32 %v674, %v1064
        %v1066 = vpop.f32.mrb[0].mxu0
        %v1067 = vadd.f32 %v678, %v1066
        %1068 = vmatprep.mubr.f32.mxu0 %v396
        %1069 = vmatmul.mubr.f32.gmra.mrb[0].mxu0 %v395
        %v1070 = vpop.f32.mrb[0].mxu0
        %v1071 = vadd.f32 %v674, %v1070
        %v1072 = vpop.f32.mrb[0].mxu0
        %v1073 = vadd.f32 %v678, %v1072
        %1074 = vmatprep.mubr.f32.mxu0 %v398
        %1075 = vmatmul.mubr.f32.gmra.mrb[0].mxu0 %v397
        %v1076 = vpop.f32.mrb[0].mxu0
        %v1077 = vadd.f32 %v674, %v1076
        %v1078 = vpop.f32.mrb[0].mxu0
        %v1079 = vadd.f32 %v678, %v1078
        %1080 = vmatprep.mubr.f32.mxu0 %v400
        %1081 = vmatmul.mubr.f32.gmra.mrb[0].mxu0 %v399
        %v1082 = vpop.f32.mrb[0].mxu0
        %v1083 = vadd.f32 %v674, %v1082
        %v1084 = vpop.f32.mrb[0].mxu0
        %v1085 = vadd.f32 %v678, %v1084
        %1086 = vmatprep.mubr.f32.mxu0 %v402
        %1087 = vmatmul.mubr.f32.gmra.mrb[0].mxu0 %v401
        %v1088 = vpop.f32.mrb[0].mxu0
        %v1089 = vadd.f32 %v674, %v1088
        %v1090 = vpop.f32.mrb[0].mxu0
        %v1091 = vadd.f32 %v678, %v1090
        %1092 = vmatprep.mubr.f32.mxu0 %v404
        %1093 = vmatmul.mubr.f32.gmra.mrb[0].mxu0 %v403
        %v1094 = vpop.f32.mrb[0].mxu0
        %v1095 = vadd.f32 %v674, %v1094
        %v1096 = vpop.f32.mrb[0].mxu0
        %v1097 = vadd.f32 %v678, %v1096
        %1098 = vmatprep.mubr.f32.mxu0 %v406
        %1099 = vmatmul.mubr.f32.gmra.mrb[0].mxu0 %v405
        %v1100 = vpop.f32.mrb[0].mxu0
        %v1101 = vadd.f32 %v674, %v1100
        %v1102 = vpop.f32.mrb[0].mxu0
        %v1103 = vadd.f32 %v678, %v1102
        %1104 = vmatprep.mubr.f32.mxu0 %v408
        %1105 = vmatmul.mubr.f32.gmra.mrb[0].mxu0 %v407
        %v1106 = vpop.f32.mrb[0].mxu0
        %v1107 = vadd.f32 %v674, %v1106
        %v1108 = vpop.f32.mrb[0].mxu0
        %v1109 = vadd.f32 %v678, %v1108
        %1110 = vmatprep.mubr.f32.mxu0 %v410
        %1111 = vmatmul.mubr.f32.gmra.mrb[0].mxu0 %v409
        %v1112 = vpop.f32.mrb[0].mxu0
        %v1113 = vadd.f32 %v674, %v1112
        %v1114 = vpop.f32.mrb[0].mxu0
        %v1115 = vadd.f32 %v678, %v1114
        %1116 = vmatprep.mubr.f32.mxu0 %v412
        %1117 = vmatmul.mubr.f32.gmra.mrb[0].mxu0 %v411
        %v1118 = vpop.f32.mrb[0].mxu0
        %v1119 = vadd.f32 %v674, %v1118
        %v1120 = vpop.f32.mrb[0].mxu0
        %v1121 = vadd.f32 %v678, %v1120
        %1122 = vmatprep.mubr.f32.mxu0 %v414
        %1123 = vmatmul.mubr.f32.gmra.mrb[0].mxu0 %v413
        %v1124 = vpop.f32.mrb[0].mxu0
        %v1125 = vadd.f32 %v674, %v1124
        %v1126 = vpop.f32.mrb[0].mxu0
        %v1127 = vadd.f32 %v678, %v1126
        %1128 = vmatprep.mubr.f32.mxu0 %v416
        %1129 = vmatmul.mubr.f32.gmra.mrb[0].mxu0 %v415
        %v1130 = vpop.f32.mrb[0].mxu0
        %v1131 = vadd.f32 %v674, %v1130
        %v1132 = vpop.f32.mrb[0].mxu0
        %v1133 = vadd.f32 %v678, %v1132
        %1134 = vmatprep.mubr.f32.mxu0 %v418
        %1135 = vmatmul.mubr.f32.gmra.mrb[0].mxu0 %v417
        %v1136 = vpop.f32.mrb[0].mxu0
        %v1137 = vadd.f32 %v674, %v1136
        %v1138 = vpop.f32.mrb[0].mxu0
        %v1139 = vadd.f32 %v678, %v1138
        %1140 = vmatprep.mubr.f32.mxu0 %v420
        %1141 = vmatmul.mubr.f32.gmra.mrb[0].mxu0 %v419
        %v1142 = vpop.f32.mrb[0].mxu0
        %v1143 = vadd.f32 %v674, %v1142
        %v1144 = vpop.f32.mrb[0].mxu0
        %v1145 = vadd.f32 %v678, %v1144
        %1146 = vmatprep.mubr.f32.mxu0 %v422
        %1147 = vmatmul.mubr.f32.gmra.mrb[0].mxu0 %v421
        %v1148 = vpop.f32.mrb[0].mxu0
        %v1149 = vadd.f32 %v674, %v1148
        %v1150 = vpop.f32.mrb[0].mxu0
        %v1151 = vadd.f32 %v678, %v1150
        %1152 = vmatprep.mubr.f32.mxu0 %v424
        %1153 = vmatmul.mubr.f32.gmra.mrb[0].mxu0 %v423
        %v1154 = vpop.f32.mrb[0].mxu0
        %v1155 = vadd.f32 %v674, %v1154
        %v1156 = vpop.f32.mrb[0].mxu0
        %v1157 = vadd.f32 %v678, %v1156
        %1158 = vmatprep.mubr.f32.mxu0 %v426
        %1159 = vmatmul.mubr.f32.gmra.mrb[0].mxu0 %v425
        %v1160 = vpop.f32.mrb[0].mxu0
        %v1161 = vadd.f32 %v674, %v1160
        %v1162 = vpop.f32.mrb[0].mxu0
        %v1163 = vadd.f32 %v678, %v1162
        %1164 = vmatprep.mubr.f32.mxu0 %v428
        %1165 = vmatmul.mubr.f32.gmra.mrb[0].mxu0 %v427
        %v1166 = vpop.f32.mrb[0].mxu0
        %v1167 = vadd.f32 %v674, %v1166
        %v1168 = vpop.f32.mrb[0].mxu0
        %v1169 = vadd.f32 %v678, %v1168
        %1170 = vmatprep.mubr.f32.mxu0 %v430
        %1171 = vmatmul.mubr.f32.gmra.mrb[0].mxu0 %v429
        %v1172 = vpop.f32.mrb[0].mxu0
        %v1173 = vadd.f32 %v674, %v1172
        %v1174 = vpop.f32.mrb[0].mxu0
        %v1175 = vadd.f32 %v678, %v1174
        %1176 = vmatprep.mubr.f32.mxu0 %v432
        %1177 = vmatmul.mubr.f32.gmra.mrb[0].mxu0 %v431
        %v1178 = vpop.f32.mrb[0].mxu0
        %v1179 = vadd.f32 %v674, %v1178
        %v1180 = vpop.f32.mrb[0].mxu0
        %v1181 = vadd.f32 %v678, %v1180
        %1182 = vmatprep.mubr.f32.mxu0 %v434
        %1183 = vmatmul.mubr.f32.gmra.mrb[0].mxu0 %v433
        %v1184 = vpop.f32.mrb[0].mxu0
        %v1185 = vadd.f32 %v674, %v1184
        %v1186 = vpop.f32.mrb[0].mxu0
        %v1187 = vadd.f32 %v678, %v1186
        %1188 = vmatprep.mubr.f32.mxu0 %v436
        %1189 = vmatmul.mubr.f32.gmra.mrb[0].mxu0 %v435
        %v1190 = vpop.f32.mrb[0].mxu0
        %v1191 = vadd.f32 %v674, %v1190
        %v1192 = vpop.f32.mrb[0].mxu0
        %v1193 = vadd.f32 %v678, %v1192
        %1194 = vmatprep.mubr.f32.mxu0 %v438
        %1195 = vmatmul.mubr.f32.gmra.mrb[0].mxu0 %v437
        %v1196 = vpop.f32.mrb[0].mxu0
        %v1197 = vadd.f32 %v674, %v1196
        %v1198 = vpop.f32.mrb[0].mxu0
        %v1199 = vadd.f32 %v678, %v1198
        %1200 = vdwg.mxu0
        %1201 = vmatprep.subr.mxu0 %v444
        %1202 = vmatpush1.msra.mxu0 %v443
        %1203 = vmatprep.subr.mxu0 %v450
        %1204 = vmatpush1.msra.mxu0 %v449
        %1205 = vmatprep.subr.mxu0 %v456
        %1206 = vmatpush1.msra.mxu0 %v455
        %1207 = vmatprep.subr.mxu0 %v462
        %1208 = vmatpush1.msra.mxu0 %v461
        %1209 = vmatprep.subr.mxu0 %v468
        %1210 = vmatpush1.msra.mxu0 %v467
        %1211 = vmatprep.subr.mxu0 %v474
        %1212 = vmatpush1.msra.mxu0 %v473
        %1213 = vmatprep.subr.mxu0 %v480
        %1214 = vmatpush1.msra.mxu0 %v479
        %1215 = vmatprep.subr.mxu0 %v486
        %1216 = vmatpush1.msra.mxu0 %v485
        %1217 = vmatprep.subr.mxu0 %v492
        %1218 = vmatpush1.msra.mxu0 %v491
        %1219 = vmatprep.subr.mxu0 %v498
        %1220 = vmatpush1.msra.mxu0 %v497
        %1221 = vmatprep.subr.mxu0 %v504
        %1222 = vmatpush1.msra.mxu0 %v503
        %1223 = vmatprep.subr.mxu0 %v510
        %1224 = vmatpush1.msra.mxu0 %v509
        %1225 = vmatprep.subr.mxu0 %v516
        %1226 = vmatpush1.msra.mxu0 %v515
        %1227 = vmatprep.subr.mxu0 %v522
        %1228 = vmatpush1.msra.mxu0 %v521
        %1229 = vmatprep.subr.mxu0 %v528
        %1230 = vmatpush1.msra.mxu0 %v527
        %1231 = vmatprep.subr.mxu0 %v534
        %1232 = vmatpush1.msra.mxu0 %v533
        %1233 = vmatprep.subr.mxu0 %v540
        %1234 = vmatpush1.msra.mxu0 %v539
        %1235 = vmatprep.subr.mxu0 %v546
        %1236 = vmatpush1.msra.mxu0 %v545
        %1237 = vmatprep.subr.mxu0 %v552
        %1238 = vmatpush1.msra.mxu0 %v551
        %1239 = vmatprep.subr.mxu0 %v558
        %1240 = vmatpush1.msra.mxu0 %v557
        %1241 = vmatprep.subr.mxu0 %v564
        %1242 = vmatpush1.msra.mxu0 %v563
        %1243 = vmatprep.subr.mxu0 %v570
        %1244 = vmatpush1.msra.mxu0 %v569
        %1245 = vmatprep.subr.mxu0 %v576
        %1246 = vmatpush1.msra.mxu0 %v575
        %1247 = vmatprep.subr.mxu0 %v582
        %1248 = vmatpush1.msra.mxu0 %v581
        %1249 = vmatprep.subr.mxu0 %v588
        %1250 = vmatpush1.msra.mxu0 %v587
        %1251 = vmatprep.subr.mxu0 %v594
        %1252 = vmatpush1.msra.mxu0 %v593
        %1253 = vmatprep.subr.mxu0 %v600
        %1254 = vmatpush1.msra.mxu0 %v599
        %1255 = vmatprep.subr.mxu0 %v606
        %1256 = vmatpush1.msra.mxu0 %v605
        %1257 = vmatprep.subr.mxu0 %v612
        %1258 = vmatpush1.msra.mxu0 %v611
        %1259 = vmatprep.subr.mxu0 %v618
        %1260 = vmatpush1.msra.mxu0 %v617
        %1261 = vmatprep.subr.mxu0 %v624
        %1262 = vmatpush1.msra.mxu0 %v623
        %1263 = vmatprep.subr.mxu0 %v630
        %1264 = vmatpush1.msra.mxu0 %v629
        %1265 = vmatprep.mubr.f32.mxu0 %v376
        %1266 = vmatmul.mubr.f32.gmra.mrb[0].mxu0 %v375
        %v1267 = vpop.f32.mrb[0].mxu0
        %v1268 = vadd.f32 %v682, %v1267
        %v1269 = vpop.f32.mrb[0].mxu0
        %v1270 = vadd.f32 %v686, %v1269
        %1271 = vmatprep.mubr.f32.mxu0 %v378
        %1272 = vmatmul.mubr.f32.gmra.mrb[0].mxu0 %v377
        %v1273 = vpop.f32.mrb[0].mxu0
        %v1274 = vadd.f32 %v682, %v1273
        %v1275 = vpop.f32.mrb[0].mxu0
        %v1276 = vadd.f32 %v686, %v1275
        %1277 = vmatprep.mubr.f32.mxu0 %v380
        %1278 = vmatmul.mubr.f32.gmra.mrb[0].mxu0 %v379
        %v1279 = vpop.f32.mrb[0].mxu0
        %v1280 = vadd.f32 %v682, %v1279
        %v1281 = vpop.f32.mrb[0].mxu0
        %v1282 = vadd.f32 %v686, %v1281
        %1283 = vmatprep.mubr.f32.mxu0 %v382
        %1284 = vmatmul.mubr.f32.gmra.mrb[0].mxu0 %v381
        %v1285 = vpop.f32.mrb[0].mxu0
        %v1286 = vadd.f32 %v682, %v1285
        %v1287 = vpop.f32.mrb[0].mxu0
        %v1288 = vadd.f32 %v686, %v1287
        %1289 = vmatprep.mubr.f32.mxu0 %v384
        %1290 = vmatmul.mubr.f32.gmra.mrb[0].mxu0 %v383
        %v1291 = vpop.f32.mrb[0].mxu0
        %v1292 = vadd.f32 %v682, %v1291
        %v1293 = vpop.f32.mrb[0].mxu0
        %v1294 = vadd.f32 %v686, %v1293
        %1295 = vmatprep.mubr.f32.mxu0 %v386
        %1296 = vmatmul.mubr.f32.gmra.mrb[0].mxu0 %v385
        %v1297 = vpop.f32.mrb[0].mxu0
        %v1298 = vadd.f32 %v682, %v1297
        %v1299 = vpop.f32.mrb[0].mxu0
        %v1300 = vadd.f32 %v686, %v1299
        %1301 = vmatprep.mubr.f32.mxu0 %v388
        %1302 = vmatmul.mubr.f32.gmra.mrb[0].mxu0 %v387
        %v1303 = vpop.f32.mrb[0].mxu0
        %v1304 = vadd.f32 %v682, %v1303
        %v1305 = vpop.f32.mrb[0].mxu0
        %v1306 = vadd.f32 %v686, %v1305
        %1307 = vmatprep.mubr.f32.mxu0 %v390
        %1308 = vmatmul.mubr.f32.gmra.mrb[0].mxu0 %v389
        %v1309 = vpop.f32.mrb[0].mxu0
        %v1310 = vadd.f32 %v682, %v1309
        %v1311 = vpop.f32.mrb[0].mxu0
        %v1312 = vadd.f32 %v686, %v1311
        %1313 = vmatprep.mubr.f32.mxu0 %v392
        %1314 = vmatmul.mubr.f32.gmra.mrb[0].mxu0 %v391
        %v1315 = vpop.f32.mrb[0].mxu0
        %v1316 = vadd.f32 %v682, %v1315
        %v1317 = vpop.f32.mrb[0].mxu0
        %v1318 = vadd.f32 %v686, %v1317
        %1319 = vmatprep.mubr.f32.mxu0 %v394
        %1320 = vmatmul.mubr.f32.gmra.mrb[0].mxu0 %v393
        %v1321 = vpop.f32.mrb[0].mxu0
        %v1322 = vadd.f32 %v682, %v1321
        %v1323 = vpop.f32.mrb[0].mxu0
        %v1324 = vadd.f32 %v686, %v1323
        %1325 = vmatprep.mubr.f32.mxu0 %v396
        %1326 = vmatmul.mubr.f32.gmra.mrb[0].mxu0 %v395
        %v1327 = vpop.f32.mrb[0].mxu0
        %v1328 = vadd.f32 %v682, %v1327
        %v1329 = vpop.f32.mrb[0].mxu0
        %v1330 = vadd.f32 %v686, %v1329
        %1331 = vmatprep.mubr.f32.mxu0 %v398
        %1332 = vmatmul.mubr.f32.gmra.mrb[0].mxu0 %v397
        %v1333 = vpop.f32.mrb[0].mxu0
        %v1334 = vadd.f32 %v682, %v1333
        %v1335 = vpop.f32.mrb[0].mxu0
        %v1336 = vadd.f32 %v686, %v1335
        %1337 = vmatprep.mubr.f32.mxu0 %v400
        %1338 = vmatmul.mubr.f32.gmra.mrb[0].mxu0 %v399
        %v1339 = vpop.f32.mrb[0].mxu0
        %v1340 = vadd.f32 %v682, %v1339
        %v1341 = vpop.f32.mrb[0].mxu0
        %v1342 = vadd.f32 %v686, %v1341
        %1343 = vmatprep.mubr.f32.mxu0 %v402
        %1344 = vmatmul.mubr.f32.gmra.mrb[0].mxu0 %v401
        %v1345 = vpop.f32.mrb[0].mxu0
        %v1346 = vadd.f32 %v682, %v1345
        %v1347 = vpop.f32.mrb[0].mxu0
        %v1348 = vadd.f32 %v686, %v1347
        %1349 = vmatprep.mubr.f32.mxu0 %v404
        %1350 = vmatmul.mubr.f32.gmra.mrb[0].mxu0 %v403
        %v1351 = vpop.f32.mrb[0].mxu0
        %v1352 = vadd.f32 %v682, %v1351
        %v1353 = vpop.f32.mrb[0].mxu0
        %v1354 = vadd.f32 %v686, %v1353
        %1355 = vmatprep.mubr.f32.mxu0 %v406
        %1356 = vmatmul.mubr.f32.gmra.mrb[0].mxu0 %v405
        %v1357 = vpop.f32.mrb[0].mxu0
        %v1358 = vadd.f32 %v682, %v1357
        %v1359 = vpop.f32.mrb[0].mxu0
        %v1360 = vadd.f32 %v686, %v1359
        %1361 = vmatprep.mubr.f32.mxu0 %v408
        %1362 = vmatmul.mubr.f32.gmra.mrb[0].mxu0 %v407
        %v1363 = vpop.f32.mrb[0].mxu0
        %v1364 = vadd.f32 %v682, %v1363
        %v1365 = vpop.f32.mrb[0].mxu0
        %v1366 = vadd.f32 %v686, %v1365
        %1367 = vmatprep.mubr.f32.mxu0 %v410
        %1368 = vmatmul.mubr.f32.gmra.mrb[0].mxu0 %v409
        %v1369 = vpop.f32.mrb[0].mxu0
        %v1370 = vadd.f32 %v682, %v1369
        %v1371 = vpop.f32.mrb[0].mxu0
        %v1372 = vadd.f32 %v686, %v1371
        %1373 = vmatprep.mubr.f32.mxu0 %v412
        %1374 = vmatmul.mubr.f32.gmra.mrb[0].mxu0 %v411
        %v1375 = vpop.f32.mrb[0].mxu0
        %v1376 = vadd.f32 %v682, %v1375
        %v1377 = vpop.f32.mrb[0].mxu0
        %v1378 = vadd.f32 %v686, %v1377
        %1379 = vmatprep.mubr.f32.mxu0 %v414
        %1380 = vmatmul.mubr.f32.gmra.mrb[0].mxu0 %v413
        %v1381 = vpop.f32.mrb[0].mxu0
        %v1382 = vadd.f32 %v682, %v1381
        %v1383 = vpop.f32.mrb[0].mxu0
        %v1384 = vadd.f32 %v686, %v1383
        %1385 = vmatprep.mubr.f32.mxu0 %v416
        %1386 = vmatmul.mubr.f32.gmra.mrb[0].mxu0 %v415
        %v1387 = vpop.f32.mrb[0].mxu0
        %v1388 = vadd.f32 %v682, %v1387
        %v1389 = vpop.f32.mrb[0].mxu0
        %v1390 = vadd.f32 %v686, %v1389
        %1391 = vmatprep.mubr.f32.mxu0 %v418
        %1392 = vmatmul.mubr.f32.gmra.mrb[0].mxu0 %v417
        %v1393 = vpop.f32.mrb[0].mxu0
        %v1394 = vadd.f32 %v682, %v1393
        %v1395 = vpop.f32.mrb[0].mxu0
        %v1396 = vadd.f32 %v686, %v1395
        %1397 = vmatprep.mubr.f32.mxu0 %v420
        %1398 = vmatmul.mubr.f32.gmra.mrb[0].mxu0 %v419
        %v1399 = vpop.f32.mrb[0].mxu0
        %v1400 = vadd.f32 %v682, %v1399
        %v1401 = vpop.f32.mrb[0].mxu0
        %v1402 = vadd.f32 %v686, %v1401
        %1403 = vmatprep.mubr.f32.mxu0 %v422
        %1404 = vmatmul.mubr.f32.gmra.mrb[0].mxu0 %v421
        %v1405 = vpop.f32.mrb[0].mxu0
        %v1406 = vadd.f32 %v682, %v1405
        %v1407 = vpop.f32.mrb[0].mxu0
        %v1408 = vadd.f32 %v686, %v1407
        %1409 = vmatprep.mubr.f32.mxu0 %v424
        %1410 = vmatmul.mubr.f32.gmra.mrb[0].mxu0 %v423
        %v1411 = vpop.f32.mrb[0].mxu0
        %v1412 = vadd.f32 %v682, %v1411
        %v1413 = vpop.f32.mrb[0].mxu0
        %v1414 = vadd.f32 %v686, %v1413
        %1415 = vmatprep.mubr.f32.mxu0 %v426
        %1416 = vmatmul.mubr.f32.gmra.mrb[0].mxu0 %v425
        %v1417 = vpop.f32.mrb[0].mxu0
        %v1418 = vadd.f32 %v682, %v1417
        %v1419 = vpop.f32.mrb[0].mxu0
        %v1420 = vadd.f32 %v686, %v1419
        %1421 = vmatprep.mubr.f32.mxu0 %v428
        %1422 = vmatmul.mubr.f32.gmra.mrb[0].mxu0 %v427
        %v1423 = vpop.f32.mrb[0].mxu0
        %v1424 = vadd.f32 %v682, %v1423
        %v1425 = vpop.f32.mrb[0].mxu0
        %v1426 = vadd.f32 %v686, %v1425
        %1427 = vmatprep.mubr.f32.mxu0 %v430
        %1428 = vmatmul.mubr.f32.gmra.mrb[0].mxu0 %v429
        %v1429 = vpop.f32.mrb[0].mxu0
        %v1430 = vadd.f32 %v682, %v1429
        %v1431 = vpop.f32.mrb[0].mxu0
        %v1432 = vadd.f32 %v686, %v1431
        %1433 = vmatprep.mubr.f32.mxu0 %v432
        %1434 = vmatmul.mubr.f32.gmra.mrb[0].mxu0 %v431
        %v1435 = vpop.f32.mrb[0].mxu0
        %v1436 = vadd.f32 %v682, %v1435
        %v1437 = vpop.f32.mrb[0].mxu0
        %v1438 = vadd.f32 %v686, %v1437
        %1439 = vmatprep.mubr.f32.mxu0 %v434
        %1440 = vmatmul.mubr.f32.gmra.mrb[0].mxu0 %v433
        %v1441 = vpop.f32.mrb[0].mxu0
        %v1442 = vadd.f32 %v682, %v1441
        %v1443 = vpop.f32.mrb[0].mxu0
        %v1444 = vadd.f32 %v686, %v1443
        %1445 = vmatprep.mubr.f32.mxu0 %v436
        %1446 = vmatmul.mubr.f32.gmra.mrb[0].mxu0 %v435
        %v1447 = vpop.f32.mrb[0].mxu0
        %v1448 = vadd.f32 %v682, %v1447
        %v1449 = vpop.f32.mrb[0].mxu0
        %v1450 = vadd.f32 %v686, %v1449
        %1451 = vmatprep.mubr.f32.mxu0 %v438
        %1452 = vmatmul.mubr.f32.gmra.mrb[0].mxu0 %v437
        %v1453 = vpop.f32.mrb[0].mxu0
        %v1454 = vadd.f32 %v682, %v1453
        %v1455 = vpop.f32.mrb[0].mxu0
        %v1456 = vadd.f32 %v686, %v1455
        %1457 = vdwg.mxu0
        %1458 = vmatprep.subr.mxu0 0.0
        %1459 = vmatpush1.xpose.msra.mxu0 %v1011
        %1460 = vmatprep.subr.mxu0 0.0
        %1461 = vmatpush1.xpose.msra.mxu0 %v1017
        %1462 = vmatprep.subr.mxu0 0.0
        %1463 = vmatpush1.xpose.msra.mxu0 %v1023
        %1464 = vmatprep.subr.mxu0 0.0
        %1465 = vmatpush1.xpose.msra.mxu0 %v1029
        %1466 = vmatprep.subr.mxu0 0.0
        %1467 = vmatpush1.xpose.msra.mxu0 0.0
        %1468 = vmatprep.subr.mxu0 0.0
        %1469 = vmatpush1.xpose.msra.mxu0 0.0
        %1470 = vmatprep.subr.mxu0 0.0
        %1471 = vmatpush1.xpose.msra.mxu0 0.0
        %1472 = vmatprep.subr.mxu0 0.0
        %1473 = vmatpush1.xpose.msra.mxu0 0.0
        %1474 = vmatprep.subr.mxu0 0.0
        %1475 = vmatpush1.xpose.msra.mxu0 0.0
        %1476 = vmatprep.subr.mxu0 0.0
        %1477 = vmatpush1.xpose.msra.mxu0 0.0
        %1478 = vmatprep.subr.mxu0 0.0
        %1479 = vmatpush1.xpose.msra.mxu0 0.0
        %1480 = vmatprep.subr.mxu0 0.0
        %1481 = vmatpush1.xpose.msra.mxu0 0.0
        %1482 = vmatprep.subr.mxu0 0.0
        %1483 = vmatpush1.xpose.msra.mxu0 0.0
        %1484 = vmatprep.subr.mxu0 0.0
        %1485 = vmatpush1.xpose.msra.mxu0 0.0
        %1486 = vmatprep.subr.mxu0 0.0
        %1487 = vmatpush1.xpose.msra.mxu0 0.0
        %1488 = vmatprep.subr.mxu0 0.0
        %1489 = vmatpush1.xpose.msra.mxu0 0.0
        %1490 = vmatprep.subr.mxu0 0.0
        %1491 = vmatpush1.xpose.msra.mxu0 0.0
        %1492 = vmatprep.subr.mxu0 0.0
        %1493 = vmatpush1.xpose.msra.mxu0 0.0
        %1494 = vmatprep.subr.mxu0 0.0
        %1495 = vmatpush1.xpose.msra.mxu0 0.0
        %1496 = vmatprep.subr.mxu0 0.0
        %1497 = vmatpush1.xpose.msra.mxu0 0.0
        %1498 = vmatprep.subr.mxu0 0.0
        %1499 = vmatpush1.xpose.msra.mxu0 0.0
        %1500 = vmatprep.subr.mxu0 0.0
        %1501 = vmatpush1.xpose.msra.mxu0 0.0
        %1502 = vmatprep.subr.mxu0 0.0
        %1503 = vmatpush1.xpose.msra.mxu0 0.0
        %1504 = vmatprep.subr.mxu0 0.0
        %1505 = vmatpush1.xpose.msra.mxu0 0.0
        %1506 = vmatprep.subr.mxu0 0.0
        %1507 = vmatpush1.xpose.msra.mxu0 0.0
        %1508 = vmatprep.subr.mxu0 0.0
        %1509 = vmatpush1.xpose.msra.mxu0 0.0
        %1510 = vmatprep.subr.mxu0 0.0
        %1511 = vmatpush1.xpose.msra.mxu0 0.0
        %1512 = vmatprep.subr.mxu0 0.0
        %1513 = vmatpush1.xpose.msra.mxu0 0.0
        %1514 = vmatprep.subr.mxu0 0.0
        %1515 = vmatpush1.xpose.msra.mxu0 0.0
        %1516 = vmatprep.subr.mxu0 0.0
        %1517 = vmatpush1.xpose.msra.mxu0 0.0
        %1518 = vmatprep.subr.mxu0 0.0
        %1519 = vmatpush1.xpose.msra.mxu0 0.0
        %1520 = vmatprep.subr.mxu0 0.0
        %1521 = vmatpush1.xpose.msra.mxu0 0.0
        %1522 = vmatprep.mubr.f32.mxu0 0.0
        %1523 = vmatmul.mubr.f32.gmra.mrb[0].mxu0 %v754
        %v1524 = vpop.f32.mrb[0].mxu0
        %v1525 = vadd.f32 0.0, %v1524
        %v1526 = vpop.f32.mrb[0].mxu0
        %1527 = vmatprep.mubr.f32.mxu0 0.0
        %1528 = vmatmul.mubr.f32.gmra.mrb[0].mxu0 %v760
        %v1529 = vpop.f32.mrb[0].mxu0
        %v1530 = vadd.f32 0.0, %v1529
        %v1531 = vpop.f32.mrb[0].mxu0
        %1532 = vmatprep.mubr.f32.mxu0 0.0
        %1533 = vmatmul.mubr.f32.gmra.mrb[0].mxu0 %v766
        %v1534 = vpop.f32.mrb[0].mxu0
        %v1535 = vadd.f32 0.0, %v1534
        %v1536 = vpop.f32.mrb[0].mxu0
        %1537 = vmatprep.mubr.f32.mxu0 0.0
        %1538 = vmatmul.mubr.f32.gmra.mrb[0].mxu0 %v772
        %v1539 = vpop.f32.mrb[0].mxu0
        %v1540 = vadd.f32 0.0, %v1539
        %v1541 = vpop.f32.mrb[0].mxu0
        %1542 = vdwg.mxu0
        %1543 = vmatprep.subr.mxu0 0.0
        %1544 = vmatpush1.xpose.msra.mxu0 %v1035
        %1545 = vmatprep.subr.mxu0 0.0
        %1546 = vmatpush1.xpose.msra.mxu0 %v1041
        %1547 = vmatprep.subr.mxu0 0.0
        %1548 = vmatpush1.xpose.msra.mxu0 %v1047
        %1549 = vmatprep.subr.mxu0 0.0
        %1550 = vmatpush1.xpose.msra.mxu0 %v1053
        %1551 = vmatprep.subr.mxu0 0.0
        %1552 = vmatpush1.xpose.msra.mxu0 0.0
        %1553 = vmatprep.subr.mxu0 0.0
        %1554 = vmatpush1.xpose.msra.mxu0 0.0
        %1555 = vmatprep.subr.mxu0 0.0
        %1556 = vmatpush1.xpose.msra.mxu0 0.0
        %1557 = vmatprep.subr.mxu0 0.0
        %1558 = vmatpush1.xpose.msra.mxu0 0.0
        %1559 = vmatprep.subr.mxu0 0.0
        %1560 = vmatpush1.xpose.msra.mxu0 0.0
        %1561 = vmatprep.subr.mxu0 0.0
        %1562 = vmatpush1.xpose.msra.mxu0 0.0
        %1563 = vmatprep.subr.mxu0 0.0
        %1564 = vmatpush1.xpose.msra.mxu0 0.0
        %1565 = vmatprep.subr.mxu0 0.0
        %1566 = vmatpush1.xpose.msra.mxu0 0.0
        %1567 = vmatprep.subr.mxu0 0.0
        %1568 = vmatpush1.xpose.msra.mxu0 0.0
        %1569 = vmatprep.subr.mxu0 0.0
        %1570 = vmatpush1.xpose.msra.mxu0 0.0
        %1571 = vmatprep.subr.mxu0 0.0
        %1572 = vmatpush1.xpose.msra.mxu0 0.0
        %1573 = vmatprep.subr.mxu0 0.0
        %1574 = vmatpush1.xpose.msra.mxu0 0.0
        %1575 = vmatprep.subr.mxu0 0.0
        %1576 = vmatpush1.xpose.msra.mxu0 0.0
        %1577 = vmatprep.subr.mxu0 0.0
        %1578 = vmatpush1.xpose.msra.mxu0 0.0
        %1579 = vmatprep.subr.mxu0 0.0
        %1580 = vmatpush1.xpose.msra.mxu0 0.0
        %1581 = vmatprep.subr.mxu0 0.0
        %1582 = vmatpush1.xpose.msra.mxu0 0.0
        %1583 = vmatprep.subr.mxu0 0.0
        %1584 = vmatpush1.xpose.msra.mxu0 0.0
        %1585 = vmatprep.subr.mxu0 0.0
        %1586 = vmatpush1.xpose.msra.mxu0 0.0
        %1587 = vmatprep.subr.mxu0 0.0
        %1588 = vmatpush1.xpose.msra.mxu0 0.0
        %1589 = vmatprep.subr.mxu0 0.0
        %1590 = vmatpush1.xpose.msra.mxu0 0.0
        %1591 = vmatprep.subr.mxu0 0.0
        %1592 = vmatpush1.xpose.msra.mxu0 0.0
        %1593 = vmatprep.subr.mxu0 0.0
        %1594 = vmatpush1.xpose.msra.mxu0 0.0
        %1595 = vmatprep.subr.mxu0 0.0
        %1596 = vmatpush1.xpose.msra.mxu0 0.0
        %1597 = vmatprep.subr.mxu0 0.0
        %1598 = vmatpush1.xpose.msra.mxu0 0.0
        %1599 = vmatprep.subr.mxu0 0.0
        %1600 = vmatpush1.xpose.msra.mxu0 0.0
        %1601 = vmatprep.subr.mxu0 0.0
        %1602 = vmatpush1.xpose.msra.mxu0 0.0
        %1603 = vmatprep.subr.mxu0 0.0
        %1604 = vmatpush1.xpose.msra.mxu0 0.0
        %1605 = vmatprep.subr.mxu0 0.0
        %1606 = vmatpush1.xpose.msra.mxu0 0.0
        %1607 = vmatprep.mubr.f32.mxu0 0.0
        %1608 = vmatmul.mubr.f32.gmra.mrb[0].mxu0 %v778
        %v1609 = vpop.f32.mrb[0].mxu0
        %v1610 = vadd.f32 0.0, %v1609
        %v1611 = vpop.f32.mrb[0].mxu0
        %1612 = vmatprep.mubr.f32.mxu0 0.0
        %1613 = vmatmul.mubr.f32.gmra.mrb[0].mxu0 %v784
        %v1614 = vpop.f32.mrb[0].mxu0
        %v1615 = vadd.f32 0.0, %v1614
        %v1616 = vpop.f32.mrb[0].mxu0
        %1617 = vmatprep.mubr.f32.mxu0 0.0
        %1618 = vmatmul.mubr.f32.gmra.mrb[0].mxu0 %v790
        %v1619 = vpop.f32.mrb[0].mxu0
        %v1620 = vadd.f32 0.0, %v1619
        %v1621 = vpop.f32.mrb[0].mxu0
        %1622 = vmatprep.mubr.f32.mxu0 0.0
        %1623 = vmatmul.mubr.f32.gmra.mrb[0].mxu0 %v796
        %v1624 = vpop.f32.mrb[0].mxu0
        %v1625 = vadd.f32 0.0, %v1624
        %v1626 = vpop.f32.mrb[0].mxu0
        %1627 = vdwg.mxu0
        %1628 = vmatprep.subr.mxu0 0.0
        %1629 = vmatpush1.xpose.msra.mxu0 %v1059
        %1630 = vmatprep.subr.mxu0 0.0
        %1631 = vmatpush1.xpose.msra.mxu0 %v1065
        %1632 = vmatprep.subr.mxu0 0.0
        %1633 = vmatpush1.xpose.msra.mxu0 %v1071
        %1634 = vmatprep.subr.mxu0 0.0
        %1635 = vmatpush1.xpose.msra.mxu0 %v1077
        %1636 = vmatprep.subr.mxu0 0.0
        %1637 = vmatpush1.xpose.msra.mxu0 0.0
        %1638 = vmatprep.subr.mxu0 0.0
        %1639 = vmatpush1.xpose.msra.mxu0 0.0
        %1640 = vmatprep.subr.mxu0 0.0
        %1641 = vmatpush1.xpose.msra.mxu0 0.0
        %1642 = vmatprep.subr.mxu0 0.0
        %1643 = vmatpush1.xpose.msra.mxu0 0.0
        %1644 = vmatprep.subr.mxu0 0.0
        %1645 = vmatpush1.xpose.msra.mxu0 0.0
        %1646 = vmatprep.subr.mxu0 0.0
        %1647 = vmatpush1.xpose.msra.mxu0 0.0
        %1648 = vmatprep.subr.mxu0 0.0
        %1649 = vmatpush1.xpose.msra.mxu0 0.0
        %1650 = vmatprep.subr.mxu0 0.0
        %1651 = vmatpush1.xpose.msra.mxu0 0.0
        %1652 = vmatprep.subr.mxu0 0.0
        %1653 = vmatpush1.xpose.msra.mxu0 0.0
        %1654 = vmatprep.subr.mxu0 0.0
        %1655 = vmatpush1.xpose.msra.mxu0 0.0
        %1656 = vmatprep.subr.mxu0 0.0
        %1657 = vmatpush1.xpose.msra.mxu0 0.0
        %1658 = vmatprep.subr.mxu0 0.0
        %1659 = vmatpush1.xpose.msra.mxu0 0.0
        %1660 = vmatprep.subr.mxu0 0.0
        %1661 = vmatpush1.xpose.msra.mxu0 0.0
        %1662 = vmatprep.subr.mxu0 0.0
        %1663 = vmatpush1.xpose.msra.mxu0 0.0
        %1664 = vmatprep.subr.mxu0 0.0
        %1665 = vmatpush1.xpose.msra.mxu0 0.0
        %1666 = vmatprep.subr.mxu0 0.0
        %1667 = vmatpush1.xpose.msra.mxu0 0.0
        %1668 = vmatprep.subr.mxu0 0.0
        %1669 = vmatpush1.xpose.msra.mxu0 0.0
        %1670 = vmatprep.subr.mxu0 0.0
        %1671 = vmatpush1.xpose.msra.mxu0 0.0
        %1672 = vmatprep.subr.mxu0 0.0
        %1673 = vmatpush1.xpose.msra.mxu0 0.0
        %1674 = vmatprep.subr.mxu0 0.0
        %1675 = vmatpush1.xpose.msra.mxu0 0.0
        %1676 = vmatprep.subr.mxu0 0.0
        %1677 = vmatpush1.xpose.msra.mxu0 0.0
        %1678 = vmatprep.subr.mxu0 0.0
        %1679 = vmatpush1.xpose.msra.mxu0 0.0
        %1680 = vmatprep.subr.mxu0 0.0
        %1681 = vmatpush1.xpose.msra.mxu0 0.0
        %1682 = vmatprep.subr.mxu0 0.0
        %1683 = vmatpush1.xpose.msra.mxu0 0.0
        %1684 = vmatprep.subr.mxu0 0.0
        %1685 = vmatpush1.xpose.msra.mxu0 0.0
        %1686 = vmatprep.subr.mxu0 0.0
        %1687 = vmatpush1.xpose.msra.mxu0 0.0
        %1688 = vmatprep.subr.mxu0 0.0
        %1689 = vmatpush1.xpose.msra.mxu0 0.0
        %1690 = vmatprep.subr.mxu0 0.0
        %1691 = vmatpush1.xpose.msra.mxu0 0.0
        %1692 = vmatprep.mubr.f32.mxu0 0.0
        %1693 = vmatmul.mubr.f32.gmra.mrb[0].mxu0 %v802
        %v1694 = vpop.f32.mrb[0].mxu0
        %v1695 = vadd.f32 0.0, %v1694
        %v1696 = vpop.f32.mrb[0].mxu0
        %1697 = vmatprep.mubr.f32.mxu0 0.0
        %1698 = vmatmul.mubr.f32.gmra.mrb[0].mxu0 %v808
        %v1699 = vpop.f32.mrb[0].mxu0
        %v1700 = vadd.f32 0.0, %v1699
        %v1701 = vpop.f32.mrb[0].mxu0
        %1702 = vmatprep.mubr.f32.mxu0 0.0
        %1703 = vmatmul.mubr.f32.gmra.mrb[0].mxu0 %v814
        %v1704 = vpop.f32.mrb[0].mxu0
        %v1705 = vadd.f32 0.0, %v1704
        %v1706 = vpop.f32.mrb[0].mxu0
        %1707 = vmatprep.mubr.f32.mxu0 0.0
        %1708 = vmatmul.mubr.f32.gmra.mrb[0].mxu0 %v820
        %v1709 = vpop.f32.mrb[0].mxu0
        %v1710 = vadd.f32 0.0, %v1709
        %v1711 = vpop.f32.mrb[0].mxu0
        %1712 = vdwg.mxu0
        %1713 = vmatprep.subr.mxu0 0.0
        %1714 = vmatpush1.xpose.msra.mxu0 %v1083
        %1715 = vmatprep.subr.mxu0 0.0
        %1716 = vmatpush1.xpose.msra.mxu0 %v1089
        %1717 = vmatprep.subr.mxu0 0.0
        %1718 = vmatpush1.xpose.msra.mxu0 %v1095
        %1719 = vmatprep.subr.mxu0 0.0
        %1720 = vmatpush1.xpose.msra.mxu0 %v1101
        %1721 = vmatprep.subr.mxu0 0.0
        %1722 = vmatpush1.xpose.msra.mxu0 0.0
        %1723 = vmatprep.subr.mxu0 0.0
        %1724 = vmatpush1.xpose.msra.mxu0 0.0
        %1725 = vmatprep.subr.mxu0 0.0
        %1726 = vmatpush1.xpose.msra.mxu0 0.0
        %1727 = vmatprep.subr.mxu0 0.0
        %1728 = vmatpush1.xpose.msra.mxu0 0.0
        %1729 = vmatprep.subr.mxu0 0.0
        %1730 = vmatpush1.xpose.msra.mxu0 0.0
        %1731 = vmatprep.subr.mxu0 0.0
        %1732 = vmatpush1.xpose.msra.mxu0 0.0
        %1733 = vmatprep.subr.mxu0 0.0
        %1734 = vmatpush1.xpose.msra.mxu0 0.0
        %1735 = vmatprep.subr.mxu0 0.0
        %1736 = vmatpush1.xpose.msra.mxu0 0.0
        %1737 = vmatprep.subr.mxu0 0.0
        %1738 = vmatpush1.xpose.msra.mxu0 0.0
        %1739 = vmatprep.subr.mxu0 0.0
        %1740 = vmatpush1.xpose.msra.mxu0 0.0
        %1741 = vmatprep.subr.mxu0 0.0
        %1742 = vmatpush1.xpose.msra.mxu0 0.0
        %1743 = vmatprep.subr.mxu0 0.0
        %1744 = vmatpush1.xpose.msra.mxu0 0.0
        %1745 = vmatprep.subr.mxu0 0.0
        %1746 = vmatpush1.xpose.msra.mxu0 0.0
        %1747 = vmatprep.subr.mxu0 0.0
        %1748 = vmatpush1.xpose.msra.mxu0 0.0
        %1749 = vmatprep.subr.mxu0 0.0
        %1750 = vmatpush1.xpose.msra.mxu0 0.0
        %1751 = vmatprep.subr.mxu0 0.0
        %1752 = vmatpush1.xpose.msra.mxu0 0.0
        %1753 = vmatprep.subr.mxu0 0.0
        %1754 = vmatpush1.xpose.msra.mxu0 0.0
        %1755 = vmatprep.subr.mxu0 0.0
        %1756 = vmatpush1.xpose.msra.mxu0 0.0
        %1757 = vmatprep.subr.mxu0 0.0
        %1758 = vmatpush1.xpose.msra.mxu0 0.0
        %1759 = vmatprep.subr.mxu0 0.0
        %1760 = vmatpush1.xpose.msra.mxu0 0.0
        %1761 = vmatprep.subr.mxu0 0.0
        %1762 = vmatpush1.xpose.msra.mxu0 0.0
        %1763 = vmatprep.subr.mxu0 0.0
        %1764 = vmatpush1.xpose.msra.mxu0 0.0
        %1765 = vmatprep.subr.mxu0 0.0
        %1766 = vmatpush1.xpose.msra.mxu0 0.0
        %1767 = vmatprep.subr.mxu0 0.0
        %1768 = vmatpush1.xpose.msra.mxu0 0.0
        %1769 = vmatprep.subr.mxu0 0.0
        %1770 = vmatpush1.xpose.msra.mxu0 0.0
        %1771 = vmatprep.subr.mxu0 0.0
        %1772 = vmatpush1.xpose.msra.mxu0 0.0
        %1773 = vmatprep.subr.mxu0 0.0
        %1774 = vmatpush1.xpose.msra.mxu0 0.0
        %1775 = vmatprep.subr.mxu0 0.0
        %1776 = vmatpush1.xpose.msra.mxu0 0.0
        %1777 = vmatprep.mubr.f32.mxu0 0.0
        %1778 = vmatmul.mubr.f32.gmra.mrb[0].mxu0 %v826
        %v1779 = vpop.f32.mrb[0].mxu0
        %v1780 = vadd.f32 0.0, %v1779
        %v1781 = vpop.f32.mrb[0].mxu0
        %1782 = vmatprep.mubr.f32.mxu0 0.0
        %1783 = vmatmul.mubr.f32.gmra.mrb[0].mxu0 %v832
        %v1784 = vpop.f32.mrb[0].mxu0
        %v1785 = vadd.f32 0.0, %v1784
        %v1786 = vpop.f32.mrb[0].mxu0
        %1787 = vmatprep.mubr.f32.mxu0 0.0
        %1788 = vmatmul.mubr.f32.gmra.mrb[0].mxu0 %v838
        %v1789 = vpop.f32.mrb[0].mxu0
        %v1790 = vadd.f32 0.0, %v1789
        %v1791 = vpop.f32.mrb[0].mxu0
        %1792 = vmatprep.mubr.f32.mxu0 0.0
        %1793 = vmatmul.mubr.f32.gmra.mrb[0].mxu0 %v844
        %v1794 = vpop.f32.mrb[0].mxu0
        %v1795 = vadd.f32 0.0, %v1794
        %v1796 = vpop.f32.mrb[0].mxu0
        %1797 = vdwg.mxu0
        %1798 = vmatprep.subr.mxu0 0.0
        %1799 = vmatpush1.xpose.msra.mxu0 %v1107
        %1800 = vmatprep.subr.mxu0 0.0
        %1801 = vmatpush1.xpose.msra.mxu0 %v1113
        %1802 = vmatprep.subr.mxu0 0.0
        %1803 = vmatpush1.xpose.msra.mxu0 %v1119
        %1804 = vmatprep.subr.mxu0 0.0
        %1805 = vmatpush1.xpose.msra.mxu0 %v1125
        %1806 = vmatprep.subr.mxu0 0.0
        %1807 = vmatpush1.xpose.msra.mxu0 0.0
        %1808 = vmatprep.subr.mxu0 0.0
        %1809 = vmatpush1.xpose.msra.mxu0 0.0
        %1810 = vmatprep.subr.mxu0 0.0
        %1811 = vmatpush1.xpose.msra.mxu0 0.0
        %1812 = vmatprep.subr.mxu0 0.0
        %1813 = vmatpush1.xpose.msra.mxu0 0.0
        %1814 = vmatprep.subr.mxu0 0.0
        %1815 = vmatpush1.xpose.msra.mxu0 0.0
        %1816 = vmatprep.subr.mxu0 0.0
        %1817 = vmatpush1.xpose.msra.mxu0 0.0
        %1818 = vmatprep.subr.mxu0 0.0
        %1819 = vmatpush1.xpose.msra.mxu0 0.0
        %1820 = vmatprep.subr.mxu0 0.0
        %1821 = vmatpush1.xpose.msra.mxu0 0.0
        %1822 = vmatprep.subr.mxu0 0.0
        %1823 = vmatpush1.xpose.msra.mxu0 0.0
        %1824 = vmatprep.subr.mxu0 0.0
        %1825 = vmatpush1.xpose.msra.mxu0 0.0
        %1826 = vmatprep.subr.mxu0 0.0
        %1827 = vmatpush1.xpose.msra.mxu0 0.0
        %1828 = vmatprep.subr.mxu0 0.0
        %1829 = vmatpush1.xpose.msra.mxu0 0.0
        %1830 = vmatprep.subr.mxu0 0.0
        %1831 = vmatpush1.xpose.msra.mxu0 0.0
        %1832 = vmatprep.subr.mxu0 0.0
        %1833 = vmatpush1.xpose.msra.mxu0 0.0
        %1834 = vmatprep.subr.mxu0 0.0
        %1835 = vmatpush1.xpose.msra.mxu0 0.0
        %1836 = vmatprep.subr.mxu0 0.0
        %1837 = vmatpush1.xpose.msra.mxu0 0.0
        %1838 = vmatprep.subr.mxu0 0.0
        %1839 = vmatpush1.xpose.msra.mxu0 0.0
        %1840 = vmatprep.subr.mxu0 0.0
        %1841 = vmatpush1.xpose.msra.mxu0 0.0
        %1842 = vmatprep.subr.mxu0 0.0
        %1843 = vmatpush1.xpose.msra.mxu0 0.0
        %1844 = vmatprep.subr.mxu0 0.0
        %1845 = vmatpush1.xpose.msra.mxu0 0.0
        %1846 = vmatprep.subr.mxu0 0.0
        %1847 = vmatpush1.xpose.msra.mxu0 0.0
        %1848 = vmatprep.subr.mxu0 0.0
        %1849 = vmatpush1.xpose.msra.mxu0 0.0
        %1850 = vmatprep.subr.mxu0 0.0
        %1851 = vmatpush1.xpose.msra.mxu0 0.0
        %1852 = vmatprep.subr.mxu0 0.0
        %1853 = vmatpush1.xpose.msra.mxu0 0.0
        %1854 = vmatprep.subr.mxu0 0.0
        %1855 = vmatpush1.xpose.msra.mxu0 0.0
        %1856 = vmatprep.subr.mxu0 0.0
        %1857 = vmatpush1.xpose.msra.mxu0 0.0
        %1858 = vmatprep.subr.mxu0 0.0
        %1859 = vmatpush1.xpose.msra.mxu0 0.0
        %1860 = vmatprep.subr.mxu0 0.0
        %1861 = vmatpush1.xpose.msra.mxu0 0.0
        %1862 = vmatprep.mubr.f32.mxu0 0.0
        %1863 = vmatmul.mubr.f32.gmra.mrb[0].mxu0 %v850
        %v1864 = vpop.f32.mrb[0].mxu0
        %v1865 = vadd.f32 0.0, %v1864
        %v1866 = vpop.f32.mrb[0].mxu0
        %1867 = vmatprep.mubr.f32.mxu0 0.0
        %1868 = vmatmul.mubr.f32.gmra.mrb[0].mxu0 %v856
        %v1869 = vpop.f32.mrb[0].mxu0
        %v1870 = vadd.f32 0.0, %v1869
        %v1871 = vpop.f32.mrb[0].mxu0
        %1872 = vmatprep.mubr.f32.mxu0 0.0
        %1873 = vmatmul.mubr.f32.gmra.mrb[0].mxu0 %v862
        %v1874 = vpop.f32.mrb[0].mxu0
        %v1875 = vadd.f32 0.0, %v1874
        %v1876 = vpop.f32.mrb[0].mxu0
        %1877 = vmatprep.mubr.f32.mxu0 0.0
        %1878 = vmatmul.mubr.f32.gmra.mrb[0].mxu0 %v868
        %v1879 = vpop.f32.mrb[0].mxu0
        %v1880 = vadd.f32 0.0, %v1879
        %v1881 = vpop.f32.mrb[0].mxu0
        %1882 = vdwg.mxu0
        %1883 = vmatprep.subr.mxu0 0.0
        %1884 = vmatpush1.xpose.msra.mxu0 %v1131
        %1885 = vmatprep.subr.mxu0 0.0
        %1886 = vmatpush1.xpose.msra.mxu0 %v1137
        %1887 = vmatprep.subr.mxu0 0.0
        %1888 = vmatpush1.xpose.msra.mxu0 %v1143
        %1889 = vmatprep.subr.mxu0 0.0
        %1890 = vmatpush1.xpose.msra.mxu0 %v1149
        %1891 = vmatprep.subr.mxu0 0.0
        %1892 = vmatpush1.xpose.msra.mxu0 0.0
        %1893 = vmatprep.subr.mxu0 0.0
        %1894 = vmatpush1.xpose.msra.mxu0 0.0
        %1895 = vmatprep.subr.mxu0 0.0
        %1896 = vmatpush1.xpose.msra.mxu0 0.0
        %1897 = vmatprep.subr.mxu0 0.0
        %1898 = vmatpush1.xpose.msra.mxu0 0.0
        %1899 = vmatprep.subr.mxu0 0.0
        %1900 = vmatpush1.xpose.msra.mxu0 0.0
        %1901 = vmatprep.subr.mxu0 0.0
        %1902 = vmatpush1.xpose.msra.mxu0 0.0
        %1903 = vmatprep.subr.mxu0 0.0
        %1904 = vmatpush1.xpose.msra.mxu0 0.0
        %1905 = vmatprep.subr.mxu0 0.0
        %1906 = vmatpush1.xpose.msra.mxu0 0.0
        %1907 = vmatprep.subr.mxu0 0.0
        %1908 = vmatpush1.xpose.msra.mxu0 0.0
        %1909 = vmatprep.subr.mxu0 0.0
        %1910 = vmatpush1.xpose.msra.mxu0 0.0
        %1911 = vmatprep.subr.mxu0 0.0
        %1912 = vmatpush1.xpose.msra.mxu0 0.0
        %1913 = vmatprep.subr.mxu0 0.0
        %1914 = vmatpush1.xpose.msra.mxu0 0.0
        %1915 = vmatprep.subr.mxu0 0.0
        %1916 = vmatpush1.xpose.msra.mxu0 0.0
        %1917 = vmatprep.subr.mxu0 0.0
        %1918 = vmatpush1.xpose.msra.mxu0 0.0
        %1919 = vmatprep.subr.mxu0 0.0
        %1920 = vmatpush1.xpose.msra.mxu0 0.0
        %1921 = vmatprep.subr.mxu0 0.0
        %1922 = vmatpush1.xpose.msra.mxu0 0.0
        %1923 = vmatprep.subr.mxu0 0.0
        %1924 = vmatpush1.xpose.msra.mxu0 0.0
        %1925 = vmatprep.subr.mxu0 0.0
        %1926 = vmatpush1.xpose.msra.mxu0 0.0
        %1927 = vmatprep.subr.mxu0 0.0
        %1928 = vmatpush1.xpose.msra.mxu0 0.0
        %1929 = vmatprep.subr.mxu0 0.0
        %1930 = vmatpush1.xpose.msra.mxu0 0.0
        %1931 = vmatprep.subr.mxu0 0.0
        %1932 = vmatpush1.xpose.msra.mxu0 0.0
        %1933 = vmatprep.subr.mxu0 0.0
        %1934 = vmatpush1.xpose.msra.mxu0 0.0
        %1935 = vmatprep.subr.mxu0 0.0
        %1936 = vmatpush1.xpose.msra.mxu0 0.0
        %1937 = vmatprep.subr.mxu0 0.0
        %1938 = vmatpush1.xpose.msra.mxu0 0.0
        %1939 = vmatprep.subr.mxu0 0.0
        %1940 = vmatpush1.xpose.msra.mxu0 0.0
        %1941 = vmatprep.subr.mxu0 0.0
        %1942 = vmatpush1.xpose.msra.mxu0 0.0
        %1943 = vmatprep.subr.mxu0 0.0
        %1944 = vmatpush1.xpose.msra.mxu0 0.0
        %1945 = vmatprep.subr.mxu0 0.0
        %1946 = vmatpush1.xpose.msra.mxu0 0.0
        %1947 = vmatprep.mubr.f32.mxu0 0.0
        %1948 = vmatmul.mubr.f32.gmra.mrb[0].mxu0 %v874
        %v1949 = vpop.f32.mrb[0].mxu0
        %v1950 = vadd.f32 0.0, %v1949
        %v1951 = vpop.f32.mrb[0].mxu0
        %1952 = vmatprep.mubr.f32.mxu0 0.0
        %1953 = vmatmul.mubr.f32.gmra.mrb[0].mxu0 %v880
        %v1954 = vpop.f32.mrb[0].mxu0
        %v1955 = vadd.f32 0.0, %v1954
        %v1956 = vpop.f32.mrb[0].mxu0
        %1957 = vmatprep.mubr.f32.mxu0 0.0
        %1958 = vmatmul.mubr.f32.gmra.mrb[0].mxu0 %v886
        %v1959 = vpop.f32.mrb[0].mxu0
        %v1960 = vadd.f32 0.0, %v1959
        %v1961 = vpop.f32.mrb[0].mxu0
        %1962 = vmatprep.mubr.f32.mxu0 0.0
        %1963 = vmatmul.mubr.f32.gmra.mrb[0].mxu0 %v892
        %v1964 = vpop.f32.mrb[0].mxu0
        %v1965 = vadd.f32 0.0, %v1964
        %v1966 = vpop.f32.mrb[0].mxu0
        %1967 = vdwg.mxu0
        %1968 = vmatprep.subr.mxu0 0.0
        %1969 = vmatpush1.xpose.msra.mxu0 %v1155
        %1970 = vmatprep.subr.mxu0 0.0
        %1971 = vmatpush1.xpose.msra.mxu0 %v1161
        %1972 = vmatprep.subr.mxu0 0.0
        %1973 = vmatpush1.xpose.msra.mxu0 %v1167
        %1974 = vmatprep.subr.mxu0 0.0
        %1975 = vmatpush1.xpose.msra.mxu0 %v1173
        %1976 = vmatprep.subr.mxu0 0.0
        %1977 = vmatpush1.xpose.msra.mxu0 0.0
        %1978 = vmatprep.subr.mxu0 0.0
        %1979 = vmatpush1.xpose.msra.mxu0 0.0
        %1980 = vmatprep.subr.mxu0 0.0
        %1981 = vmatpush1.xpose.msra.mxu0 0.0
        %1982 = vmatprep.subr.mxu0 0.0
        %1983 = vmatpush1.xpose.msra.mxu0 0.0
        %1984 = vmatprep.subr.mxu0 0.0
        %1985 = vmatpush1.xpose.msra.mxu0 0.0
        %1986 = vmatprep.subr.mxu0 0.0
        %1987 = vmatpush1.xpose.msra.mxu0 0.0
        %1988 = vmatprep.subr.mxu0 0.0
        %1989 = vmatpush1.xpose.msra.mxu0 0.0
        %1990 = vmatprep.subr.mxu0 0.0
        %1991 = vmatpush1.xpose.msra.mxu0 0.0
        %1992 = vmatprep.subr.mxu0 0.0
        %1993 = vmatpush1.xpose.msra.mxu0 0.0
        %1994 = vmatprep.subr.mxu0 0.0
        %1995 = vmatpush1.xpose.msra.mxu0 0.0
        %1996 = vmatprep.subr.mxu0 0.0
        %1997 = vmatpush1.xpose.msra.mxu0 0.0
        %1998 = vmatprep.subr.mxu0 0.0
        %1999 = vmatpush1.xpose.msra.mxu0 0.0
        %2000 = vmatprep.subr.mxu0 0.0
        %2001 = vmatpush1.xpose.msra.mxu0 0.0
        %2002 = vmatprep.subr.mxu0 0.0
        %2003 = vmatpush1.xpose.msra.mxu0 0.0
        %2004 = vmatprep.subr.mxu0 0.0
        %2005 = vmatpush1.xpose.msra.mxu0 0.0
        %2006 = vmatprep.subr.mxu0 0.0
        %2007 = vmatpush1.xpose.msra.mxu0 0.0
        %2008 = vmatprep.subr.mxu0 0.0
        %2009 = vmatpush1.xpose.msra.mxu0 0.0
        %2010 = vmatprep.subr.mxu0 0.0
        %2011 = vmatpush1.xpose.msra.mxu0 0.0
        %2012 = vmatprep.subr.mxu0 0.0
        %2013 = vmatpush1.xpose.msra.mxu0 0.0
        %2014 = vmatprep.subr.mxu0 0.0
        %2015 = vmatpush1.xpose.msra.mxu0 0.0
        %2016 = vmatprep.subr.mxu0 0.0
        %2017 = vmatpush1.xpose.msra.mxu0 0.0
        %2018 = vmatprep.subr.mxu0 0.0
        %2019 = vmatpush1.xpose.msra.mxu0 0.0
        %2020 = vmatprep.subr.mxu0 0.0
        %2021 = vmatpush1.xpose.msra.mxu0 0.0
        %2022 = vmatprep.subr.mxu0 0.0
        %2023 = vmatpush1.xpose.msra.mxu0 0.0
        %2024 = vmatprep.subr.mxu0 0.0
        %2025 = vmatpush1.xpose.msra.mxu0 0.0
        %2026 = vmatprep.subr.mxu0 0.0
        %2027 = vmatpush1.xpose.msra.mxu0 0.0
        %2028 = vmatprep.subr.mxu0 0.0
        %2029 = vmatpush1.xpose.msra.mxu0 0.0
        %2030 = vmatprep.subr.mxu0 0.0
        %2031 = vmatpush1.xpose.msra.mxu0 0.0
        %2032 = vmatprep.mubr.f32.mxu0 0.0
        %2033 = vmatmul.mubr.f32.gmra.mrb[0].mxu0 %v898
        %v2034 = vpop.f32.mrb[0].mxu0
        %v2035 = vadd.f32 0.0, %v2034
        %v2036 = vpop.f32.mrb[0].mxu0
        %2037 = vmatprep.mubr.f32.mxu0 0.0
        %2038 = vmatmul.mubr.f32.gmra.mrb[0].mxu0 %v904
        %v2039 = vpop.f32.mrb[0].mxu0
        %v2040 = vadd.f32 0.0, %v2039
        %v2041 = vpop.f32.mrb[0].mxu0
        %2042 = vmatprep.mubr.f32.mxu0 0.0
        %2043 = vmatmul.mubr.f32.gmra.mrb[0].mxu0 %v910
        %v2044 = vpop.f32.mrb[0].mxu0
        %v2045 = vadd.f32 0.0, %v2044
        %v2046 = vpop.f32.mrb[0].mxu0
        %2047 = vmatprep.mubr.f32.mxu0 0.0
        %2048 = vmatmul.mubr.f32.gmra.mrb[0].mxu0 %v916
        %v2049 = vpop.f32.mrb[0].mxu0
        %v2050 = vadd.f32 0.0, %v2049
        %v2051 = vpop.f32.mrb[0].mxu0
        %2052 = vdwg.mxu0
        %2053 = vmatprep.subr.mxu0 0.0
        %2054 = vmatpush1.xpose.msra.mxu0 %v1179
        %2055 = vmatprep.subr.mxu0 0.0
        %2056 = vmatpush1.xpose.msra.mxu0 %v1185
        %2057 = vmatprep.subr.mxu0 0.0
        %2058 = vmatpush1.xpose.msra.mxu0 %v1191
        %2059 = vmatprep.subr.mxu0 0.0
        %2060 = vmatpush1.xpose.msra.mxu0 %v1197
        %2061 = vmatprep.subr.mxu0 0.0
        %2062 = vmatpush1.xpose.msra.mxu0 0.0
        %2063 = vmatprep.subr.mxu0 0.0
        %2064 = vmatpush1.xpose.msra.mxu0 0.0
        %2065 = vmatprep.subr.mxu0 0.0
        %2066 = vmatpush1.xpose.msra.mxu0 0.0
        %2067 = vmatprep.subr.mxu0 0.0
        %2068 = vmatpush1.xpose.msra.mxu0 0.0
        %2069 = vmatprep.subr.mxu0 0.0
        %2070 = vmatpush1.xpose.msra.mxu0 0.0
        %2071 = vmatprep.subr.mxu0 0.0
        %2072 = vmatpush1.xpose.msra.mxu0 0.0
        %2073 = vmatprep.subr.mxu0 0.0
        %2074 = vmatpush1.xpose.msra.mxu0 0.0
        %2075 = vmatprep.subr.mxu0 0.0
        %2076 = vmatpush1.xpose.msra.mxu0 0.0
        %2077 = vmatprep.subr.mxu0 0.0
        %2078 = vmatpush1.xpose.msra.mxu0 0.0
        %2079 = vmatprep.subr.mxu0 0.0
        %2080 = vmatpush1.xpose.msra.mxu0 0.0
        %2081 = vmatprep.subr.mxu0 0.0
        %2082 = vmatpush1.xpose.msra.mxu0 0.0
        %2083 = vmatprep.subr.mxu0 0.0
        %2084 = vmatpush1.xpose.msra.mxu0 0.0
        %2085 = vmatprep.subr.mxu0 0.0
        %2086 = vmatpush1.xpose.msra.mxu0 0.0
        %2087 = vmatprep.subr.mxu0 0.0
        %2088 = vmatpush1.xpose.msra.mxu0 0.0
        %2089 = vmatprep.subr.mxu0 0.0
        %2090 = vmatpush1.xpose.msra.mxu0 0.0
        %2091 = vmatprep.subr.mxu0 0.0
        %2092 = vmatpush1.xpose.msra.mxu0 0.0
        %2093 = vmatprep.subr.mxu0 0.0
        %2094 = vmatpush1.xpose.msra.mxu0 0.0
        %2095 = vmatprep.subr.mxu0 0.0
        %2096 = vmatpush1.xpose.msra.mxu0 0.0
        %2097 = vmatprep.subr.mxu0 0.0
        %2098 = vmatpush1.xpose.msra.mxu0 0.0
        %2099 = vmatprep.subr.mxu0 0.0
        %2100 = vmatpush1.xpose.msra.mxu0 0.0
        %2101 = vmatprep.subr.mxu0 0.0
        %2102 = vmatpush1.xpose.msra.mxu0 0.0
        %2103 = vmatprep.subr.mxu0 0.0
        %2104 = vmatpush1.xpose.msra.mxu0 0.0
        %2105 = vmatprep.subr.mxu0 0.0
        %2106 = vmatpush1.xpose.msra.mxu0 0.0
        %2107 = vmatprep.subr.mxu0 0.0
        %2108 = vmatpush1.xpose.msra.mxu0 0.0
        %2109 = vmatprep.subr.mxu0 0.0
        %2110 = vmatpush1.xpose.msra.mxu0 0.0
        %2111 = vmatprep.subr.mxu0 0.0
        %2112 = vmatpush1.xpose.msra.mxu0 0.0
        %2113 = vmatprep.subr.mxu0 0.0
        %2114 = vmatpush1.xpose.msra.mxu0 0.0
        %2115 = vmatprep.subr.mxu0 0.0
        %2116 = vmatpush1.xpose.msra.mxu0 0.0
        %2117 = vmatprep.mubr.f32.mxu0 0.0
        %2118 = vmatmul.mubr.f32.gmra.mrb[0].mxu0 %v922
        %v2119 = vpop.f32.mrb[0].mxu0
        %v2120 = vadd.f32 0.0, %v2119
        %v2121 = vpop.f32.mrb[0].mxu0
        %2122 = vmatprep.mubr.f32.mxu0 0.0
        %2123 = vmatmul.mubr.f32.gmra.mrb[0].mxu0 %v928
        %v2124 = vpop.f32.mrb[0].mxu0
        %v2125 = vadd.f32 0.0, %v2124
        %v2126 = vpop.f32.mrb[0].mxu0
        %2127 = vmatprep.mubr.f32.mxu0 0.0
        %2128 = vmatmul.mubr.f32.gmra.mrb[0].mxu0 %v934
        %v2129 = vpop.f32.mrb[0].mxu0
        %v2130 = vadd.f32 0.0, %v2129
        %v2131 = vpop.f32.mrb[0].mxu0
        %2132 = vmatprep.mubr.f32.mxu0 0.0
        %2133 = vmatmul.mubr.f32.gmra.mrb[0].mxu0 %v940
        %v2134 = vpop.f32.mrb[0].mxu0
        %v2135 = vadd.f32 0.0, %v2134
        %v2136 = vpop.f32.mrb[0].mxu0
        %2137 = vdwg.mxu0
        %vm2138 = vcmask 261120
        %v2139 = vsel %vm2138, %v1525, -inf
        %2140 = vmax.xlane.f32.xlu0 %v2139
        %v2141 = vpop.xlane.xlu0 %2140
        %v2142 = vsel %vm2138, %v1530, -inf
        %2143 = vmax.xlane.f32.xlu0 %v2142
        %v2144 = vpop.xlane.xlu0 %2143
        %v2145 = vsel %vm2138, %v1535, -inf
        %2146 = vmax.xlane.f32.xlu0 %v2145
        %v2147 = vpop.xlane.xlu0 %2146
        %v2148 = vsel %vm2138, %v1540, -inf
        %2149 = vmax.xlane.f32.xlu0 %v2148
        %v2150 = vpop.xlane.xlu0 %2149
        %v2151 = vsel %vm2138, %v1610, -inf
        %2152 = vmax.xlane.f32.xlu0 %v2151
        %v2153 = vpop.xlane.xlu0 %2152
        %v2154 = vsel %vm2138, %v1615, -inf
        %2155 = vmax.xlane.f32.xlu0 %v2154
        %v2156 = vpop.xlane.xlu0 %2155
        %v2157 = vsel %vm2138, %v1620, -inf
        %2158 = vmax.xlane.f32.xlu0 %v2157
        %v2159 = vpop.xlane.xlu0 %2158
        %v2160 = vsel %vm2138, %v1625, -inf
        %2161 = vmax.xlane.f32.xlu0 %v2160
        %v2162 = vpop.xlane.xlu0 %2161
        %v2163 = vsel %vm2138, %v1695, -inf
        %2164 = vmax.xlane.f32.xlu0 %v2163
        %v2165 = vpop.xlane.xlu0 %2164
        %v2166 = vsel %vm2138, %v1700, -inf
        %2167 = vmax.xlane.f32.xlu0 %v2166
        %v2168 = vpop.xlane.xlu0 %2167
        %v2169 = vsel %vm2138, %v1705, -inf
        %2170 = vmax.xlane.f32.xlu0 %v2169
        %v2171 = vpop.xlane.xlu0 %2170
        %v2172 = vsel %vm2138, %v1710, -inf
        %2173 = vmax.xlane.f32.xlu0 %v2172
        %v2174 = vpop.xlane.xlu0 %2173
        %v2175 = vsel %vm2138, %v1780, -inf
        %2176 = vmax.xlane.f32.xlu0 %v2175
        %v2177 = vpop.xlane.xlu0 %2176
        %v2178 = vsel %vm2138, %v1785, -inf
        %2179 = vmax.xlane.f32.xlu0 %v2178
        %v2180 = vpop.xlane.xlu0 %2179
        %v2181 = vsel %vm2138, %v1790, -inf
        %2182 = vmax.xlane.f32.xlu0 %v2181
        %v2183 = vpop.xlane.xlu0 %2182
        %v2184 = vsel %vm2138, %v1795, -inf
        %2185 = vmax.xlane.f32.xlu0 %v2184
        %v2186 = vpop.xlane.xlu0 %2185
        %v2187 = vsel %vm2138, %v1865, -inf
        %2188 = vmax.xlane.f32.xlu0 %v2187
        %v2189 = vpop.xlane.xlu0 %2188
        %v2190 = vsel %vm2138, %v1870, -inf
        %2191 = vmax.xlane.f32.xlu0 %v2190
        %v2192 = vpop.xlane.xlu0 %2191
        %v2193 = vsel %vm2138, %v1875, -inf
        %2194 = vmax.xlane.f32.xlu0 %v2193
        %v2195 = vpop.xlane.xlu0 %2194
        %v2196 = vsel %vm2138, %v1880, -inf
        %2197 = vmax.xlane.f32.xlu0 %v2196
        %v2198 = vpop.xlane.xlu0 %2197
        %v2199 = vsel %vm2138, %v1950, -inf
        %2200 = vmax.xlane.f32.xlu0 %v2199
        %v2201 = vpop.xlane.xlu0 %2200
        %v2202 = vsel %vm2138, %v1955, -inf
        %2203 = vmax.xlane.f32.xlu0 %v2202
        %v2204 = vpop.xlane.xlu0 %2203
        %v2205 = vsel %vm2138, %v1960, -inf
        %2206 = vmax.xlane.f32.xlu0 %v2205
        %v2207 = vpop.xlane.xlu0 %2206
        %v2208 = vsel %vm2138, %v1965, -inf
        %2209 = vmax.xlane.f32.xlu0 %v2208
        %v2210 = vpop.xlane.xlu0 %2209
        %v2211 = vsel %vm2138, %v2035, -inf
        %2212 = vmax.xlane.f32.xlu0 %v2211
        %v2213 = vpop.xlane.xlu0 %2212
        %v2214 = vsel %vm2138, %v2040, -inf
        %2215 = vmax.xlane.f32.xlu0 %v2214
        %v2216 = vpop.xlane.xlu0 %2215
        %v2217 = vsel %vm2138, %v2045, -inf
        %2218 = vmax.xlane.f32.xlu0 %v2217
        %v2219 = vpop.xlane.xlu0 %2218
        %v2220 = vsel %vm2138, %v2050, -inf
        %2221 = vmax.xlane.f32.xlu0 %v2220
        %v2222 = vpop.xlane.xlu0 %2221
        %v2223 = vsel %vm2138, %v2120, -inf
        %2224 = vmax.xlane.f32.xlu0 %v2223
        %v2225 = vpop.xlane.xlu0 %2224
        %v2226 = vsel %vm2138, %v2125, -inf
        %2227 = vmax.xlane.f32.xlu0 %v2226
        %v2228 = vpop.xlane.xlu0 %2227
        %v2229 = vsel %vm2138, %v2130, -inf
        %2230 = vmax.xlane.f32.xlu0 %v2229
        %v2231 = vpop.xlane.xlu0 %2230
        %v2232 = vsel %vm2138, %v2135, -inf
        %2233 = vmax.xlane.f32.xlu0 %v2232
        %v2234 = vpop.xlane.xlu0 %2233
        %v2235 = vsub.f32 %v1525, %v2141
        %v2236 = vsub.f32 %v1530, %v2144
        %v2237 = vsub.f32 %v1535, %v2147
        %v2238 = vsub.f32 %v1540, %v2150
        %v2239 = vsub.f32 %v1610, %v2153
        %v2240 = vsub.f32 %v1615, %v2156
        %v2241 = vsub.f32 %v1620, %v2159
        %v2242 = vsub.f32 %v1625, %v2162
        %v2243 = vsub.f32 %v1695, %v2165
        %v2244 = vsub.f32 %v1700, %v2168
        %v2245 = vsub.f32 %v1705, %v2171
        %v2246 = vsub.f32 %v1710, %v2174
        %v2247 = vsub.f32 %v1780, %v2177
        %v2248 = vsub.f32 %v1785, %v2180
        %v2249 = vsub.f32 %v1790, %v2183
        %v2250 = vsub.f32 %v1795, %v2186
        %v2251 = vsub.f32 %v1865, %v2189
        %v2252 = vsub.f32 %v1870, %v2192
        %v2253 = vsub.f32 %v1875, %v2195
        %v2254 = vsub.f32 %v1880, %v2198
        %v2255 = vsub.f32 %v1950, %v2201
        %v2256 = vsub.f32 %v1955, %v2204
        %v2257 = vsub.f32 %v1960, %v2207
        %v2258 = vsub.f32 %v1965, %v2210
        %v2259 = vsub.f32 %v2035, %v2213
        %v2260 = vsub.f32 %v2040, %v2216
        %v2261 = vsub.f32 %v2045, %v2219
        %v2262 = vsub.f32 %v2050, %v2222
        %v2263 = vsub.f32 %v2120, %v2225
        %v2264 = vsub.f32 %v2125, %v2228
        %v2265 = vsub.f32 %v2130, %v2231
        %v2266 = vsub.f32 %v2135, %v2234
        %v2267 = vmul.f32 %v2235, 1.442695
        %v2268 = vpow.pop %v2267
        %v2269 = vmul.f32 %v2236, 1.442695
        %v2270 = vpow.pop %v2269
        %v2271 = vmul.f32 %v2237, 1.442695
        %v2272 = vpow.pop %v2271
        %v2273 = vmul.f32 %v2238, 1.442695
        %v2274 = vpow.pop %v2273
        %v2275 = vmul.f32 %v2239, 1.442695
        %v2276 = vpow.pop %v2275
        %v2277 = vmul.f32 %v2240, 1.442695
        %v2278 = vpow.pop %v2277
        %v2279 = vmul.f32 %v2241, 1.442695
        %v2280 = vpow.pop %v2279
        %v2281 = vmul.f32 %v2242, 1.442695
        %v2282 = vpow.pop %v2281
        %v2283 = vmul.f32 %v2243, 1.442695
        %v2284 = vpow.pop %v2283
        %v2285 = vmul.f32 %v2244, 1.442695
        %v2286 = vpow.pop %v2285
        %v2287 = vmul.f32 %v2245, 1.442695
        %v2288 = vpow.pop %v2287
        %v2289 = vmul.f32 %v2246, 1.442695
        %v2290 = vpow.pop %v2289
        %v2291 = vmul.f32 %v2247, 1.442695
        %v2292 = vpow.pop %v2291
        %v2293 = vmul.f32 %v2248, 1.442695
        %v2294 = vpow.pop %v2293
        %v2295 = vmul.f32 %v2249, 1.442695
        %v2296 = vpow.pop %v2295
        %v2297 = vmul.f32 %v2250, 1.442695
        %v2298 = vpow.pop %v2297
        %v2299 = vmul.f32 %v2251, 1.442695
        %v2300 = vpow.pop %v2299
        %v2301 = vmul.f32 %v2252, 1.442695
        %v2302 = vpow.pop %v2301
        %v2303 = vmul.f32 %v2253, 1.442695
        %v2304 = vpow.pop %v2303
        %v2305 = vmul.f32 %v2254, 1.442695
        %v2306 = vpow.pop %v2305
        %v2307 = vmul.f32 %v2255, 1.442695
        %v2308 = vpow.pop %v2307
        %v2309 = vmul.f32 %v2256, 1.442695
        %v2310 = vpow.pop %v2309
        %v2311 = vmul.f32 %v2257, 1.442695
        %v2312 = vpow.pop %v2311
        %v2313 = vmul.f32 %v2258, 1.442695
        %v2314 = vpow.pop %v2313
        %v2315 = vmul.f32 %v2259, 1.442695
        %v2316 = vpow.pop %v2315
        %v2317 = vmul.f32 %v2260, 1.442695
        %v2318 = vpow.pop %v2317
        %v2319 = vmul.f32 %v2261, 1.442695
        %v2320 = vpow.pop %v2319
        %v2321 = vmul.f32 %v2262, 1.442695
        %v2322 = vpow.pop %v2321
        %v2323 = vmul.f32 %v2263, 1.442695
        %v2324 = vpow.pop %v2323
        %v2325 = vmul.f32 %v2264, 1.442695
        %v2326 = vpow.pop %v2325
        %v2327 = vmul.f32 %v2265, 1.442695
        %v2328 = vpow.pop %v2327
        %v2329 = vmul.f32 %v2266, 1.442695
        %v2330 = vpow.pop %v2329
        %v2331 = vsel %vm2138, %v2268, 0.0
        %2332 = vadd.xlane.f32.xlu0 %v2331
        %v2333 = vpop.xlane.xlu0 %2332
        %v2334 = vsel %vm2138, %v2270, 0.0
        %2335 = vadd.xlane.f32.xlu0 %v2334
        %v2336 = vpop.xlane.xlu0 %2335
        %v2337 = vsel %vm2138, %v2272, 0.0
        %2338 = vadd.xlane.f32.xlu0 %v2337
        %v2339 = vpop.xlane.xlu0 %2338
        %v2340 = vsel %vm2138, %v2274, 0.0
        %2341 = vadd.xlane.f32.xlu0 %v2340
        %v2342 = vpop.xlane.xlu0 %2341
        %v2343 = vsel %vm2138, %v2276, 0.0
        %2344 = vadd.xlane.f32.xlu0 %v2343
        %v2345 = vpop.xlane.xlu0 %2344
        %v2346 = vsel %vm2138, %v2278, 0.0
        %2347 = vadd.xlane.f32.xlu0 %v2346
        %v2348 = vpop.xlane.xlu0 %2347
        %v2349 = vsel %vm2138, %v2280, 0.0
        %2350 = vadd.xlane.f32.xlu0 %v2349
        %v2351 = vpop.xlane.xlu0 %2350
        %v2352 = vsel %vm2138, %v2282, 0.0
        %2353 = vadd.xlane.f32.xlu0 %v2352
        %v2354 = vpop.xlane.xlu0 %2353
        %v2355 = vsel %vm2138, %v2284, 0.0
        %2356 = vadd.xlane.f32.xlu0 %v2355
        %v2357 = vpop.xlane.xlu0 %2356
        %v2358 = vsel %vm2138, %v2286, 0.0
        %2359 = vadd.xlane.f32.xlu0 %v2358
        %v2360 = vpop.xlane.xlu0 %2359
        %v2361 = vsel %vm2138, %v2288, 0.0
        %2362 = vadd.xlane.f32.xlu0 %v2361
        %v2363 = vpop.xlane.xlu0 %2362
        %v2364 = vsel %vm2138, %v2290, 0.0
        %2365 = vadd.xlane.f32.xlu0 %v2364
        %v2366 = vpop.xlane.xlu0 %2365
        %v2367 = vsel %vm2138, %v2292, 0.0
        %2368 = vadd.xlane.f32.xlu0 %v2367
        %v2369 = vpop.xlane.xlu0 %2368
        %v2370 = vsel %vm2138, %v2294, 0.0
        %2371 = vadd.xlane.f32.xlu0 %v2370
        %v2372 = vpop.xlane.xlu0 %2371
        %v2373 = vsel %vm2138, %v2296, 0.0
        %2374 = vadd.xlane.f32.xlu0 %v2373
        %v2375 = vpop.xlane.xlu0 %2374
        %v2376 = vsel %vm2138, %v2298, 0.0
        %2377 = vadd.xlane.f32.xlu0 %v2376
        %v2378 = vpop.xlane.xlu0 %2377
        %v2379 = vsel %vm2138, %v2300, 0.0
        %2380 = vadd.xlane.f32.xlu0 %v2379
        %v2381 = vpop.xlane.xlu0 %2380
        %v2382 = vsel %vm2138, %v2302, 0.0
        %2383 = vadd.xlane.f32.xlu0 %v2382
        %v2384 = vpop.xlane.xlu0 %2383
        %v2385 = vsel %vm2138, %v2304, 0.0
        %2386 = vadd.xlane.f32.xlu0 %v2385
        %v2387 = vpop.xlane.xlu0 %2386
        %v2388 = vsel %vm2138, %v2306, 0.0
        %2389 = vadd.xlane.f32.xlu0 %v2388
        %v2390 = vpop.xlane.xlu0 %2389
        %v2391 = vsel %vm2138, %v2308, 0.0
        %2392 = vadd.xlane.f32.xlu0 %v2391
        %v2393 = vpop.xlane.xlu0 %2392
        %v2394 = vsel %vm2138, %v2310, 0.0
        %2395 = vadd.xlane.f32.xlu0 %v2394
        %v2396 = vpop.xlane.xlu0 %2395
        %v2397 = vsel %vm2138, %v2312, 0.0
        %2398 = vadd.xlane.f32.xlu0 %v2397
        %v2399 = vpop.xlane.xlu0 %2398
        %v2400 = vsel %vm2138, %v2314, 0.0
        %2401 = vadd.xlane.f32.xlu0 %v2400
        %v2402 = vpop.xlane.xlu0 %2401
        %v2403 = vsel %vm2138, %v2316, 0.0
        %2404 = vadd.xlane.f32.xlu0 %v2403
        %v2405 = vpop.xlane.xlu0 %2404
        %v2406 = vsel %vm2138, %v2318, 0.0
        %2407 = vadd.xlane.f32.xlu0 %v2406
        %v2408 = vpop.xlane.xlu0 %2407
        %v2409 = vsel %vm2138, %v2320, 0.0
        %2410 = vadd.xlane.f32.xlu0 %v2409
        %v2411 = vpop.xlane.xlu0 %2410
        %v2412 = vsel %vm2138, %v2322, 0.0
        %2413 = vadd.xlane.f32.xlu0 %v2412
        %v2414 = vpop.xlane.xlu0 %2413
        %v2415 = vsel %vm2138, %v2324, 0.0
        %2416 = vadd.xlane.f32.xlu0 %v2415
        %v2417 = vpop.xlane.xlu0 %2416
        %v2418 = vsel %vm2138, %v2326, 0.0
        %2419 = vadd.xlane.f32.xlu0 %v2418
        %v2420 = vpop.xlane.xlu0 %2419
        %v2421 = vsel %vm2138, %v2328, 0.0
        %2422 = vadd.xlane.f32.xlu0 %v2421
        %v2423 = vpop.xlane.xlu0 %2422
        %v2424 = vsel %vm2138, %v2330, 0.0
        %2425 = vadd.xlane.f32.xlu0 %v2424
        %v2426 = vpop.xlane.xlu0 %2425
        %v2428 = vsel %vm2138, %v2268, 0
        %v2431 = vsel %vm2138, %v2270, 0
        %v2434 = vsel %vm2138, %v2272, 0
        %v2437 = vsel %vm2138, %v2274, 0
        %2439 = vmatprep.subr.mxu0 0.0
        %2440 = vmatpush1.msra.mxu0 %v1268
        %2441 = vmatprep.subr.mxu0 0.0
        %2442 = vmatpush1.msra.mxu0 %v1274
        %2443 = vmatprep.subr.mxu0 0.0
        %2444 = vmatpush1.msra.mxu0 %v1280
        %2445 = vmatprep.subr.mxu0 0.0
        %2446 = vmatpush1.msra.mxu0 %v1286
        %2447 = vmatprep.subr.mxu0 0.0
        %2448 = vmatpush1.msra.mxu0 0.0
        %2449 = vmatprep.subr.mxu0 0.0
        %2450 = vmatpush1.msra.mxu0 0.0
        %2451 = vmatprep.subr.mxu0 0.0
        %2452 = vmatpush1.msra.mxu0 0.0
        %2453 = vmatprep.subr.mxu0 0.0
        %2454 = vmatpush1.msra.mxu0 0.0
        %2455 = vmatprep.subr.mxu0 0.0
        %2456 = vmatpush1.msra.mxu0 0.0
        %2457 = vmatprep.subr.mxu0 0.0
        %2458 = vmatpush1.msra.mxu0 0.0
        %2459 = vmatprep.subr.mxu0 0.0
        %2460 = vmatpush1.msra.mxu0 0.0
        %2461 = vmatprep.subr.mxu0 0.0
        %2462 = vmatpush1.msra.mxu0 0.0
        %2463 = vmatprep.subr.mxu0 0.0
        %2464 = vmatpush1.msra.mxu0 0.0
        %2465 = vmatprep.subr.mxu0 0.0
        %2466 = vmatpush1.msra.mxu0 0.0
        %2467 = vmatprep.subr.mxu0 0.0
        %2468 = vmatpush1.msra.mxu0 0.0
        %2469 = vmatprep.subr.mxu0 0.0
        %2470 = vmatpush1.msra.mxu0 0.0
        %2471 = vmatprep.subr.mxu0 0.0
        %2472 = vmatpush1.msra.mxu0 0.0
        %2473 = vmatprep.subr.mxu0 0.0
        %2474 = vmatpush1.msra.mxu0 0.0
        %2475 = vmatprep.subr.mxu0 0.0
        %2476 = vmatpush1.msra.mxu0 0.0
        %2477 = vmatprep.subr.mxu0 0.0
        %2478 = vmatpush1.msra.mxu0 0.0
        %2479 = vmatprep.subr.mxu0 0.0
        %2480 = vmatpush1.msra.mxu0 0.0
        %2481 = vmatprep.subr.mxu0 0.0
        %2482 = vmatpush1.msra.mxu0 0.0
        %2483 = vmatprep.subr.mxu0 0.0
        %2484 = vmatpush1.msra.mxu0 0.0
        %2485 = vmatprep.subr.mxu0 0.0
        %2486 = vmatpush1.msra.mxu0 0.0
        %2487 = vmatprep.subr.mxu0 0.0
        %2488 = vmatpush1.msra.mxu0 0.0
        %2489 = vmatprep.subr.mxu0 0.0
        %2490 = vmatpush1.msra.mxu0 0.0
        %2491 = vmatprep.subr.mxu0 0.0
        %2492 = vmatpush1.msra.mxu0 0.0
        %2493 = vmatprep.subr.mxu0 0.0
        %2494 = vmatpush1.msra.mxu0 0.0
        %2495 = vmatprep.subr.mxu0 0.0
        %2496 = vmatpush1.msra.mxu0 0.0
        %2497 = vmatprep.subr.mxu0 0.0
        %2498 = vmatpush1.msra.mxu0 0.0
        %2499 = vmatprep.subr.mxu0 0.0
        %2500 = vmatpush1.msra.mxu0 0.0
        %2501 = vmatprep.subr.mxu0 0.0
        %2502 = vmatpush1.msra.mxu0 0.0
        %2503 = vmatprep.mubr.f32.mxu0 0.0
        %2504 = vmatmul.mubr.f32.gmra.mrb[0].mxu0 %v2428
        %v2505 = vpop.f32.mrb[0].mxu0
        %v2506 = vadd.f32 0.0, %v2505
        %v2507 = vpop.f32.mrb[0].mxu0
        %2508 = vmatprep.mubr.f32.mxu0 0.0
        %2509 = vmatmul.mubr.f32.gmra.mrb[0].mxu0 %v2431
        %v2510 = vpop.f32.mrb[0].mxu0
        %v2511 = vadd.f32 0.0, %v2510
        %v2512 = vpop.f32.mrb[0].mxu0
        %2513 = vmatprep.mubr.f32.mxu0 0.0
        %2514 = vmatmul.mubr.f32.gmra.mrb[0].mxu0 %v2434
        %v2515 = vpop.f32.mrb[0].mxu0
        %v2516 = vadd.f32 0.0, %v2515
        %v2517 = vpop.f32.mrb[0].mxu0
        %2518 = vmatprep.mubr.f32.mxu0 0.0
        %2519 = vmatmul.mubr.f32.gmra.mrb[0].mxu0 %v2437
        %v2520 = vpop.f32.mrb[0].mxu0
        %v2521 = vadd.f32 0.0, %v2520
        %v2522 = vpop.f32.mrb[0].mxu0
        %2523 = vdwg.mxu0
        %v2525 = vsel %vm2138, %v2276, 0
        %v2528 = vsel %vm2138, %v2278, 0
        %v2531 = vsel %vm2138, %v2280, 0
        %v2534 = vsel %vm2138, %v2282, 0
        %2536 = vmatprep.subr.mxu0 0.0
        %2537 = vmatpush1.msra.mxu0 %v1292
        %2538 = vmatprep.subr.mxu0 0.0
        %2539 = vmatpush1.msra.mxu0 %v1298
        %2540 = vmatprep.subr.mxu0 0.0
        %2541 = vmatpush1.msra.mxu0 %v1304
        %2542 = vmatprep.subr.mxu0 0.0
        %2543 = vmatpush1.msra.mxu0 %v1310
        %2544 = vmatprep.subr.mxu0 0.0
        %2545 = vmatpush1.msra.mxu0 0.0
        %2546 = vmatprep.subr.mxu0 0.0
        %2547 = vmatpush1.msra.mxu0 0.0
        %2548 = vmatprep.subr.mxu0 0.0
        %2549 = vmatpush1.msra.mxu0 0.0
        %2550 = vmatprep.subr.mxu0 0.0
        %2551 = vmatpush1.msra.mxu0 0.0
        %2552 = vmatprep.subr.mxu0 0.0
        %2553 = vmatpush1.msra.mxu0 0.0
        %2554 = vmatprep.subr.mxu0 0.0
        %2555 = vmatpush1.msra.mxu0 0.0
        %2556 = vmatprep.subr.mxu0 0.0
        %2557 = vmatpush1.msra.mxu0 0.0
        %2558 = vmatprep.subr.mxu0 0.0
        %2559 = vmatpush1.msra.mxu0 0.0
        %2560 = vmatprep.subr.mxu0 0.0
        %2561 = vmatpush1.msra.mxu0 0.0
        %2562 = vmatprep.subr.mxu0 0.0
        %2563 = vmatpush1.msra.mxu0 0.0
        %2564 = vmatprep.subr.mxu0 0.0
        %2565 = vmatpush1.msra.mxu0 0.0
        %2566 = vmatprep.subr.mxu0 0.0
        %2567 = vmatpush1.msra.mxu0 0.0
        %2568 = vmatprep.subr.mxu0 0.0
        %2569 = vmatpush1.msra.mxu0 0.0
        %2570 = vmatprep.subr.mxu0 0.0
        %2571 = vmatpush1.msra.mxu0 0.0
        %2572 = vmatprep.subr.mxu0 0.0
        %2573 = vmatpush1.msra.mxu0 0.0
        %2574 = vmatprep.subr.mxu0 0.0
        %2575 = vmatpush1.msra.mxu0 0.0
        %2576 = vmatprep.subr.mxu0 0.0
        %2577 = vmatpush1.msra.mxu0 0.0
        %2578 = vmatprep.subr.mxu0 0.0
        %2579 = vmatpush1.msra.mxu0 0.0
        %2580 = vmatprep.subr.mxu0 0.0
        %2581 = vmatpush1.msra.mxu0 0.0
        %2582 = vmatprep.subr.mxu0 0.0
        %2583 = vmatpush1.msra.mxu0 0.0
        %2584 = vmatprep.subr.mxu0 0.0
        %2585 = vmatpush1.msra.mxu0 0.0
        %2586 = vmatprep.subr.mxu0 0.0
        %2587 = vmatpush1.msra.mxu0 0.0
        %2588 = vmatprep.subr.mxu0 0.0
        %2589 = vmatpush1.msra.mxu0 0.0
        %2590 = vmatprep.subr.mxu0 0.0
        %2591 = vmatpush1.msra.mxu0 0.0
        %2592 = vmatprep.subr.mxu0 0.0
        %2593 = vmatpush1.msra.mxu0 0.0
        %2594 = vmatprep.subr.mxu0 0.0
        %2595 = vmatpush1.msra.mxu0 0.0
        %2596 = vmatprep.subr.mxu0 0.0
        %2597 = vmatpush1.msra.mxu0 0.0
        %2598 = vmatprep.subr.mxu0 0.0
        %2599 = vmatpush1.msra.mxu0 0.0
        %2600 = vmatprep.mubr.f32.mxu0 0.0
        %2601 = vmatmul.mubr.f32.gmra.mrb[0].mxu0 %v2525
        %v2602 = vpop.f32.mrb[0].mxu0
        %v2603 = vadd.f32 0.0, %v2602
        %v2604 = vpop.f32.mrb[0].mxu0
        %2605 = vmatprep.mubr.f32.mxu0 0.0
        %2606 = vmatmul.mubr.f32.gmra.mrb[0].mxu0 %v2528
        %v2607 = vpop.f32.mrb[0].mxu0
        %v2608 = vadd.f32 0.0, %v2607
        %v2609 = vpop.f32.mrb[0].mxu0
        %2610 = vmatprep.mubr.f32.mxu0 0.0
        %2611 = vmatmul.mubr.f32.gmra.mrb[0].mxu0 %v2531
        %v2612 = vpop.f32.mrb[0].mxu0
        %v2613 = vadd.f32 0.0, %v2612
        %v2614 = vpop.f32.mrb[0].mxu0
        %2615 = vmatprep.mubr.f32.mxu0 0.0
        %2616 = vmatmul.mubr.f32.gmra.mrb[0].mxu0 %v2534
        %v2617 = vpop.f32.mrb[0].mxu0
        %v2618 = vadd.f32 0.0, %v2617
        %v2619 = vpop.f32.mrb[0].mxu0
        %2620 = vdwg.mxu0
        %v2622 = vsel %vm2138, %v2284, 0
        %v2625 = vsel %vm2138, %v2286, 0
        %v2628 = vsel %vm2138, %v2288, 0
        %v2631 = vsel %vm2138, %v2290, 0
        %2633 = vmatprep.subr.mxu0 0.0
        %2634 = vmatpush1.msra.mxu0 %v1316
        %2635 = vmatprep.subr.mxu0 0.0
        %2636 = vmatpush1.msra.mxu0 %v1322
        %2637 = vmatprep.subr.mxu0 0.0
        %2638 = vmatpush1.msra.mxu0 %v1328
        %2639 = vmatprep.subr.mxu0 0.0
        %2640 = vmatpush1.msra.mxu0 %v1334
        %2641 = vmatprep.subr.mxu0 0.0
        %2642 = vmatpush1.msra.mxu0 0.0
        %2643 = vmatprep.subr.mxu0 0.0
        %2644 = vmatpush1.msra.mxu0 0.0
        %2645 = vmatprep.subr.mxu0 0.0
        %2646 = vmatpush1.msra.mxu0 0.0
        %2647 = vmatprep.subr.mxu0 0.0
        %2648 = vmatpush1.msra.mxu0 0.0
        %2649 = vmatprep.subr.mxu0 0.0
        %2650 = vmatpush1.msra.mxu0 0.0
        %2651 = vmatprep.subr.mxu0 0.0
        %2652 = vmatpush1.msra.mxu0 0.0
        %2653 = vmatprep.subr.mxu0 0.0
        %2654 = vmatpush1.msra.mxu0 0.0
        %2655 = vmatprep.subr.mxu0 0.0
        %2656 = vmatpush1.msra.mxu0 0.0
        %2657 = vmatprep.subr.mxu0 0.0
        %2658 = vmatpush1.msra.mxu0 0.0
        %2659 = vmatprep.subr.mxu0 0.0
        %2660 = vmatpush1.msra.mxu0 0.0
        %2661 = vmatprep.subr.mxu0 0.0
        %2662 = vmatpush1.msra.mxu0 0.0
        %2663 = vmatprep.subr.mxu0 0.0
        %2664 = vmatpush1.msra.mxu0 0.0
        %2665 = vmatprep.subr.mxu0 0.0
        %2666 = vmatpush1.msra.mxu0 0.0
        %2667 = vmatprep.subr.mxu0 0.0
        %2668 = vmatpush1.msra.mxu0 0.0
        %2669 = vmatprep.subr.mxu0 0.0
        %2670 = vmatpush1.msra.mxu0 0.0
        %2671 = vmatprep.subr.mxu0 0.0
        %2672 = vmatpush1.msra.mxu0 0.0
        %2673 = vmatprep.subr.mxu0 0.0
        %2674 = vmatpush1.msra.mxu0 0.0
        %2675 = vmatprep.subr.mxu0 0.0
        %2676 = vmatpush1.msra.mxu0 0.0
        %2677 = vmatprep.subr.mxu0 0.0
        %2678 = vmatpush1.msra.mxu0 0.0
        %2679 = vmatprep.subr.mxu0 0.0
        %2680 = vmatpush1.msra.mxu0 0.0
        %2681 = vmatprep.subr.mxu0 0.0
        %2682 = vmatpush1.msra.mxu0 0.0
        %2683 = vmatprep.subr.mxu0 0.0
        %2684 = vmatpush1.msra.mxu0 0.0
        %2685 = vmatprep.subr.mxu0 0.0
        %2686 = vmatpush1.msra.mxu0 0.0
        %2687 = vmatprep.subr.mxu0 0.0
        %2688 = vmatpush1.msra.mxu0 0.0
        %2689 = vmatprep.subr.mxu0 0.0
        %2690 = vmatpush1.msra.mxu0 0.0
        %2691 = vmatprep.subr.mxu0 0.0
        %2692 = vmatpush1.msra.mxu0 0.0
        %2693 = vmatprep.subr.mxu0 0.0
        %2694 = vmatpush1.msra.mxu0 0.0
        %2695 = vmatprep.subr.mxu0 0.0
        %2696 = vmatpush1.msra.mxu0 0.0
        %2697 = vmatprep.mubr.f32.mxu0 0.0
        %2698 = vmatmul.mubr.f32.gmra.mrb[0].mxu0 %v2622
        %v2699 = vpop.f32.mrb[0].mxu0
        %v2700 = vadd.f32 0.0, %v2699
        %v2701 = vpop.f32.mrb[0].mxu0
        %2702 = vmatprep.mubr.f32.mxu0 0.0
        %2703 = vmatmul.mubr.f32.gmra.mrb[0].mxu0 %v2625
        %v2704 = vpop.f32.mrb[0].mxu0
        %v2705 = vadd.f32 0.0, %v2704
        %v2706 = vpop.f32.mrb[0].mxu0
        %2707 = vmatprep.mubr.f32.mxu0 0.0
        %2708 = vmatmul.mubr.f32.gmra.mrb[0].mxu0 %v2628
        %v2709 = vpop.f32.mrb[0].mxu0
        %v2710 = vadd.f32 0.0, %v2709
        %v2711 = vpop.f32.mrb[0].mxu0
        %2712 = vmatprep.mubr.f32.mxu0 0.0
        %2713 = vmatmul.mubr.f32.gmra.mrb[0].mxu0 %v2631
        %v2714 = vpop.f32.mrb[0].mxu0
        %v2715 = vadd.f32 0.0, %v2714
        %v2716 = vpop.f32.mrb[0].mxu0
        %2717 = vdwg.mxu0
        %v2719 = vsel %vm2138, %v2292, 0
        %v2722 = vsel %vm2138, %v2294, 0
        %v2725 = vsel %vm2138, %v2296, 0
        %v2728 = vsel %vm2138, %v2298, 0
        %2730 = vmatprep.subr.mxu0 0.0
        %2731 = vmatpush1.msra.mxu0 %v1340
        %2732 = vmatprep.subr.mxu0 0.0
        %2733 = vmatpush1.msra.mxu0 %v1346
        %2734 = vmatprep.subr.mxu0 0.0
        %2735 = vmatpush1.msra.mxu0 %v1352
        %2736 = vmatprep.subr.mxu0 0.0
        %2737 = vmatpush1.msra.mxu0 %v1358
        %2738 = vmatprep.subr.mxu0 0.0
        %2739 = vmatpush1.msra.mxu0 0.0
        %2740 = vmatprep.subr.mxu0 0.0
        %2741 = vmatpush1.msra.mxu0 0.0
        %2742 = vmatprep.subr.mxu0 0.0
        %2743 = vmatpush1.msra.mxu0 0.0
        %2744 = vmatprep.subr.mxu0 0.0
        %2745 = vmatpush1.msra.mxu0 0.0
        %2746 = vmatprep.subr.mxu0 0.0
        %2747 = vmatpush1.msra.mxu0 0.0
        %2748 = vmatprep.subr.mxu0 0.0
        %2749 = vmatpush1.msra.mxu0 0.0
        %2750 = vmatprep.subr.mxu0 0.0
        %2751 = vmatpush1.msra.mxu0 0.0
        %2752 = vmatprep.subr.mxu0 0.0
        %2753 = vmatpush1.msra.mxu0 0.0
        %2754 = vmatprep.subr.mxu0 0.0
        %2755 = vmatpush1.msra.mxu0 0.0
        %2756 = vmatprep.subr.mxu0 0.0
        %2757 = vmatpush1.msra.mxu0 0.0
        %2758 = vmatprep.subr.mxu0 0.0
        %2759 = vmatpush1.msra.mxu0 0.0
        %2760 = vmatprep.subr.mxu0 0.0
        %2761 = vmatpush1.msra.mxu0 0.0
        %2762 = vmatprep.subr.mxu0 0.0
        %2763 = vmatpush1.msra.mxu0 0.0
        %2764 = vmatprep.subr.mxu0 0.0
        %2765 = vmatpush1.msra.mxu0 0.0
        %2766 = vmatprep.subr.mxu0 0.0
        %2767 = vmatpush1.msra.mxu0 0.0
        %2768 = vmatprep.subr.mxu0 0.0
        %2769 = vmatpush1.msra.mxu0 0.0
        %2770 = vmatprep.subr.mxu0 0.0
        %2771 = vmatpush1.msra.mxu0 0.0
        %2772 = vmatprep.subr.mxu0 0.0
        %2773 = vmatpush1.msra.mxu0 0.0
        %2774 = vmatprep.subr.mxu0 0.0
        %2775 = vmatpush1.msra.mxu0 0.0
        %2776 = vmatprep.subr.mxu0 0.0
        %2777 = vmatpush1.msra.mxu0 0.0
        %2778 = vmatprep.subr.mxu0 0.0
        %2779 = vmatpush1.msra.mxu0 0.0
        %2780 = vmatprep.subr.mxu0 0.0
        %2781 = vmatpush1.msra.mxu0 0.0
        %2782 = vmatprep.subr.mxu0 0.0
        %2783 = vmatpush1.msra.mxu0 0.0
        %2784 = vmatprep.subr.mxu0 0.0
        %2785 = vmatpush1.msra.mxu0 0.0
        %2786 = vmatprep.subr.mxu0 0.0
        %2787 = vmatpush1.msra.mxu0 0.0
        %2788 = vmatprep.subr.mxu0 0.0
        %2789 = vmatpush1.msra.mxu0 0.0
        %2790 = vmatprep.subr.mxu0 0.0
        %2791 = vmatpush1.msra.mxu0 0.0
        %2792 = vmatprep.subr.mxu0 0.0
        %2793 = vmatpush1.msra.mxu0 0.0
        %2794 = vmatprep.mubr.f32.mxu0 0.0
        %2795 = vmatmul.mubr.f32.gmra.mrb[0].mxu0 %v2719
        %v2796 = vpop.f32.mrb[0].mxu0
        %v2797 = vadd.f32 0.0, %v2796
        %v2798 = vpop.f32.mrb[0].mxu0
        %2799 = vmatprep.mubr.f32.mxu0 0.0
        %2800 = vmatmul.mubr.f32.gmra.mrb[0].mxu0 %v2722
        %v2801 = vpop.f32.mrb[0].mxu0
        %v2802 = vadd.f32 0.0, %v2801
        %v2803 = vpop.f32.mrb[0].mxu0
        %2804 = vmatprep.mubr.f32.mxu0 0.0
        %2805 = vmatmul.mubr.f32.gmra.mrb[0].mxu0 %v2725
        %v2806 = vpop.f32.mrb[0].mxu0
        %v2807 = vadd.f32 0.0, %v2806
        %v2808 = vpop.f32.mrb[0].mxu0
        %2809 = vmatprep.mubr.f32.mxu0 0.0
        %2810 = vmatmul.mubr.f32.gmra.mrb[0].mxu0 %v2728
        %v2811 = vpop.f32.mrb[0].mxu0
        %v2812 = vadd.f32 0.0, %v2811
        %v2813 = vpop.f32.mrb[0].mxu0
        %2814 = vdwg.mxu0
        %v2816 = vsel %vm2138, %v2300, 0
        %v2819 = vsel %vm2138, %v2302, 0
        %v2822 = vsel %vm2138, %v2304, 0
        %v2825 = vsel %vm2138, %v2306, 0
        %2827 = vmatprep.subr.mxu0 0.0
        %2828 = vmatpush1.msra.mxu0 %v1364
        %2829 = vmatprep.subr.mxu0 0.0
        %2830 = vmatpush1.msra.mxu0 %v1370
        %2831 = vmatprep.subr.mxu0 0.0
        %2832 = vmatpush1.msra.mxu0 %v1376
        %2833 = vmatprep.subr.mxu0 0.0
        %2834 = vmatpush1.msra.mxu0 %v1382
        %2835 = vmatprep.subr.mxu0 0.0
        %2836 = vmatpush1.msra.mxu0 0.0
        %2837 = vmatprep.subr.mxu0 0.0
        %2838 = vmatpush1.msra.mxu0 0.0
        %2839 = vmatprep.subr.mxu0 0.0
        %2840 = vmatpush1.msra.mxu0 0.0
        %2841 = vmatprep.subr.mxu0 0.0
        %2842 = vmatpush1.msra.mxu0 0.0
        %2843 = vmatprep.subr.mxu0 0.0
        %2844 = vmatpush1.msra.mxu0 0.0
        %2845 = vmatprep.subr.mxu0 0.0
        %2846 = vmatpush1.msra.mxu0 0.0
        %2847 = vmatprep.subr.mxu0 0.0
        %2848 = vmatpush1.msra.mxu0 0.0
        %2849 = vmatprep.subr.mxu0 0.0
        %2850 = vmatpush1.msra.mxu0 0.0
        %2851 = vmatprep.subr.mxu0 0.0
        %2852 = vmatpush1.msra.mxu0 0.0
        %2853 = vmatprep.subr.mxu0 0.0
        %2854 = vmatpush1.msra.mxu0 0.0
        %2855 = vmatprep.subr.mxu0 0.0
        %2856 = vmatpush1.msra.mxu0 0.0
        %2857 = vmatprep.subr.mxu0 0.0
        %2858 = vmatpush1.msra.mxu0 0.0
        %2859 = vmatprep.subr.mxu0 0.0
        %2860 = vmatpush1.msra.mxu0 0.0
        %2861 = vmatprep.subr.mxu0 0.0
        %2862 = vmatpush1.msra.mxu0 0.0
        %2863 = vmatprep.subr.mxu0 0.0
        %2864 = vmatpush1.msra.mxu0 0.0
        %2865 = vmatprep.subr.mxu0 0.0
        %2866 = vmatpush1.msra.mxu0 0.0
        %2867 = vmatprep.subr.mxu0 0.0
        %2868 = vmatpush1.msra.mxu0 0.0
        %2869 = vmatprep.subr.mxu0 0.0
        %2870 = vmatpush1.msra.mxu0 0.0
        %2871 = vmatprep.subr.mxu0 0.0
        %2872 = vmatpush1.msra.mxu0 0.0
        %2873 = vmatprep.subr.mxu0 0.0
        %2874 = vmatpush1.msra.mxu0 0.0
        %2875 = vmatprep.subr.mxu0 0.0
        %2876 = vmatpush1.msra.mxu0 0.0
        %2877 = vmatprep.subr.mxu0 0.0
        %2878 = vmatpush1.msra.mxu0 0.0
        %2879 = vmatprep.subr.mxu0 0.0
        %2880 = vmatpush1.msra.mxu0 0.0
        %2881 = vmatprep.subr.mxu0 0.0
        %2882 = vmatpush1.msra.mxu0 0.0
        %2883 = vmatprep.subr.mxu0 0.0
        %2884 = vmatpush1.msra.mxu0 0.0
        %2885 = vmatprep.subr.mxu0 0.0
        %2886 = vmatpush1.msra.mxu0 0.0
        %2887 = vmatprep.subr.mxu0 0.0
        %2888 = vmatpush1.msra.mxu0 0.0
        %2889 = vmatprep.subr.mxu0 0.0
        %2890 = vmatpush1.msra.mxu0 0.0
        %2891 = vmatprep.mubr.f32.mxu0 0.0
        %2892 = vmatmul.mubr.f32.gmra.mrb[0].mxu0 %v2816
        %v2893 = vpop.f32.mrb[0].mxu0
        %v2894 = vadd.f32 0.0, %v2893
        %v2895 = vpop.f32.mrb[0].mxu0
        %2896 = vmatprep.mubr.f32.mxu0 0.0
        %2897 = vmatmul.mubr.f32.gmra.mrb[0].mxu0 %v2819
        %v2898 = vpop.f32.mrb[0].mxu0
        %v2899 = vadd.f32 0.0, %v2898
        %v2900 = vpop.f32.mrb[0].mxu0
        %2901 = vmatprep.mubr.f32.mxu0 0.0
        %2902 = vmatmul.mubr.f32.gmra.mrb[0].mxu0 %v2822
        %v2903 = vpop.f32.mrb[0].mxu0
        %v2904 = vadd.f32 0.0, %v2903
        %v2905 = vpop.f32.mrb[0].mxu0
        %2906 = vmatprep.mubr.f32.mxu0 0.0
        %2907 = vmatmul.mubr.f32.gmra.mrb[0].mxu0 %v2825
        %v2908 = vpop.f32.mrb[0].mxu0
        %v2909 = vadd.f32 0.0, %v2908
        %v2910 = vpop.f32.mrb[0].mxu0
        %2911 = vdwg.mxu0
        %v2913 = vsel %vm2138, %v2308, 0
        %v2916 = vsel %vm2138, %v2310, 0
        %v2919 = vsel %vm2138, %v2312, 0
        %v2922 = vsel %vm2138, %v2314, 0
        %2924 = vmatprep.subr.mxu0 0.0
        %2925 = vmatpush1.msra.mxu0 %v1388
        %2926 = vmatprep.subr.mxu0 0.0
        %2927 = vmatpush1.msra.mxu0 %v1394
        %2928 = vmatprep.subr.mxu0 0.0
        %2929 = vmatpush1.msra.mxu0 %v1400
        %2930 = vmatprep.subr.mxu0 0.0
        %2931 = vmatpush1.msra.mxu0 %v1406
        %2932 = vmatprep.subr.mxu0 0.0
        %2933 = vmatpush1.msra.mxu0 0.0
        %2934 = vmatprep.subr.mxu0 0.0
        %2935 = vmatpush1.msra.mxu0 0.0
        %2936 = vmatprep.subr.mxu0 0.0
        %2937 = vmatpush1.msra.mxu0 0.0
        %2938 = vmatprep.subr.mxu0 0.0
        %2939 = vmatpush1.msra.mxu0 0.0
        %2940 = vmatprep.subr.mxu0 0.0
        %2941 = vmatpush1.msra.mxu0 0.0
        %2942 = vmatprep.subr.mxu0 0.0
        %2943 = vmatpush1.msra.mxu0 0.0
        %2944 = vmatprep.subr.mxu0 0.0
        %2945 = vmatpush1.msra.mxu0 0.0
        %2946 = vmatprep.subr.mxu0 0.0
        %2947 = vmatpush1.msra.mxu0 0.0
        %2948 = vmatprep.subr.mxu0 0.0
        %2949 = vmatpush1.msra.mxu0 0.0
        %2950 = vmatprep.subr.mxu0 0.0
        %2951 = vmatpush1.msra.mxu0 0.0
        %2952 = vmatprep.subr.mxu0 0.0
        %2953 = vmatpush1.msra.mxu0 0.0
        %2954 = vmatprep.subr.mxu0 0.0
        %2955 = vmatpush1.msra.mxu0 0.0
        %2956 = vmatprep.subr.mxu0 0.0
        %2957 = vmatpush1.msra.mxu0 0.0
        %2958 = vmatprep.subr.mxu0 0.0
        %2959 = vmatpush1.msra.mxu0 0.0
        %2960 = vmatprep.subr.mxu0 0.0
        %2961 = vmatpush1.msra.mxu0 0.0
        %2962 = vmatprep.subr.mxu0 0.0
        %2963 = vmatpush1.msra.mxu0 0.0
        %2964 = vmatprep.subr.mxu0 0.0
        %2965 = vmatpush1.msra.mxu0 0.0
        %2966 = vmatprep.subr.mxu0 0.0
        %2967 = vmatpush1.msra.mxu0 0.0
        %2968 = vmatprep.subr.mxu0 0.0
        %2969 = vmatpush1.msra.mxu0 0.0
        %2970 = vmatprep.subr.mxu0 0.0
        %2971 = vmatpush1.msra.mxu0 0.0
        %2972 = vmatprep.subr.mxu0 0.0
        %2973 = vmatpush1.msra.mxu0 0.0
        %2974 = vmatprep.subr.mxu0 0.0
        %2975 = vmatpush1.msra.mxu0 0.0
        %2976 = vmatprep.subr.mxu0 0.0
        %2977 = vmatpush1.msra.mxu0 0.0
        %2978 = vmatprep.subr.mxu0 0.0
        %2979 = vmatpush1.msra.mxu0 0.0
        %2980 = vmatprep.subr.mxu0 0.0
        %2981 = vmatpush1.msra.mxu0 0.0
        %2982 = vmatprep.subr.mxu0 0.0
        %2983 = vmatpush1.msra.mxu0 0.0
        %2984 = vmatprep.subr.mxu0 0.0
        %2985 = vmatpush1.msra.mxu0 0.0
        %2986 = vmatprep.subr.mxu0 0.0
        %2987 = vmatpush1.msra.mxu0 0.0
        %2988 = vmatprep.mubr.f32.mxu0 0.0
        %2989 = vmatmul.mubr.f32.gmra.mrb[0].mxu0 %v2913
        %v2990 = vpop.f32.mrb[0].mxu0
        %v2991 = vadd.f32 0.0, %v2990
        %v2992 = vpop.f32.mrb[0].mxu0
        %2993 = vmatprep.mubr.f32.mxu0 0.0
        %2994 = vmatmul.mubr.f32.gmra.mrb[0].mxu0 %v2916
        %v2995 = vpop.f32.mrb[0].mxu0
        %v2996 = vadd.f32 0.0, %v2995
        %v2997 = vpop.f32.mrb[0].mxu0
        %2998 = vmatprep.mubr.f32.mxu0 0.0
        %2999 = vmatmul.mubr.f32.gmra.mrb[0].mxu0 %v2919
        %v3000 = vpop.f32.mrb[0].mxu0
        %v3001 = vadd.f32 0.0, %v3000
        %v3002 = vpop.f32.mrb[0].mxu0
        %3003 = vmatprep.mubr.f32.mxu0 0.0
        %3004 = vmatmul.mubr.f32.gmra.mrb[0].mxu0 %v2922
        %v3005 = vpop.f32.mrb[0].mxu0
        %v3006 = vadd.f32 0.0, %v3005
        %v3007 = vpop.f32.mrb[0].mxu0
        %3008 = vdwg.mxu0
        %v3010 = vsel %vm2138, %v2316, 0
        %v3013 = vsel %vm2138, %v2318, 0
        %v3016 = vsel %vm2138, %v2320, 0
        %v3019 = vsel %vm2138, %v2322, 0
        %3021 = vmatprep.subr.mxu0 0.0
        %3022 = vmatpush1.msra.mxu0 %v1412
        %3023 = vmatprep.subr.mxu0 0.0
        %3024 = vmatpush1.msra.mxu0 %v1418
        %3025 = vmatprep.subr.mxu0 0.0
        %3026 = vmatpush1.msra.mxu0 %v1424
        %3027 = vmatprep.subr.mxu0 0.0
        %3028 = vmatpush1.msra.mxu0 %v1430
        %3029 = vmatprep.subr.mxu0 0.0
        %3030 = vmatpush1.msra.mxu0 0.0
        %3031 = vmatprep.subr.mxu0 0.0
        %3032 = vmatpush1.msra.mxu0 0.0
        %3033 = vmatprep.subr.mxu0 0.0
        %3034 = vmatpush1.msra.mxu0 0.0
        %3035 = vmatprep.subr.mxu0 0.0
        %3036 = vmatpush1.msra.mxu0 0.0
        %3037 = vmatprep.subr.mxu0 0.0
        %3038 = vmatpush1.msra.mxu0 0.0
        %3039 = vmatprep.subr.mxu0 0.0
        %3040 = vmatpush1.msra.mxu0 0.0
        %3041 = vmatprep.subr.mxu0 0.0
        %3042 = vmatpush1.msra.mxu0 0.0
        %3043 = vmatprep.subr.mxu0 0.0
        %3044 = vmatpush1.msra.mxu0 0.0
        %3045 = vmatprep.subr.mxu0 0.0
        %3046 = vmatpush1.msra.mxu0 0.0
        %3047 = vmatprep.subr.mxu0 0.0
        %3048 = vmatpush1.msra.mxu0 0.0
        %3049 = vmatprep.subr.mxu0 0.0
        %3050 = vmatpush1.msra.mxu0 0.0
        %3051 = vmatprep.subr.mxu0 0.0
        %3052 = vmatpush1.msra.mxu0 0.0
        %3053 = vmatprep.subr.mxu0 0.0
        %3054 = vmatpush1.msra.mxu0 0.0
        %3055 = vmatprep.subr.mxu0 0.0
        %3056 = vmatpush1.msra.mxu0 0.0
        %3057 = vmatprep.subr.mxu0 0.0
        %3058 = vmatpush1.msra.mxu0 0.0
        %3059 = vmatprep.subr.mxu0 0.0
        %3060 = vmatpush1.msra.mxu0 0.0
        %3061 = vmatprep.subr.mxu0 0.0
        %3062 = vmatpush1.msra.mxu0 0.0
        %3063 = vmatprep.subr.mxu0 0.0
        %3064 = vmatpush1.msra.mxu0 0.0
        %3065 = vmatprep.subr.mxu0 0.0
        %3066 = vmatpush1.msra.mxu0 0.0
        %3067 = vmatprep.subr.mxu0 0.0
        %3068 = vmatpush1.msra.mxu0 0.0
        %3069 = vmatprep.subr.mxu0 0.0
        %3070 = vmatpush1.msra.mxu0 0.0
        %3071 = vmatprep.subr.mxu0 0.0
        %3072 = vmatpush1.msra.mxu0 0.0
        %3073 = vmatprep.subr.mxu0 0.0
        %3074 = vmatpush1.msra.mxu0 0.0
        %3075 = vmatprep.subr.mxu0 0.0
        %3076 = vmatpush1.msra.mxu0 0.0
        %3077 = vmatprep.subr.mxu0 0.0
        %3078 = vmatpush1.msra.mxu0 0.0
        %3079 = vmatprep.subr.mxu0 0.0
        %3080 = vmatpush1.msra.mxu0 0.0
        %3081 = vmatprep.subr.mxu0 0.0
        %3082 = vmatpush1.msra.mxu0 0.0
        %3083 = vmatprep.subr.mxu0 0.0
        %3084 = vmatpush1.msra.mxu0 0.0
        %3085 = vmatprep.mubr.f32.mxu0 0.0
        %3086 = vmatmul.mubr.f32.gmra.mrb[0].mxu0 %v3010
        %v3087 = vpop.f32.mrb[0].mxu0
        %v3088 = vadd.f32 0.0, %v3087
        %v3089 = vpop.f32.mrb[0].mxu0
        %3090 = vmatprep.mubr.f32.mxu0 0.0
        %3091 = vmatmul.mubr.f32.gmra.mrb[0].mxu0 %v3013
        %v3092 = vpop.f32.mrb[0].mxu0
        %v3093 = vadd.f32 0.0, %v3092
        %v3094 = vpop.f32.mrb[0].mxu0
        %3095 = vmatprep.mubr.f32.mxu0 0.0
        %3096 = vmatmul.mubr.f32.gmra.mrb[0].mxu0 %v3016
        %v3097 = vpop.f32.mrb[0].mxu0
        %v3098 = vadd.f32 0.0, %v3097
        %v3099 = vpop.f32.mrb[0].mxu0
        %3100 = vmatprep.mubr.f32.mxu0 0.0
        %3101 = vmatmul.mubr.f32.gmra.mrb[0].mxu0 %v3019
        %v3102 = vpop.f32.mrb[0].mxu0
        %v3103 = vadd.f32 0.0, %v3102
        %v3104 = vpop.f32.mrb[0].mxu0
        %3105 = vdwg.mxu0
        %v3107 = vsel %vm2138, %v2324, 0
        %v3110 = vsel %vm2138, %v2326, 0
        %v3113 = vsel %vm2138, %v2328, 0
        %v3116 = vsel %vm2138, %v2330, 0
        %3118 = vmatprep.subr.mxu0 0.0
        %3119 = vmatpush1.msra.mxu0 %v1436
        %3120 = vmatprep.subr.mxu0 0.0
        %3121 = vmatpush1.msra.mxu0 %v1442
        %3122 = vmatprep.subr.mxu0 0.0
        %3123 = vmatpush1.msra.mxu0 %v1448
        %3124 = vmatprep.subr.mxu0 0.0
        %3125 = vmatpush1.msra.mxu0 %v1454
        %3126 = vmatprep.subr.mxu0 0.0
        %3127 = vmatpush1.msra.mxu0 0.0
        %3128 = vmatprep.subr.mxu0 0.0
        %3129 = vmatpush1.msra.mxu0 0.0
        %3130 = vmatprep.subr.mxu0 0.0
        %3131 = vmatpush1.msra.mxu0 0.0
        %3132 = vmatprep.subr.mxu0 0.0
        %3133 = vmatpush1.msra.mxu0 0.0
        %3134 = vmatprep.subr.mxu0 0.0
        %3135 = vmatpush1.msra.mxu0 0.0
        %3136 = vmatprep.subr.mxu0 0.0
        %3137 = vmatpush1.msra.mxu0 0.0
        %3138 = vmatprep.subr.mxu0 0.0
        %3139 = vmatpush1.msra.mxu0 0.0
        %3140 = vmatprep.subr.mxu0 0.0
        %3141 = vmatpush1.msra.mxu0 0.0
        %3142 = vmatprep.subr.mxu0 0.0
        %3143 = vmatpush1.msra.mxu0 0.0
        %3144 = vmatprep.subr.mxu0 0.0
        %3145 = vmatpush1.msra.mxu0 0.0
        %3146 = vmatprep.subr.mxu0 0.0
        %3147 = vmatpush1.msra.mxu0 0.0
        %3148 = vmatprep.subr.mxu0 0.0
        %3149 = vmatpush1.msra.mxu0 0.0
        %3150 = vmatprep.subr.mxu0 0.0
        %3151 = vmatpush1.msra.mxu0 0.0
        %3152 = vmatprep.subr.mxu0 0.0
        %3153 = vmatpush1.msra.mxu0 0.0
        %3154 = vmatprep.subr.mxu0 0.0
        %3155 = vmatpush1.msra.mxu0 0.0
        %3156 = vmatprep.subr.mxu0 0.0
        %3157 = vmatpush1.msra.mxu0 0.0
        %3158 = vmatprep.subr.mxu0 0.0
        %3159 = vmatpush1.msra.mxu0 0.0
        %3160 = vmatprep.subr.mxu0 0.0
        %3161 = vmatpush1.msra.mxu0 0.0
        %3162 = vmatprep.subr.mxu0 0.0
        %3163 = vmatpush1.msra.mxu0 0.0
        %3164 = vmatprep.subr.mxu0 0.0
        %3165 = vmatpush1.msra.mxu0 0.0
        %3166 = vmatprep.subr.mxu0 0.0
        %3167 = vmatpush1.msra.mxu0 0.0
        %3168 = vmatprep.subr.mxu0 0.0
        %3169 = vmatpush1.msra.mxu0 0.0
        %3170 = vmatprep.subr.mxu0 0.0
        %3171 = vmatpush1.msra.mxu0 0.0
        %3172 = vmatprep.subr.mxu0 0.0
        %3173 = vmatpush1.msra.mxu0 0.0
        %3174 = vmatprep.subr.mxu0 0.0
        %3175 = vmatpush1.msra.mxu0 0.0
        %3176 = vmatprep.subr.mxu0 0.0
        %3177 = vmatpush1.msra.mxu0 0.0
        %3178 = vmatprep.subr.mxu0 0.0
        %3179 = vmatpush1.msra.mxu0 0.0
        %3180 = vmatprep.subr.mxu0 0.0
        %3181 = vmatpush1.msra.mxu0 0.0
        %3182 = vmatprep.mubr.f32.mxu0 0.0
        %3183 = vmatmul.mubr.f32.gmra.mrb[0].mxu0 %v3107
        %v3184 = vpop.f32.mrb[0].mxu0
        %v3185 = vadd.f32 0.0, %v3184
        %v3186 = vpop.f32.mrb[0].mxu0
        %3187 = vmatprep.mubr.f32.mxu0 0.0
        %3188 = vmatmul.mubr.f32.gmra.mrb[0].mxu0 %v3110
        %v3189 = vpop.f32.mrb[0].mxu0
        %v3190 = vadd.f32 0.0, %v3189
        %v3191 = vpop.f32.mrb[0].mxu0
        %3192 = vmatprep.mubr.f32.mxu0 0.0
        %3193 = vmatmul.mubr.f32.gmra.mrb[0].mxu0 %v3113
        %v3194 = vpop.f32.mrb[0].mxu0
        %v3195 = vadd.f32 0.0, %v3194
        %v3196 = vpop.f32.mrb[0].mxu0
        %3197 = vmatprep.mubr.f32.mxu0 0.0
        %3198 = vmatmul.mubr.f32.gmra.mrb[0].mxu0 %v3116
        %v3199 = vpop.f32.mrb[0].mxu0
        %v3200 = vadd.f32 0.0, %v3199
        %v3201 = vpop.f32.mrb[0].mxu0
        %3202 = vdwg.mxu0
        %v3203 = vrcp.pop %v2333
        %v3204 = vrcp.pop %v2336
        %v3205 = vrcp.pop %v2339
        %v3206 = vrcp.pop %v2342
        %v3207 = vrcp.pop %v2345
        %v3208 = vrcp.pop %v2348
        %v3209 = vrcp.pop %v2351
        %v3210 = vrcp.pop %v2354
        %v3211 = vrcp.pop %v2357
        %v3212 = vrcp.pop %v2360
        %v3213 = vrcp.pop %v2363
        %v3214 = vrcp.pop %v2366
        %v3215 = vrcp.pop %v2369
        %v3216 = vrcp.pop %v2372
        %v3217 = vrcp.pop %v2375
        %v3218 = vrcp.pop %v2378
        %v3219 = vrcp.pop %v2381
        %v3220 = vrcp.pop %v2384
        %v3221 = vrcp.pop %v2387
        %v3222 = vrcp.pop %v2390
        %v3223 = vrcp.pop %v2393
        %v3224 = vrcp.pop %v2396
        %v3225 = vrcp.pop %v2399
        %v3226 = vrcp.pop %v2402
        %v3227 = vrcp.pop %v2405
        %v3228 = vrcp.pop %v2408
        %v3229 = vrcp.pop %v2411
        %v3230 = vrcp.pop %v2414
        %v3231 = vrcp.pop %v2417
        %v3232 = vrcp.pop %v2420
        %v3233 = vrcp.pop %v2423
        %v3234 = vrcp.pop %v2426
        %v3235 = vmul.f32 %v2506, %v3203
        %v3236 = vmul.f32 %v2511, %v3204
        %v3237 = vmul.f32 %v2516, %v3205
        %v3238 = vmul.f32 %v2521, %v3206
        %v3239 = vmul.f32 %v2603, %v3207
        %v3240 = vmul.f32 %v2608, %v3208
        %v3241 = vmul.f32 %v2613, %v3209
        %v3242 = vmul.f32 %v2618, %v3210
        %v3243 = vmul.f32 %v2700, %v3211
        %v3244 = vmul.f32 %v2705, %v3212
        %v3245 = vmul.f32 %v2710, %v3213
        %v3246 = vmul.f32 %v2715, %v3214
        %v3247 = vmul.f32 %v2797, %v3215
        %v3248 = vmul.f32 %v2802, %v3216
        %v3249 = vmul.f32 %v2807, %v3217
        %v3250 = vmul.f32 %v2812, %v3218
        %v3251 = vmul.f32 %v2894, %v3219
        %v3252 = vmul.f32 %v2899, %v3220
        %v3253 = vmul.f32 %v2904, %v3221
        %v3254 = vmul.f32 %v2909, %v3222
        %v3255 = vmul.f32 %v2991, %v3223
        %v3256 = vmul.f32 %v2996, %v3224
        %v3257 = vmul.f32 %v3001, %v3225
        %v3258 = vmul.f32 %v3006, %v3226
        %v3259 = vmul.f32 %v3088, %v3227
        %v3260 = vmul.f32 %v3093, %v3228
        %v3261 = vmul.f32 %v3098, %v3229
        %v3262 = vmul.f32 %v3103, %v3230
        %v3263 = vmul.f32 %v3185, %v3231
        %v3264 = vmul.f32 %v3190, %v3232
        %v3265 = vmul.f32 %v3195, %v3233
        %v3266 = vmul.f32 %v3200, %v3234
        %3267 = vmatprep.subr.mxu0 0.0
        %3268 = vmatpush1.xpose.msra.mxu0 %v1013
        %3269 = vmatprep.subr.mxu0 0.0
        %3270 = vmatpush1.xpose.msra.mxu0 %v1019
        %3271 = vmatprep.subr.mxu0 0.0
        %3272 = vmatpush1.xpose.msra.mxu0 %v1025
        %3273 = vmatprep.subr.mxu0 0.0
        %3274 = vmatpush1.xpose.msra.mxu0 %v1031
        %3275 = vmatprep.subr.mxu0 0.0
        %3276 = vmatpush1.xpose.msra.mxu0 0.0
        %3277 = vmatprep.subr.mxu0 0.0
        %3278 = vmatpush1.xpose.msra.mxu0 0.0
        %3279 = vmatprep.subr.mxu0 0.0
        %3280 = vmatpush1.xpose.msra.mxu0 0.0
        %3281 = vmatprep.subr.mxu0 0.0
        %3282 = vmatpush1.xpose.msra.mxu0 0.0
        %3283 = vmatprep.subr.mxu0 0.0
        %3284 = vmatpush1.xpose.msra.mxu0 0.0
        %3285 = vmatprep.subr.mxu0 0.0
        %3286 = vmatpush1.xpose.msra.mxu0 0.0
        %3287 = vmatprep.subr.mxu0 0.0
        %3288 = vmatpush1.xpose.msra.mxu0 0.0
        %3289 = vmatprep.subr.mxu0 0.0
        %3290 = vmatpush1.xpose.msra.mxu0 0.0
        %3291 = vmatprep.subr.mxu0 0.0
        %3292 = vmatpush1.xpose.msra.mxu0 0.0
        %3293 = vmatprep.subr.mxu0 0.0
        %3294 = vmatpush1.xpose.msra.mxu0 0.0
        %3295 = vmatprep.subr.mxu0 0.0
        %3296 = vmatpush1.xpose.msra.mxu0 0.0
        %3297 = vmatprep.subr.mxu0 0.0
        %3298 = vmatpush1.xpose.msra.mxu0 0.0
        %3299 = vmatprep.subr.mxu0 0.0
        %3300 = vmatpush1.xpose.msra.mxu0 0.0
        %3301 = vmatprep.subr.mxu0 0.0
        %3302 = vmatpush1.xpose.msra.mxu0 0.0
        %3303 = vmatprep.subr.mxu0 0.0
        %3304 = vmatpush1.xpose.msra.mxu0 0.0
        %3305 = vmatprep.subr.mxu0 0.0
        %3306 = vmatpush1.xpose.msra.mxu0 0.0
        %3307 = vmatprep.subr.mxu0 0.0
        %3308 = vmatpush1.xpose.msra.mxu0 0.0
        %3309 = vmatprep.subr.mxu0 0.0
        %3310 = vmatpush1.xpose.msra.mxu0 0.0
        %3311 = vmatprep.subr.mxu0 0.0
        %3312 = vmatpush1.xpose.msra.mxu0 0.0
        %3313 = vmatprep.subr.mxu0 0.0
        %3314 = vmatpush1.xpose.msra.mxu0 0.0
        %3315 = vmatprep.subr.mxu0 0.0
        %3316 = vmatpush1.xpose.msra.mxu0 0.0
        %3317 = vmatprep.subr.mxu0 0.0
        %3318 = vmatpush1.xpose.msra.mxu0 0.0
        %3319 = vmatprep.subr.mxu0 0.0
        %3320 = vmatpush1.xpose.msra.mxu0 0.0
        %3321 = vmatprep.subr.mxu0 0.0
        %3322 = vmatpush1.xpose.msra.mxu0 0.0
        %3323 = vmatprep.subr.mxu0 0.0
        %3324 = vmatpush1.xpose.msra.mxu0 0.0
        %3325 = vmatprep.subr.mxu0 0.0
        %3326 = vmatpush1.xpose.msra.mxu0 0.0
        %3327 = vmatprep.subr.mxu0 0.0
        %3328 = vmatpush1.xpose.msra.mxu0 0.0
        %3329 = vmatprep.subr.mxu0 0.0
        %3330 = vmatpush1.xpose.msra.mxu0 0.0
        %3331 = vmatprep.mubr.f32.mxu0 0.0
        %3332 = vmatmul.mubr.f32.gmra.mrb[0].mxu0 %v756
        %v3333 = vpop.f32.mrb[0].mxu0
        %v3334 = vadd.f32 0.0, %v3333
        %v3335 = vpop.f32.mrb[0].mxu0
        %3336 = vmatprep.mubr.f32.mxu0 0.0
        %3337 = vmatmul.mubr.f32.gmra.mrb[0].mxu0 %v762
        %v3338 = vpop.f32.mrb[0].mxu0
        %v3339 = vadd.f32 0.0, %v3338
        %v3340 = vpop.f32.mrb[0].mxu0
        %3341 = vmatprep.mubr.f32.mxu0 0.0
        %3342 = vmatmul.mubr.f32.gmra.mrb[0].mxu0 %v768
        %v3343 = vpop.f32.mrb[0].mxu0
        %v3344 = vadd.f32 0.0, %v3343
        %v3345 = vpop.f32.mrb[0].mxu0
        %3346 = vmatprep.mubr.f32.mxu0 0.0
        %3347 = vmatmul.mubr.f32.gmra.mrb[0].mxu0 %v774
        %v3348 = vpop.f32.mrb[0].mxu0
        %v3349 = vadd.f32 0.0, %v3348
        %v3350 = vpop.f32.mrb[0].mxu0
        %3351 = vdwg.mxu0
        %3352 = vmatprep.subr.mxu0 0.0
        %3353 = vmatpush1.xpose.msra.mxu0 %v1037
        %3354 = vmatprep.subr.mxu0 0.0
        %3355 = vmatpush1.xpose.msra.mxu0 %v1043
        %3356 = vmatprep.subr.mxu0 0.0
        %3357 = vmatpush1.xpose.msra.mxu0 %v1049
        %3358 = vmatprep.subr.mxu0 0.0
        %3359 = vmatpush1.xpose.msra.mxu0 %v1055
        %3360 = vmatprep.subr.mxu0 0.0
        %3361 = vmatpush1.xpose.msra.mxu0 0.0
        %3362 = vmatprep.subr.mxu0 0.0
        %3363 = vmatpush1.xpose.msra.mxu0 0.0
        %3364 = vmatprep.subr.mxu0 0.0
        %3365 = vmatpush1.xpose.msra.mxu0 0.0
        %3366 = vmatprep.subr.mxu0 0.0
        %3367 = vmatpush1.xpose.msra.mxu0 0.0
        %3368 = vmatprep.subr.mxu0 0.0
        %3369 = vmatpush1.xpose.msra.mxu0 0.0
        %3370 = vmatprep.subr.mxu0 0.0
        %3371 = vmatpush1.xpose.msra.mxu0 0.0
        %3372 = vmatprep.subr.mxu0 0.0
        %3373 = vmatpush1.xpose.msra.mxu0 0.0
        %3374 = vmatprep.subr.mxu0 0.0
        %3375 = vmatpush1.xpose.msra.mxu0 0.0
        %3376 = vmatprep.subr.mxu0 0.0
        %3377 = vmatpush1.xpose.msra.mxu0 0.0
        %3378 = vmatprep.subr.mxu0 0.0
        %3379 = vmatpush1.xpose.msra.mxu0 0.0
        %3380 = vmatprep.subr.mxu0 0.0
        %3381 = vmatpush1.xpose.msra.mxu0 0.0
        %3382 = vmatprep.subr.mxu0 0.0
        %3383 = vmatpush1.xpose.msra.mxu0 0.0
        %3384 = vmatprep.subr.mxu0 0.0
        %3385 = vmatpush1.xpose.msra.mxu0 0.0
        %3386 = vmatprep.subr.mxu0 0.0
        %3387 = vmatpush1.xpose.msra.mxu0 0.0
        %3388 = vmatprep.subr.mxu0 0.0
        %3389 = vmatpush1.xpose.msra.mxu0 0.0
        %3390 = vmatprep.subr.mxu0 0.0
        %3391 = vmatpush1.xpose.msra.mxu0 0.0
        %3392 = vmatprep.subr.mxu0 0.0
        %3393 = vmatpush1.xpose.msra.mxu0 0.0
        %3394 = vmatprep.subr.mxu0 0.0
        %3395 = vmatpush1.xpose.msra.mxu0 0.0
        %3396 = vmatprep.subr.mxu0 0.0
        %3397 = vmatpush1.xpose.msra.mxu0 0.0
        %3398 = vmatprep.subr.mxu0 0.0
        %3399 = vmatpush1.xpose.msra.mxu0 0.0
        %3400 = vmatprep.subr.mxu0 0.0
        %3401 = vmatpush1.xpose.msra.mxu0 0.0
        %3402 = vmatprep.subr.mxu0 0.0
        %3403 = vmatpush1.xpose.msra.mxu0 0.0
        %3404 = vmatprep.subr.mxu0 0.0
        %3405 = vmatpush1.xpose.msra.mxu0 0.0
        %3406 = vmatprep.subr.mxu0 0.0
        %3407 = vmatpush1.xpose.msra.mxu0 0.0
        %3408 = vmatprep.subr.mxu0 0.0
        %3409 = vmatpush1.xpose.msra.mxu0 0.0
        %3410 = vmatprep.subr.mxu0 0.0
        %3411 = vmatpush1.xpose.msra.mxu0 0.0
        %3412 = vmatprep.subr.mxu0 0.0
        %3413 = vmatpush1.xpose.msra.mxu0 0.0
        %3414 = vmatprep.subr.mxu0 0.0
        %3415 = vmatpush1.xpose.msra.mxu0 0.0
        %3416 = vmatprep.mubr.f32.mxu0 0.0
        %3417 = vmatmul.mubr.f32.gmra.mrb[0].mxu0 %v780
        %v3418 = vpop.f32.mrb[0].mxu0
        %v3419 = vadd.f32 0.0, %v3418
        %v3420 = vpop.f32.mrb[0].mxu0
        %3421 = vmatprep.mubr.f32.mxu0 0.0
        %3422 = vmatmul.mubr.f32.gmra.mrb[0].mxu0 %v786
        %v3423 = vpop.f32.mrb[0].mxu0
        %v3424 = vadd.f32 0.0, %v3423
        %v3425 = vpop.f32.mrb[0].mxu0
        %3426 = vmatprep.mubr.f32.mxu0 0.0
        %3427 = vmatmul.mubr.f32.gmra.mrb[0].mxu0 %v792
        %v3428 = vpop.f32.mrb[0].mxu0
        %v3429 = vadd.f32 0.0, %v3428
        %v3430 = vpop.f32.mrb[0].mxu0
        %3431 = vmatprep.mubr.f32.mxu0 0.0
        %3432 = vmatmul.mubr.f32.gmra.mrb[0].mxu0 %v798
        %v3433 = vpop.f32.mrb[0].mxu0
        %v3434 = vadd.f32 0.0, %v3433
        %v3435 = vpop.f32.mrb[0].mxu0
        %3436 = vdwg.mxu0
        %3437 = vmatprep.subr.mxu0 0.0
        %3438 = vmatpush1.xpose.msra.mxu0 %v1061
        %3439 = vmatprep.subr.mxu0 0.0
        %3440 = vmatpush1.xpose.msra.mxu0 %v1067
        %3441 = vmatprep.subr.mxu0 0.0
        %3442 = vmatpush1.xpose.msra.mxu0 %v1073
        %3443 = vmatprep.subr.mxu0 0.0
        %3444 = vmatpush1.xpose.msra.mxu0 %v1079
        %3445 = vmatprep.subr.mxu0 0.0
        %3446 = vmatpush1.xpose.msra.mxu0 0.0
        %3447 = vmatprep.subr.mxu0 0.0
        %3448 = vmatpush1.xpose.msra.mxu0 0.0
        %3449 = vmatprep.subr.mxu0 0.0
        %3450 = vmatpush1.xpose.msra.mxu0 0.0
        %3451 = vmatprep.subr.mxu0 0.0
        %3452 = vmatpush1.xpose.msra.mxu0 0.0
        %3453 = vmatprep.subr.mxu0 0.0
        %3454 = vmatpush1.xpose.msra.mxu0 0.0
        %3455 = vmatprep.subr.mxu0 0.0
        %3456 = vmatpush1.xpose.msra.mxu0 0.0
        %3457 = vmatprep.subr.mxu0 0.0
        %3458 = vmatpush1.xpose.msra.mxu0 0.0
        %3459 = vmatprep.subr.mxu0 0.0
        %3460 = vmatpush1.xpose.msra.mxu0 0.0
        %3461 = vmatprep.subr.mxu0 0.0
        %3462 = vmatpush1.xpose.msra.mxu0 0.0
        %3463 = vmatprep.subr.mxu0 0.0
        %3464 = vmatpush1.xpose.msra.mxu0 0.0
        %3465 = vmatprep.subr.mxu0 0.0
        %3466 = vmatpush1.xpose.msra.mxu0 0.0
        %3467 = vmatprep.subr.mxu0 0.0
        %3468 = vmatpush1.xpose.msra.mxu0 0.0
        %3469 = vmatprep.subr.mxu0 0.0
        %3470 = vmatpush1.xpose.msra.mxu0 0.0
        %3471 = vmatprep.subr.mxu0 0.0
        %3472 = vmatpush1.xpose.msra.mxu0 0.0
        %3473 = vmatprep.subr.mxu0 0.0
        %3474 = vmatpush1.xpose.msra.mxu0 0.0
        %3475 = vmatprep.subr.mxu0 0.0
        %3476 = vmatpush1.xpose.msra.mxu0 0.0
        %3477 = vmatprep.subr.mxu0 0.0
        %3478 = vmatpush1.xpose.msra.mxu0 0.0
        %3479 = vmatprep.subr.mxu0 0.0
        %3480 = vmatpush1.xpose.msra.mxu0 0.0
        %3481 = vmatprep.subr.mxu0 0.0
        %3482 = vmatpush1.xpose.msra.mxu0 0.0
        %3483 = vmatprep.subr.mxu0 0.0
        %3484 = vmatpush1.xpose.msra.mxu0 0.0
        %3485 = vmatprep.subr.mxu0 0.0
        %3486 = vmatpush1.xpose.msra.mxu0 0.0
        %3487 = vmatprep.subr.mxu0 0.0
        %3488 = vmatpush1.xpose.msra.mxu0 0.0
        %3489 = vmatprep.subr.mxu0 0.0
        %3490 = vmatpush1.xpose.msra.mxu0 0.0
        %3491 = vmatprep.subr.mxu0 0.0
        %3492 = vmatpush1.xpose.msra.mxu0 0.0
        %3493 = vmatprep.subr.mxu0 0.0
        %3494 = vmatpush1.xpose.msra.mxu0 0.0
        %3495 = vmatprep.subr.mxu0 0.0
        %3496 = vmatpush1.xpose.msra.mxu0 0.0
        %3497 = vmatprep.subr.mxu0 0.0
        %3498 = vmatpush1.xpose.msra.mxu0 0.0
        %3499 = vmatprep.subr.mxu0 0.0
        %3500 = vmatpush1.xpose.msra.mxu0 0.0
        %3501 = vmatprep.mubr.f32.mxu0 0.0
        %3502 = vmatmul.mubr.f32.gmra.mrb[0].mxu0 %v804
        %v3503 = vpop.f32.mrb[0].mxu0
        %v3504 = vadd.f32 0.0, %v3503
        %v3505 = vpop.f32.mrb[0].mxu0
        %3506 = vmatprep.mubr.f32.mxu0 0.0
        %3507 = vmatmul.mubr.f32.gmra.mrb[0].mxu0 %v810
        %v3508 = vpop.f32.mrb[0].mxu0
        %v3509 = vadd.f32 0.0, %v3508
        %v3510 = vpop.f32.mrb[0].mxu0
        %3511 = vmatprep.mubr.f32.mxu0 0.0
        %3512 = vmatmul.mubr.f32.gmra.mrb[0].mxu0 %v816
        %v3513 = vpop.f32.mrb[0].mxu0
        %v3514 = vadd.f32 0.0, %v3513
        %v3515 = vpop.f32.mrb[0].mxu0
        %3516 = vmatprep.mubr.f32.mxu0 0.0
        %3517 = vmatmul.mubr.f32.gmra.mrb[0].mxu0 %v822
        %v3518 = vpop.f32.mrb[0].mxu0
        %v3519 = vadd.f32 0.0, %v3518
        %v3520 = vpop.f32.mrb[0].mxu0
        %3521 = vdwg.mxu0
        %3522 = vmatprep.subr.mxu0 0.0
        %3523 = vmatpush1.xpose.msra.mxu0 %v1085
        %3524 = vmatprep.subr.mxu0 0.0
        %3525 = vmatpush1.xpose.msra.mxu0 %v1091
        %3526 = vmatprep.subr.mxu0 0.0
        %3527 = vmatpush1.xpose.msra.mxu0 %v1097
        %3528 = vmatprep.subr.mxu0 0.0
        %3529 = vmatpush1.xpose.msra.mxu0 %v1103
        %3530 = vmatprep.subr.mxu0 0.0
        %3531 = vmatpush1.xpose.msra.mxu0 0.0
        %3532 = vmatprep.subr.mxu0 0.0
        %3533 = vmatpush1.xpose.msra.mxu0 0.0
        %3534 = vmatprep.subr.mxu0 0.0
        %3535 = vmatpush1.xpose.msra.mxu0 0.0
        %3536 = vmatprep.subr.mxu0 0.0
        %3537 = vmatpush1.xpose.msra.mxu0 0.0
        %3538 = vmatprep.subr.mxu0 0.0
        %3539 = vmatpush1.xpose.msra.mxu0 0.0
        %3540 = vmatprep.subr.mxu0 0.0
        %3541 = vmatpush1.xpose.msra.mxu0 0.0
        %3542 = vmatprep.subr.mxu0 0.0
        %3543 = vmatpush1.xpose.msra.mxu0 0.0
        %3544 = vmatprep.subr.mxu0 0.0
        %3545 = vmatpush1.xpose.msra.mxu0 0.0
        %3546 = vmatprep.subr.mxu0 0.0
        %3547 = vmatpush1.xpose.msra.mxu0 0.0
        %3548 = vmatprep.subr.mxu0 0.0
        %3549 = vmatpush1.xpose.msra.mxu0 0.0
        %3550 = vmatprep.subr.mxu0 0.0
        %3551 = vmatpush1.xpose.msra.mxu0 0.0
        %3552 = vmatprep.subr.mxu0 0.0
        %3553 = vmatpush1.xpose.msra.mxu0 0.0
        %3554 = vmatprep.subr.mxu0 0.0
        %3555 = vmatpush1.xpose.msra.mxu0 0.0
        %3556 = vmatprep.subr.mxu0 0.0
        %3557 = vmatpush1.xpose.msra.mxu0 0.0
        %3558 = vmatprep.subr.mxu0 0.0
        %3559 = vmatpush1.xpose.msra.mxu0 0.0
        %3560 = vmatprep.subr.mxu0 0.0
        %3561 = vmatpush1.xpose.msra.mxu0 0.0
        %3562 = vmatprep.subr.mxu0 0.0
        %3563 = vmatpush1.xpose.msra.mxu0 0.0
        %3564 = vmatprep.subr.mxu0 0.0
        %3565 = vmatpush1.xpose.msra.mxu0 0.0
        %3566 = vmatprep.subr.mxu0 0.0
        %3567 = vmatpush1.xpose.msra.mxu0 0.0
        %3568 = vmatprep.subr.mxu0 0.0
        %3569 = vmatpush1.xpose.msra.mxu0 0.0
        %3570 = vmatprep.subr.mxu0 0.0
        %3571 = vmatpush1.xpose.msra.mxu0 0.0
        %3572 = vmatprep.subr.mxu0 0.0
        %3573 = vmatpush1.xpose.msra.mxu0 0.0
        %3574 = vmatprep.subr.mxu0 0.0
        %3575 = vmatpush1.xpose.msra.mxu0 0.0
        %3576 = vmatprep.subr.mxu0 0.0
        %3577 = vmatpush1.xpose.msra.mxu0 0.0
        %3578 = vmatprep.subr.mxu0 0.0
        %3579 = vmatpush1.xpose.msra.mxu0 0.0
        %3580 = vmatprep.subr.mxu0 0.0
        %3581 = vmatpush1.xpose.msra.mxu0 0.0
        %3582 = vmatprep.subr.mxu0 0.0
        %3583 = vmatpush1.xpose.msra.mxu0 0.0
        %3584 = vmatprep.subr.mxu0 0.0
        %3585 = vmatpush1.xpose.msra.mxu0 0.0
        %3586 = vmatprep.mubr.f32.mxu0 0.0
        %3587 = vmatmul.mubr.f32.gmra.mrb[0].mxu0 %v828
        %v3588 = vpop.f32.mrb[0].mxu0
        %v3589 = vadd.f32 0.0, %v3588
        %v3590 = vpop.f32.mrb[0].mxu0
        %3591 = vmatprep.mubr.f32.mxu0 0.0
        %3592 = vmatmul.mubr.f32.gmra.mrb[0].mxu0 %v834
        %v3593 = vpop.f32.mrb[0].mxu0
        %v3594 = vadd.f32 0.0, %v3593
        %v3595 = vpop.f32.mrb[0].mxu0
        %3596 = vmatprep.mubr.f32.mxu0 0.0
        %3597 = vmatmul.mubr.f32.gmra.mrb[0].mxu0 %v840
        %v3598 = vpop.f32.mrb[0].mxu0
        %v3599 = vadd.f32 0.0, %v3598
        %v3600 = vpop.f32.mrb[0].mxu0
        %3601 = vmatprep.mubr.f32.mxu0 0.0
        %3602 = vmatmul.mubr.f32.gmra.mrb[0].mxu0 %v846
        %v3603 = vpop.f32.mrb[0].mxu0
        %v3604 = vadd.f32 0.0, %v3603
        %v3605 = vpop.f32.mrb[0].mxu0
        %3606 = vdwg.mxu0
        %3607 = vmatprep.subr.mxu0 0.0
        %3608 = vmatpush1.xpose.msra.mxu0 %v1109
        %3609 = vmatprep.subr.mxu0 0.0
        %3610 = vmatpush1.xpose.msra.mxu0 %v1115
        %3611 = vmatprep.subr.mxu0 0.0
        %3612 = vmatpush1.xpose.msra.mxu0 %v1121
        %3613 = vmatprep.subr.mxu0 0.0
        %3614 = vmatpush1.xpose.msra.mxu0 %v1127
        %3615 = vmatprep.subr.mxu0 0.0
        %3616 = vmatpush1.xpose.msra.mxu0 0.0
        %3617 = vmatprep.subr.mxu0 0.0
        %3618 = vmatpush1.xpose.msra.mxu0 0.0
        %3619 = vmatprep.subr.mxu0 0.0
        %3620 = vmatpush1.xpose.msra.mxu0 0.0
        %3621 = vmatprep.subr.mxu0 0.0
        %3622 = vmatpush1.xpose.msra.mxu0 0.0
        %3623 = vmatprep.subr.mxu0 0.0
        %3624 = vmatpush1.xpose.msra.mxu0 0.0
        %3625 = vmatprep.subr.mxu0 0.0
        %3626 = vmatpush1.xpose.msra.mxu0 0.0
        %3627 = vmatprep.subr.mxu0 0.0
        %3628 = vmatpush1.xpose.msra.mxu0 0.0
        %3629 = vmatprep.subr.mxu0 0.0
        %3630 = vmatpush1.xpose.msra.mxu0 0.0
        %3631 = vmatprep.subr.mxu0 0.0
        %3632 = vmatpush1.xpose.msra.mxu0 0.0
        %3633 = vmatprep.subr.mxu0 0.0
        %3634 = vmatpush1.xpose.msra.mxu0 0.0
        %3635 = vmatprep.subr.mxu0 0.0
        %3636 = vmatpush1.xpose.msra.mxu0 0.0
        %3637 = vmatprep.subr.mxu0 0.0
        %3638 = vmatpush1.xpose.msra.mxu0 0.0
        %3639 = vmatprep.subr.mxu0 0.0
        %3640 = vmatpush1.xpose.msra.mxu0 0.0
        %3641 = vmatprep.subr.mxu0 0.0
        %3642 = vmatpush1.xpose.msra.mxu0 0.0
        %3643 = vmatprep.subr.mxu0 0.0
        %3644 = vmatpush1.xpose.msra.mxu0 0.0
        %3645 = vmatprep.subr.mxu0 0.0
        %3646 = vmatpush1.xpose.msra.mxu0 0.0
        %3647 = vmatprep.subr.mxu0 0.0
        %3648 = vmatpush1.xpose.msra.mxu0 0.0
        %3649 = vmatprep.subr.mxu0 0.0
        %3650 = vmatpush1.xpose.msra.mxu0 0.0
        %3651 = vmatprep.subr.mxu0 0.0
        %3652 = vmatpush1.xpose.msra.mxu0 0.0
        %3653 = vmatprep.subr.mxu0 0.0
        %3654 = vmatpush1.xpose.msra.mxu0 0.0
        %3655 = vmatprep.subr.mxu0 0.0
        %3656 = vmatpush1.xpose.msra.mxu0 0.0
        %3657 = vmatprep.subr.mxu0 0.0
        %3658 = vmatpush1.xpose.msra.mxu0 0.0
        %3659 = vmatprep.subr.mxu0 0.0
        %3660 = vmatpush1.xpose.msra.mxu0 0.0
        %3661 = vmatprep.subr.mxu0 0.0
        %3662 = vmatpush1.xpose.msra.mxu0 0.0
        %3663 = vmatprep.subr.mxu0 0.0
        %3664 = vmatpush1.xpose.msra.mxu0 0.0
        %3665 = vmatprep.subr.mxu0 0.0
        %3666 = vmatpush1.xpose.msra.mxu0 0.0
        %3667 = vmatprep.subr.mxu0 0.0
        %3668 = vmatpush1.xpose.msra.mxu0 0.0
        %3669 = vmatprep.subr.mxu0 0.0
        %3670 = vmatpush1.xpose.msra.mxu0 0.0
        %3671 = vmatprep.mubr.f32.mxu0 0.0
        %3672 = vmatmul.mubr.f32.gmra.mrb[0].mxu0 %v852
        %v3673 = vpop.f32.mrb[0].mxu0
        %v3674 = vadd.f32 0.0, %v3673
        %v3675 = vpop.f32.mrb[0].mxu0
        %3676 = vmatprep.mubr.f32.mxu0 0.0
        %3677 = vmatmul.mubr.f32.gmra.mrb[0].mxu0 %v858
        %v3678 = vpop.f32.mrb[0].mxu0
        %v3679 = vadd.f32 0.0, %v3678
        %v3680 = vpop.f32.mrb[0].mxu0
        %3681 = vmatprep.mubr.f32.mxu0 0.0
        %3682 = vmatmul.mubr.f32.gmra.mrb[0].mxu0 %v864
        %v3683 = vpop.f32.mrb[0].mxu0
        %v3684 = vadd.f32 0.0, %v3683
        %v3685 = vpop.f32.mrb[0].mxu0
        %3686 = vmatprep.mubr.f32.mxu0 0.0
        %3687 = vmatmul.mubr.f32.gmra.mrb[0].mxu0 %v870
        %v3688 = vpop.f32.mrb[0].mxu0
        %v3689 = vadd.f32 0.0, %v3688
        %v3690 = vpop.f32.mrb[0].mxu0
        %3691 = vdwg.mxu0
        %3692 = vmatprep.subr.mxu0 0.0
        %3693 = vmatpush1.xpose.msra.mxu0 %v1133
        %3694 = vmatprep.subr.mxu0 0.0
        %3695 = vmatpush1.xpose.msra.mxu0 %v1139
        %3696 = vmatprep.subr.mxu0 0.0
        %3697 = vmatpush1.xpose.msra.mxu0 %v1145
        %3698 = vmatprep.subr.mxu0 0.0
        %3699 = vmatpush1.xpose.msra.mxu0 %v1151
        %3700 = vmatprep.subr.mxu0 0.0
        %3701 = vmatpush1.xpose.msra.mxu0 0.0
        %3702 = vmatprep.subr.mxu0 0.0
        %3703 = vmatpush1.xpose.msra.mxu0 0.0
        %3704 = vmatprep.subr.mxu0 0.0
        %3705 = vmatpush1.xpose.msra.mxu0 0.0
        %3706 = vmatprep.subr.mxu0 0.0
        %3707 = vmatpush1.xpose.msra.mxu0 0.0
        %3708 = vmatprep.subr.mxu0 0.0
        %3709 = vmatpush1.xpose.msra.mxu0 0.0
        %3710 = vmatprep.subr.mxu0 0.0
        %3711 = vmatpush1.xpose.msra.mxu0 0.0
        %3712 = vmatprep.subr.mxu0 0.0
        %3713 = vmatpush1.xpose.msra.mxu0 0.0
        %3714 = vmatprep.subr.mxu0 0.0
        %3715 = vmatpush1.xpose.msra.mxu0 0.0
        %3716 = vmatprep.subr.mxu0 0.0
        %3717 = vmatpush1.xpose.msra.mxu0 0.0
        %3718 = vmatprep.subr.mxu0 0.0
        %3719 = vmatpush1.xpose.msra.mxu0 0.0
        %3720 = vmatprep.subr.mxu0 0.0
        %3721 = vmatpush1.xpose.msra.mxu0 0.0
        %3722 = vmatprep.subr.mxu0 0.0
        %3723 = vmatpush1.xpose.msra.mxu0 0.0
        %3724 = vmatprep.subr.mxu0 0.0
        %3725 = vmatpush1.xpose.msra.mxu0 0.0
        %3726 = vmatprep.subr.mxu0 0.0
        %3727 = vmatpush1.xpose.msra.mxu0 0.0
        %3728 = vmatprep.subr.mxu0 0.0
        %3729 = vmatpush1.xpose.msra.mxu0 0.0
        %3730 = vmatprep.subr.mxu0 0.0
        %3731 = vmatpush1.xpose.msra.mxu0 0.0
        %3732 = vmatprep.subr.mxu0 0.0
        %3733 = vmatpush1.xpose.msra.mxu0 0.0
        %3734 = vmatprep.subr.mxu0 0.0
        %3735 = vmatpush1.xpose.msra.mxu0 0.0
        %3736 = vmatprep.subr.mxu0 0.0
        %3737 = vmatpush1.xpose.msra.mxu0 0.0
        %3738 = vmatprep.subr.mxu0 0.0
        %3739 = vmatpush1.xpose.msra.mxu0 0.0
        %3740 = vmatprep.subr.mxu0 0.0
        %3741 = vmatpush1.xpose.msra.mxu0 0.0
        %3742 = vmatprep.subr.mxu0 0.0
        %3743 = vmatpush1.xpose.msra.mxu0 0.0
        %3744 = vmatprep.subr.mxu0 0.0
        %3745 = vmatpush1.xpose.msra.mxu0 0.0
        %3746 = vmatprep.subr.mxu0 0.0
        %3747 = vmatpush1.xpose.msra.mxu0 0.0
        %3748 = vmatprep.subr.mxu0 0.0
        %3749 = vmatpush1.xpose.msra.mxu0 0.0
        %3750 = vmatprep.subr.mxu0 0.0
        %3751 = vmatpush1.xpose.msra.mxu0 0.0
        %3752 = vmatprep.subr.mxu0 0.0
        %3753 = vmatpush1.xpose.msra.mxu0 0.0
        %3754 = vmatprep.subr.mxu0 0.0
        %3755 = vmatpush1.xpose.msra.mxu0 0.0
        %3756 = vmatprep.mubr.f32.mxu0 0.0
        %3757 = vmatmul.mubr.f32.gmra.mrb[0].mxu0 %v876
        %v3758 = vpop.f32.mrb[0].mxu0
        %v3759 = vadd.f32 0.0, %v3758
        %v3760 = vpop.f32.mrb[0].mxu0
        %3761 = vmatprep.mubr.f32.mxu0 0.0
        %3762 = vmatmul.mubr.f32.gmra.mrb[0].mxu0 %v882
        %v3763 = vpop.f32.mrb[0].mxu0
        %v3764 = vadd.f32 0.0, %v3763
        %v3765 = vpop.f32.mrb[0].mxu0
        %3766 = vmatprep.mubr.f32.mxu0 0.0
        %3767 = vmatmul.mubr.f32.gmra.mrb[0].mxu0 %v888
        %v3768 = vpop.f32.mrb[0].mxu0
        %v3769 = vadd.f32 0.0, %v3768
        %v3770 = vpop.f32.mrb[0].mxu0
        %3771 = vmatprep.mubr.f32.mxu0 0.0
        %3772 = vmatmul.mubr.f32.gmra.mrb[0].mxu0 %v894
        %v3773 = vpop.f32.mrb[0].mxu0
        %v3774 = vadd.f32 0.0, %v3773
        %v3775 = vpop.f32.mrb[0].mxu0
        %3776 = vdwg.mxu0
        %3777 = vmatprep.subr.mxu0 0.0
        %3778 = vmatpush1.xpose.msra.mxu0 %v1157
        %3779 = vmatprep.subr.mxu0 0.0
        %3780 = vmatpush1.xpose.msra.mxu0 %v1163
        %3781 = vmatprep.subr.mxu0 0.0
        %3782 = vmatpush1.xpose.msra.mxu0 %v1169
        %3783 = vmatprep.subr.mxu0 0.0
        %3784 = vmatpush1.xpose.msra.mxu0 %v1175
        %3785 = vmatprep.subr.mxu0 0.0
        %3786 = vmatpush1.xpose.msra.mxu0 0.0
        %3787 = vmatprep.subr.mxu0 0.0
        %3788 = vmatpush1.xpose.msra.mxu0 0.0
        %3789 = vmatprep.subr.mxu0 0.0
        %3790 = vmatpush1.xpose.msra.mxu0 0.0
        %3791 = vmatprep.subr.mxu0 0.0
        %3792 = vmatpush1.xpose.msra.mxu0 0.0
        %3793 = vmatprep.subr.mxu0 0.0
        %3794 = vmatpush1.xpose.msra.mxu0 0.0
        %3795 = vmatprep.subr.mxu0 0.0
        %3796 = vmatpush1.xpose.msra.mxu0 0.0
        %3797 = vmatprep.subr.mxu0 0.0
        %3798 = vmatpush1.xpose.msra.mxu0 0.0
        %3799 = vmatprep.subr.mxu0 0.0
        %3800 = vmatpush1.xpose.msra.mxu0 0.0
        %3801 = vmatprep.subr.mxu0 0.0
        %3802 = vmatpush1.xpose.msra.mxu0 0.0
        %3803 = vmatprep.subr.mxu0 0.0
        %3804 = vmatpush1.xpose.msra.mxu0 0.0
        %3805 = vmatprep.subr.mxu0 0.0
        %3806 = vmatpush1.xpose.msra.mxu0 0.0
        %3807 = vmatprep.subr.mxu0 0.0
        %3808 = vmatpush1.xpose.msra.mxu0 0.0
        %3809 = vmatprep.subr.mxu0 0.0
        %3810 = vmatpush1.xpose.msra.mxu0 0.0
        %3811 = vmatprep.subr.mxu0 0.0
        %3812 = vmatpush1.xpose.msra.mxu0 0.0
        %3813 = vmatprep.subr.mxu0 0.0
        %3814 = vmatpush1.xpose.msra.mxu0 0.0
        %3815 = vmatprep.subr.mxu0 0.0
        %3816 = vmatpush1.xpose.msra.mxu0 0.0
        %3817 = vmatprep.subr.mxu0 0.0
        %3818 = vmatpush1.xpose.msra.mxu0 0.0
        %3819 = vmatprep.subr.mxu0 0.0
        %3820 = vmatpush1.xpose.msra.mxu0 0.0
        %3821 = vmatprep.subr.mxu0 0.0
        %3822 = vmatpush1.xpose.msra.mxu0 0.0
        %3823 = vmatprep.subr.mxu0 0.0
        %3824 = vmatpush1.xpose.msra.mxu0 0.0
        %3825 = vmatprep.subr.mxu0 0.0
        %3826 = vmatpush1.xpose.msra.mxu0 0.0
        %3827 = vmatprep.subr.mxu0 0.0
        %3828 = vmatpush1.xpose.msra.mxu0 0.0
        %3829 = vmatprep.subr.mxu0 0.0
        %3830 = vmatpush1.xpose.msra.mxu0 0.0
        %3831 = vmatprep.subr.mxu0 0.0
        %3832 = vmatpush1.xpose.msra.mxu0 0.0
        %3833 = vmatprep.subr.mxu0 0.0
        %3834 = vmatpush1.xpose.msra.mxu0 0.0
        %3835 = vmatprep.subr.mxu0 0.0
        %3836 = vmatpush1.xpose.msra.mxu0 0.0
        %3837 = vmatprep.subr.mxu0 0.0
        %3838 = vmatpush1.xpose.msra.mxu0 0.0
        %3839 = vmatprep.subr.mxu0 0.0
        %3840 = vmatpush1.xpose.msra.mxu0 0.0
        %3841 = vmatprep.mubr.f32.mxu0 0.0
        %3842 = vmatmul.mubr.f32.gmra.mrb[0].mxu0 %v900
        %v3843 = vpop.f32.mrb[0].mxu0
        %v3844 = vadd.f32 0.0, %v3843
        %v3845 = vpop.f32.mrb[0].mxu0
        %3846 = vmatprep.mubr.f32.mxu0 0.0
        %3847 = vmatmul.mubr.f32.gmra.mrb[0].mxu0 %v906
        %v3848 = vpop.f32.mrb[0].mxu0
        %v3849 = vadd.f32 0.0, %v3848
        %v3850 = vpop.f32.mrb[0].mxu0
        %3851 = vmatprep.mubr.f32.mxu0 0.0
        %3852 = vmatmul.mubr.f32.gmra.mrb[0].mxu0 %v912
        %v3853 = vpop.f32.mrb[0].mxu0
        %v3854 = vadd.f32 0.0, %v3853
        %v3855 = vpop.f32.mrb[0].mxu0
        %3856 = vmatprep.mubr.f32.mxu0 0.0
        %3857 = vmatmul.mubr.f32.gmra.mrb[0].mxu0 %v918
        %v3858 = vpop.f32.mrb[0].mxu0
        %v3859 = vadd.f32 0.0, %v3858
        %v3860 = vpop.f32.mrb[0].mxu0
        %3861 = vdwg.mxu0
        %3862 = vmatprep.subr.mxu0 0.0
        %3863 = vmatpush1.xpose.msra.mxu0 %v1181
        %3864 = vmatprep.subr.mxu0 0.0
        %3865 = vmatpush1.xpose.msra.mxu0 %v1187
        %3866 = vmatprep.subr.mxu0 0.0
        %3867 = vmatpush1.xpose.msra.mxu0 %v1193
        %3868 = vmatprep.subr.mxu0 0.0
        %3869 = vmatpush1.xpose.msra.mxu0 %v1199
        %3870 = vmatprep.subr.mxu0 0.0
        %3871 = vmatpush1.xpose.msra.mxu0 0.0
        %3872 = vmatprep.subr.mxu0 0.0
        %3873 = vmatpush1.xpose.msra.mxu0 0.0
        %3874 = vmatprep.subr.mxu0 0.0
        %3875 = vmatpush1.xpose.msra.mxu0 0.0
        %3876 = vmatprep.subr.mxu0 0.0
        %3877 = vmatpush1.xpose.msra.mxu0 0.0
        %3878 = vmatprep.subr.mxu0 0.0
        %3879 = vmatpush1.xpose.msra.mxu0 0.0
        %3880 = vmatprep.subr.mxu0 0.0
        %3881 = vmatpush1.xpose.msra.mxu0 0.0
        %3882 = vmatprep.subr.mxu0 0.0
        %3883 = vmatpush1.xpose.msra.mxu0 0.0
        %3884 = vmatprep.subr.mxu0 0.0
        %3885 = vmatpush1.xpose.msra.mxu0 0.0
        %3886 = vmatprep.subr.mxu0 0.0
        %3887 = vmatpush1.xpose.msra.mxu0 0.0
        %3888 = vmatprep.subr.mxu0 0.0
        %3889 = vmatpush1.xpose.msra.mxu0 0.0
        %3890 = vmatprep.subr.mxu0 0.0
        %3891 = vmatpush1.xpose.msra.mxu0 0.0
        %3892 = vmatprep.subr.mxu0 0.0
        %3893 = vmatpush1.xpose.msra.mxu0 0.0
        %3894 = vmatprep.subr.mxu0 0.0
        %3895 = vmatpush1.xpose.msra.mxu0 0.0
        %3896 = vmatprep.subr.mxu0 0.0
        %3897 = vmatpush1.xpose.msra.mxu0 0.0
        %3898 = vmatprep.subr.mxu0 0.0
        %3899 = vmatpush1.xpose.msra.mxu0 0.0
        %3900 = vmatprep.subr.mxu0 0.0
        %3901 = vmatpush1.xpose.msra.mxu0 0.0
        %3902 = vmatprep.subr.mxu0 0.0
        %3903 = vmatpush1.xpose.msra.mxu0 0.0
        %3904 = vmatprep.subr.mxu0 0.0
        %3905 = vmatpush1.xpose.msra.mxu0 0.0
        %3906 = vmatprep.subr.mxu0 0.0
        %3907 = vmatpush1.xpose.msra.mxu0 0.0
        %3908 = vmatprep.subr.mxu0 0.0
        %3909 = vmatpush1.xpose.msra.mxu0 0.0
        %3910 = vmatprep.subr.mxu0 0.0
        %3911 = vmatpush1.xpose.msra.mxu0 0.0
        %3912 = vmatprep.subr.mxu0 0.0
        %3913 = vmatpush1.xpose.msra.mxu0 0.0
        %3914 = vmatprep.subr.mxu0 0.0
        %3915 = vmatpush1.xpose.msra.mxu0 0.0
        %3916 = vmatprep.subr.mxu0 0.0
        %3917 = vmatpush1.xpose.msra.mxu0 0.0
        %3918 = vmatprep.subr.mxu0 0.0
        %3919 = vmatpush1.xpose.msra.mxu0 0.0
        %3920 = vmatprep.subr.mxu0 0.0
        %3921 = vmatpush1.xpose.msra.mxu0 0.0
        %3922 = vmatprep.subr.mxu0 0.0
        %3923 = vmatpush1.xpose.msra.mxu0 0.0
        %3924 = vmatprep.subr.mxu0 0.0
        %3925 = vmatpush1.xpose.msra.mxu0 0.0
        %3926 = vmatprep.mubr.f32.mxu0 0.0
        %3927 = vmatmul.mubr.f32.gmra.mrb[0].mxu0 %v924
        %v3928 = vpop.f32.mrb[0].mxu0
        %v3929 = vadd.f32 0.0, %v3928
        %v3930 = vpop.f32.mrb[0].mxu0
        %3931 = vmatprep.mubr.f32.mxu0 0.0
        %3932 = vmatmul.mubr.f32.gmra.mrb[0].mxu0 %v930
        %v3933 = vpop.f32.mrb[0].mxu0
        %v3934 = vadd.f32 0.0, %v3933
        %v3935 = vpop.f32.mrb[0].mxu0
        %3936 = vmatprep.mubr.f32.mxu0 0.0
        %3937 = vmatmul.mubr.f32.gmra.mrb[0].mxu0 %v936
        %v3938 = vpop.f32.mrb[0].mxu0
        %v3939 = vadd.f32 0.0, %v3938
        %v3940 = vpop.f32.mrb[0].mxu0
        %3941 = vmatprep.mubr.f32.mxu0 0.0
        %3942 = vmatmul.mubr.f32.gmra.mrb[0].mxu0 %v942
        %v3943 = vpop.f32.mrb[0].mxu0
        %v3944 = vadd.f32 0.0, %v3943
        %v3945 = vpop.f32.mrb[0].mxu0
        %3946 = vdwg.mxu0
        %v3947 = vsel %vm2138, %v3334, -inf
        %3948 = vmax.xlane.f32.xlu0 %v3947
        %v3949 = vpop.xlane.xlu0 %3948
        %v3950 = vsel %vm2138, %v3339, -inf
        %3951 = vmax.xlane.f32.xlu0 %v3950
        %v3952 = vpop.xlane.xlu0 %3951
        %v3953 = vsel %vm2138, %v3344, -inf
        %3954 = vmax.xlane.f32.xlu0 %v3953
        %v3955 = vpop.xlane.xlu0 %3954
        %v3956 = vsel %vm2138, %v3349, -inf
        %3957 = vmax.xlane.f32.xlu0 %v3956
        %v3958 = vpop.xlane.xlu0 %3957
        %v3959 = vsel %vm2138, %v3419, -inf
        %3960 = vmax.xlane.f32.xlu0 %v3959
        %v3961 = vpop.xlane.xlu0 %3960
        %v3962 = vsel %vm2138, %v3424, -inf
        %3963 = vmax.xlane.f32.xlu0 %v3962
        %v3964 = vpop.xlane.xlu0 %3963
        %v3965 = vsel %vm2138, %v3429, -inf
        %3966 = vmax.xlane.f32.xlu0 %v3965
        %v3967 = vpop.xlane.xlu0 %3966
        %v3968 = vsel %vm2138, %v3434, -inf
        %3969 = vmax.xlane.f32.xlu0 %v3968
        %v3970 = vpop.xlane.xlu0 %3969
        %v3971 = vsel %vm2138, %v3504, -inf
        %3972 = vmax.xlane.f32.xlu0 %v3971
        %v3973 = vpop.xlane.xlu0 %3972
        %v3974 = vsel %vm2138, %v3509, -inf
        %3975 = vmax.xlane.f32.xlu0 %v3974
        %v3976 = vpop.xlane.xlu0 %3975
        %v3977 = vsel %vm2138, %v3514, -inf
        %3978 = vmax.xlane.f32.xlu0 %v3977
        %v3979 = vpop.xlane.xlu0 %3978
        %v3980 = vsel %vm2138, %v3519, -inf
        %3981 = vmax.xlane.f32.xlu0 %v3980
        %v3982 = vpop.xlane.xlu0 %3981
        %v3983 = vsel %vm2138, %v3589, -inf
        %3984 = vmax.xlane.f32.xlu0 %v3983
        %v3985 = vpop.xlane.xlu0 %3984
        %v3986 = vsel %vm2138, %v3594, -inf
        %3987 = vmax.xlane.f32.xlu0 %v3986
        %v3988 = vpop.xlane.xlu0 %3987
        %v3989 = vsel %vm2138, %v3599, -inf
        %3990 = vmax.xlane.f32.xlu0 %v3989
        %v3991 = vpop.xlane.xlu0 %3990
        %v3992 = vsel %vm2138, %v3604, -inf
        %3993 = vmax.xlane.f32.xlu0 %v3992
        %v3994 = vpop.xlane.xlu0 %3993
        %v3995 = vsel %vm2138, %v3674, -inf
        %3996 = vmax.xlane.f32.xlu0 %v3995
        %v3997 = vpop.xlane.xlu0 %3996
        %v3998 = vsel %vm2138, %v3679, -inf
        %3999 = vmax.xlane.f32.xlu0 %v3998
        %v4000 = vpop.xlane.xlu0 %3999
        %v4001 = vsel %vm2138, %v3684, -inf
        %4002 = vmax.xlane.f32.xlu0 %v4001
        %v4003 = vpop.xlane.xlu0 %4002
        %v4004 = vsel %vm2138, %v3689, -inf
        %4005 = vmax.xlane.f32.xlu0 %v4004
        %v4006 = vpop.xlane.xlu0 %4005
        %v4007 = vsel %vm2138, %v3759, -inf
        %4008 = vmax.xlane.f32.xlu0 %v4007
        %v4009 = vpop.xlane.xlu0 %4008
        %v4010 = vsel %vm2138, %v3764, -inf
        %4011 = vmax.xlane.f32.xlu0 %v4010
        %v4012 = vpop.xlane.xlu0 %4011
        %v4013 = vsel %vm2138, %v3769, -inf
        %4014 = vmax.xlane.f32.xlu0 %v4013
        %v4015 = vpop.xlane.xlu0 %4014
        %v4016 = vsel %vm2138, %v3774, -inf
        %4017 = vmax.xlane.f32.xlu0 %v4016
        %v4018 = vpop.xlane.xlu0 %4017
        %v4019 = vsel %vm2138, %v3844, -inf
        %4020 = vmax.xlane.f32.xlu0 %v4019
        %v4021 = vpop.xlane.xlu0 %4020
        %v4022 = vsel %vm2138, %v3849, -inf
        %4023 = vmax.xlane.f32.xlu0 %v4022
        %v4024 = vpop.xlane.xlu0 %4023
        %v4025 = vsel %vm2138, %v3854, -inf
        %4026 = vmax.xlane.f32.xlu0 %v4025
        %v4027 = vpop.xlane.xlu0 %4026
        %v4028 = vsel %vm2138, %v3859, -inf
        %4029 = vmax.xlane.f32.xlu0 %v4028
        %v4030 = vpop.xlane.xlu0 %4029
        %v4031 = vsel %vm2138, %v3929, -inf
        %4032 = vmax.xlane.f32.xlu0 %v4031
        %v4033 = vpop.xlane.xlu0 %4032
        %v4034 = vsel %vm2138, %v3934, -inf
        %4035 = vmax.xlane.f32.xlu0 %v4034
        %v4036 = vpop.xlane.xlu0 %4035
        %v4037 = vsel %vm2138, %v3939, -inf
        %4038 = vmax.xlane.f32.xlu0 %v4037
        %v4039 = vpop.xlane.xlu0 %4038
        %v4040 = vsel %vm2138, %v3944, -inf
        %4041 = vmax.xlane.f32.xlu0 %v4040
        %v4042 = vpop.xlane.xlu0 %4041
        %v4043 = vsub.f32 %v3334, %v3949
        %v4044 = vsub.f32 %v3339, %v3952
        %v4045 = vsub.f32 %v3344, %v3955
        %v4046 = vsub.f32 %v3349, %v3958
        %v4047 = vsub.f32 %v3419, %v3961
        %v4048 = vsub.f32 %v3424, %v3964
        %v4049 = vsub.f32 %v3429, %v3967
        %v4050 = vsub.f32 %v3434, %v3970
        %v4051 = vsub.f32 %v3504, %v3973
        %v4052 = vsub.f32 %v3509, %v3976
        %v4053 = vsub.f32 %v3514, %v3979
        %v4054 = vsub.f32 %v3519, %v3982
        %v4055 = vsub.f32 %v3589, %v3985
        %v4056 = vsub.f32 %v3594, %v3988
        %v4057 = vsub.f32 %v3599, %v3991
        %v4058 = vsub.f32 %v3604, %v3994
        %v4059 = vsub.f32 %v3674, %v3997
        %v4060 = vsub.f32 %v3679, %v4000
        %v4061 = vsub.f32 %v3684, %v4003
        %v4062 = vsub.f32 %v3689, %v4006
        %v4063 = vsub.f32 %v3759, %v4009
        %v4064 = vsub.f32 %v3764, %v4012
        %v4065 = vsub.f32 %v3769, %v4015
        %v4066 = vsub.f32 %v3774, %v4018
        %v4067 = vsub.f32 %v3844, %v4021
        %v4068 = vsub.f32 %v3849, %v4024
        %v4069 = vsub.f32 %v3854, %v4027
        %v4070 = vsub.f32 %v3859, %v4030
        %v4071 = vsub.f32 %v3929, %v4033
        %v4072 = vsub.f32 %v3934, %v4036
        %v4073 = vsub.f32 %v3939, %v4039
        %v4074 = vsub.f32 %v3944, %v4042
        %v4075 = vmul.f32 %v4043, 1.442695
        %v4076 = vpow.pop %v4075
        %v4077 = vmul.f32 %v4044, 1.442695
        %v4078 = vpow.pop %v4077
        %v4079 = vmul.f32 %v4045, 1.442695
        %v4080 = vpow.pop %v4079
        %v4081 = vmul.f32 %v4046, 1.442695
        %v4082 = vpow.pop %v4081
        %v4083 = vmul.f32 %v4047, 1.442695
        %v4084 = vpow.pop %v4083
        %v4085 = vmul.f32 %v4048, 1.442695
        %v4086 = vpow.pop %v4085
        %v4087 = vmul.f32 %v4049, 1.442695
        %v4088 = vpow.pop %v4087
        %v4089 = vmul.f32 %v4050, 1.442695
        %v4090 = vpow.pop %v4089
        %v4091 = vmul.f32 %v4051, 1.442695
        %v4092 = vpow.pop %v4091
        %v4093 = vmul.f32 %v4052, 1.442695
        %v4094 = vpow.pop %v4093
        %v4095 = vmul.f32 %v4053, 1.442695
        %v4096 = vpow.pop %v4095
        %v4097 = vmul.f32 %v4054, 1.442695
        %v4098 = vpow.pop %v4097
        %v4099 = vmul.f32 %v4055, 1.442695
        %v4100 = vpow.pop %v4099
        %v4101 = vmul.f32 %v4056, 1.442695
        %v4102 = vpow.pop %v4101
        %v4103 = vmul.f32 %v4057, 1.442695
        %v4104 = vpow.pop %v4103
        %v4105 = vmul.f32 %v4058, 1.442695
        %v4106 = vpow.pop %v4105
        %v4107 = vmul.f32 %v4059, 1.442695
        %v4108 = vpow.pop %v4107
        %v4109 = vmul.f32 %v4060, 1.442695
        %v4110 = vpow.pop %v4109
        %v4111 = vmul.f32 %v4061, 1.442695
        %v4112 = vpow.pop %v4111
        %v4113 = vmul.f32 %v4062, 1.442695
        %v4114 = vpow.pop %v4113
        %v4115 = vmul.f32 %v4063, 1.442695
        %v4116 = vpow.pop %v4115
        %v4117 = vmul.f32 %v4064, 1.442695
        %v4118 = vpow.pop %v4117
        %v4119 = vmul.f32 %v4065, 1.442695
        %v4120 = vpow.pop %v4119
        %v4121 = vmul.f32 %v4066, 1.442695
        %v4122 = vpow.pop %v4121
        %v4123 = vmul.f32 %v4067, 1.442695
        %v4124 = vpow.pop %v4123
        %v4125 = vmul.f32 %v4068, 1.442695
        %v4126 = vpow.pop %v4125
        %v4127 = vmul.f32 %v4069, 1.442695
        %v4128 = vpow.pop %v4127
        %v4129 = vmul.f32 %v4070, 1.442695
        %v4130 = vpow.pop %v4129
        %v4131 = vmul.f32 %v4071, 1.442695
        %v4132 = vpow.pop %v4131
        %v4133 = vmul.f32 %v4072, 1.442695
        %v4134 = vpow.pop %v4133
        %v4135 = vmul.f32 %v4073, 1.442695
        %v4136 = vpow.pop %v4135
        %v4137 = vmul.f32 %v4074, 1.442695
        %v4138 = vpow.pop %v4137
        %v4139 = vsel %vm2138, %v4076, 0.0
        %4140 = vadd.xlane.f32.xlu0 %v4139
        %v4141 = vpop.xlane.xlu0 %4140
        %v4142 = vsel %vm2138, %v4078, 0.0
        %4143 = vadd.xlane.f32.xlu0 %v4142
        %v4144 = vpop.xlane.xlu0 %4143
        %v4145 = vsel %vm2138, %v4080, 0.0
        %4146 = vadd.xlane.f32.xlu0 %v4145
        %v4147 = vpop.xlane.xlu0 %4146
        %v4148 = vsel %vm2138, %v4082, 0.0
        %4149 = vadd.xlane.f32.xlu0 %v4148
        %v4150 = vpop.xlane.xlu0 %4149
        %v4151 = vsel %vm2138, %v4084, 0.0
        %4152 = vadd.xlane.f32.xlu0 %v4151
        %v4153 = vpop.xlane.xlu0 %4152
        %v4154 = vsel %vm2138, %v4086, 0.0
        %4155 = vadd.xlane.f32.xlu0 %v4154
        %v4156 = vpop.xlane.xlu0 %4155
        %v4157 = vsel %vm2138, %v4088, 0.0
        %4158 = vadd.xlane.f32.xlu0 %v4157
        %v4159 = vpop.xlane.xlu0 %4158
        %v4160 = vsel %vm2138, %v4090, 0.0
        %4161 = vadd.xlane.f32.xlu0 %v4160
        %v4162 = vpop.xlane.xlu0 %4161
        %v4163 = vsel %vm2138, %v4092, 0.0
        %4164 = vadd.xlane.f32.xlu0 %v4163
        %v4165 = vpop.xlane.xlu0 %4164
        %v4166 = vsel %vm2138, %v4094, 0.0
        %4167 = vadd.xlane.f32.xlu0 %v4166
        %v4168 = vpop.xlane.xlu0 %4167
        %v4169 = vsel %vm2138, %v4096, 0.0
        %4170 = vadd.xlane.f32.xlu0 %v4169
        %v4171 = vpop.xlane.xlu0 %4170
        %v4172 = vsel %vm2138, %v4098, 0.0
        %4173 = vadd.xlane.f32.xlu0 %v4172
        %v4174 = vpop.xlane.xlu0 %4173
        %v4175 = vsel %vm2138, %v4100, 0.0
        %4176 = vadd.xlane.f32.xlu0 %v4175
        %v4177 = vpop.xlane.xlu0 %4176
        %v4178 = vsel %vm2138, %v4102, 0.0
        %4179 = vadd.xlane.f32.xlu0 %v4178
        %v4180 = vpop.xlane.xlu0 %4179
        %v4181 = vsel %vm2138, %v4104, 0.0
        %4182 = vadd.xlane.f32.xlu0 %v4181
        %v4183 = vpop.xlane.xlu0 %4182
        %v4184 = vsel %vm2138, %v4106, 0.0
        %4185 = vadd.xlane.f32.xlu0 %v4184
        %v4186 = vpop.xlane.xlu0 %4185
        %v4187 = vsel %vm2138, %v4108, 0.0
        %4188 = vadd.xlane.f32.xlu0 %v4187
        %v4189 = vpop.xlane.xlu0 %4188
        %v4190 = vsel %vm2138, %v4110, 0.0
        %4191 = vadd.xlane.f32.xlu0 %v4190
        %v4192 = vpop.xlane.xlu0 %4191
        %v4193 = vsel %vm2138, %v4112, 0.0
        %4194 = vadd.xlane.f32.xlu0 %v4193
        %v4195 = vpop.xlane.xlu0 %4194
        %v4196 = vsel %vm2138, %v4114, 0.0
        %4197 = vadd.xlane.f32.xlu0 %v4196
        %v4198 = vpop.xlane.xlu0 %4197
        %v4199 = vsel %vm2138, %v4116, 0.0
        %4200 = vadd.xlane.f32.xlu0 %v4199
        %v4201 = vpop.xlane.xlu0 %4200
        %v4202 = vsel %vm2138, %v4118, 0.0
        %4203 = vadd.xlane.f32.xlu0 %v4202
        %v4204 = vpop.xlane.xlu0 %4203
        %v4205 = vsel %vm2138, %v4120, 0.0
        %4206 = vadd.xlane.f32.xlu0 %v4205
        %v4207 = vpop.xlane.xlu0 %4206
        %v4208 = vsel %vm2138, %v4122, 0.0
        %4209 = vadd.xlane.f32.xlu0 %v4208
        %v4210 = vpop.xlane.xlu0 %4209
        %v4211 = vsel %vm2138, %v4124, 0.0
        %4212 = vadd.xlane.f32.xlu0 %v4211
        %v4213 = vpop.xlane.xlu0 %4212
        %v4214 = vsel %vm2138, %v4126, 0.0
        %4215 = vadd.xlane.f32.xlu0 %v4214
        %v4216 = vpop.xlane.xlu0 %4215
        %v4217 = vsel %vm2138, %v4128, 0.0
        %4218 = vadd.xlane.f32.xlu0 %v4217
        %v4219 = vpop.xlane.xlu0 %4218
        %v4220 = vsel %vm2138, %v4130, 0.0
        %4221 = vadd.xlane.f32.xlu0 %v4220
        %v4222 = vpop.xlane.xlu0 %4221
        %v4223 = vsel %vm2138, %v4132, 0.0
        %4224 = vadd.xlane.f32.xlu0 %v4223
        %v4225 = vpop.xlane.xlu0 %4224
        %v4226 = vsel %vm2138, %v4134, 0.0
        %4227 = vadd.xlane.f32.xlu0 %v4226
        %v4228 = vpop.xlane.xlu0 %4227
        %v4229 = vsel %vm2138, %v4136, 0.0
        %4230 = vadd.xlane.f32.xlu0 %v4229
        %v4231 = vpop.xlane.xlu0 %4230
        %v4232 = vsel %vm2138, %v4138, 0.0
        %4233 = vadd.xlane.f32.xlu0 %v4232
        %v4234 = vpop.xlane.xlu0 %4233
        %v4236 = vsel %vm2138, %v4076, 0
        %v4239 = vsel %vm2138, %v4078, 0
        %v4242 = vsel %vm2138, %v4080, 0
        %v4245 = vsel %vm2138, %v4082, 0
        %4247 = vmatprep.subr.mxu0 0.0
        %4248 = vmatpush1.msra.mxu0 %v1270
        %4249 = vmatprep.subr.mxu0 0.0
        %4250 = vmatpush1.msra.mxu0 %v1276
        %4251 = vmatprep.subr.mxu0 0.0
        %4252 = vmatpush1.msra.mxu0 %v1282
        %4253 = vmatprep.subr.mxu0 0.0
        %4254 = vmatpush1.msra.mxu0 %v1288
        %4255 = vmatprep.subr.mxu0 0.0
        %4256 = vmatpush1.msra.mxu0 0.0
        %4257 = vmatprep.subr.mxu0 0.0
        %4258 = vmatpush1.msra.mxu0 0.0
        %4259 = vmatprep.subr.mxu0 0.0
        %4260 = vmatpush1.msra.mxu0 0.0
        %4261 = vmatprep.subr.mxu0 0.0
        %4262 = vmatpush1.msra.mxu0 0.0
        %4263 = vmatprep.subr.mxu0 0.0
        %4264 = vmatpush1.msra.mxu0 0.0
        %4265 = vmatprep.subr.mxu0 0.0
        %4266 = vmatpush1.msra.mxu0 0.0
        %4267 = vmatprep.subr.mxu0 0.0
        %4268 = vmatpush1.msra.mxu0 0.0
        %4269 = vmatprep.subr.mxu0 0.0
        %4270 = vmatpush1.msra.mxu0 0.0
        %4271 = vmatprep.subr.mxu0 0.0
        %4272 = vmatpush1.msra.mxu0 0.0
        %4273 = vmatprep.subr.mxu0 0.0
        %4274 = vmatpush1.msra.mxu0 0.0
        %4275 = vmatprep.subr.mxu0 0.0
        %4276 = vmatpush1.msra.mxu0 0.0
        %4277 = vmatprep.subr.mxu0 0.0
        %4278 = vmatpush1.msra.mxu0 0.0
        %4279 = vmatprep.subr.mxu0 0.0
        %4280 = vmatpush1.msra.mxu0 0.0
        %4281 = vmatprep.subr.mxu0 0.0
        %4282 = vmatpush1.msra.mxu0 0.0
        %4283 = vmatprep.subr.mxu0 0.0
        %4284 = vmatpush1.msra.mxu0 0.0
        %4285 = vmatprep.subr.mxu0 0.0
        %4286 = vmatpush1.msra.mxu0 0.0
        %4287 = vmatprep.subr.mxu0 0.0
        %4288 = vmatpush1.msra.mxu0 0.0
        %4289 = vmatprep.subr.mxu0 0.0
        %4290 = vmatpush1.msra.mxu0 0.0
        %4291 = vmatprep.subr.mxu0 0.0
        %4292 = vmatpush1.msra.mxu0 0.0
        %4293 = vmatprep.subr.mxu0 0.0
        %4294 = vmatpush1.msra.mxu0 0.0
        %4295 = vmatprep.subr.mxu0 0.0
        %4296 = vmatpush1.msra.mxu0 0.0
        %4297 = vmatprep.subr.mxu0 0.0
        %4298 = vmatpush1.msra.mxu0 0.0
        %4299 = vmatprep.subr.mxu0 0.0
        %4300 = vmatpush1.msra.mxu0 0.0
        %4301 = vmatprep.subr.mxu0 0.0
        %4302 = vmatpush1.msra.mxu0 0.0
        %4303 = vmatprep.subr.mxu0 0.0
        %4304 = vmatpush1.msra.mxu0 0.0
        %4305 = vmatprep.subr.mxu0 0.0
        %4306 = vmatpush1.msra.mxu0 0.0
        %4307 = vmatprep.subr.mxu0 0.0
        %4308 = vmatpush1.msra.mxu0 0.0
        %4309 = vmatprep.subr.mxu0 0.0
        %4310 = vmatpush1.msra.mxu0 0.0
        %4311 = vmatprep.mubr.f32.mxu0 0.0
        %4312 = vmatmul.mubr.f32.gmra.mrb[0].mxu0 %v4236
        %v4313 = vpop.f32.mrb[0].mxu0
        %v4314 = vadd.f32 0.0, %v4313
        %v4315 = vpop.f32.mrb[0].mxu0
        %4316 = vmatprep.mubr.f32.mxu0 0.0
        %4317 = vmatmul.mubr.f32.gmra.mrb[0].mxu0 %v4239
        %v4318 = vpop.f32.mrb[0].mxu0
        %v4319 = vadd.f32 0.0, %v4318
        %v4320 = vpop.f32.mrb[0].mxu0
        %4321 = vmatprep.mubr.f32.mxu0 0.0
        %4322 = vmatmul.mubr.f32.gmra.mrb[0].mxu0 %v4242
        %v4323 = vpop.f32.mrb[0].mxu0
        %v4324 = vadd.f32 0.0, %v4323
        %v4325 = vpop.f32.mrb[0].mxu0
        %4326 = vmatprep.mubr.f32.mxu0 0.0
        %4327 = vmatmul.mubr.f32.gmra.mrb[0].mxu0 %v4245
        %v4328 = vpop.f32.mrb[0].mxu0
        %v4329 = vadd.f32 0.0, %v4328
        %v4330 = vpop.f32.mrb[0].mxu0
        %4331 = vdwg.mxu0
        %v4333 = vsel %vm2138, %v4084, 0
        %v4336 = vsel %vm2138, %v4086, 0
        %v4339 = vsel %vm2138, %v4088, 0
        %v4342 = vsel %vm2138, %v4090, 0
        %4344 = vmatprep.subr.mxu0 0.0
        %4345 = vmatpush1.msra.mxu0 %v1294
        %4346 = vmatprep.subr.mxu0 0.0
        %4347 = vmatpush1.msra.mxu0 %v1300
        %4348 = vmatprep.subr.mxu0 0.0
        %4349 = vmatpush1.msra.mxu0 %v1306
        %4350 = vmatprep.subr.mxu0 0.0
        %4351 = vmatpush1.msra.mxu0 %v1312
        %4352 = vmatprep.subr.mxu0 0.0
        %4353 = vmatpush1.msra.mxu0 0.0
        %4354 = vmatprep.subr.mxu0 0.0
        %4355 = vmatpush1.msra.mxu0 0.0
        %4356 = vmatprep.subr.mxu0 0.0
        %4357 = vmatpush1.msra.mxu0 0.0
        %4358 = vmatprep.subr.mxu0 0.0
        %4359 = vmatpush1.msra.mxu0 0.0
        %4360 = vmatprep.subr.mxu0 0.0
        %4361 = vmatpush1.msra.mxu0 0.0
        %4362 = vmatprep.subr.mxu0 0.0
        %4363 = vmatpush1.msra.mxu0 0.0
        %4364 = vmatprep.subr.mxu0 0.0
        %4365 = vmatpush1.msra.mxu0 0.0
        %4366 = vmatprep.subr.mxu0 0.0
        %4367 = vmatpush1.msra.mxu0 0.0
        %4368 = vmatprep.subr.mxu0 0.0
        %4369 = vmatpush1.msra.mxu0 0.0
        %4370 = vmatprep.subr.mxu0 0.0
        %4371 = vmatpush1.msra.mxu0 0.0
        %4372 = vmatprep.subr.mxu0 0.0
        %4373 = vmatpush1.msra.mxu0 0.0
        %4374 = vmatprep.subr.mxu0 0.0
        %4375 = vmatpush1.msra.mxu0 0.0
        %4376 = vmatprep.subr.mxu0 0.0
        %4377 = vmatpush1.msra.mxu0 0.0
        %4378 = vmatprep.subr.mxu0 0.0
        %4379 = vmatpush1.msra.mxu0 0.0
        %4380 = vmatprep.subr.mxu0 0.0
        %4381 = vmatpush1.msra.mxu0 0.0
        %4382 = vmatprep.subr.mxu0 0.0
        %4383 = vmatpush1.msra.mxu0 0.0
        %4384 = vmatprep.subr.mxu0 0.0
        %4385 = vmatpush1.msra.mxu0 0.0
        %4386 = vmatprep.subr.mxu0 0.0
        %4387 = vmatpush1.msra.mxu0 0.0
        %4388 = vmatprep.subr.mxu0 0.0
        %4389 = vmatpush1.msra.mxu0 0.0
        %4390 = vmatprep.subr.mxu0 0.0
        %4391 = vmatpush1.msra.mxu0 0.0
        %4392 = vmatprep.subr.mxu0 0.0
        %4393 = vmatpush1.msra.mxu0 0.0
        %4394 = vmatprep.subr.mxu0 0.0
        %4395 = vmatpush1.msra.mxu0 0.0
        %4396 = vmatprep.subr.mxu0 0.0
        %4397 = vmatpush1.msra.mxu0 0.0
        %4398 = vmatprep.subr.mxu0 0.0
        %4399 = vmatpush1.msra.mxu0 0.0
        %4400 = vmatprep.subr.mxu0 0.0
        %4401 = vmatpush1.msra.mxu0 0.0
        %4402 = vmatprep.subr.mxu0 0.0
        %4403 = vmatpush1.msra.mxu0 0.0
        %4404 = vmatprep.subr.mxu0 0.0
        %4405 = vmatpush1.msra.mxu0 0.0
        %4406 = vmatprep.subr.mxu0 0.0
        %4407 = vmatpush1.msra.mxu0 0.0
        %4408 = vmatprep.mubr.f32.mxu0 0.0
        %4409 = vmatmul.mubr.f32.gmra.mrb[0].mxu0 %v4333
        %v4410 = vpop.f32.mrb[0].mxu0
        %v4411 = vadd.f32 0.0, %v4410
        %v4412 = vpop.f32.mrb[0].mxu0
        %4413 = vmatprep.mubr.f32.mxu0 0.0
        %4414 = vmatmul.mubr.f32.gmra.mrb[0].mxu0 %v4336
        %v4415 = vpop.f32.mrb[0].mxu0
        %v4416 = vadd.f32 0.0, %v4415
        %v4417 = vpop.f32.mrb[0].mxu0
        %4418 = vmatprep.mubr.f32.mxu0 0.0
        %4419 = vmatmul.mubr.f32.gmra.mrb[0].mxu0 %v4339
        %v4420 = vpop.f32.mrb[0].mxu0
        %v4421 = vadd.f32 0.0, %v4420
        %v4422 = vpop.f32.mrb[0].mxu0
        %4423 = vmatprep.mubr.f32.mxu0 0.0
        %4424 = vmatmul.mubr.f32.gmra.mrb[0].mxu0 %v4342
        %v4425 = vpop.f32.mrb[0].mxu0
        %v4426 = vadd.f32 0.0, %v4425
        %v4427 = vpop.f32.mrb[0].mxu0
        %4428 = vdwg.mxu0
        %v4430 = vsel %vm2138, %v4092, 0
        %v4433 = vsel %vm2138, %v4094, 0
        %v4436 = vsel %vm2138, %v4096, 0
        %v4439 = vsel %vm2138, %v4098, 0
        %4441 = vmatprep.subr.mxu0 0.0
        %4442 = vmatpush1.msra.mxu0 %v1318
        %4443 = vmatprep.subr.mxu0 0.0
        %4444 = vmatpush1.msra.mxu0 %v1324
        %4445 = vmatprep.subr.mxu0 0.0
        %4446 = vmatpush1.msra.mxu0 %v1330
        %4447 = vmatprep.subr.mxu0 0.0
        %4448 = vmatpush1.msra.mxu0 %v1336
        %4449 = vmatprep.subr.mxu0 0.0
        %4450 = vmatpush1.msra.mxu0 0.0
        %4451 = vmatprep.subr.mxu0 0.0
        %4452 = vmatpush1.msra.mxu0 0.0
        %4453 = vmatprep.subr.mxu0 0.0
        %4454 = vmatpush1.msra.mxu0 0.0
        %4455 = vmatprep.subr.mxu0 0.0
        %4456 = vmatpush1.msra.mxu0 0.0
        %4457 = vmatprep.subr.mxu0 0.0
        %4458 = vmatpush1.msra.mxu0 0.0
        %4459 = vmatprep.subr.mxu0 0.0
        %4460 = vmatpush1.msra.mxu0 0.0
        %4461 = vmatprep.subr.mxu0 0.0
        %4462 = vmatpush1.msra.mxu0 0.0
        %4463 = vmatprep.subr.mxu0 0.0
        %4464 = vmatpush1.msra.mxu0 0.0
        %4465 = vmatprep.subr.mxu0 0.0
        %4466 = vmatpush1.msra.mxu0 0.0
        %4467 = vmatprep.subr.mxu0 0.0
        %4468 = vmatpush1.msra.mxu0 0.0
        %4469 = vmatprep.subr.mxu0 0.0
        %4470 = vmatpush1.msra.mxu0 0.0
        %4471 = vmatprep.subr.mxu0 0.0
        %4472 = vmatpush1.msra.mxu0 0.0
        %4473 = vmatprep.subr.mxu0 0.0
        %4474 = vmatpush1.msra.mxu0 0.0
        %4475 = vmatprep.subr.mxu0 0.0
        %4476 = vmatpush1.msra.mxu0 0.0
        %4477 = vmatprep.subr.mxu0 0.0
        %4478 = vmatpush1.msra.mxu0 0.0
        %4479 = vmatprep.subr.mxu0 0.0
        %4480 = vmatpush1.msra.mxu0 0.0
        %4481 = vmatprep.subr.mxu0 0.0
        %4482 = vmatpush1.msra.mxu0 0.0
        %4483 = vmatprep.subr.mxu0 0.0
        %4484 = vmatpush1.msra.mxu0 0.0
        %4485 = vmatprep.subr.mxu0 0.0
        %4486 = vmatpush1.msra.mxu0 0.0
        %4487 = vmatprep.subr.mxu0 0.0
        %4488 = vmatpush1.msra.mxu0 0.0
        %4489 = vmatprep.subr.mxu0 0.0
        %4490 = vmatpush1.msra.mxu0 0.0
        %4491 = vmatprep.subr.mxu0 0.0
        %4492 = vmatpush1.msra.mxu0 0.0
        %4493 = vmatprep.subr.mxu0 0.0
        %4494 = vmatpush1.msra.mxu0 0.0
        %4495 = vmatprep.subr.mxu0 0.0
        %4496 = vmatpush1.msra.mxu0 0.0
        %4497 = vmatprep.subr.mxu0 0.0
        %4498 = vmatpush1.msra.mxu0 0.0
        %4499 = vmatprep.subr.mxu0 0.0
        %4500 = vmatpush1.msra.mxu0 0.0
        %4501 = vmatprep.subr.mxu0 0.0
        %4502 = vmatpush1.msra.mxu0 0.0
        %4503 = vmatprep.subr.mxu0 0.0
        %4504 = vmatpush1.msra.mxu0 0.0
        %4505 = vmatprep.mubr.f32.mxu0 0.0
        %4506 = vmatmul.mubr.f32.gmra.mrb[0].mxu0 %v4430
        %v4507 = vpop.f32.mrb[0].mxu0
        %v4508 = vadd.f32 0.0, %v4507
        %v4509 = vpop.f32.mrb[0].mxu0
        %4510 = vmatprep.mubr.f32.mxu0 0.0
        %4511 = vmatmul.mubr.f32.gmra.mrb[0].mxu0 %v4433
        %v4512 = vpop.f32.mrb[0].mxu0
        %v4513 = vadd.f32 0.0, %v4512
        %v4514 = vpop.f32.mrb[0].mxu0
        %4515 = vmatprep.mubr.f32.mxu0 0.0
        %4516 = vmatmul.mubr.f32.gmra.mrb[0].mxu0 %v4436
        %v4517 = vpop.f32.mrb[0].mxu0
        %v4518 = vadd.f32 0.0, %v4517
        %v4519 = vpop.f32.mrb[0].mxu0
        %4520 = vmatprep.mubr.f32.mxu0 0.0
        %4521 = vmatmul.mubr.f32.gmra.mrb[0].mxu0 %v4439
        %v4522 = vpop.f32.mrb[0].mxu0
        %v4523 = vadd.f32 0.0, %v4522
        %v4524 = vpop.f32.mrb[0].mxu0
        %4525 = vdwg.mxu0
        %v4527 = vsel %vm2138, %v4100, 0
        %v4530 = vsel %vm2138, %v4102, 0
        %v4533 = vsel %vm2138, %v4104, 0
        %v4536 = vsel %vm2138, %v4106, 0
        %4538 = vmatprep.subr.mxu0 0.0
        %4539 = vmatpush1.msra.mxu0 %v1342
        %4540 = vmatprep.subr.mxu0 0.0
        %4541 = vmatpush1.msra.mxu0 %v1348
        %4542 = vmatprep.subr.mxu0 0.0
        %4543 = vmatpush1.msra.mxu0 %v1354
        %4544 = vmatprep.subr.mxu0 0.0
        %4545 = vmatpush1.msra.mxu0 %v1360
        %4546 = vmatprep.subr.mxu0 0.0
        %4547 = vmatpush1.msra.mxu0 0.0
        %4548 = vmatprep.subr.mxu0 0.0
        %4549 = vmatpush1.msra.mxu0 0.0
        %4550 = vmatprep.subr.mxu0 0.0
        %4551 = vmatpush1.msra.mxu0 0.0
        %4552 = vmatprep.subr.mxu0 0.0
        %4553 = vmatpush1.msra.mxu0 0.0
        %4554 = vmatprep.subr.mxu0 0.0
        %4555 = vmatpush1.msra.mxu0 0.0
        %4556 = vmatprep.subr.mxu0 0.0
        %4557 = vmatpush1.msra.mxu0 0.0
        %4558 = vmatprep.subr.mxu0 0.0
        %4559 = vmatpush1.msra.mxu0 0.0
        %4560 = vmatprep.subr.mxu0 0.0
        %4561 = vmatpush1.msra.mxu0 0.0
        %4562 = vmatprep.subr.mxu0 0.0
        %4563 = vmatpush1.msra.mxu0 0.0
        %4564 = vmatprep.subr.mxu0 0.0
        %4565 = vmatpush1.msra.mxu0 0.0
        %4566 = vmatprep.subr.mxu0 0.0
        %4567 = vmatpush1.msra.mxu0 0.0
        %4568 = vmatprep.subr.mxu0 0.0
        %4569 = vmatpush1.msra.mxu0 0.0
        %4570 = vmatprep.subr.mxu0 0.0
        %4571 = vmatpush1.msra.mxu0 0.0
        %4572 = vmatprep.subr.mxu0 0.0
        %4573 = vmatpush1.msra.mxu0 0.0
        %4574 = vmatprep.subr.mxu0 0.0
        %4575 = vmatpush1.msra.mxu0 0.0
        %4576 = vmatprep.subr.mxu0 0.0
        %4577 = vmatpush1.msra.mxu0 0.0
        %4578 = vmatprep.subr.mxu0 0.0
        %4579 = vmatpush1.msra.mxu0 0.0
        %4580 = vmatprep.subr.mxu0 0.0
        %4581 = vmatpush1.msra.mxu0 0.0
        %4582 = vmatprep.subr.mxu0 0.0
        %4583 = vmatpush1.msra.mxu0 0.0
        %4584 = vmatprep.subr.mxu0 0.0
        %4585 = vmatpush1.msra.mxu0 0.0
        %4586 = vmatprep.subr.mxu0 0.0
        %4587 = vmatpush1.msra.mxu0 0.0
        %4588 = vmatprep.subr.mxu0 0.0
        %4589 = vmatpush1.msra.mxu0 0.0
        %4590 = vmatprep.subr.mxu0 0.0
        %4591 = vmatpush1.msra.mxu0 0.0
        %4592 = vmatprep.subr.mxu0 0.0
        %4593 = vmatpush1.msra.mxu0 0.0
        %4594 = vmatprep.subr.mxu0 0.0
        %4595 = vmatpush1.msra.mxu0 0.0
        %4596 = vmatprep.subr.mxu0 0.0
        %4597 = vmatpush1.msra.mxu0 0.0
        %4598 = vmatprep.subr.mxu0 0.0
        %4599 = vmatpush1.msra.mxu0 0.0
        %4600 = vmatprep.subr.mxu0 0.0
        %4601 = vmatpush1.msra.mxu0 0.0
        %4602 = vmatprep.mubr.f32.mxu0 0.0
        %4603 = vmatmul.mubr.f32.gmra.mrb[0].mxu0 %v4527
        %v4604 = vpop.f32.mrb[0].mxu0
        %v4605 = vadd.f32 0.0, %v4604
        %v4606 = vpop.f32.mrb[0].mxu0
        %4607 = vmatprep.mubr.f32.mxu0 0.0
        %4608 = vmatmul.mubr.f32.gmra.mrb[0].mxu0 %v4530
        %v4609 = vpop.f32.mrb[0].mxu0
        %v4610 = vadd.f32 0.0, %v4609
        %v4611 = vpop.f32.mrb[0].mxu0
        %4612 = vmatprep.mubr.f32.mxu0 0.0
        %4613 = vmatmul.mubr.f32.gmra.mrb[0].mxu0 %v4533
        %v4614 = vpop.f32.mrb[0].mxu0
        %v4615 = vadd.f32 0.0, %v4614
        %v4616 = vpop.f32.mrb[0].mxu0
        %4617 = vmatprep.mubr.f32.mxu0 0.0
        %4618 = vmatmul.mubr.f32.gmra.mrb[0].mxu0 %v4536
        %v4619 = vpop.f32.mrb[0].mxu0
        %v4620 = vadd.f32 0.0, %v4619
        %v4621 = vpop.f32.mrb[0].mxu0
        %4622 = vdwg.mxu0
        %v4624 = vsel %vm2138, %v4108, 0
        %v4627 = vsel %vm2138, %v4110, 0
        %v4630 = vsel %vm2138, %v4112, 0
        %v4633 = vsel %vm2138, %v4114, 0
        %4635 = vmatprep.subr.mxu0 0.0
        %4636 = vmatpush1.msra.mxu0 %v1366
        %4637 = vmatprep.subr.mxu0 0.0
        %4638 = vmatpush1.msra.mxu0 %v1372
        %4639 = vmatprep.subr.mxu0 0.0
        %4640 = vmatpush1.msra.mxu0 %v1378
        %4641 = vmatprep.subr.mxu0 0.0
        %4642 = vmatpush1.msra.mxu0 %v1384
        %4643 = vmatprep.subr.mxu0 0.0
        %4644 = vmatpush1.msra.mxu0 0.0
        %4645 = vmatprep.subr.mxu0 0.0
        %4646 = vmatpush1.msra.mxu0 0.0
        %4647 = vmatprep.subr.mxu0 0.0
        %4648 = vmatpush1.msra.mxu0 0.0
        %4649 = vmatprep.subr.mxu0 0.0
        %4650 = vmatpush1.msra.mxu0 0.0
        %4651 = vmatprep.subr.mxu0 0.0
        %4652 = vmatpush1.msra.mxu0 0.0
        %4653 = vmatprep.subr.mxu0 0.0
        %4654 = vmatpush1.msra.mxu0 0.0
        %4655 = vmatprep.subr.mxu0 0.0
        %4656 = vmatpush1.msra.mxu0 0.0
        %4657 = vmatprep.subr.mxu0 0.0
        %4658 = vmatpush1.msra.mxu0 0.0
        %4659 = vmatprep.subr.mxu0 0.0
        %4660 = vmatpush1.msra.mxu0 0.0
        %4661 = vmatprep.subr.mxu0 0.0
        %4662 = vmatpush1.msra.mxu0 0.0
        %4663 = vmatprep.subr.mxu0 0.0
        %4664 = vmatpush1.msra.mxu0 0.0
        %4665 = vmatprep.subr.mxu0 0.0
        %4666 = vmatpush1.msra.mxu0 0.0
        %4667 = vmatprep.subr.mxu0 0.0
        %4668 = vmatpush1.msra.mxu0 0.0
        %4669 = vmatprep.subr.mxu0 0.0
        %4670 = vmatpush1.msra.mxu0 0.0
        %4671 = vmatprep.subr.mxu0 0.0
        %4672 = vmatpush1.msra.mxu0 0.0
        %4673 = vmatprep.subr.mxu0 0.0
        %4674 = vmatpush1.msra.mxu0 0.0
        %4675 = vmatprep.subr.mxu0 0.0
        %4676 = vmatpush1.msra.mxu0 0.0
        %4677 = vmatprep.subr.mxu0 0.0
        %4678 = vmatpush1.msra.mxu0 0.0
        %4679 = vmatprep.subr.mxu0 0.0
        %4680 = vmatpush1.msra.mxu0 0.0
        %4681 = vmatprep.subr.mxu0 0.0
        %4682 = vmatpush1.msra.mxu0 0.0
        %4683 = vmatprep.subr.mxu0 0.0
        %4684 = vmatpush1.msra.mxu0 0.0
        %4685 = vmatprep.subr.mxu0 0.0
        %4686 = vmatpush1.msra.mxu0 0.0
        %4687 = vmatprep.subr.mxu0 0.0
        %4688 = vmatpush1.msra.mxu0 0.0
        %4689 = vmatprep.subr.mxu0 0.0
        %4690 = vmatpush1.msra.mxu0 0.0
        %4691 = vmatprep.subr.mxu0 0.0
        %4692 = vmatpush1.msra.mxu0 0.0
        %4693 = vmatprep.subr.mxu0 0.0
        %4694 = vmatpush1.msra.mxu0 0.0
        %4695 = vmatprep.subr.mxu0 0.0
        %4696 = vmatpush1.msra.mxu0 0.0
        %4697 = vmatprep.subr.mxu0 0.0
        %4698 = vmatpush1.msra.mxu0 0.0
        %4699 = vmatprep.mubr.f32.mxu0 0.0
        %4700 = vmatmul.mubr.f32.gmra.mrb[0].mxu0 %v4624
        %v4701 = vpop.f32.mrb[0].mxu0
        %v4702 = vadd.f32 0.0, %v4701
        %v4703 = vpop.f32.mrb[0].mxu0
        %4704 = vmatprep.mubr.f32.mxu0 0.0
        %4705 = vmatmul.mubr.f32.gmra.mrb[0].mxu0 %v4627
        %v4706 = vpop.f32.mrb[0].mxu0
        %v4707 = vadd.f32 0.0, %v4706
        %v4708 = vpop.f32.mrb[0].mxu0
        %4709 = vmatprep.mubr.f32.mxu0 0.0
        %4710 = vmatmul.mubr.f32.gmra.mrb[0].mxu0 %v4630
        %v4711 = vpop.f32.mrb[0].mxu0
        %v4712 = vadd.f32 0.0, %v4711
        %v4713 = vpop.f32.mrb[0].mxu0
        %4714 = vmatprep.mubr.f32.mxu0 0.0
        %4715 = vmatmul.mubr.f32.gmra.mrb[0].mxu0 %v4633
        %v4716 = vpop.f32.mrb[0].mxu0
        %v4717 = vadd.f32 0.0, %v4716
        %v4718 = vpop.f32.mrb[0].mxu0
        %4719 = vdwg.mxu0
        %v4721 = vsel %vm2138, %v4116, 0
        %v4724 = vsel %vm2138, %v4118, 0
        %v4727 = vsel %vm2138, %v4120, 0
        %v4730 = vsel %vm2138, %v4122, 0
        %4732 = vmatprep.subr.mxu0 0.0
        %4733 = vmatpush1.msra.mxu0 %v1390
        %4734 = vmatprep.subr.mxu0 0.0
        %4735 = vmatpush1.msra.mxu0 %v1396
        %4736 = vmatprep.subr.mxu0 0.0
        %4737 = vmatpush1.msra.mxu0 %v1402
        %4738 = vmatprep.subr.mxu0 0.0
        %4739 = vmatpush1.msra.mxu0 %v1408
        %4740 = vmatprep.subr.mxu0 0.0
        %4741 = vmatpush1.msra.mxu0 0.0
        %4742 = vmatprep.subr.mxu0 0.0
        %4743 = vmatpush1.msra.mxu0 0.0
        %4744 = vmatprep.subr.mxu0 0.0
        %4745 = vmatpush1.msra.mxu0 0.0
        %4746 = vmatprep.subr.mxu0 0.0
        %4747 = vmatpush1.msra.mxu0 0.0
        %4748 = vmatprep.subr.mxu0 0.0
        %4749 = vmatpush1.msra.mxu0 0.0
        %4750 = vmatprep.subr.mxu0 0.0
        %4751 = vmatpush1.msra.mxu0 0.0
        %4752 = vmatprep.subr.mxu0 0.0
        %4753 = vmatpush1.msra.mxu0 0.0
        %4754 = vmatprep.subr.mxu0 0.0
        %4755 = vmatpush1.msra.mxu0 0.0
        %4756 = vmatprep.subr.mxu0 0.0
        %4757 = vmatpush1.msra.mxu0 0.0
        %4758 = vmatprep.subr.mxu0 0.0
        %4759 = vmatpush1.msra.mxu0 0.0
        %4760 = vmatprep.subr.mxu0 0.0
        %4761 = vmatpush1.msra.mxu0 0.0
        %4762 = vmatprep.subr.mxu0 0.0
        %4763 = vmatpush1.msra.mxu0 0.0
        %4764 = vmatprep.subr.mxu0 0.0
        %4765 = vmatpush1.msra.mxu0 0.0
        %4766 = vmatprep.subr.mxu0 0.0
        %4767 = vmatpush1.msra.mxu0 0.0
        %4768 = vmatprep.subr.mxu0 0.0
        %4769 = vmatpush1.msra.mxu0 0.0
        %4770 = vmatprep.subr.mxu0 0.0
        %4771 = vmatpush1.msra.mxu0 0.0
        %4772 = vmatprep.subr.mxu0 0.0
        %4773 = vmatpush1.msra.mxu0 0.0
        %4774 = vmatprep.subr.mxu0 0.0
        %4775 = vmatpush1.msra.mxu0 0.0
        %4776 = vmatprep.subr.mxu0 0.0
        %4777 = vmatpush1.msra.mxu0 0.0
        %4778 = vmatprep.subr.mxu0 0.0
        %4779 = vmatpush1.msra.mxu0 0.0
        %4780 = vmatprep.subr.mxu0 0.0
        %4781 = vmatpush1.msra.mxu0 0.0
        %4782 = vmatprep.subr.mxu0 0.0
        %4783 = vmatpush1.msra.mxu0 0.0
        %4784 = vmatprep.subr.mxu0 0.0
        %4785 = vmatpush1.msra.mxu0 0.0
        %4786 = vmatprep.subr.mxu0 0.0
        %4787 = vmatpush1.msra.mxu0 0.0
        %4788 = vmatprep.subr.mxu0 0.0
        %4789 = vmatpush1.msra.mxu0 0.0
        %4790 = vmatprep.subr.mxu0 0.0
        %4791 = vmatpush1.msra.mxu0 0.0
        %4792 = vmatprep.subr.mxu0 0.0
        %4793 = vmatpush1.msra.mxu0 0.0
        %4794 = vmatprep.subr.mxu0 0.0
        %4795 = vmatpush1.msra.mxu0 0.0
        %4796 = vmatprep.mubr.f32.mxu0 0.0
        %4797 = vmatmul.mubr.f32.gmra.mrb[0].mxu0 %v4721
        %v4798 = vpop.f32.mrb[0].mxu0
        %v4799 = vadd.f32 0.0, %v4798
        %v4800 = vpop.f32.mrb[0].mxu0
        %4801 = vmatprep.mubr.f32.mxu0 0.0
        %4802 = vmatmul.mubr.f32.gmra.mrb[0].mxu0 %v4724
        %v4803 = vpop.f32.mrb[0].mxu0
        %v4804 = vadd.f32 0.0, %v4803
        %v4805 = vpop.f32.mrb[0].mxu0
        %4806 = vmatprep.mubr.f32.mxu0 0.0
        %4807 = vmatmul.mubr.f32.gmra.mrb[0].mxu0 %v4727
        %v4808 = vpop.f32.mrb[0].mxu0
        %v4809 = vadd.f32 0.0, %v4808
        %v4810 = vpop.f32.mrb[0].mxu0
        %4811 = vmatprep.mubr.f32.mxu0 0.0
        %4812 = vmatmul.mubr.f32.gmra.mrb[0].mxu0 %v4730
        %v4813 = vpop.f32.mrb[0].mxu0
        %v4814 = vadd.f32 0.0, %v4813
        %v4815 = vpop.f32.mrb[0].mxu0
        %4816 = vdwg.mxu0
        %v4818 = vsel %vm2138, %v4124, 0
        %v4821 = vsel %vm2138, %v4126, 0
        %v4824 = vsel %vm2138, %v4128, 0
        %v4827 = vsel %vm2138, %v4130, 0
        %4829 = vmatprep.subr.mxu0 0.0
        %4830 = vmatpush1.msra.mxu0 %v1414
        %4831 = vmatprep.subr.mxu0 0.0
        %4832 = vmatpush1.msra.mxu0 %v1420
        %4833 = vmatprep.subr.mxu0 0.0
        %4834 = vmatpush1.msra.mxu0 %v1426
        %4835 = vmatprep.subr.mxu0 0.0
        %4836 = vmatpush1.msra.mxu0 %v1432
        %4837 = vmatprep.subr.mxu0 0.0
        %4838 = vmatpush1.msra.mxu0 0.0
        %4839 = vmatprep.subr.mxu0 0.0
        %4840 = vmatpush1.msra.mxu0 0.0
        %4841 = vmatprep.subr.mxu0 0.0
        %4842 = vmatpush1.msra.mxu0 0.0
        %4843 = vmatprep.subr.mxu0 0.0
        %4844 = vmatpush1.msra.mxu0 0.0
        %4845 = vmatprep.subr.mxu0 0.0
        %4846 = vmatpush1.msra.mxu0 0.0
        %4847 = vmatprep.subr.mxu0 0.0
        %4848 = vmatpush1.msra.mxu0 0.0
        %4849 = vmatprep.subr.mxu0 0.0
        %4850 = vmatpush1.msra.mxu0 0.0
        %4851 = vmatprep.subr.mxu0 0.0
        %4852 = vmatpush1.msra.mxu0 0.0
        %4853 = vmatprep.subr.mxu0 0.0
        %4854 = vmatpush1.msra.mxu0 0.0
        %4855 = vmatprep.subr.mxu0 0.0
        %4856 = vmatpush1.msra.mxu0 0.0
        %4857 = vmatprep.subr.mxu0 0.0
        %4858 = vmatpush1.msra.mxu0 0.0
        %4859 = vmatprep.subr.mxu0 0.0
        %4860 = vmatpush1.msra.mxu0 0.0
        %4861 = vmatprep.subr.mxu0 0.0
        %4862 = vmatpush1.msra.mxu0 0.0
        %4863 = vmatprep.subr.mxu0 0.0
        %4864 = vmatpush1.msra.mxu0 0.0
        %4865 = vmatprep.subr.mxu0 0.0
        %4866 = vmatpush1.msra.mxu0 0.0
        %4867 = vmatprep.subr.mxu0 0.0
        %4868 = vmatpush1.msra.mxu0 0.0
        %4869 = vmatprep.subr.mxu0 0.0
        %4870 = vmatpush1.msra.mxu0 0.0
        %4871 = vmatprep.subr.mxu0 0.0
        %4872 = vmatpush1.msra.mxu0 0.0
        %4873 = vmatprep.subr.mxu0 0.0
        %4874 = vmatpush1.msra.mxu0 0.0
        %4875 = vmatprep.subr.mxu0 0.0
        %4876 = vmatpush1.msra.mxu0 0.0
        %4877 = vmatprep.subr.mxu0 0.0
        %4878 = vmatpush1.msra.mxu0 0.0
        %4879 = vmatprep.subr.mxu0 0.0
        %4880 = vmatpush1.msra.mxu0 0.0
        %4881 = vmatprep.subr.mxu0 0.0
        %4882 = vmatpush1.msra.mxu0 0.0
        %4883 = vmatprep.subr.mxu0 0.0
        %4884 = vmatpush1.msra.mxu0 0.0
        %4885 = vmatprep.subr.mxu0 0.0
        %4886 = vmatpush1.msra.mxu0 0.0
        %4887 = vmatprep.subr.mxu0 0.0
        %4888 = vmatpush1.msra.mxu0 0.0
        %4889 = vmatprep.subr.mxu0 0.0
        %4890 = vmatpush1.msra.mxu0 0.0
        %4891 = vmatprep.subr.mxu0 0.0
        %4892 = vmatpush1.msra.mxu0 0.0
        %4893 = vmatprep.mubr.f32.mxu0 0.0
        %4894 = vmatmul.mubr.f32.gmra.mrb[0].mxu0 %v4818
        %v4895 = vpop.f32.mrb[0].mxu0
        %v4896 = vadd.f32 0.0, %v4895
        %v4897 = vpop.f32.mrb[0].mxu0
        %4898 = vmatprep.mubr.f32.mxu0 0.0
        %4899 = vmatmul.mubr.f32.gmra.mrb[0].mxu0 %v4821
        %v4900 = vpop.f32.mrb[0].mxu0
        %v4901 = vadd.f32 0.0, %v4900
        %v4902 = vpop.f32.mrb[0].mxu0
        %4903 = vmatprep.mubr.f32.mxu0 0.0
        %4904 = vmatmul.mubr.f32.gmra.mrb[0].mxu0 %v4824
        %v4905 = vpop.f32.mrb[0].mxu0
        %v4906 = vadd.f32 0.0, %v4905
        %v4907 = vpop.f32.mrb[0].mxu0
        %4908 = vmatprep.mubr.f32.mxu0 0.0
        %4909 = vmatmul.mubr.f32.gmra.mrb[0].mxu0 %v4827
        %v4910 = vpop.f32.mrb[0].mxu0
        %v4911 = vadd.f32 0.0, %v4910
        %v4912 = vpop.f32.mrb[0].mxu0
        %4913 = vdwg.mxu0
        %v4915 = vsel %vm2138, %v4132, 0
        %v4918 = vsel %vm2138, %v4134, 0
        %v4921 = vsel %vm2138, %v4136, 0
        %v4924 = vsel %vm2138, %v4138, 0
        %4926 = vmatprep.subr.mxu0 0.0
        %4927 = vmatpush1.msra.mxu0 %v1438
        %4928 = vmatprep.subr.mxu0 0.0
        %4929 = vmatpush1.msra.mxu0 %v1444
        %4930 = vmatprep.subr.mxu0 0.0
        %4931 = vmatpush1.msra.mxu0 %v1450
        %4932 = vmatprep.subr.mxu0 0.0
        %4933 = vmatpush1.msra.mxu0 %v1456
        %4934 = vmatprep.subr.mxu0 0.0
        %4935 = vmatpush1.msra.mxu0 0.0
        %4936 = vmatprep.subr.mxu0 0.0
        %4937 = vmatpush1.msra.mxu0 0.0
        %4938 = vmatprep.subr.mxu0 0.0
        %4939 = vmatpush1.msra.mxu0 0.0
        %4940 = vmatprep.subr.mxu0 0.0
        %4941 = vmatpush1.msra.mxu0 0.0
        %4942 = vmatprep.subr.mxu0 0.0
        %4943 = vmatpush1.msra.mxu0 0.0
        %4944 = vmatprep.subr.mxu0 0.0
        %4945 = vmatpush1.msra.mxu0 0.0
        %4946 = vmatprep.subr.mxu0 0.0
        %4947 = vmatpush1.msra.mxu0 0.0
        %4948 = vmatprep.subr.mxu0 0.0
        %4949 = vmatpush1.msra.mxu0 0.0
        %4950 = vmatprep.subr.mxu0 0.0
        %4951 = vmatpush1.msra.mxu0 0.0
        %4952 = vmatprep.subr.mxu0 0.0
        %4953 = vmatpush1.msra.mxu0 0.0
        %4954 = vmatprep.subr.mxu0 0.0
        %4955 = vmatpush1.msra.mxu0 0.0
        %4956 = vmatprep.subr.mxu0 0.0
        %4957 = vmatpush1.msra.mxu0 0.0
        %4958 = vmatprep.subr.mxu0 0.0
        %4959 = vmatpush1.msra.mxu0 0.0
        %4960 = vmatprep.subr.mxu0 0.0
        %4961 = vmatpush1.msra.mxu0 0.0
        %4962 = vmatprep.subr.mxu0 0.0
        %4963 = vmatpush1.msra.mxu0 0.0
        %4964 = vmatprep.subr.mxu0 0.0
        %4965 = vmatpush1.msra.mxu0 0.0
        %4966 = vmatprep.subr.mxu0 0.0
        %4967 = vmatpush1.msra.mxu0 0.0
        %4968 = vmatprep.subr.mxu0 0.0
        %4969 = vmatpush1.msra.mxu0 0.0
        %4970 = vmatprep.subr.mxu0 0.0
        %4971 = vmatpush1.msra.mxu0 0.0
        %4972 = vmatprep.subr.mxu0 0.0
        %4973 = vmatpush1.msra.mxu0 0.0
        %4974 = vmatprep.subr.mxu0 0.0
        %4975 = vmatpush1.msra.mxu0 0.0
        %4976 = vmatprep.subr.mxu0 0.0
        %4977 = vmatpush1.msra.mxu0 0.0
        %4978 = vmatprep.subr.mxu0 0.0
        %4979 = vmatpush1.msra.mxu0 0.0
        %4980 = vmatprep.subr.mxu0 0.0
        %4981 = vmatpush1.msra.mxu0 0.0
        %4982 = vmatprep.subr.mxu0 0.0
        %4983 = vmatpush1.msra.mxu0 0.0
        %4984 = vmatprep.subr.mxu0 0.0
        %4985 = vmatpush1.msra.mxu0 0.0
        %4986 = vmatprep.subr.mxu0 0.0
        %4987 = vmatpush1.msra.mxu0 0.0
        %4988 = vmatprep.subr.mxu0 0.0
        %4989 = vmatpush1.msra.mxu0 0.0
        %4990 = vmatprep.mubr.f32.mxu0 0.0
        %4991 = vmatmul.mubr.f32.gmra.mrb[0].mxu0 %v4915
        %v4992 = vpop.f32.mrb[0].mxu0
        %v4993 = vadd.f32 0.0, %v4992
        %v4994 = vpop.f32.mrb[0].mxu0
        %4995 = vmatprep.mubr.f32.mxu0 0.0
        %4996 = vmatmul.mubr.f32.gmra.mrb[0].mxu0 %v4918
        %v4997 = vpop.f32.mrb[0].mxu0
        %v4998 = vadd.f32 0.0, %v4997
        %v4999 = vpop.f32.mrb[0].mxu0
        %5000 = vmatprep.mubr.f32.mxu0 0.0
        %5001 = vmatmul.mubr.f32.gmra.mrb[0].mxu0 %v4921
        %v5002 = vpop.f32.mrb[0].mxu0
        %v5003 = vadd.f32 0.0, %v5002
        %v5004 = vpop.f32.mrb[0].mxu0
        %5005 = vmatprep.mubr.f32.mxu0 0.0
        %5006 = vmatmul.mubr.f32.gmra.mrb[0].mxu0 %v4924
        %v5007 = vpop.f32.mrb[0].mxu0
        %v5008 = vadd.f32 0.0, %v5007
        %v5009 = vpop.f32.mrb[0].mxu0
        %5010 = vdwg.mxu0
        %v5011 = vrcp.pop %v4141
        %v5012 = vrcp.pop %v4144
        %v5013 = vrcp.pop %v4147
        %v5014 = vrcp.pop %v4150
        %v5015 = vrcp.pop %v4153
        %v5016 = vrcp.pop %v4156
        %v5017 = vrcp.pop %v4159
        %v5018 = vrcp.pop %v4162
        %v5019 = vrcp.pop %v4165
        %v5020 = vrcp.pop %v4168
        %v5021 = vrcp.pop %v4171
        %v5022 = vrcp.pop %v4174
        %v5023 = vrcp.pop %v4177
        %v5024 = vrcp.pop %v4180
        %v5025 = vrcp.pop %v4183
        %v5026 = vrcp.pop %v4186
        %v5027 = vrcp.pop %v4189
        %v5028 = vrcp.pop %v4192
        %v5029 = vrcp.pop %v4195
        %v5030 = vrcp.pop %v4198
        %v5031 = vrcp.pop %v4201
        %v5032 = vrcp.pop %v4204
        %v5033 = vrcp.pop %v4207
        %v5034 = vrcp.pop %v4210
        %v5035 = vrcp.pop %v4213
        %v5036 = vrcp.pop %v4216
        %v5037 = vrcp.pop %v4219
        %v5038 = vrcp.pop %v4222
        %v5039 = vrcp.pop %v4225
        %v5040 = vrcp.pop %v4228
        %v5041 = vrcp.pop %v4231
        %v5042 = vrcp.pop %v4234
        %v5043 = vmul.f32 %v4314, %v5011
        %v5044 = vmul.f32 %v4319, %v5012
        %v5045 = vmul.f32 %v4324, %v5013
        %v5046 = vmul.f32 %v4329, %v5014
        %v5047 = vmul.f32 %v4411, %v5015
        %v5048 = vmul.f32 %v4416, %v5016
        %v5049 = vmul.f32 %v4421, %v5017
        %v5050 = vmul.f32 %v4426, %v5018
        %v5051 = vmul.f32 %v4508, %v5019
        %v5052 = vmul.f32 %v4513, %v5020
        %v5053 = vmul.f32 %v4518, %v5021
        %v5054 = vmul.f32 %v4523, %v5022
        %v5055 = vmul.f32 %v4605, %v5023
        %v5056 = vmul.f32 %v4610, %v5024
        %v5057 = vmul.f32 %v4615, %v5025
        %v5058 = vmul.f32 %v4620, %v5026
        %v5059 = vmul.f32 %v4702, %v5027
        %v5060 = vmul.f32 %v4707, %v5028
        %v5061 = vmul.f32 %v4712, %v5029
        %v5062 = vmul.f32 %v4717, %v5030
        %v5063 = vmul.f32 %v4799, %v5031
        %v5064 = vmul.f32 %v4804, %v5032
        %v5065 = vmul.f32 %v4809, %v5033
        %v5066 = vmul.f32 %v4814, %v5034
        %v5067 = vmul.f32 %v4896, %v5035
        %v5068 = vmul.f32 %v4901, %v5036
        %v5069 = vmul.f32 %v4906, %v5037
        %v5070 = vmul.f32 %v4911, %v5038
        %v5071 = vmul.f32 %v4993, %v5039
        %v5072 = vmul.f32 %v4998, %v5040
        %v5073 = vmul.f32 %v5003, %v5041
        %v5074 = vmul.f32 %v5008, %v5042
        %v5075 = vld [vmem:[#allocation7] sm:$0xff]
        %v5076 = vld [vmem:[#allocation7 + $0x8] sm:$0xff]
        %v5077 = vld [vmem:[#allocation7 + $0x10] sm:$0xff]
        %v5078 = vld [vmem:[#allocation7 + $0x18] sm:$0xff]
        %v5079 = vld [vmem:[#allocation7 + $0x20] sm:$0xff]
        %v5080 = vld [vmem:[#allocation7 + $0x28] sm:$0xff]
        %v5081 = vld [vmem:[#allocation7 + $0x30] sm:$0xff]
        %v5082 = vld [vmem:[#allocation7 + $0x38] sm:$0xff]
        %v5083 = vld [vmem:[#allocation7 + $0x40] sm:$0xff]
        %v5084 = vld [vmem:[#allocation7 + $0x48] sm:$0xff]
        %v5085 = vld [vmem:[#allocation7 + $0x50] sm:$0xff]
        %v5086 = vld [vmem:[#allocation7 + $0x58] sm:$0xff]
        %v5087 = vld [vmem:[#allocation7 + $0x60] sm:$0xff]
        %v5088 = vld [vmem:[#allocation7 + $0x68] sm:$0xff]
        %v5089 = vld [vmem:[#allocation7 + $0x70] sm:$0xff]
        %v5090 = vld [vmem:[#allocation7 + $0x78] sm:$0xff]
        %v5091 = vld [vmem:[#allocation7 + $0x80] sm:$0xff]
        %v5092 = vld [vmem:[#allocation7 + $0x88] sm:$0xff]
        %v5093 = vld [vmem:[#allocation7 + $0x90] sm:$0xff]
        %v5094 = vld [vmem:[#allocation7 + $0x98] sm:$0xff]
        %v5095 = vld [vmem:[#allocation7 + $0xa0] sm:$0xff]
        %v5096 = vld [vmem:[#allocation7 + $0xa8] sm:$0xff]
        %v5097 = vld [vmem:[#allocation7 + $0xb0] sm:$0xff]
        %v5098 = vld [vmem:[#allocation7 + $0xb8] sm:$0xff]
        %v5099 = vld [vmem:[#allocation7 + $0xc0] sm:$0xff]
        %v5100 = vld [vmem:[#allocation7 + $0xc8] sm:$0xff]
        %v5101 = vld [vmem:[#allocation7 + $0xd0] sm:$0xff]
        %v5102 = vld [vmem:[#allocation7 + $0xd8] sm:$0xff]
        %v5103 = vld [vmem:[#allocation7 + $0xe0] sm:$0xff]
        %v5104 = vld [vmem:[#allocation7 + $0xe8] sm:$0xff]
        %v5105 = vld [vmem:[#allocation7 + $0xf0] sm:$0xff]
        %v5106 = vld [vmem:[#allocation7 + $0xf8] sm:$0xff]
        %v5107 = vld [vmem:[#allocation7 + $0x100] sm:$0xff]
        %v5108 = vld [vmem:[#allocation7 + $0x108] sm:$0xff]
        %v5109 = vld [vmem:[#allocation7 + $0x110] sm:$0xff]
        %v5110 = vld [vmem:[#allocation7 + $0x118] sm:$0xff]
        %v5111 = vld [vmem:[#allocation7 + $0x120] sm:$0xff]
        %v5112 = vld [vmem:[#allocation7 + $0x128] sm:$0xff]
        %v5113 = vld [vmem:[#allocation7 + $0x130] sm:$0xff]
        %v5114 = vld [vmem:[#allocation7 + $0x138] sm:$0xff]
        %v5115 = vld [vmem:[#allocation7 + $0x140] sm:$0xff]
        %v5116 = vld [vmem:[#allocation7 + $0x148] sm:$0xff]
        %v5117 = vld [vmem:[#allocation7 + $0x150] sm:$0xff]
        %v5118 = vld [vmem:[#allocation7 + $0x158] sm:$0xff]
        %v5119 = vld [vmem:[#allocation7 + $0x160] sm:$0xff]
        %v5120 = vld [vmem:[#allocation7 + $0x168] sm:$0xff]
        %v5121 = vld [vmem:[#allocation7 + $0x170] sm:$0xff]
        %v5122 = vld [vmem:[#allocation7 + $0x178] sm:$0xff]
        %v5123 = vld [vmem:[#allocation7 + $0x180] sm:$0xff]
        %v5124 = vld [vmem:[#allocation7 + $0x188] sm:$0xff]
        %v5125 = vld [vmem:[#allocation7 + $0x190] sm:$0xff]
        %v5126 = vld [vmem:[#allocation7 + $0x198] sm:$0xff]
        %v5127 = vld [vmem:[#allocation7 + $0x1a0] sm:$0xff]
        %v5128 = vld [vmem:[#allocation7 + $0x1a8] sm:$0xff]
        %v5129 = vld [vmem:[#allocation7 + $0x1b0] sm:$0xff]
        %v5130 = vld [vmem:[#allocation7 + $0x1b8] sm:$0xff]
        %v5131 = vld [vmem:[#allocation7 + $0x1c0] sm:$0xff]
        %v5132 = vld [vmem:[#allocation7 + $0x1c8] sm:$0xff]
        %v5133 = vld [vmem:[#allocation7 + $0x1d0] sm:$0xff]
        %v5134 = vld [vmem:[#allocation7 + $0x1d8] sm:$0xff]
        %v5135 = vld [vmem:[#allocation7 + $0x1e0] sm:$0xff]
        %v5136 = vld [vmem:[#allocation7 + $0x1e8] sm:$0xff]
        %v5137 = vld [vmem:[#allocation7 + $0x1f0] sm:$0xff]
        %v5138 = vld [vmem:[#allocation7 + $0x1f8] sm:$0xff]
        %v5139 = vlaneseq
        %v5140 = vshrl.u32 %v5139, 7
        %v5141 = vsub.s32 0, %v5140
        %v5142 = vrot.slane %v371, %v5141
        %v5143 = vlaneseq
        %v5144 = vshrl.u32 %v5143, 7
        %v5145 = vsub.s32 0, %v5144
        %v5146 = vrot.slane %v372, %v5145
        %5147 = vmatprep.subr.mxu0 %v5076
        %5148 = vmatpush1.msra.mxu0 %v5075
        %5149 = vmatprep.subr.mxu0 %v5078
        %5150 = vmatpush1.msra.mxu0 %v5077
        %5151 = vmatprep.subr.mxu0 %v5080
        %5152 = vmatpush1.msra.mxu0 %v5079
        %5153 = vmatprep.subr.mxu0 %v5082
        %5154 = vmatpush1.msra.mxu0 %v5081
        %5155 = vmatprep.subr.mxu0 %v5084
        %5156 = vmatpush1.msra.mxu0 %v5083
        %5157 = vmatprep.subr.mxu0 %v5086
        %5158 = vmatpush1.msra.mxu0 %v5085
        %5159 = vmatprep.subr.mxu0 %v5088
        %5160 = vmatpush1.msra.mxu0 %v5087
        %5161 = vmatprep.subr.mxu0 %v5090
        %5162 = vmatpush1.msra.mxu0 %v5089
        %5163 = vmatprep.subr.mxu0 %v5092
        %5164 = vmatpush1.msra.mxu0 %v5091
        %5165 = vmatprep.subr.mxu0 %v5094
        %5166 = vmatpush1.msra.mxu0 %v5093
        %5167 = vmatprep.subr.mxu0 %v5096
        %5168 = vmatpush1.msra.mxu0 %v5095
        %5169 = vmatprep.subr.mxu0 %v5098
        %5170 = vmatpush1.msra.mxu0 %v5097
        %5171 = vmatprep.subr.mxu0 %v5100
        %5172 = vmatpush1.msra.mxu0 %v5099
        %5173 = vmatprep.subr.mxu0 %v5102
        %5174 = vmatpush1.msra.mxu0 %v5101
        %5175 = vmatprep.subr.mxu0 %v5104
        %5176 = vmatpush1.msra.mxu0 %v5103
        %5177 = vmatprep.subr.mxu0 %v5106
        %5178 = vmatpush1.msra.mxu0 %v5105
        %5179 = vmatprep.subr.mxu0 %v5108
        %5180 = vmatpush1.msra.mxu0 %v5107
        %5181 = vmatprep.subr.mxu0 %v5110
        %5182 = vmatpush1.msra.mxu0 %v5109
        %5183 = vmatprep.subr.mxu0 %v5112
        %5184 = vmatpush1.msra.mxu0 %v5111
        %5185 = vmatprep.subr.mxu0 %v5114
        %5186 = vmatpush1.msra.mxu0 %v5113
        %5187 = vmatprep.subr.mxu0 %v5116
        %5188 = vmatpush1.msra.mxu0 %v5115
        %5189 = vmatprep.subr.mxu0 %v5118
        %5190 = vmatpush1.msra.mxu0 %v5117
        %5191 = vmatprep.subr.mxu0 %v5120
        %5192 = vmatpush1.msra.mxu0 %v5119
        %5193 = vmatprep.subr.mxu0 %v5122
        %5194 = vmatpush1.msra.mxu0 %v5121
        %5195 = vmatprep.subr.mxu0 %v5124
        %5196 = vmatpush1.msra.mxu0 %v5123
        %5197 = vmatprep.subr.mxu0 %v5126
        %5198 = vmatpush1.msra.mxu0 %v5125
        %5199 = vmatprep.subr.mxu0 %v5128
        %5200 = vmatpush1.msra.mxu0 %v5127
        %5201 = vmatprep.subr.mxu0 %v5130
        %5202 = vmatpush1.msra.mxu0 %v5129
        %5203 = vmatprep.subr.mxu0 %v5132
        %5204 = vmatpush1.msra.mxu0 %v5131
        %5205 = vmatprep.subr.mxu0 %v5134
        %5206 = vmatpush1.msra.mxu0 %v5133
        %5207 = vmatprep.subr.mxu0 %v5136
        %5208 = vmatpush1.msra.mxu0 %v5135
        %5209 = vmatprep.subr.mxu0 %v5138
        %5210 = vmatpush1.msra.mxu0 %v5137
        %5211 = vmatprep.mubr.f32.mxu0 %v5043
        %5212 = vmatmul.mubr.f32.gmra.mrb[0].mxu0 %v3235
        %v5213 = vpop.f32.mrb[0].mxu0
        %v5214 = vadd.f32 %v5142, %v5213
        %v5215 = vpop.f32.mrb[0].mxu0
        %v5216 = vadd.f32 %v5146, %v5215
        %5217 = vmatprep.mubr.f32.mxu0 %v5044
        %5218 = vmatmul.mubr.f32.gmra.mrb[0].mxu0 %v3236
        %v5219 = vpop.f32.mrb[0].mxu0
        %v5220 = vadd.f32 %v5142, %v5219
        %v5221 = vpop.f32.mrb[0].mxu0
        %v5222 = vadd.f32 %v5146, %v5221
        %5223 = vmatprep.mubr.f32.mxu0 %v5045
        %5224 = vmatmul.mubr.f32.gmra.mrb[0].mxu0 %v3237
        %v5225 = vpop.f32.mrb[0].mxu0
        %v5226 = vadd.f32 %v5142, %v5225
        %v5227 = vpop.f32.mrb[0].mxu0
        %v5228 = vadd.f32 %v5146, %v5227
        %5229 = vmatprep.mubr.f32.mxu0 %v5046
        %5230 = vmatmul.mubr.f32.gmra.mrb[0].mxu0 %v3238
        %v5231 = vpop.f32.mrb[0].mxu0
        %v5232 = vadd.f32 %v5142, %v5231
        %v5233 = vpop.f32.mrb[0].mxu0
        %v5234 = vadd.f32 %v5146, %v5233
        %5235 = vmatprep.mubr.f32.mxu0 %v5047
        %5236 = vmatmul.mubr.f32.gmra.mrb[0].mxu0 %v3239
        %v5237 = vpop.f32.mrb[0].mxu0
        %v5238 = vadd.f32 %v5142, %v5237
        %v5239 = vpop.f32.mrb[0].mxu0
        %v5240 = vadd.f32 %v5146, %v5239
        %5241 = vmatprep.mubr.f32.mxu0 %v5048
        %5242 = vmatmul.mubr.f32.gmra.mrb[0].mxu0 %v3240
        %v5243 = vpop.f32.mrb[0].mxu0
        %v5244 = vadd.f32 %v5142, %v5243
        %v5245 = vpop.f32.mrb[0].mxu0
        %v5246 = vadd.f32 %v5146, %v5245
        %5247 = vmatprep.mubr.f32.mxu0 %v5049
        %5248 = vmatmul.mubr.f32.gmra.mrb[0].mxu0 %v3241
        %v5249 = vpop.f32.mrb[0].mxu0
        %v5250 = vadd.f32 %v5142, %v5249
        %v5251 = vpop.f32.mrb[0].mxu0
        %v5252 = vadd.f32 %v5146, %v5251
        %5253 = vmatprep.mubr.f32.mxu0 %v5050
        %5254 = vmatmul.mubr.f32.gmra.mrb[0].mxu0 %v3242
        %v5255 = vpop.f32.mrb[0].mxu0
        %v5256 = vadd.f32 %v5142, %v5255
        %v5257 = vpop.f32.mrb[0].mxu0
        %v5258 = vadd.f32 %v5146, %v5257
        %5259 = vmatprep.mubr.f32.mxu0 %v5051
        %5260 = vmatmul.mubr.f32.gmra.mrb[0].mxu0 %v3243
        %v5261 = vpop.f32.mrb[0].mxu0
        %v5262 = vadd.f32 %v5142, %v5261
        %v5263 = vpop.f32.mrb[0].mxu0
        %v5264 = vadd.f32 %v5146, %v5263
        %5265 = vmatprep.mubr.f32.mxu0 %v5052
        %5266 = vmatmul.mubr.f32.gmra.mrb[0].mxu0 %v3244
        %v5267 = vpop.f32.mrb[0].mxu0
        %v5268 = vadd.f32 %v5142, %v5267
        %v5269 = vpop.f32.mrb[0].mxu0
        %v5270 = vadd.f32 %v5146, %v5269
        %5271 = vmatprep.mubr.f32.mxu0 %v5053
        %5272 = vmatmul.mubr.f32.gmra.mrb[0].mxu0 %v3245
        %v5273 = vpop.f32.mrb[0].mxu0
        %v5274 = vadd.f32 %v5142, %v5273
        %v5275 = vpop.f32.mrb[0].mxu0
        %v5276 = vadd.f32 %v5146, %v5275
        %5277 = vmatprep.mubr.f32.mxu0 %v5054
        %5278 = vmatmul.mubr.f32.gmra.mrb[0].mxu0 %v3246
        %v5279 = vpop.f32.mrb[0].mxu0
        %v5280 = vadd.f32 %v5142, %v5279
        %v5281 = vpop.f32.mrb[0].mxu0
        %v5282 = vadd.f32 %v5146, %v5281
        %5283 = vmatprep.mubr.f32.mxu0 %v5055
        %5284 = vmatmul.mubr.f32.gmra.mrb[0].mxu0 %v3247
        %v5285 = vpop.f32.mrb[0].mxu0
        %v5286 = vadd.f32 %v5142, %v5285
        %v5287 = vpop.f32.mrb[0].mxu0
        %v5288 = vadd.f32 %v5146, %v5287
        %5289 = vmatprep.mubr.f32.mxu0 %v5056
        %5290 = vmatmul.mubr.f32.gmra.mrb[0].mxu0 %v3248
        %v5291 = vpop.f32.mrb[0].mxu0
        %v5292 = vadd.f32 %v5142, %v5291
        %v5293 = vpop.f32.mrb[0].mxu0
        %v5294 = vadd.f32 %v5146, %v5293
        %5295 = vmatprep.mubr.f32.mxu0 %v5057
        %5296 = vmatmul.mubr.f32.gmra.mrb[0].mxu0 %v3249
        %v5297 = vpop.f32.mrb[0].mxu0
        %v5298 = vadd.f32 %v5142, %v5297
        %v5299 = vpop.f32.mrb[0].mxu0
        %v5300 = vadd.f32 %v5146, %v5299
        %5301 = vmatprep.mubr.f32.mxu0 %v5058
        %5302 = vmatmul.mubr.f32.gmra.mrb[0].mxu0 %v3250
        %v5303 = vpop.f32.mrb[0].mxu0
        %v5304 = vadd.f32 %v5142, %v5303
        %v5305 = vpop.f32.mrb[0].mxu0
        %v5306 = vadd.f32 %v5146, %v5305
        %5307 = vmatprep.mubr.f32.mxu0 %v5059
        %5308 = vmatmul.mubr.f32.gmra.mrb[0].mxu0 %v3251
        %v5309 = vpop.f32.mrb[0].mxu0
        %v5310 = vadd.f32 %v5142, %v5309
        %v5311 = vpop.f32.mrb[0].mxu0
        %v5312 = vadd.f32 %v5146, %v5311
        %5313 = vmatprep.mubr.f32.mxu0 %v5060
        %5314 = vmatmul.mubr.f32.gmra.mrb[0].mxu0 %v3252
        %v5315 = vpop.f32.mrb[0].mxu0
        %v5316 = vadd.f32 %v5142, %v5315
        %v5317 = vpop.f32.mrb[0].mxu0
        %v5318 = vadd.f32 %v5146, %v5317
        %5319 = vmatprep.mubr.f32.mxu0 %v5061
        %5320 = vmatmul.mubr.f32.gmra.mrb[0].mxu0 %v3253
        %v5321 = vpop.f32.mrb[0].mxu0
        %v5322 = vadd.f32 %v5142, %v5321
        %v5323 = vpop.f32.mrb[0].mxu0
        %v5324 = vadd.f32 %v5146, %v5323
        %5325 = vmatprep.mubr.f32.mxu0 %v5062
        %5326 = vmatmul.mubr.f32.gmra.mrb[0].mxu0 %v3254
        %v5327 = vpop.f32.mrb[0].mxu0
        %v5328 = vadd.f32 %v5142, %v5327
        %v5329 = vpop.f32.mrb[0].mxu0
        %v5330 = vadd.f32 %v5146, %v5329
        %5331 = vmatprep.mubr.f32.mxu0 %v5063
        %5332 = vmatmul.mubr.f32.gmra.mrb[0].mxu0 %v3255
        %v5333 = vpop.f32.mrb[0].mxu0
        %v5334 = vadd.f32 %v5142, %v5333
        %v5335 = vpop.f32.mrb[0].mxu0
        %v5336 = vadd.f32 %v5146, %v5335
        %5337 = vmatprep.mubr.f32.mxu0 %v5064
        %5338 = vmatmul.mubr.f32.gmra.mrb[0].mxu0 %v3256
        %v5339 = vpop.f32.mrb[0].mxu0
        %v5340 = vadd.f32 %v5142, %v5339
        %v5341 = vpop.f32.mrb[0].mxu0
        %v5342 = vadd.f32 %v5146, %v5341
        %5343 = vmatprep.mubr.f32.mxu0 %v5065
        %5344 = vmatmul.mubr.f32.gmra.mrb[0].mxu0 %v3257
        %v5345 = vpop.f32.mrb[0].mxu0
        %v5346 = vadd.f32 %v5142, %v5345
        %v5347 = vpop.f32.mrb[0].mxu0
        %v5348 = vadd.f32 %v5146, %v5347
        %5349 = vmatprep.mubr.f32.mxu0 %v5066
        %5350 = vmatmul.mubr.f32.gmra.mrb[0].mxu0 %v3258
        %v5351 = vpop.f32.mrb[0].mxu0
        %v5352 = vadd.f32 %v5142, %v5351
        %v5353 = vpop.f32.mrb[0].mxu0
        %v5354 = vadd.f32 %v5146, %v5353
        %5355 = vmatprep.mubr.f32.mxu0 %v5067
        %5356 = vmatmul.mubr.f32.gmra.mrb[0].mxu0 %v3259
        %v5357 = vpop.f32.mrb[0].mxu0
        %v5358 = vadd.f32 %v5142, %v5357
        %v5359 = vpop.f32.mrb[0].mxu0
        %v5360 = vadd.f32 %v5146, %v5359
        %5361 = vmatprep.mubr.f32.mxu0 %v5068
        %5362 = vmatmul.mubr.f32.gmra.mrb[0].mxu0 %v3260
        %v5363 = vpop.f32.mrb[0].mxu0
        %v5364 = vadd.f32 %v5142, %v5363
        %v5365 = vpop.f32.mrb[0].mxu0
        %v5366 = vadd.f32 %v5146, %v5365
        %5367 = vmatprep.mubr.f32.mxu0 %v5069
        %5368 = vmatmul.mubr.f32.gmra.mrb[0].mxu0 %v3261
        %v5369 = vpop.f32.mrb[0].mxu0
        %v5370 = vadd.f32 %v5142, %v5369
        %v5371 = vpop.f32.mrb[0].mxu0
        %v5372 = vadd.f32 %v5146, %v5371
        %5373 = vmatprep.mubr.f32.mxu0 %v5070
        %5374 = vmatmul.mubr.f32.gmra.mrb[0].mxu0 %v3262
        %v5375 = vpop.f32.mrb[0].mxu0
        %v5376 = vadd.f32 %v5142, %v5375
        %v5377 = vpop.f32.mrb[0].mxu0
        %v5378 = vadd.f32 %v5146, %v5377
        %5379 = vmatprep.mubr.f32.mxu0 %v5071
        %5380 = vmatmul.mubr.f32.gmra.mrb[0].mxu0 %v3263
        %v5381 = vpop.f32.mrb[0].mxu0
        %v5382 = vadd.f32 %v5142, %v5381
        %v5383 = vpop.f32.mrb[0].mxu0
        %v5384 = vadd.f32 %v5146, %v5383
        %5385 = vmatprep.mubr.f32.mxu0 %v5072
        %5386 = vmatmul.mubr.f32.gmra.mrb[0].mxu0 %v3264
        %v5387 = vpop.f32.mrb[0].mxu0
        %v5388 = vadd.f32 %v5142, %v5387
        %v5389 = vpop.f32.mrb[0].mxu0
        %v5390 = vadd.f32 %v5146, %v5389
        %5391 = vmatprep.mubr.f32.mxu0 %v5073
        %5392 = vmatmul.mubr.f32.gmra.mrb[0].mxu0 %v3265
        %v5393 = vpop.f32.mrb[0].mxu0
        %v5394 = vadd.f32 %v5142, %v5393
        %v5395 = vpop.f32.mrb[0].mxu0
        %v5396 = vadd.f32 %v5146, %v5395
        %5397 = vmatprep.mubr.f32.mxu0 %v5074
        %5398 = vmatmul.mubr.f32.gmra.mrb[0].mxu0 %v3266
        %v5399 = vpop.f32.mrb[0].mxu0
        %v5400 = vadd.f32 %v5142, %v5399
        %v5401 = vpop.f32.mrb[0].mxu0
        %v5402 = vadd.f32 %v5146, %v5401
        %5403 = vdwg.mxu0
        %v5404 = vadd.f32 %v375, %v5214
        %v5405 = vadd.f32 %v376, %v5216
        %v5406 = vadd.f32 %v377, %v5220
        %v5407 = vadd.f32 %v378, %v5222
        %v5408 = vadd.f32 %v379, %v5226
        %v5409 = vadd.f32 %v380, %v5228
        %v5410 = vadd.f32 %v381, %v5232
        %v5411 = vadd.f32 %v382, %v5234
        %v5412 = vadd.f32 %v383, %v5238
        %v5413 = vadd.f32 %v384, %v5240
        %v5414 = vadd.f32 %v385, %v5244
        %v5415 = vadd.f32 %v386, %v5246
        %v5416 = vadd.f32 %v387, %v5250
        %v5417 = vadd.f32 %v388, %v5252
        %v5418 = vadd.f32 %v389, %v5256
        %v5419 = vadd.f32 %v390, %v5258
        %v5420 = vadd.f32 %v391, %v5262
        %v5421 = vadd.f32 %v392, %v5264
        %v5422 = vadd.f32 %v393, %v5268
        %v5423 = vadd.f32 %v394, %v5270
        %v5424 = vadd.f32 %v395, %v5274
        %v5425 = vadd.f32 %v396, %v5276
        %v5426 = vadd.f32 %v397, %v5280
        %v5427 = vadd.f32 %v398, %v5282
        %v5428 = vadd.f32 %v399, %v5286
        %v5429 = vadd.f32 %v400, %v5288
        %v5430 = vadd.f32 %v401, %v5292
        %v5431 = vadd.f32 %v402, %v5294
        %v5432 = vadd.f32 %v403, %v5298
        %v5433 = vadd.f32 %v404, %v5300
        %v5434 = vadd.f32 %v405, %v5304
        %v5435 = vadd.f32 %v406, %v5306
        %v5436 = vadd.f32 %v407, %v5310
        %v5437 = vadd.f32 %v408, %v5312
        %v5438 = vadd.f32 %v409, %v5316
        %v5439 = vadd.f32 %v410, %v5318
        %v5440 = vadd.f32 %v411, %v5322
        %v5441 = vadd.f32 %v412, %v5324
        %v5442 = vadd.f32 %v413, %v5328
        %v5443 = vadd.f32 %v414, %v5330
        %v5444 = vadd.f32 %v415, %v5334
        %v5445 = vadd.f32 %v416, %v5336
        %v5446 = vadd.f32 %v417, %v5340
        %v5447 = vadd.f32 %v418, %v5342
        %v5448 = vadd.f32 %v419, %v5346
        %v5449 = vadd.f32 %v420, %v5348
        %v5450 = vadd.f32 %v421, %v5352
        %v5451 = vadd.f32 %v422, %v5354
        %v5452 = vadd.f32 %v423, %v5358
        %v5453 = vadd.f32 %v424, %v5360
        %v5454 = vadd.f32 %v425, %v5364
        %v5455 = vadd.f32 %v426, %v5366
        %v5456 = vadd.f32 %v427, %v5370
        %v5457 = vadd.f32 %v428, %v5372
        %v5458 = vadd.f32 %v429, %v5376
        %v5459 = vadd.f32 %v430, %v5378
        %v5460 = vadd.f32 %v431, %v5382
        %v5461 = vadd.f32 %v432, %v5384
        %v5462 = vadd.f32 %v433, %v5388
        %v5463 = vadd.f32 %v434, %v5390
        %v5464 = vadd.f32 %v435, %v5394
        %v5465 = vadd.f32 %v436, %v5396
        %v5466 = vadd.f32 %v437, %v5400
        %v5467 = vadd.f32 %v438, %v5402
        %v5468 = vadd.f32 %v5404, %v5405
        %5469 = vadd.xlane.f32.xlu0 %v5468
        %v5470 = vpop.xlane.xlu0 %5469
        %v5471 = vadd.f32 %v5406, %v5407
        %5472 = vadd.xlane.f32.xlu0 %v5471
        %v5473 = vpop.xlane.xlu0 %5472
        %v5474 = vadd.f32 %v5408, %v5409
        %5475 = vadd.xlane.f32.xlu0 %v5474
        %v5476 = vpop.xlane.xlu0 %5475
        %v5477 = vadd.f32 %v5410, %v5411
        %5478 = vadd.xlane.f32.xlu0 %v5477
        %v5479 = vpop.xlane.xlu0 %5478
        %v5480 = vadd.f32 %v5412, %v5413
        %5481 = vadd.xlane.f32.xlu0 %v5480
        %v5482 = vpop.xlane.xlu0 %5481
        %v5483 = vadd.f32 %v5414, %v5415
        %5484 = vadd.xlane.f32.xlu0 %v5483
        %v5485 = vpop.xlane.xlu0 %5484
        %v5486 = vadd.f32 %v5416, %v5417
        %5487 = vadd.xlane.f32.xlu0 %v5486
        %v5488 = vpop.xlane.xlu0 %5487
        %v5489 = vadd.f32 %v5418, %v5419
        %5490 = vadd.xlane.f32.xlu0 %v5489
        %v5491 = vpop.xlane.xlu0 %5490
        %v5492 = vadd.f32 %v5420, %v5421
        %5493 = vadd.xlane.f32.xlu0 %v5492
        %v5494 = vpop.xlane.xlu0 %5493
        %v5495 = vadd.f32 %v5422, %v5423
        %5496 = vadd.xlane.f32.xlu0 %v5495
        %v5497 = vpop.xlane.xlu0 %5496
        %v5498 = vadd.f32 %v5424, %v5425
        %5499 = vadd.xlane.f32.xlu0 %v5498
        %v5500 = vpop.xlane.xlu0 %5499
        %v5501 = vadd.f32 %v5426, %v5427
        %5502 = vadd.xlane.f32.xlu0 %v5501
        %v5503 = vpop.xlane.xlu0 %5502
        %v5504 = vadd.f32 %v5428, %v5429
        %5505 = vadd.xlane.f32.xlu0 %v5504
        %v5506 = vpop.xlane.xlu0 %5505
        %v5507 = vadd.f32 %v5430, %v5431
        %5508 = vadd.xlane.f32.xlu0 %v5507
        %v5509 = vpop.xlane.xlu0 %5508
        %v5510 = vadd.f32 %v5432, %v5433
        %5511 = vadd.xlane.f32.xlu0 %v5510
        %v5512 = vpop.xlane.xlu0 %5511
        %v5513 = vadd.f32 %v5434, %v5435
        %5514 = vadd.xlane.f32.xlu0 %v5513
        %v5515 = vpop.xlane.xlu0 %5514
        %v5516 = vadd.f32 %v5436, %v5437
        %5517 = vadd.xlane.f32.xlu0 %v5516
        %v5518 = vpop.xlane.xlu0 %5517
        %v5519 = vadd.f32 %v5438, %v5439
        %5520 = vadd.xlane.f32.xlu0 %v5519
        %v5521 = vpop.xlane.xlu0 %5520
        %v5522 = vadd.f32 %v5440, %v5441
        %5523 = vadd.xlane.f32.xlu0 %v5522
        %v5524 = vpop.xlane.xlu0 %5523
        %v5525 = vadd.f32 %v5442, %v5443
        %5526 = vadd.xlane.f32.xlu0 %v5525
        %v5527 = vpop.xlane.xlu0 %5526
        %v5528 = vadd.f32 %v5444, %v5445
        %5529 = vadd.xlane.f32.xlu0 %v5528
        %v5530 = vpop.xlane.xlu0 %5529
        %v5531 = vadd.f32 %v5446, %v5447
        %5532 = vadd.xlane.f32.xlu0 %v5531
        %v5533 = vpop.xlane.xlu0 %5532
        %v5534 = vadd.f32 %v5448, %v5449
        %5535 = vadd.xlane.f32.xlu0 %v5534
        %v5536 = vpop.xlane.xlu0 %5535
        %v5537 = vadd.f32 %v5450, %v5451
        %5538 = vadd.xlane.f32.xlu0 %v5537
        %v5539 = vpop.xlane.xlu0 %5538
        %v5540 = vadd.f32 %v5452, %v5453
        %5541 = vadd.xlane.f32.xlu0 %v5540
        %v5542 = vpop.xlane.xlu0 %5541
        %v5543 = vadd.f32 %v5454, %v5455
        %5544 = vadd.xlane.f32.xlu0 %v5543
        %v5545 = vpop.xlane.xlu0 %5544
        %v5546 = vadd.f32 %v5456, %v5457
        %5547 = vadd.xlane.f32.xlu0 %v5546
        %v5548 = vpop.xlane.xlu0 %5547
        %v5549 = vadd.f32 %v5458, %v5459
        %5550 = vadd.xlane.f32.xlu0 %v5549
        %v5551 = vpop.xlane.xlu0 %5550
        %v5552 = vadd.f32 %v5460, %v5461
        %5553 = vadd.xlane.f32.xlu0 %v5552
        %v5554 = vpop.xlane.xlu0 %5553
        %v5555 = vadd.f32 %v5462, %v5463
        %5556 = vadd.xlane.f32.xlu0 %v5555
        %v5557 = vpop.xlane.xlu0 %5556
        %v5558 = vadd.f32 %v5464, %v5465
        %5559 = vadd.xlane.f32.xlu0 %v5558
        %v5560 = vpop.xlane.xlu0 %5559
        %v5561 = vadd.f32 %v5466, %v5467
        %5562 = vadd.xlane.f32.xlu0 %v5561
        %v5563 = vpop.xlane.xlu0 %5562
        %v5564 = vrcp.pop 256.0
        %v5565 = vmul.f32 %v5470, %v5564
        %v5566 = vmul.f32 %v5473, %v5564
        %v5567 = vmul.f32 %v5476, %v5564
        %v5568 = vmul.f32 %v5479, %v5564
        %v5569 = vmul.f32 %v5482, %v5564
        %v5570 = vmul.f32 %v5485, %v5564
        %v5571 = vmul.f32 %v5488, %v5564
        %v5572 = vmul.f32 %v5491, %v5564
        %v5573 = vmul.f32 %v5494, %v5564
        %v5574 = vmul.f32 %v5497, %v5564
        %v5575 = vmul.f32 %v5500, %v5564
        %v5576 = vmul.f32 %v5503, %v5564
        %v5577 = vmul.f32 %v5506, %v5564
        %v5578 = vmul.f32 %v5509, %v5564
        %v5579 = vmul.f32 %v5512, %v5564
        %v5580 = vmul.f32 %v5515, %v5564
        %v5581 = vmul.f32 %v5518, %v5564
        %v5582 = vmul.f32 %v5521, %v5564
        %v5583 = vmul.f32 %v5524, %v5564
        %v5584 = vmul.f32 %v5527, %v5564
        %v5585 = vmul.f32 %v5530, %v5564
        %v5586 = vmul.f32 %v5533, %v5564
        %v5587 = vmul.f32 %v5536, %v5564
        %v5588 = vmul.f32 %v5539, %v5564
        %v5589 = vmul.f32 %v5542, %v5564
        %v5590 = vmul.f32 %v5545, %v5564
        %v5591 = vmul.f32 %v5548, %v5564
        %v5592 = vmul.f32 %v5551, %v5564
        %v5593 = vmul.f32 %v5554, %v5564
        %v5594 = vmul.f32 %v5557, %v5564
        %v5595 = vmul.f32 %v5560, %v5564
        %v5596 = vmul.f32 %v5563, %v5564
        %v5597 = vsub.f32 %v5404, %v5565
        %v5598 = vsub.f32 %v5405, %v5565
        %v5599 = vsub.f32 %v5406, %v5566
        %v5600 = vsub.f32 %v5407, %v5566
        %v5601 = vsub.f32 %v5408, %v5567
        %v5602 = vsub.f32 %v5409, %v5567
        %v5603 = vsub.f32 %v5410, %v5568
        %v5604 = vsub.f32 %v5411, %v5568
        %v5605 = vsub.f32 %v5412, %v5569
        %v5606 = vsub.f32 %v5413, %v5569
        %v5607 = vsub.f32 %v5414, %v5570
        %v5608 = vsub.f32 %v5415, %v5570
        %v5609 = vsub.f32 %v5416, %v5571
        %v5610 = vsub.f32 %v5417, %v5571
        %v5611 = vsub.f32 %v5418, %v5572
        %v5612 = vsub.f32 %v5419, %v5572
        %v5613 = vsub.f32 %v5420, %v5573
        %v5614 = vsub.f32 %v5421, %v5573
        %v5615 = vsub.f32 %v5422, %v5574
        %v5616 = vsub.f32 %v5423, %v5574
        %v5617 = vsub.f32 %v5424, %v5575
        %v5618 = vsub.f32 %v5425, %v5575
        %v5619 = vsub.f32 %v5426, %v5576
        %v5620 = vsub.f32 %v5427, %v5576
        %v5621 = vsub.f32 %v5428, %v5577
        %v5622 = vsub.f32 %v5429, %v5577
        %v5623 = vsub.f32 %v5430, %v5578
        %v5624 = vsub.f32 %v5431, %v5578
        %v5625 = vsub.f32 %v5432, %v5579
        %v5626 = vsub.f32 %v5433, %v5579
        %v5627 = vsub.f32 %v5434, %v5580
        %v5628 = vsub.f32 %v5435, %v5580
        %v5629 = vsub.f32 %v5436, %v5581
        %v5630 = vsub.f32 %v5437, %v5581
        %v5631 = vsub.f32 %v5438, %v5582
        %v5632 = vsub.f32 %v5439, %v5582
        %v5633 = vsub.f32 %v5440, %v5583
        %v5634 = vsub.f32 %v5441, %v5583
        %v5635 = vsub.f32 %v5442, %v5584
        %v5636 = vsub.f32 %v5443, %v5584
        %v5637 = vsub.f32 %v5444, %v5585
        %v5638 = vsub.f32 %v5445, %v5585
        %v5639 = vsub.f32 %v5446, %v5586
        %v5640 = vsub.f32 %v5447, %v5586
        %v5641 = vsub.f32 %v5448, %v5587
        %v5642 = vsub.f32 %v5449, %v5587
        %v5643 = vsub.f32 %v5450, %v5588
        %v5644 = vsub.f32 %v5451, %v5588
        %v5645 = vsub.f32 %v5452, %v5589
        %v5646 = vsub.f32 %v5453, %v5589
        %v5647 = vsub.f32 %v5454, %v5590
        %v5648 = vsub.f32 %v5455, %v5590
        %v5649 = vsub.f32 %v5456, %v5591
        %v5650 = vsub.f32 %v5457, %v5591
        %v5651 = vsub.f32 %v5458, %v5592
        %v5652 = vsub.f32 %v5459, %v5592
        %v5653 = vsub.f32 %v5460, %v5593
        %v5654 = vsub.f32 %v5461, %v5593
        %v5655 = vsub.f32 %v5462, %v5594
        %v5656 = vsub.f32 %v5463, %v5594
        %v5657 = vsub.f32 %v5464, %v5595
        %v5658 = vsub.f32 %v5465, %v5595
        %v5659 = vsub.f32 %v5466, %v5596
        %v5660 = vsub.f32 %v5467, %v5596
        %v5661 = vmul.f32 %v5597, %v5597
        %v5662 = vmul.f32 %v5598, %v5598
        %v5663 = vmul.f32 %v5599, %v5599
        %v5664 = vmul.f32 %v5600, %v5600
        %v5665 = vmul.f32 %v5601, %v5601
        %v5666 = vmul.f32 %v5602, %v5602
        %v5667 = vmul.f32 %v5603, %v5603
        %v5668 = vmul.f32 %v5604, %v5604
        %v5669 = vmul.f32 %v5605, %v5605
        %v5670 = vmul.f32 %v5606, %v5606
        %v5671 = vmul.f32 %v5607, %v5607
        %v5672 = vmul.f32 %v5608, %v5608
        %v5673 = vmul.f32 %v5609, %v5609
        %v5674 = vmul.f32 %v5610, %v5610
        %v5675 = vmul.f32 %v5611, %v5611
        %v5676 = vmul.f32 %v5612, %v5612
        %v5677 = vmul.f32 %v5613, %v5613
        %v5678 = vmul.f32 %v5614, %v5614
        %v5679 = vmul.f32 %v5615, %v5615
        %v5680 = vmul.f32 %v5616, %v5616
        %v5681 = vmul.f32 %v5617, %v5617
        %v5682 = vmul.f32 %v5618, %v5618
        %v5683 = vmul.f32 %v5619, %v5619
        %v5684 = vmul.f32 %v5620, %v5620
        %v5685 = vmul.f32 %v5621, %v5621
        %v5686 = vmul.f32 %v5622, %v5622
        %v5687 = vmul.f32 %v5623, %v5623
        %v5688 = vmul.f32 %v5624, %v5624
        %v5689 = vmul.f32 %v5625, %v5625
        %v5690 = vmul.f32 %v5626, %v5626
        %v5691 = vmul.f32 %v5627, %v5627
        %v5692 = vmul.f32 %v5628, %v5628
        %v5693 = vmul.f32 %v5629, %v5629
        %v5694 = vmul.f32 %v5630, %v5630
        %v5695 = vmul.f32 %v5631, %v5631
        %v5696 = vmul.f32 %v5632, %v5632
        %v5697 = vmul.f32 %v5633, %v5633
        %v5698 = vmul.f32 %v5634, %v5634
        %v5699 = vmul.f32 %v5635, %v5635
        %v5700 = vmul.f32 %v5636, %v5636
        %v5701 = vmul.f32 %v5637, %v5637
        %v5702 = vmul.f32 %v5638, %v5638
        %v5703 = vmul.f32 %v5639, %v5639
        %v5704 = vmul.f32 %v5640, %v5640
        %v5705 = vmul.f32 %v5641, %v5641
        %v5706 = vmul.f32 %v5642, %v5642
        %v5707 = vmul.f32 %v5643, %v5643
        %v5708 = vmul.f32 %v5644, %v5644
        %v5709 = vmul.f32 %v5645, %v5645
        %v5710 = vmul.f32 %v5646, %v5646
        %v5711 = vmul.f32 %v5647, %v5647
        %v5712 = vmul.f32 %v5648, %v5648
        %v5713 = vmul.f32 %v5649, %v5649
        %v5714 = vmul.f32 %v5650, %v5650
        %v5715 = vmul.f32 %v5651, %v5651
        %v5716 = vmul.f32 %v5652, %v5652
        %v5717 = vmul.f32 %v5653, %v5653
        %v5718 = vmul.f32 %v5654, %v5654
        %v5719 = vmul.f32 %v5655, %v5655
        %v5720 = vmul.f32 %v5656, %v5656
        %v5721 = vmul.f32 %v5657, %v5657
        %v5722 = vmul.f32 %v5658, %v5658
        %v5723 = vmul.f32 %v5659, %v5659
        %v5724 = vmul.f32 %v5660, %v5660
        %v5725 = vadd.f32 %v5661, %v5662
        %5726 = vadd.xlane.f32.xlu0 %v5725
        %v5727 = vpop.xlane.xlu0 %5726
        %v5728 = vadd.f32 %v5663, %v5664
        %5729 = vadd.xlane.f32.xlu0 %v5728
        %v5730 = vpop.xlane.xlu0 %5729
        %v5731 = vadd.f32 %v5665, %v5666
        %5732 = vadd.xlane.f32.xlu0 %v5731
        %v5733 = vpop.xlane.xlu0 %5732
        %v5734 = vadd.f32 %v5667, %v5668
        %5735 = vadd.xlane.f32.xlu0 %v5734
        %v5736 = vpop.xlane.xlu0 %5735
        %v5737 = vadd.f32 %v5669, %v5670
        %5738 = vadd.xlane.f32.xlu0 %v5737
        %v5739 = vpop.xlane.xlu0 %5738
        %v5740 = vadd.f32 %v5671, %v5672
        %5741 = vadd.xlane.f32.xlu0 %v5740
        %v5742 = vpop.xlane.xlu0 %5741
        %v5743 = vadd.f32 %v5673, %v5674
        %5744 = vadd.xlane.f32.xlu0 %v5743
        %v5745 = vpop.xlane.xlu0 %5744
        %v5746 = vadd.f32 %v5675, %v5676
        %5747 = vadd.xlane.f32.xlu0 %v5746
        %v5748 = vpop.xlane.xlu0 %5747
        %v5749 = vadd.f32 %v5677, %v5678
        %5750 = vadd.xlane.f32.xlu0 %v5749
        %v5751 = vpop.xlane.xlu0 %5750
        %v5752 = vadd.f32 %v5679, %v5680
        %5753 = vadd.xlane.f32.xlu0 %v5752
        %v5754 = vpop.xlane.xlu0 %5753
        %v5755 = vadd.f32 %v5681, %v5682
        %5756 = vadd.xlane.f32.xlu0 %v5755
        %v5757 = vpop.xlane.xlu0 %5756
        %v5758 = vadd.f32 %v5683, %v5684
        %5759 = vadd.xlane.f32.xlu0 %v5758
        %v5760 = vpop.xlane.xlu0 %5759
        %v5761 = vadd.f32 %v5685, %v5686
        %5762 = vadd.xlane.f32.xlu0 %v5761
        %v5763 = vpop.xlane.xlu0 %5762
        %v5764 = vadd.f32 %v5687, %v5688
        %5765 = vadd.xlane.f32.xlu0 %v5764
        %v5766 = vpop.xlane.xlu0 %5765
        %v5767 = vadd.f32 %v5689, %v5690
        %5768 = vadd.xlane.f32.xlu0 %v5767
        %v5769 = vpop.xlane.xlu0 %5768
        %v5770 = vadd.f32 %v5691, %v5692
        %5771 = vadd.xlane.f32.xlu0 %v5770
        %v5772 = vpop.xlane.xlu0 %5771
        %v5773 = vadd.f32 %v5693, %v5694
        %5774 = vadd.xlane.f32.xlu0 %v5773
        %v5775 = vpop.xlane.xlu0 %5774
        %v5776 = vadd.f32 %v5695, %v5696
        %5777 = vadd.xlane.f32.xlu0 %v5776
        %v5778 = vpop.xlane.xlu0 %5777
        %v5779 = vadd.f32 %v5697, %v5698
        %5780 = vadd.xlane.f32.xlu0 %v5779
        %v5781 = vpop.xlane.xlu0 %5780
        %v5782 = vadd.f32 %v5699, %v5700
        %5783 = vadd.xlane.f32.xlu0 %v5782
        %v5784 = vpop.xlane.xlu0 %5783
        %v5785 = vadd.f32 %v5701, %v5702
        %5786 = vadd.xlane.f32.xlu0 %v5785
        %v5787 = vpop.xlane.xlu0 %5786
        %v5788 = vadd.f32 %v5703, %v5704
        %5789 = vadd.xlane.f32.xlu0 %v5788
        %v5790 = vpop.xlane.xlu0 %5789
        %v5791 = vadd.f32 %v5705, %v5706
        %5792 = vadd.xlane.f32.xlu0 %v5791
        %v5793 = vpop.xlane.xlu0 %5792
        %v5794 = vadd.f32 %v5707, %v5708
        %5795 = vadd.xlane.f32.xlu0 %v5794
        %v5796 = vpop.xlane.xlu0 %5795
        %v5797 = vadd.f32 %v5709, %v5710
        %5798 = vadd.xlane.f32.xlu0 %v5797
        %v5799 = vpop.xlane.xlu0 %5798
        %v5800 = vadd.f32 %v5711, %v5712
        %5801 = vadd.xlane.f32.xlu0 %v5800
        %v5802 = vpop.xlane.xlu0 %5801
        %v5803 = vadd.f32 %v5713, %v5714
        %5804 = vadd.xlane.f32.xlu0 %v5803
        %v5805 = vpop.xlane.xlu0 %5804
        %v5806 = vadd.f32 %v5715, %v5716
        %5807 = vadd.xlane.f32.xlu0 %v5806
        %v5808 = vpop.xlane.xlu0 %5807
        %v5809 = vadd.f32 %v5717, %v5718
        %5810 = vadd.xlane.f32.xlu0 %v5809
        %v5811 = vpop.xlane.xlu0 %5810
        %v5812 = vadd.f32 %v5719, %v5720
        %5813 = vadd.xlane.f32.xlu0 %v5812
        %v5814 = vpop.xlane.xlu0 %5813
        %v5815 = vadd.f32 %v5721, %v5722
        %5816 = vadd.xlane.f32.xlu0 %v5815
        %v5817 = vpop.xlane.xlu0 %5816
        %v5818 = vadd.f32 %v5723, %v5724
        %5819 = vadd.xlane.f32.xlu0 %v5818
        %v5820 = vpop.xlane.xlu0 %5819
        %v5821 = vmul.f32 %v5727, %v5564
        %v5822 = vmul.f32 %v5730, %v5564
        %v5823 = vmul.f32 %v5733, %v5564
        %v5824 = vmul.f32 %v5736, %v5564
        %v5825 = vmul.f32 %v5739, %v5564
        %v5826 = vmul.f32 %v5742, %v5564
        %v5827 = vmul.f32 %v5745, %v5564
        %v5828 = vmul.f32 %v5748, %v5564
        %v5829 = vmul.f32 %v5751, %v5564
        %v5830 = vmul.f32 %v5754, %v5564
        %v5831 = vmul.f32 %v5757, %v5564
        %v5832 = vmul.f32 %v5760, %v5564
        %v5833 = vmul.f32 %v5763, %v5564
        %v5834 = vmul.f32 %v5766, %v5564
        %v5835 = vmul.f32 %v5769, %v5564
        %v5836 = vmul.f32 %v5772, %v5564
        %v5837 = vmul.f32 %v5775, %v5564
        %v5838 = vmul.f32 %v5778, %v5564
        %v5839 = vmul.f32 %v5781, %v5564
        %v5840 = vmul.f32 %v5784, %v5564
        %v5841 = vmul.f32 %v5787, %v5564
        %v5842 = vmul.f32 %v5790, %v5564
        %v5843 = vmul.f32 %v5793, %v5564
        %v5844 = vmul.f32 %v5796, %v5564
        %v5845 = vmul.f32 %v5799, %v5564
        %v5846 = vmul.f32 %v5802, %v5564
        %v5847 = vmul.f32 %v5805, %v5564
        %v5848 = vmul.f32 %v5808, %v5564
        %v5849 = vmul.f32 %v5811, %v5564
        %v5850 = vmul.f32 %v5814, %v5564
        %v5851 = vmul.f32 %v5817, %v5564
        %v5852 = vmul.f32 %v5820, %v5564
        %v5853 = vadd.f32 %v5821, 1e-05
        %v5854 = vadd.f32 %v5822, 1e-05
        %v5855 = vadd.f32 %v5823, 1e-05
        %v5856 = vadd.f32 %v5824, 1e-05
        %v5857 = vadd.f32 %v5825, 1e-05
        %v5858 = vadd.f32 %v5826, 1e-05
        %v5859 = vadd.f32 %v5827, 1e-05
        %v5860 = vadd.f32 %v5828, 1e-05
        %v5861 = vadd.f32 %v5829, 1e-05
        %v5862 = vadd.f32 %v5830, 1e-05
        %v5863 = vadd.f32 %v5831, 1e-05
        %v5864 = vadd.f32 %v5832, 1e-05
        %v5865 = vadd.f32 %v5833, 1e-05
        %v5866 = vadd.f32 %v5834, 1e-05
        %v5867 = vadd.f32 %v5835, 1e-05
        %v5868 = vadd.f32 %v5836, 1e-05
        %v5869 = vadd.f32 %v5837, 1e-05
        %v5870 = vadd.f32 %v5838, 1e-05
        %v5871 = vadd.f32 %v5839, 1e-05
        %v5872 = vadd.f32 %v5840, 1e-05
        %v5873 = vadd.f32 %v5841, 1e-05
        %v5874 = vadd.f32 %v5842, 1e-05
        %v5875 = vadd.f32 %v5843, 1e-05
        %v5876 = vadd.f32 %v5844, 1e-05
        %v5877 = vadd.f32 %v5845, 1e-05
        %v5878 = vadd.f32 %v5846, 1e-05
        %v5879 = vadd.f32 %v5847, 1e-05
        %v5880 = vadd.f32 %v5848, 1e-05
        %v5881 = vadd.f32 %v5849, 1e-05
        %v5882 = vadd.f32 %v5850, 1e-05
        %v5883 = vadd.f32 %v5851, 1e-05
        %v5884 = vadd.f32 %v5852, 1e-05
        %v5885 = vrsqrt.pop %v5853
        %v5886 = vrsqrt.pop %v5854
        %v5887 = vrsqrt.pop %v5855
        %v5888 = vrsqrt.pop %v5856
        %v5889 = vrsqrt.pop %v5857
        %v5890 = vrsqrt.pop %v5858
        %v5891 = vrsqrt.pop %v5859
        %v5892 = vrsqrt.pop %v5860
        %v5893 = vrsqrt.pop %v5861
        %v5894 = vrsqrt.pop %v5862
        %v5895 = vrsqrt.pop %v5863
        %v5896 = vrsqrt.pop %v5864
        %v5897 = vrsqrt.pop %v5865
        %v5898 = vrsqrt.pop %v5866
        %v5899 = vrsqrt.pop %v5867
        %v5900 = vrsqrt.pop %v5868
        %v5901 = vrsqrt.pop %v5869
        %v5902 = vrsqrt.pop %v5870
        %v5903 = vrsqrt.pop %v5871
        %v5904 = vrsqrt.pop %v5872
        %v5905 = vrsqrt.pop %v5873
        %v5906 = vrsqrt.pop %v5874
        %v5907 = vrsqrt.pop %v5875
        %v5908 = vrsqrt.pop %v5876
        %v5909 = vrsqrt.pop %v5877
        %v5910 = vrsqrt.pop %v5878
        %v5911 = vrsqrt.pop %v5879
        %v5912 = vrsqrt.pop %v5880
        %v5913 = vrsqrt.pop %v5881
        %v5914 = vrsqrt.pop %v5882
        %v5915 = vrsqrt.pop %v5883
        %v5916 = vrsqrt.pop %v5884
        %v5917 = vmul.f32 %v5597, %v5885
        %v5918 = vmul.f32 %v5598, %v5885
        %v5919 = vmul.f32 %v5599, %v5886
        %v5920 = vmul.f32 %v5600, %v5886
        %v5921 = vmul.f32 %v5601, %v5887
        %v5922 = vmul.f32 %v5602, %v5887
        %v5923 = vmul.f32 %v5603, %v5888
        %v5924 = vmul.f32 %v5604, %v5888
        %v5925 = vmul.f32 %v5605, %v5889
        %v5926 = vmul.f32 %v5606, %v5889
        %v5927 = vmul.f32 %v5607, %v5890
        %v5928 = vmul.f32 %v5608, %v5890
        %v5929 = vmul.f32 %v5609, %v5891
        %v5930 = vmul.f32 %v5610, %v5891
        %v5931 = vmul.f32 %v5611, %v5892
        %v5932 = vmul.f32 %v5612, %v5892
        %v5933 = vmul.f32 %v5613, %v5893
        %v5934 = vmul.f32 %v5614, %v5893
        %v5935 = vmul.f32 %v5615, %v5894
        %v5936 = vmul.f32 %v5616, %v5894
        %v5937 = vmul.f32 %v5617, %v5895
        %v5938 = vmul.f32 %v5618, %v5895
        %v5939 = vmul.f32 %v5619, %v5896
        %v5940 = vmul.f32 %v5620, %v5896
        %v5941 = vmul.f32 %v5621, %v5897
        %v5942 = vmul.f32 %v5622, %v5897
        %v5943 = vmul.f32 %v5623, %v5898
        %v5944 = vmul.f32 %v5624, %v5898
        %v5945 = vmul.f32 %v5625, %v5899
        %v5946 = vmul.f32 %v5626, %v5899
        %v5947 = vmul.f32 %v5627, %v5900
        %v5948 = vmul.f32 %v5628, %v5900
        %v5949 = vmul.f32 %v5629, %v5901
        %v5950 = vmul.f32 %v5630, %v5901
        %v5951 = vmul.f32 %v5631, %v5902
        %v5952 = vmul.f32 %v5632, %v5902
        %v5953 = vmul.f32 %v5633, %v5903
        %v5954 = vmul.f32 %v5634, %v5903
        %v5955 = vmul.f32 %v5635, %v5904
        %v5956 = vmul.f32 %v5636, %v5904
        %v5957 = vmul.f32 %v5637, %v5905
        %v5958 = vmul.f32 %v5638, %v5905
        %v5959 = vmul.f32 %v5639, %v5906
        %v5960 = vmul.f32 %v5640, %v5906
        %v5961 = vmul.f32 %v5641, %v5907
        %v5962 = vmul.f32 %v5642, %v5907
        %v5963 = vmul.f32 %v5643, %v5908
        %v5964 = vmul.f32 %v5644, %v5908
        %v5965 = vmul.f32 %v5645, %v5909
        %v5966 = vmul.f32 %v5646, %v5909
        %v5967 = vmul.f32 %v5647, %v5910
        %v5968 = vmul.f32 %v5648, %v5910
        %v5969 = vmul.f32 %v5649, %v5911
        %v5970 = vmul.f32 %v5650, %v5911
        %v5971 = vmul.f32 %v5651, %v5912
        %v5972 = vmul.f32 %v5652, %v5912
        %v5973 = vmul.f32 %v5653, %v5913
        %v5974 = vmul.f32 %v5654, %v5913
        %v5975 = vmul.f32 %v5655, %v5914
        %v5976 = vmul.f32 %v5656, %v5914
        %v5977 = vmul.f32 %v5657, %v5915
        %v5978 = vmul.f32 %v5658, %v5915
        %v5979 = vmul.f32 %v5659, %v5916
        %v5980 = vmul.f32 %v5660, %v5916
        %v5981 = vlaneseq
        %v5982 = vshrl.u32 %v5981, 7
        %v5983 = vsub.s32 1, %v5982
        %v5984 = vrot.slane %v371, %v5983
        %v5985 = vlaneseq
        %v5986 = vshrl.u32 %v5985, 7
        %v5987 = vsub.s32 1, %v5986
        %v5988 = vrot.slane %v372, %v5987
        %v5989 = vmul.f32 %v5917, %v5984
        %v5990 = vmul.f32 %v5918, %v5988
        %v5991 = vmul.f32 %v5919, %v5984
        %v5992 = vmul.f32 %v5920, %v5988
        %v5993 = vmul.f32 %v5921, %v5984
        %v5994 = vmul.f32 %v5922, %v5988
        %v5995 = vmul.f32 %v5923, %v5984
        %v5996 = vmul.f32 %v5924, %v5988
        %v5997 = vmul.f32 %v5925, %v5984
        %v5998 = vmul.f32 %v5926, %v5988
        %v5999 = vmul.f32 %v5927, %v5984
        %v6000 = vmul.f32 %v5928, %v5988
        %v6001 = vmul.f32 %v5929, %v5984
        %v6002 = vmul.f32 %v5930, %v5988
        %v6003 = vmul.f32 %v5931, %v5984
        %v6004 = vmul.f32 %v5932, %v5988
        %v6005 = vmul.f32 %v5933, %v5984
        %v6006 = vmul.f32 %v5934, %v5988
        %v6007 = vmul.f32 %v5935, %v5984
        %v6008 = vmul.f32 %v5936, %v5988
        %v6009 = vmul.f32 %v5937, %v5984
        %v6010 = vmul.f32 %v5938, %v5988
        %v6011 = vmul.f32 %v5939, %v5984
        %v6012 = vmul.f32 %v5940, %v5988
        %v6013 = vmul.f32 %v5941, %v5984
        %v6014 = vmul.f32 %v5942, %v5988
        %v6015 = vmul.f32 %v5943, %v5984
        %v6016 = vmul.f32 %v5944, %v5988
        %v6017 = vmul.f32 %v5945, %v5984
        %v6018 = vmul.f32 %v5946, %v5988
        %v6019 = vmul.f32 %v5947, %v5984
        %v6020 = vmul.f32 %v5948, %v5988
        %v6021 = vmul.f32 %v5949, %v5984
        %v6022 = vmul.f32 %v5950, %v5988
        %v6023 = vmul.f32 %v5951, %v5984
        %v6024 = vmul.f32 %v5952, %v5988
        %v6025 = vmul.f32 %v5953, %v5984
        %v6026 = vmul.f32 %v5954, %v5988
        %v6027 = vmul.f32 %v5955, %v5984
        %v6028 = vmul.f32 %v5956, %v5988
        %v6029 = vmul.f32 %v5957, %v5984
        %v6030 = vmul.f32 %v5958, %v5988
        %v6031 = vmul.f32 %v5959, %v5984
        %v6032 = vmul.f32 %v5960, %v5988
        %v6033 = vmul.f32 %v5961, %v5984
        %v6034 = vmul.f32 %v5962, %v5988
        %v6035 = vmul.f32 %v5963, %v5984
        %v6036 = vmul.f32 %v5964, %v5988
        %v6037 = vmul.f32 %v5965, %v5984
        %v6038 = vmul.f32 %v5966, %v5988
        %v6039 = vmul.f32 %v5967, %v5984
        %v6040 = vmul.f32 %v5968, %v5988
        %v6041 = vmul.f32 %v5969, %v5984
        %v6042 = vmul.f32 %v5970, %v5988
        %v6043 = vmul.f32 %v5971, %v5984
        %v6044 = vmul.f32 %v5972, %v5988
        %v6045 = vmul.f32 %v5973, %v5984
        %v6046 = vmul.f32 %v5974, %v5988
        %v6047 = vmul.f32 %v5975, %v5984
        %v6048 = vmul.f32 %v5976, %v5988
        %v6049 = vmul.f32 %v5977, %v5984
        %v6050 = vmul.f32 %v5978, %v5988
        %v6051 = vmul.f32 %v5979, %v5984
        %v6052 = vmul.f32 %v5980, %v5988
        %v6053 = vlaneseq
        %v6054 = vshrl.u32 %v6053, 7
        %v6055 = vsub.s32 2, %v6054
        %v6056 = vrot.slane %v371, %v6055
        %v6057 = vlaneseq
        %v6058 = vshrl.u32 %v6057, 7
        %v6059 = vsub.s32 2, %v6058
        %v6060 = vrot.slane %v372, %v6059
        %v6061 = vadd.f32 %v5989, %v6056
        %v6062 = vadd.f32 %v5990, %v6060
        %v6063 = vadd.f32 %v5991, %v6056
        %v6064 = vadd.f32 %v5992, %v6060
        %v6065 = vadd.f32 %v5993, %v6056
        %v6066 = vadd.f32 %v5994, %v6060
        %v6067 = vadd.f32 %v5995, %v6056
        %v6068 = vadd.f32 %v5996, %v6060
        %v6069 = vadd.f32 %v5997, %v6056
        %v6070 = vadd.f32 %v5998, %v6060
        %v6071 = vadd.f32 %v5999, %v6056
        %v6072 = vadd.f32 %v6000, %v6060
        %v6073 = vadd.f32 %v6001, %v6056
        %v6074 = vadd.f32 %v6002, %v6060
        %v6075 = vadd.f32 %v6003, %v6056
        %v6076 = vadd.f32 %v6004, %v6060
        %v6077 = vadd.f32 %v6005, %v6056
        %v6078 = vadd.f32 %v6006, %v6060
        %v6079 = vadd.f32 %v6007, %v6056
        %v6080 = vadd.f32 %v6008, %v6060
        %v6081 = vadd.f32 %v6009, %v6056
        %v6082 = vadd.f32 %v6010, %v6060
        %v6083 = vadd.f32 %v6011, %v6056
        %v6084 = vadd.f32 %v6012, %v6060
        %v6085 = vadd.f32 %v6013, %v6056
        %v6086 = vadd.f32 %v6014, %v6060
        %v6087 = vadd.f32 %v6015, %v6056
        %v6088 = vadd.f32 %v6016, %v6060
        %v6089 = vadd.f32 %v6017, %v6056
        %v6090 = vadd.f32 %v6018, %v6060
        %v6091 = vadd.f32 %v6019, %v6056
        %v6092 = vadd.f32 %v6020, %v6060
        %v6093 = vadd.f32 %v6021, %v6056
        %v6094 = vadd.f32 %v6022, %v6060
        %v6095 = vadd.f32 %v6023, %v6056
        %v6096 = vadd.f32 %v6024, %v6060
        %v6097 = vadd.f32 %v6025, %v6056
        %v6098 = vadd.f32 %v6026, %v6060
        %v6099 = vadd.f32 %v6027, %v6056
        %v6100 = vadd.f32 %v6028, %v6060
        %v6101 = vadd.f32 %v6029, %v6056
        %v6102 = vadd.f32 %v6030, %v6060
        %v6103 = vadd.f32 %v6031, %v6056
        %v6104 = vadd.f32 %v6032, %v6060
        %v6105 = vadd.f32 %v6033, %v6056
        %v6106 = vadd.f32 %v6034, %v6060
        %v6107 = vadd.f32 %v6035, %v6056
        %v6108 = vadd.f32 %v6036, %v6060
        %v6109 = vadd.f32 %v6037, %v6056
        %v6110 = vadd.f32 %v6038, %v6060
        %v6111 = vadd.f32 %v6039, %v6056
        %v6112 = vadd.f32 %v6040, %v6060
        %v6113 = vadd.f32 %v6041, %v6056
        %v6114 = vadd.f32 %v6042, %v6060
        %v6115 = vadd.f32 %v6043, %v6056
        %v6116 = vadd.f32 %v6044, %v6060
        %v6117 = vadd.f32 %v6045, %v6056
        %v6118 = vadd.f32 %v6046, %v6060
        %v6119 = vadd.f32 %v6047, %v6056
        %v6120 = vadd.f32 %v6048, %v6060
        %v6121 = vadd.f32 %v6049, %v6056
        %v6122 = vadd.f32 %v6050, %v6060
        %v6123 = vadd.f32 %v6051, %v6056
        %v6124 = vadd.f32 %v6052, %v6060
        %v6125 = vld [vmem:[#allocation8] sm:$0xff]
        %v6126 = vld [vmem:[#allocation8 + $0x8] sm:$0xff]
        %v6127 = vld [vmem:[#allocation8 + $0x10] sm:$0xff]
        %v6128 = vld [vmem:[#allocation8 + $0x18] sm:$0xff]
        %v6129 = vld [vmem:[#allocation8 + $0x20] sm:$0xff]
        %v6130 = vld [vmem:[#allocation8 + $0x28] sm:$0xff]
        %v6131 = vld [vmem:[#allocation8 + $0x30] sm:$0xff]
        %v6132 = vld [vmem:[#allocation8 + $0x38] sm:$0xff]
        %v6133 = vld [vmem:[#allocation8 + $0x40] sm:$0xff]
        %v6134 = vld [vmem:[#allocation8 + $0x48] sm:$0xff]
        %v6135 = vld [vmem:[#allocation8 + $0x50] sm:$0xff]
        %v6136 = vld [vmem:[#allocation8 + $0x58] sm:$0xff]
        %v6137 = vld [vmem:[#allocation8 + $0x60] sm:$0xff]
        %v6138 = vld [vmem:[#allocation8 + $0x68] sm:$0xff]
        %v6139 = vld [vmem:[#allocation8 + $0x70] sm:$0xff]
        %v6140 = vld [vmem:[#allocation8 + $0x78] sm:$0xff]
        %v6141 = vld [vmem:[#allocation8 + $0x80] sm:$0xff]
        %v6142 = vld [vmem:[#allocation8 + $0x88] sm:$0xff]
        %v6143 = vld [vmem:[#allocation8 + $0x90] sm:$0xff]
        %v6144 = vld [vmem:[#allocation8 + $0x98] sm:$0xff]
        %v6145 = vld [vmem:[#allocation8 + $0xa0] sm:$0xff]
        %v6146 = vld [vmem:[#allocation8 + $0xa8] sm:$0xff]
        %v6147 = vld [vmem:[#allocation8 + $0xb0] sm:$0xff]
        %v6148 = vld [vmem:[#allocation8 + $0xb8] sm:$0xff]
        %v6149 = vld [vmem:[#allocation8 + $0xc0] sm:$0xff]
        %v6150 = vld [vmem:[#allocation8 + $0xc8] sm:$0xff]
        %v6151 = vld [vmem:[#allocation8 + $0xd0] sm:$0xff]
        %v6152 = vld [vmem:[#allocation8 + $0xd8] sm:$0xff]
        %v6153 = vld [vmem:[#allocation8 + $0xe0] sm:$0xff]
        %v6154 = vld [vmem:[#allocation8 + $0xe8] sm:$0xff]
        %v6155 = vld [vmem:[#allocation8 + $0xf0] sm:$0xff]
        %v6156 = vld [vmem:[#allocation8 + $0xf8] sm:$0xff]
        %v6157 = vld [vmem:[#allocation8 + $0x100] sm:$0xff]
        %v6158 = vld [vmem:[#allocation8 + $0x108] sm:$0xff]
        %v6159 = vld [vmem:[#allocation8 + $0x110] sm:$0xff]
        %v6160 = vld [vmem:[#allocation8 + $0x118] sm:$0xff]
        %v6161 = vld [vmem:[#allocation8 + $0x120] sm:$0xff]
        %v6162 = vld [vmem:[#allocation8 + $0x128] sm:$0xff]
        %v6163 = vld [vmem:[#allocation8 + $0x130] sm:$0xff]
        %v6164 = vld [vmem:[#allocation8 + $0x138] sm:$0xff]
        %v6165 = vld [vmem:[#allocation8 + $0x140] sm:$0xff]
        %v6166 = vld [vmem:[#allocation8 + $0x148] sm:$0xff]
        %v6167 = vld [vmem:[#allocation8 + $0x150] sm:$0xff]
        %v6168 = vld [vmem:[#allocation8 + $0x158] sm:$0xff]
        %v6169 = vld [vmem:[#allocation8 + $0x160] sm:$0xff]
        %v6170 = vld [vmem:[#allocation8 + $0x168] sm:$0xff]
        %v6171 = vld [vmem:[#allocation8 + $0x170] sm:$0xff]
        %v6172 = vld [vmem:[#allocation8 + $0x178] sm:$0xff]
        %v6173 = vld [vmem:[#allocation8 + $0x180] sm:$0xff]
        %v6174 = vld [vmem:[#allocation8 + $0x188] sm:$0xff]
        %v6175 = vld [vmem:[#allocation8 + $0x190] sm:$0xff]
        %v6176 = vld [vmem:[#allocation8 + $0x198] sm:$0xff]
        %v6177 = vld [vmem:[#allocation8 + $0x1a0] sm:$0xff]
        %v6178 = vld [vmem:[#allocation8 + $0x1a8] sm:$0xff]
        %v6179 = vld [vmem:[#allocation8 + $0x1b0] sm:$0xff]
        %v6180 = vld [vmem:[#allocation8 + $0x1b8] sm:$0xff]
        %v6181 = vld [vmem:[#allocation8 + $0x1c0] sm:$0xff]
        %v6182 = vld [vmem:[#allocation8 + $0x1c8] sm:$0xff]
        %v6183 = vld [vmem:[#allocation8 + $0x1d0] sm:$0xff]
        %v6184 = vld [vmem:[#allocation8 + $0x1d8] sm:$0xff]
        %v6185 = vld [vmem:[#allocation8 + $0x1e0] sm:$0xff]
        %v6186 = vld [vmem:[#allocation8 + $0x1e8] sm:$0xff]
        %v6187 = vld [vmem:[#allocation8 + $0x1f0] sm:$0xff]
        %v6188 = vld [vmem:[#allocation8 + $0x1f8] sm:$0xff]
        %v6189 = vld [vmem:[#allocation8 + $0x200] sm:$0xff]
        %v6190 = vld [vmem:[#allocation8 + $0x208] sm:$0xff]
        %v6191 = vld [vmem:[#allocation8 + $0x210] sm:$0xff]
        %v6192 = vld [vmem:[#allocation8 + $0x218] sm:$0xff]
        %v6193 = vld [vmem:[#allocation8 + $0x220] sm:$0xff]
        %v6194 = vld [vmem:[#allocation8 + $0x228] sm:$0xff]
        %v6195 = vld [vmem:[#allocation8 + $0x230] sm:$0xff]
        %v6196 = vld [vmem:[#allocation8 + $0x238] sm:$0xff]
        %v6197 = vld [vmem:[#allocation8 + $0x240] sm:$0xff]
        %v6198 = vld [vmem:[#allocation8 + $0x248] sm:$0xff]
        %v6199 = vld [vmem:[#allocation8 + $0x250] sm:$0xff]
        %v6200 = vld [vmem:[#allocation8 + $0x258] sm:$0xff]
        %v6201 = vld [vmem:[#allocation8 + $0x260] sm:$0xff]
        %v6202 = vld [vmem:[#allocation8 + $0x268] sm:$0xff]
        %v6203 = vld [vmem:[#allocation8 + $0x270] sm:$0xff]
        %v6204 = vld [vmem:[#allocation8 + $0x278] sm:$0xff]
        %v6205 = vld [vmem:[#allocation8 + $0x280] sm:$0xff]
        %v6206 = vld [vmem:[#allocation8 + $0x288] sm:$0xff]
        %v6207 = vld [vmem:[#allocation8 + $0x290] sm:$0xff]
        %v6208 = vld [vmem:[#allocation8 + $0x298] sm:$0xff]
        %v6209 = vld [vmem:[#allocation8 + $0x2a0] sm:$0xff]
        %v6210 = vld [vmem:[#allocation8 + $0x2a8] sm:$0xff]
        %v6211 = vld [vmem:[#allocation8 + $0x2b0] sm:$0xff]
        %v6212 = vld [vmem:[#allocation8 + $0x2b8] sm:$0xff]
        %v6213 = vld [vmem:[#allocation8 + $0x2c0] sm:$0xff]
        %v6214 = vld [vmem:[#allocation8 + $0x2c8] sm:$0xff]
        %v6215 = vld [vmem:[#allocation8 + $0x2d0] sm:$0xff]
        %v6216 = vld [vmem:[#allocation8 + $0x2d8] sm:$0xff]
        %v6217 = vld [vmem:[#allocation8 + $0x2e0] sm:$0xff]
        %v6218 = vld [vmem:[#allocation8 + $0x2e8] sm:$0xff]
        %v6219 = vld [vmem:[#allocation8 + $0x2f0] sm:$0xff]
        %v6220 = vld [vmem:[#allocation8 + $0x2f8] sm:$0xff]
        %v6221 = vld [vmem:[#allocation8 + $0x300] sm:$0xff]
        %v6222 = vld [vmem:[#allocation8 + $0x308] sm:$0xff]
        %v6223 = vld [vmem:[#allocation8 + $0x310] sm:$0xff]
        %v6224 = vld [vmem:[#allocation8 + $0x318] sm:$0xff]
        %v6225 = vld [vmem:[#allocation8 + $0x320] sm:$0xff]
        %v6226 = vld [vmem:[#allocation8 + $0x328] sm:$0xff]
        %v6227 = vld [vmem:[#allocation8 + $0x330] sm:$0xff]
        %v6228 = vld [vmem:[#allocation8 + $0x338] sm:$0xff]
        %v6229 = vld [vmem:[#allocation8 + $0x340] sm:$0xff]
        %v6230 = vld [vmem:[#allocation8 + $0x348] sm:$0xff]
        %v6231 = vld [vmem:[#allocation8 + $0x350] sm:$0xff]
        %v6232 = vld [vmem:[#allocation8 + $0x358] sm:$0xff]
        %v6233 = vld [vmem:[#allocation8 + $0x360] sm:$0xff]
        %v6234 = vld [vmem:[#allocation8 + $0x368] sm:$0xff]
        %v6235 = vld [vmem:[#allocation8 + $0x370] sm:$0xff]
        %v6236 = vld [vmem:[#allocation8 + $0x378] sm:$0xff]
        %v6237 = vld [vmem:[#allocation8 + $0x380] sm:$0xff]
        %v6238 = vld [vmem:[#allocation8 + $0x388] sm:$0xff]
        %v6239 = vld [vmem:[#allocation8 + $0x390] sm:$0xff]
        %v6240 = vld [vmem:[#allocation8 + $0x398] sm:$0xff]
        %v6241 = vld [vmem:[#allocation8 + $0x3a0] sm:$0xff]
        %v6242 = vld [vmem:[#allocation8 + $0x3a8] sm:$0xff]
        %v6243 = vld [vmem:[#allocation8 + $0x3b0] sm:$0xff]
        %v6244 = vld [vmem:[#allocation8 + $0x3b8] sm:$0xff]
        %v6245 = vld [vmem:[#allocation8 + $0x3c0] sm:$0xff]
        %v6246 = vld [vmem:[#allocation8 + $0x3c8] sm:$0xff]
        %v6247 = vld [vmem:[#allocation8 + $0x3d0] sm:$0xff]
        %v6248 = vld [vmem:[#allocation8 + $0x3d8] sm:$0xff]
        %v6249 = vld [vmem:[#allocation8 + $0x3e0] sm:$0xff]
        %v6250 = vld [vmem:[#allocation8 + $0x3e8] sm:$0xff]
        %v6251 = vld [vmem:[#allocation8 + $0x3f0] sm:$0xff]
        %v6252 = vld [vmem:[#allocation8 + $0x3f8] sm:$0xff]
        %v6253 = vld [vmem:[#allocation8 + $0x400] sm:$0xff]
        %v6254 = vld [vmem:[#allocation8 + $0x408] sm:$0xff]
        %v6255 = vld [vmem:[#allocation8 + $0x410] sm:$0xff]
        %v6256 = vld [vmem:[#allocation8 + $0x418] sm:$0xff]
        %v6257 = vld [vmem:[#allocation8 + $0x420] sm:$0xff]
        %v6258 = vld [vmem:[#allocation8 + $0x428] sm:$0xff]
        %v6259 = vld [vmem:[#allocation8 + $0x430] sm:$0xff]
        %v6260 = vld [vmem:[#allocation8 + $0x438] sm:$0xff]
        %v6261 = vld [vmem:[#allocation8 + $0x440] sm:$0xff]
        %v6262 = vld [vmem:[#allocation8 + $0x448] sm:$0xff]
        %v6263 = vld [vmem:[#allocation8 + $0x450] sm:$0xff]
        %v6264 = vld [vmem:[#allocation8 + $0x458] sm:$0xff]
        %v6265 = vld [vmem:[#allocation8 + $0x460] sm:$0xff]
        %v6266 = vld [vmem:[#allocation8 + $0x468] sm:$0xff]
        %v6267 = vld [vmem:[#allocation8 + $0x470] sm:$0xff]
        %v6268 = vld [vmem:[#allocation8 + $0x478] sm:$0xff]
        %v6269 = vld [vmem:[#allocation8 + $0x480] sm:$0xff]
        %v6270 = vld [vmem:[#allocation8 + $0x488] sm:$0xff]
        %v6271 = vld [vmem:[#allocation8 + $0x490] sm:$0xff]
        %v6272 = vld [vmem:[#allocation8 + $0x498] sm:$0xff]
        %v6273 = vld [vmem:[#allocation8 + $0x4a0] sm:$0xff]
        %v6274 = vld [vmem:[#allocation8 + $0x4a8] sm:$0xff]
        %v6275 = vld [vmem:[#allocation8 + $0x4b0] sm:$0xff]
        %v6276 = vld [vmem:[#allocation8 + $0x4b8] sm:$0xff]
        %v6277 = vld [vmem:[#allocation8 + $0x4c0] sm:$0xff]
        %v6278 = vld [vmem:[#allocation8 + $0x4c8] sm:$0xff]
        %v6279 = vld [vmem:[#allocation8 + $0x4d0] sm:$0xff]
        %v6280 = vld [vmem:[#allocation8 + $0x4d8] sm:$0xff]
        %v6281 = vld [vmem:[#allocation8 + $0x4e0] sm:$0xff]
        %v6282 = vld [vmem:[#allocation8 + $0x4e8] sm:$0xff]
        %v6283 = vld [vmem:[#allocation8 + $0x4f0] sm:$0xff]
        %v6284 = vld [vmem:[#allocation8 + $0x4f8] sm:$0xff]
        %v6285 = vld [vmem:[#allocation8 + $0x500] sm:$0xff]
        %v6286 = vld [vmem:[#allocation8 + $0x508] sm:$0xff]
        %v6287 = vld [vmem:[#allocation8 + $0x510] sm:$0xff]
        %v6288 = vld [vmem:[#allocation8 + $0x518] sm:$0xff]
        %v6289 = vld [vmem:[#allocation8 + $0x520] sm:$0xff]
        %v6290 = vld [vmem:[#allocation8 + $0x528] sm:$0xff]
        %v6291 = vld [vmem:[#allocation8 + $0x530] sm:$0xff]
        %v6292 = vld [vmem:[#allocation8 + $0x538] sm:$0xff]
        %v6293 = vld [vmem:[#allocation8 + $0x540] sm:$0xff]
        %v6294 = vld [vmem:[#allocation8 + $0x548] sm:$0xff]
        %v6295 = vld [vmem:[#allocation8 + $0x550] sm:$0xff]
        %v6296 = vld [vmem:[#allocation8 + $0x558] sm:$0xff]
        %v6297 = vld [vmem:[#allocation8 + $0x560] sm:$0xff]
        %v6298 = vld [vmem:[#allocation8 + $0x568] sm:$0xff]
        %v6299 = vld [vmem:[#allocation8 + $0x570] sm:$0xff]
        %v6300 = vld [vmem:[#allocation8 + $0x578] sm:$0xff]
        %v6301 = vld [vmem:[#allocation8 + $0x580] sm:$0xff]
        %v6302 = vld [vmem:[#allocation8 + $0x588] sm:$0xff]
        %v6303 = vld [vmem:[#allocation8 + $0x590] sm:$0xff]
        %v6304 = vld [vmem:[#allocation8 + $0x598] sm:$0xff]
        %v6305 = vld [vmem:[#allocation8 + $0x5a0] sm:$0xff]
        %v6306 = vld [vmem:[#allocation8 + $0x5a8] sm:$0xff]
        %v6307 = vld [vmem:[#allocation8 + $0x5b0] sm:$0xff]
        %v6308 = vld [vmem:[#allocation8 + $0x5b8] sm:$0xff]
        %v6309 = vld [vmem:[#allocation8 + $0x5c0] sm:$0xff]
        %v6310 = vld [vmem:[#allocation8 + $0x5c8] sm:$0xff]
        %v6311 = vld [vmem:[#allocation8 + $0x5d0] sm:$0xff]
        %v6312 = vld [vmem:[#allocation8 + $0x5d8] sm:$0xff]
        %v6313 = vld [vmem:[#allocation8 + $0x5e0] sm:$0xff]
        %v6314 = vld [vmem:[#allocation8 + $0x5e8] sm:$0xff]
        %v6315 = vld [vmem:[#allocation8 + $0x5f0] sm:$0xff]
        %v6316 = vld [vmem:[#allocation8 + $0x5f8] sm:$0xff]
        %v6317 = vld [vmem:[#allocation8 + $0x600] sm:$0xff]
        %v6318 = vld [vmem:[#allocation8 + $0x608] sm:$0xff]
        %v6319 = vld [vmem:[#allocation8 + $0x610] sm:$0xff]
        %v6320 = vld [vmem:[#allocation8 + $0x618] sm:$0xff]
        %v6321 = vld [vmem:[#allocation8 + $0x620] sm:$0xff]
        %v6322 = vld [vmem:[#allocation8 + $0x628] sm:$0xff]
        %v6323 = vld [vmem:[#allocation8 + $0x630] sm:$0xff]
        %v6324 = vld [vmem:[#allocation8 + $0x638] sm:$0xff]
        %v6325 = vld [vmem:[#allocation8 + $0x640] sm:$0xff]
        %v6326 = vld [vmem:[#allocation8 + $0x648] sm:$0xff]
        %v6327 = vld [vmem:[#allocation8 + $0x650] sm:$0xff]
        %v6328 = vld [vmem:[#allocation8 + $0x658] sm:$0xff]
        %v6329 = vld [vmem:[#allocation8 + $0x660] sm:$0xff]
        %v6330 = vld [vmem:[#allocation8 + $0x668] sm:$0xff]
        %v6331 = vld [vmem:[#allocation8 + $0x670] sm:$0xff]
        %v6332 = vld [vmem:[#allocation8 + $0x678] sm:$0xff]
        %v6333 = vld [vmem:[#allocation8 + $0x680] sm:$0xff]
        %v6334 = vld [vmem:[#allocation8 + $0x688] sm:$0xff]
        %v6335 = vld [vmem:[#allocation8 + $0x690] sm:$0xff]
        %v6336 = vld [vmem:[#allocation8 + $0x698] sm:$0xff]
        %v6337 = vld [vmem:[#allocation8 + $0x6a0] sm:$0xff]
        %v6338 = vld [vmem:[#allocation8 + $0x6a8] sm:$0xff]
        %v6339 = vld [vmem:[#allocation8 + $0x6b0] sm:$0xff]
        %v6340 = vld [vmem:[#allocation8 + $0x6b8] sm:$0xff]
        %v6341 = vld [vmem:[#allocation8 + $0x6c0] sm:$0xff]
        %v6342 = vld [vmem:[#allocation8 + $0x6c8] sm:$0xff]
        %v6343 = vld [vmem:[#allocation8 + $0x6d0] sm:$0xff]
        %v6344 = vld [vmem:[#allocation8 + $0x6d8] sm:$0xff]
        %v6345 = vld [vmem:[#allocation8 + $0x6e0] sm:$0xff]
        %v6346 = vld [vmem:[#allocation8 + $0x6e8] sm:$0xff]
        %v6347 = vld [vmem:[#allocation8 + $0x6f0] sm:$0xff]
        %v6348 = vld [vmem:[#allocation8 + $0x6f8] sm:$0xff]
        %v6349 = vld [vmem:[#allocation8 + $0x700] sm:$0xff]
        %v6350 = vld [vmem:[#allocation8 + $0x708] sm:$0xff]
        %v6351 = vld [vmem:[#allocation8 + $0x710] sm:$0xff]
        %v6352 = vld [vmem:[#allocation8 + $0x718] sm:$0xff]
        %v6353 = vld [vmem:[#allocation8 + $0x720] sm:$0xff]
        %v6354 = vld [vmem:[#allocation8 + $0x728] sm:$0xff]
        %v6355 = vld [vmem:[#allocation8 + $0x730] sm:$0xff]
        %v6356 = vld [vmem:[#allocation8 + $0x738] sm:$0xff]
        %v6357 = vld [vmem:[#allocation8 + $0x740] sm:$0xff]
        %v6358 = vld [vmem:[#allocation8 + $0x748] sm:$0xff]
        %v6359 = vld [vmem:[#allocation8 + $0x750] sm:$0xff]
        %v6360 = vld [vmem:[#allocation8 + $0x758] sm:$0xff]
        %v6361 = vld [vmem:[#allocation8 + $0x760] sm:$0xff]
        %v6362 = vld [vmem:[#allocation8 + $0x768] sm:$0xff]
        %v6363 = vld [vmem:[#allocation8 + $0x770] sm:$0xff]
        %v6364 = vld [vmem:[#allocation8 + $0x778] sm:$0xff]
        %v6365 = vld [vmem:[#allocation8 + $0x780] sm:$0xff]
        %v6366 = vld [vmem:[#allocation8 + $0x788] sm:$0xff]
        %v6367 = vld [vmem:[#allocation8 + $0x790] sm:$0xff]
        %v6368 = vld [vmem:[#allocation8 + $0x798] sm:$0xff]
        %v6369 = vld [vmem:[#allocation8 + $0x7a0] sm:$0xff]
        %v6370 = vld [vmem:[#allocation8 + $0x7a8] sm:$0xff]
        %v6371 = vld [vmem:[#allocation8 + $0x7b0] sm:$0xff]
        %v6372 = vld [vmem:[#allocation8 + $0x7b8] sm:$0xff]
        %v6373 = vld [vmem:[#allocation8 + $0x7c0] sm:$0xff]
        %v6374 = vld [vmem:[#allocation8 + $0x7c8] sm:$0xff]
        %v6375 = vld [vmem:[#allocation8 + $0x7d0] sm:$0xff]
        %v6376 = vld [vmem:[#allocation8 + $0x7d8] sm:$0xff]
        %v6377 = vld [vmem:[#allocation8 + $0x7e0] sm:$0xff]
        %v6378 = vld [vmem:[#allocation8 + $0x7e8] sm:$0xff]
        %v6379 = vld [vmem:[#allocation8 + $0x7f0] sm:$0xff]
        %v6380 = vld [vmem:[#allocation8 + $0x7f8] sm:$0xff]
        %v6381 = vlaneseq
        %v6382 = vshrl.u32 %v6381, 7
        %v6383 = vsub.s32 1, %v6382
        %v6384 = vrot.slane %v373, %v6383
        %v6385 = vlaneseq
        %v6386 = vshrl.u32 %v6385, 7
        %v6387 = vsub.s32 3, %v6386
        %v6388 = vrot.slane %v373, %v6387
        %v6389 = vlaneseq
        %v6390 = vshrl.u32 %v6389, 7
        %v6391 = vsub.s32 5, %v6390
        %v6392 = vrot.slane %v373, %v6391
        %v6393 = vlaneseq
        %v6394 = vshrl.u32 %v6393, 7
        %v6395 = vsub.s32 7, %v6394
        %v6396 = vrot.slane %v373, %v6395
        %v6397 = vlaneseq
        %v6398 = vshrl.u32 %v6397, 7
        %v6399 = vsub.s32 1, %v6398
        %v6400 = vrot.slane %v374, %v6399
        %v6401 = vlaneseq
        %v6402 = vshrl.u32 %v6401, 7
        %v6403 = vsub.s32 3, %v6402
        %v6404 = vrot.slane %v374, %v6403
        %v6405 = vlaneseq
        %v6406 = vshrl.u32 %v6405, 7
        %v6407 = vsub.s32 5, %v6406
        %v6408 = vrot.slane %v374, %v6407
        %v6409 = vlaneseq
        %v6410 = vshrl.u32 %v6409, 7
        %v6411 = vsub.s32 7, %v6410
        %v6412 = vrot.slane %v374, %v6411
        %v6421 = vlaneseq
        %v6422 = vshrl.u32 %v6421, 7
        %v6423 = vsub.s32 1, %v6422
        %v6424 = vrot.slane %v6384, %v6423
        %v6425 = vlaneseq
        %v6426 = vshrl.u32 %v6425, 7
        %v6427 = vsub.s32 1, %v6426
        %v6428 = vrot.slane %v6388, %v6427
        %v6429 = vlaneseq
        %v6430 = vshrl.u32 %v6429, 7
        %v6431 = vsub.s32 1, %v6430
        %v6432 = vrot.slane %v6392, %v6431
        %v6433 = vlaneseq
        %v6434 = vshrl.u32 %v6433, 7
        %v6435 = vsub.s32 1, %v6434
        %v6436 = vrot.slane %v6396, %v6435
        %v6437 = vlaneseq
        %v6438 = vshrl.u32 %v6437, 7
        %v6439 = vsub.s32 1, %v6438
        %v6440 = vrot.slane %v6400, %v6439
        %v6441 = vlaneseq
        %v6442 = vshrl.u32 %v6441, 7
        %v6443 = vsub.s32 1, %v6442
        %v6444 = vrot.slane %v6404, %v6443
        %v6445 = vlaneseq
        %v6446 = vshrl.u32 %v6445, 7
        %v6447 = vsub.s32 1, %v6446
        %v6448 = vrot.slane %v6408, %v6447
        %v6449 = vlaneseq
        %v6450 = vshrl.u32 %v6449, 7
        %v6451 = vsub.s32 1, %v6450
        %v6452 = vrot.slane %v6412, %v6451
        %6453 = vmatprep.subr.mxu0 %v6126
        %6454 = vmatpush1.msra.mxu0 %v6125
        %6455 = vmatprep.subr.mxu0 %v6134
        %6456 = vmatpush1.msra.mxu0 %v6133
        %6457 = vmatprep.subr.mxu0 %v6142
        %6458 = vmatpush1.msra.mxu0 %v6141
        %6459 = vmatprep.subr.mxu0 %v6150
        %6460 = vmatpush1.msra.mxu0 %v6149
        %6461 = vmatprep.subr.mxu0 %v6158
        %6462 = vmatpush1.msra.mxu0 %v6157
        %6463 = vmatprep.subr.mxu0 %v6166
        %6464 = vmatpush1.msra.mxu0 %v6165
        %6465 = vmatprep.subr.mxu0 %v6174
        %6466 = vmatpush1.msra.mxu0 %v6173
        %6467 = vmatprep.subr.mxu0 %v6182
        %6468 = vmatpush1.msra.mxu0 %v6181
        %6469 = vmatprep.subr.mxu0 %v6190
        %6470 = vmatpush1.msra.mxu0 %v6189
        %6471 = vmatprep.subr.mxu0 %v6198
        %6472 = vmatpush1.msra.mxu0 %v6197
        %6473 = vmatprep.subr.mxu0 %v6206
        %6474 = vmatpush1.msra.mxu0 %v6205
        %6475 = vmatprep.subr.mxu0 %v6214
        %6476 = vmatpush1.msra.mxu0 %v6213
        %6477 = vmatprep.subr.mxu0 %v6222
        %6478 = vmatpush1.msra.mxu0 %v6221
        %6479 = vmatprep.subr.mxu0 %v6230
        %6480 = vmatpush1.msra.mxu0 %v6229
        %6481 = vmatprep.subr.mxu0 %v6238
        %6482 = vmatpush1.msra.mxu0 %v6237
        %6483 = vmatprep.subr.mxu0 %v6246
        %6484 = vmatpush1.msra.mxu0 %v6245
        %6485 = vmatprep.subr.mxu0 %v6254
        %6486 = vmatpush1.msra.mxu0 %v6253
        %6487 = vmatprep.subr.mxu0 %v6262
        %6488 = vmatpush1.msra.mxu0 %v6261
        %6489 = vmatprep.subr.mxu0 %v6270
        %6490 = vmatpush1.msra.mxu0 %v6269
        %6491 = vmatprep.subr.mxu0 %v6278
        %6492 = vmatpush1.msra.mxu0 %v6277
        %6493 = vmatprep.subr.mxu0 %v6286
        %6494 = vmatpush1.msra.mxu0 %v6285
        %6495 = vmatprep.subr.mxu0 %v6294
        %6496 = vmatpush1.msra.mxu0 %v6293
        %6497 = vmatprep.subr.mxu0 %v6302
        %6498 = vmatpush1.msra.mxu0 %v6301
        %6499 = vmatprep.subr.mxu0 %v6310
        %6500 = vmatpush1.msra.mxu0 %v6309
        %6501 = vmatprep.subr.mxu0 %v6318
        %6502 = vmatpush1.msra.mxu0 %v6317
        %6503 = vmatprep.subr.mxu0 %v6326
        %6504 = vmatpush1.msra.mxu0 %v6325
        %6505 = vmatprep.subr.mxu0 %v6334
        %6506 = vmatpush1.msra.mxu0 %v6333
        %6507 = vmatprep.subr.mxu0 %v6342
        %6508 = vmatpush1.msra.mxu0 %v6341
        %6509 = vmatprep.subr.mxu0 %v6350
        %6510 = vmatpush1.msra.mxu0 %v6349
        %6511 = vmatprep.subr.mxu0 %v6358
        %6512 = vmatpush1.msra.mxu0 %v6357
        %6513 = vmatprep.subr.mxu0 %v6366
        %6514 = vmatpush1.msra.mxu0 %v6365
        %6515 = vmatprep.subr.mxu0 %v6374
        %6516 = vmatpush1.msra.mxu0 %v6373
        %6517 = vmatprep.mubr.f32.mxu0 %v6062
        %6518 = vmatmul.mubr.f32.gmra.mrb[0].mxu0 %v6061
        %v6519 = vpop.f32.mrb[0].mxu0
        %v6520 = vadd.f32 %v6424, %v6519
        %v6521 = vpop.f32.mrb[0].mxu0
        %v6522 = vadd.f32 %v6428, %v6521
        %6523 = vmatprep.mubr.f32.mxu0 %v6064
        %6524 = vmatmul.mubr.f32.gmra.mrb[0].mxu0 %v6063
        %v6525 = vpop.f32.mrb[0].mxu0
        %v6526 = vadd.f32 %v6424, %v6525
        %v6527 = vpop.f32.mrb[0].mxu0
        %v6528 = vadd.f32 %v6428, %v6527
        %6529 = vmatprep.mubr.f32.mxu0 %v6066
        %6530 = vmatmul.mubr.f32.gmra.mrb[0].mxu0 %v6065
        %v6531 = vpop.f32.mrb[0].mxu0
        %v6532 = vadd.f32 %v6424, %v6531
        %v6533 = vpop.f32.mrb[0].mxu0
        %v6534 = vadd.f32 %v6428, %v6533
        %6535 = vmatprep.mubr.f32.mxu0 %v6068
        %6536 = vmatmul.mubr.f32.gmra.mrb[0].mxu0 %v6067
        %v6537 = vpop.f32.mrb[0].mxu0
        %v6538 = vadd.f32 %v6424, %v6537
        %v6539 = vpop.f32.mrb[0].mxu0
        %v6540 = vadd.f32 %v6428, %v6539
        %6541 = vmatprep.mubr.f32.mxu0 %v6070
        %6542 = vmatmul.mubr.f32.gmra.mrb[0].mxu0 %v6069
        %v6543 = vpop.f32.mrb[0].mxu0
        %v6544 = vadd.f32 %v6424, %v6543
        %v6545 = vpop.f32.mrb[0].mxu0
        %v6546 = vadd.f32 %v6428, %v6545
        %6547 = vmatprep.mubr.f32.mxu0 %v6072
        %6548 = vmatmul.mubr.f32.gmra.mrb[0].mxu0 %v6071
        %v6549 = vpop.f32.mrb[0].mxu0
        %v6550 = vadd.f32 %v6424, %v6549
        %v6551 = vpop.f32.mrb[0].mxu0
        %v6552 = vadd.f32 %v6428, %v6551
        %6553 = vmatprep.mubr.f32.mxu0 %v6074
        %6554 = vmatmul.mubr.f32.gmra.mrb[0].mxu0 %v6073
        %v6555 = vpop.f32.mrb[0].mxu0
        %v6556 = vadd.f32 %v6424, %v6555
        %v6557 = vpop.f32.mrb[0].mxu0
        %v6558 = vadd.f32 %v6428, %v6557
        %6559 = vmatprep.mubr.f32.mxu0 %v6076
        %6560 = vmatmul.mubr.f32.gmra.mrb[0].mxu0 %v6075
        %v6561 = vpop.f32.mrb[0].mxu0
        %v6562 = vadd.f32 %v6424, %v6561
        %v6563 = vpop.f32.mrb[0].mxu0
        %v6564 = vadd.f32 %v6428, %v6563
        %6565 = vmatprep.mubr.f32.mxu0 %v6078
        %6566 = vmatmul.mubr.f32.gmra.mrb[0].mxu0 %v6077
        %v6567 = vpop.f32.mrb[0].mxu0
        %v6568 = vadd.f32 %v6424, %v6567
        %v6569 = vpop.f32.mrb[0].mxu0
        %v6570 = vadd.f32 %v6428, %v6569
        %6571 = vmatprep.mubr.f32.mxu0 %v6080
        %6572 = vmatmul.mubr.f32.gmra.mrb[0].mxu0 %v6079
        %v6573 = vpop.f32.mrb[0].mxu0
        %v6574 = vadd.f32 %v6424, %v6573
        %v6575 = vpop.f32.mrb[0].mxu0
        %v6576 = vadd.f32 %v6428, %v6575
        %6577 = vmatprep.mubr.f32.mxu0 %v6082
        %6578 = vmatmul.mubr.f32.gmra.mrb[0].mxu0 %v6081
        %v6579 = vpop.f32.mrb[0].mxu0
        %v6580 = vadd.f32 %v6424, %v6579
        %v6581 = vpop.f32.mrb[0].mxu0
        %v6582 = vadd.f32 %v6428, %v6581
        %6583 = vmatprep.mubr.f32.mxu0 %v6084
        %6584 = vmatmul.mubr.f32.gmra.mrb[0].mxu0 %v6083
        %v6585 = vpop.f32.mrb[0].mxu0
        %v6586 = vadd.f32 %v6424, %v6585
        %v6587 = vpop.f32.mrb[0].mxu0
        %v6588 = vadd.f32 %v6428, %v6587
        %6589 = vmatprep.mubr.f32.mxu0 %v6086
        %6590 = vmatmul.mubr.f32.gmra.mrb[0].mxu0 %v6085
        %v6591 = vpop.f32.mrb[0].mxu0
        %v6592 = vadd.f32 %v6424, %v6591
        %v6593 = vpop.f32.mrb[0].mxu0
        %v6594 = vadd.f32 %v6428, %v6593
        %6595 = vmatprep.mubr.f32.mxu0 %v6088
        %6596 = vmatmul.mubr.f32.gmra.mrb[0].mxu0 %v6087
        %v6597 = vpop.f32.mrb[0].mxu0
        %v6598 = vadd.f32 %v6424, %v6597
        %v6599 = vpop.f32.mrb[0].mxu0
        %v6600 = vadd.f32 %v6428, %v6599
        %6601 = vmatprep.mubr.f32.mxu0 %v6090
        %6602 = vmatmul.mubr.f32.gmra.mrb[0].mxu0 %v6089
        %v6603 = vpop.f32.mrb[0].mxu0
        %v6604 = vadd.f32 %v6424, %v6603
        %v6605 = vpop.f32.mrb[0].mxu0
        %v6606 = vadd.f32 %v6428, %v6605
        %6607 = vmatprep.mubr.f32.mxu0 %v6092
        %6608 = vmatmul.mubr.f32.gmra.mrb[0].mxu0 %v6091
        %v6609 = vpop.f32.mrb[0].mxu0
        %v6610 = vadd.f32 %v6424, %v6609
        %v6611 = vpop.f32.mrb[0].mxu0
        %v6612 = vadd.f32 %v6428, %v6611
        %6613 = vmatprep.mubr.f32.mxu0 %v6094
        %6614 = vmatmul.mubr.f32.gmra.mrb[0].mxu0 %v6093
        %v6615 = vpop.f32.mrb[0].mxu0
        %v6616 = vadd.f32 %v6424, %v6615
        %v6617 = vpop.f32.mrb[0].mxu0
        %v6618 = vadd.f32 %v6428, %v6617
        %6619 = vmatprep.mubr.f32.mxu0 %v6096
        %6620 = vmatmul.mubr.f32.gmra.mrb[0].mxu0 %v6095
        %v6621 = vpop.f32.mrb[0].mxu0
        %v6622 = vadd.f32 %v6424, %v6621
        %v6623 = vpop.f32.mrb[0].mxu0
        %v6624 = vadd.f32 %v6428, %v6623
        %6625 = vmatprep.mubr.f32.mxu0 %v6098
        %6626 = vmatmul.mubr.f32.gmra.mrb[0].mxu0 %v6097
        %v6627 = vpop.f32.mrb[0].mxu0
        %v6628 = vadd.f32 %v6424, %v6627
        %v6629 = vpop.f32.mrb[0].mxu0
        %v6630 = vadd.f32 %v6428, %v6629
        %6631 = vmatprep.mubr.f32.mxu0 %v6100
        %6632 = vmatmul.mubr.f32.gmra.mrb[0].mxu0 %v6099
        %v6633 = vpop.f32.mrb[0].mxu0
        %v6634 = vadd.f32 %v6424, %v6633
        %v6635 = vpop.f32.mrb[0].mxu0
        %v6636 = vadd.f32 %v6428, %v6635
        %6637 = vmatprep.mubr.f32.mxu0 %v6102
        %6638 = vmatmul.mubr.f32.gmra.mrb[0].mxu0 %v6101
        %v6639 = vpop.f32.mrb[0].mxu0
        %v6640 = vadd.f32 %v6424, %v6639
        %v6641 = vpop.f32.mrb[0].mxu0
        %v6642 = vadd.f32 %v6428, %v6641
        %6643 = vmatprep.mubr.f32.mxu0 %v6104
        %6644 = vmatmul.mubr.f32.gmra.mrb[0].mxu0 %v6103
        %v6645 = vpop.f32.mrb[0].mxu0
        %v6646 = vadd.f32 %v6424, %v6645
        %v6647 = vpop.f32.mrb[0].mxu0
        %v6648 = vadd.f32 %v6428, %v6647
        %6649 = vmatprep.mubr.f32.mxu0 %v6106
        %6650 = vmatmul.mubr.f32.gmra.mrb[0].mxu0 %v6105
        %v6651 = vpop.f32.mrb[0].mxu0
        %v6652 = vadd.f32 %v6424, %v6651
        %v6653 = vpop.f32.mrb[0].mxu0
        %v6654 = vadd.f32 %v6428, %v6653
        %6655 = vmatprep.mubr.f32.mxu0 %v6108
        %6656 = vmatmul.mubr.f32.gmra.mrb[0].mxu0 %v6107
        %v6657 = vpop.f32.mrb[0].mxu0
        %v6658 = vadd.f32 %v6424, %v6657
        %v6659 = vpop.f32.mrb[0].mxu0
        %v6660 = vadd.f32 %v6428, %v6659
        %6661 = vmatprep.mubr.f32.mxu0 %v6110
        %6662 = vmatmul.mubr.f32.gmra.mrb[0].mxu0 %v6109
        %v6663 = vpop.f32.mrb[0].mxu0
        %v6664 = vadd.f32 %v6424, %v6663
        %v6665 = vpop.f32.mrb[0].mxu0
        %v6666 = vadd.f32 %v6428, %v6665
        %6667 = vmatprep.mubr.f32.mxu0 %v6112
        %6668 = vmatmul.mubr.f32.gmra.mrb[0].mxu0 %v6111
        %v6669 = vpop.f32.mrb[0].mxu0
        %v6670 = vadd.f32 %v6424, %v6669
        %v6671 = vpop.f32.mrb[0].mxu0
        %v6672 = vadd.f32 %v6428, %v6671
        %6673 = vmatprep.mubr.f32.mxu0 %v6114
        %6674 = vmatmul.mubr.f32.gmra.mrb[0].mxu0 %v6113
        %v6675 = vpop.f32.mrb[0].mxu0
        %v6676 = vadd.f32 %v6424, %v6675
        %v6677 = vpop.f32.mrb[0].mxu0
        %v6678 = vadd.f32 %v6428, %v6677
        %6679 = vmatprep.mubr.f32.mxu0 %v6116
        %6680 = vmatmul.mubr.f32.gmra.mrb[0].mxu0 %v6115
        %v6681 = vpop.f32.mrb[0].mxu0
        %v6682 = vadd.f32 %v6424, %v6681
        %v6683 = vpop.f32.mrb[0].mxu0
        %v6684 = vadd.f32 %v6428, %v6683
        %6685 = vmatprep.mubr.f32.mxu0 %v6118
        %6686 = vmatmul.mubr.f32.gmra.mrb[0].mxu0 %v6117
        %v6687 = vpop.f32.mrb[0].mxu0
        %v6688 = vadd.f32 %v6424, %v6687
        %v6689 = vpop.f32.mrb[0].mxu0
        %v6690 = vadd.f32 %v6428, %v6689
        %6691 = vmatprep.mubr.f32.mxu0 %v6120
        %6692 = vmatmul.mubr.f32.gmra.mrb[0].mxu0 %v6119
        %v6693 = vpop.f32.mrb[0].mxu0
        %v6694 = vadd.f32 %v6424, %v6693
        %v6695 = vpop.f32.mrb[0].mxu0
        %v6696 = vadd.f32 %v6428, %v6695
        %6697 = vmatprep.mubr.f32.mxu0 %v6122
        %6698 = vmatmul.mubr.f32.gmra.mrb[0].mxu0 %v6121
        %v6699 = vpop.f32.mrb[0].mxu0
        %v6700 = vadd.f32 %v6424, %v6699
        %v6701 = vpop.f32.mrb[0].mxu0
        %v6702 = vadd.f32 %v6428, %v6701
        %6703 = vmatprep.mubr.f32.mxu0 %v6124
        %6704 = vmatmul.mubr.f32.gmra.mrb[0].mxu0 %v6123
        %v6705 = vpop.f32.mrb[0].mxu0
        %v6706 = vadd.f32 %v6424, %v6705
        %v6707 = vpop.f32.mrb[0].mxu0
        %v6708 = vadd.f32 %v6428, %v6707
        %6709 = vdwg.mxu0
        %6710 = vmatprep.subr.mxu0 %v6128
        %6711 = vmatpush1.msra.mxu0 %v6127
        %6712 = vmatprep.subr.mxu0 %v6136
        %6713 = vmatpush1.msra.mxu0 %v6135
        %6714 = vmatprep.subr.mxu0 %v6144
        %6715 = vmatpush1.msra.mxu0 %v6143
        %6716 = vmatprep.subr.mxu0 %v6152
        %6717 = vmatpush1.msra.mxu0 %v6151
        %6718 = vmatprep.subr.mxu0 %v6160
        %6719 = vmatpush1.msra.mxu0 %v6159
        %6720 = vmatprep.subr.mxu0 %v6168
        %6721 = vmatpush1.msra.mxu0 %v6167
        %6722 = vmatprep.subr.mxu0 %v6176
        %6723 = vmatpush1.msra.mxu0 %v6175
        %6724 = vmatprep.subr.mxu0 %v6184
        %6725 = vmatpush1.msra.mxu0 %v6183
        %6726 = vmatprep.subr.mxu0 %v6192
        %6727 = vmatpush1.msra.mxu0 %v6191
        %6728 = vmatprep.subr.mxu0 %v6200
        %6729 = vmatpush1.msra.mxu0 %v6199
        %6730 = vmatprep.subr.mxu0 %v6208
        %6731 = vmatpush1.msra.mxu0 %v6207
        %6732 = vmatprep.subr.mxu0 %v6216
        %6733 = vmatpush1.msra.mxu0 %v6215
        %6734 = vmatprep.subr.mxu0 %v6224
        %6735 = vmatpush1.msra.mxu0 %v6223
        %6736 = vmatprep.subr.mxu0 %v6232
        %6737 = vmatpush1.msra.mxu0 %v6231
        %6738 = vmatprep.subr.mxu0 %v6240
        %6739 = vmatpush1.msra.mxu0 %v6239
        %6740 = vmatprep.subr.mxu0 %v6248
        %6741 = vmatpush1.msra.mxu0 %v6247
        %6742 = vmatprep.subr.mxu0 %v6256
        %6743 = vmatpush1.msra.mxu0 %v6255
        %6744 = vmatprep.subr.mxu0 %v6264
        %6745 = vmatpush1.msra.mxu0 %v6263
        %6746 = vmatprep.subr.mxu0 %v6272
        %6747 = vmatpush1.msra.mxu0 %v6271
        %6748 = vmatprep.subr.mxu0 %v6280
        %6749 = vmatpush1.msra.mxu0 %v6279
        %6750 = vmatprep.subr.mxu0 %v6288
        %6751 = vmatpush1.msra.mxu0 %v6287
        %6752 = vmatprep.subr.mxu0 %v6296
        %6753 = vmatpush1.msra.mxu0 %v6295
        %6754 = vmatprep.subr.mxu0 %v6304
        %6755 = vmatpush1.msra.mxu0 %v6303
        %6756 = vmatprep.subr.mxu0 %v6312
        %6757 = vmatpush1.msra.mxu0 %v6311
        %6758 = vmatprep.subr.mxu0 %v6320
        %6759 = vmatpush1.msra.mxu0 %v6319
        %6760 = vmatprep.subr.mxu0 %v6328
        %6761 = vmatpush1.msra.mxu0 %v6327
        %6762 = vmatprep.subr.mxu0 %v6336
        %6763 = vmatpush1.msra.mxu0 %v6335
        %6764 = vmatprep.subr.mxu0 %v6344
        %6765 = vmatpush1.msra.mxu0 %v6343
        %6766 = vmatprep.subr.mxu0 %v6352
        %6767 = vmatpush1.msra.mxu0 %v6351
        %6768 = vmatprep.subr.mxu0 %v6360
        %6769 = vmatpush1.msra.mxu0 %v6359
        %6770 = vmatprep.subr.mxu0 %v6368
        %6771 = vmatpush1.msra.mxu0 %v6367
        %6772 = vmatprep.subr.mxu0 %v6376
        %6773 = vmatpush1.msra.mxu0 %v6375
        %6774 = vmatprep.mubr.f32.mxu0 %v6062
        %6775 = vmatmul.mubr.f32.gmra.mrb[0].mxu0 %v6061
        %v6776 = vpop.f32.mrb[0].mxu0
        %v6777 = vadd.f32 %v6432, %v6776
        %v6778 = vpop.f32.mrb[0].mxu0
        %v6779 = vadd.f32 %v6436, %v6778
        %6780 = vmatprep.mubr.f32.mxu0 %v6064
        %6781 = vmatmul.mubr.f32.gmra.mrb[0].mxu0 %v6063
        %v6782 = vpop.f32.mrb[0].mxu0
        %v6783 = vadd.f32 %v6432, %v6782
        %v6784 = vpop.f32.mrb[0].mxu0
        %v6785 = vadd.f32 %v6436, %v6784
        %6786 = vmatprep.mubr.f32.mxu0 %v6066
        %6787 = vmatmul.mubr.f32.gmra.mrb[0].mxu0 %v6065
        %v6788 = vpop.f32.mrb[0].mxu0
        %v6789 = vadd.f32 %v6432, %v6788
        %v6790 = vpop.f32.mrb[0].mxu0
        %v6791 = vadd.f32 %v6436, %v6790
        %6792 = vmatprep.mubr.f32.mxu0 %v6068
        %6793 = vmatmul.mubr.f32.gmra.mrb[0].mxu0 %v6067
        %v6794 = vpop.f32.mrb[0].mxu0
        %v6795 = vadd.f32 %v6432, %v6794
        %v6796 = vpop.f32.mrb[0].mxu0
        %v6797 = vadd.f32 %v6436, %v6796
        %6798 = vmatprep.mubr.f32.mxu0 %v6070
        %6799 = vmatmul.mubr.f32.gmra.mrb[0].mxu0 %v6069
        %v6800 = vpop.f32.mrb[0].mxu0
        %v6801 = vadd.f32 %v6432, %v6800
        %v6802 = vpop.f32.mrb[0].mxu0
        %v6803 = vadd.f32 %v6436, %v6802
        %6804 = vmatprep.mubr.f32.mxu0 %v6072
        %6805 = vmatmul.mubr.f32.gmra.mrb[0].mxu0 %v6071
        %v6806 = vpop.f32.mrb[0].mxu0
        %v6807 = vadd.f32 %v6432, %v6806
        %v6808 = vpop.f32.mrb[0].mxu0
        %v6809 = vadd.f32 %v6436, %v6808
        %6810 = vmatprep.mubr.f32.mxu0 %v6074
        %6811 = vmatmul.mubr.f32.gmra.mrb[0].mxu0 %v6073
        %v6812 = vpop.f32.mrb[0].mxu0
        %v6813 = vadd.f32 %v6432, %v6812
        %v6814 = vpop.f32.mrb[0].mxu0
        %v6815 = vadd.f32 %v6436, %v6814
        %6816 = vmatprep.mubr.f32.mxu0 %v6076
        %6817 = vmatmul.mubr.f32.gmra.mrb[0].mxu0 %v6075
        %v6818 = vpop.f32.mrb[0].mxu0
        %v6819 = vadd.f32 %v6432, %v6818
        %v6820 = vpop.f32.mrb[0].mxu0
        %v6821 = vadd.f32 %v6436, %v6820
        %6822 = vmatprep.mubr.f32.mxu0 %v6078
        %6823 = vmatmul.mubr.f32.gmra.mrb[0].mxu0 %v6077
        %v6824 = vpop.f32.mrb[0].mxu0
        %v6825 = vadd.f32 %v6432, %v6824
        %v6826 = vpop.f32.mrb[0].mxu0
        %v6827 = vadd.f32 %v6436, %v6826
        %6828 = vmatprep.mubr.f32.mxu0 %v6080
        %6829 = vmatmul.mubr.f32.gmra.mrb[0].mxu0 %v6079
        %v6830 = vpop.f32.mrb[0].mxu0
        %v6831 = vadd.f32 %v6432, %v6830
        %v6832 = vpop.f32.mrb[0].mxu0
        %v6833 = vadd.f32 %v6436, %v6832
        %6834 = vmatprep.mubr.f32.mxu0 %v6082
        %6835 = vmatmul.mubr.f32.gmra.mrb[0].mxu0 %v6081
        %v6836 = vpop.f32.mrb[0].mxu0
        %v6837 = vadd.f32 %v6432, %v6836
        %v6838 = vpop.f32.mrb[0].mxu0
        %v6839 = vadd.f32 %v6436, %v6838
        %6840 = vmatprep.mubr.f32.mxu0 %v6084
        %6841 = vmatmul.mubr.f32.gmra.mrb[0].mxu0 %v6083
        %v6842 = vpop.f32.mrb[0].mxu0
        %v6843 = vadd.f32 %v6432, %v6842
        %v6844 = vpop.f32.mrb[0].mxu0
        %v6845 = vadd.f32 %v6436, %v6844
        %6846 = vmatprep.mubr.f32.mxu0 %v6086
        %6847 = vmatmul.mubr.f32.gmra.mrb[0].mxu0 %v6085
        %v6848 = vpop.f32.mrb[0].mxu0
        %v6849 = vadd.f32 %v6432, %v6848
        %v6850 = vpop.f32.mrb[0].mxu0
        %v6851 = vadd.f32 %v6436, %v6850
        %6852 = vmatprep.mubr.f32.mxu0 %v6088
        %6853 = vmatmul.mubr.f32.gmra.mrb[0].mxu0 %v6087
        %v6854 = vpop.f32.mrb[0].mxu0
        %v6855 = vadd.f32 %v6432, %v6854
        %v6856 = vpop.f32.mrb[0].mxu0
        %v6857 = vadd.f32 %v6436, %v6856
        %6858 = vmatprep.mubr.f32.mxu0 %v6090
        %6859 = vmatmul.mubr.f32.gmra.mrb[0].mxu0 %v6089
        %v6860 = vpop.f32.mrb[0].mxu0
        %v6861 = vadd.f32 %v6432, %v6860
        %v6862 = vpop.f32.mrb[0].mxu0
        %v6863 = vadd.f32 %v6436, %v6862
        %6864 = vmatprep.mubr.f32.mxu0 %v6092
        %6865 = vmatmul.mubr.f32.gmra.mrb[0].mxu0 %v6091
        %v6866 = vpop.f32.mrb[0].mxu0
        %v6867 = vadd.f32 %v6432, %v6866
        %v6868 = vpop.f32.mrb[0].mxu0
        %v6869 = vadd.f32 %v6436, %v6868
        %6870 = vmatprep.mubr.f32.mxu0 %v6094
        %6871 = vmatmul.mubr.f32.gmra.mrb[0].mxu0 %v6093
        %v6872 = vpop.f32.mrb[0].mxu0
        %v6873 = vadd.f32 %v6432, %v6872
        %v6874 = vpop.f32.mrb[0].mxu0
        %v6875 = vadd.f32 %v6436, %v6874
        %6876 = vmatprep.mubr.f32.mxu0 %v6096
        %6877 = vmatmul.mubr.f32.gmra.mrb[0].mxu0 %v6095
        %v6878 = vpop.f32.mrb[0].mxu0
        %v6879 = vadd.f32 %v6432, %v6878
        %v6880 = vpop.f32.mrb[0].mxu0
        %v6881 = vadd.f32 %v6436, %v6880
        %6882 = vmatprep.mubr.f32.mxu0 %v6098
        %6883 = vmatmul.mubr.f32.gmra.mrb[0].mxu0 %v6097
        %v6884 = vpop.f32.mrb[0].mxu0
        %v6885 = vadd.f32 %v6432, %v6884
        %v6886 = vpop.f32.mrb[0].mxu0
        %v6887 = vadd.f32 %v6436, %v6886
        %6888 = vmatprep.mubr.f32.mxu0 %v6100
        %6889 = vmatmul.mubr.f32.gmra.mrb[0].mxu0 %v6099
        %v6890 = vpop.f32.mrb[0].mxu0
        %v6891 = vadd.f32 %v6432, %v6890
        %v6892 = vpop.f32.mrb[0].mxu0
        %v6893 = vadd.f32 %v6436, %v6892
        %6894 = vmatprep.mubr.f32.mxu0 %v6102
        %6895 = vmatmul.mubr.f32.gmra.mrb[0].mxu0 %v6101
        %v6896 = vpop.f32.mrb[0].mxu0
        %v6897 = vadd.f32 %v6432, %v6896
        %v6898 = vpop.f32.mrb[0].mxu0
        %v6899 = vadd.f32 %v6436, %v6898
        %6900 = vmatprep.mubr.f32.mxu0 %v6104
        %6901 = vmatmul.mubr.f32.gmra.mrb[0].mxu0 %v6103
        %v6902 = vpop.f32.mrb[0].mxu0
        %v6903 = vadd.f32 %v6432, %v6902
        %v6904 = vpop.f32.mrb[0].mxu0
        %v6905 = vadd.f32 %v6436, %v6904
        %6906 = vmatprep.mubr.f32.mxu0 %v6106
        %6907 = vmatmul.mubr.f32.gmra.mrb[0].mxu0 %v6105
        %v6908 = vpop.f32.mrb[0].mxu0
        %v6909 = vadd.f32 %v6432, %v6908
        %v6910 = vpop.f32.mrb[0].mxu0
        %v6911 = vadd.f32 %v6436, %v6910
        %6912 = vmatprep.mubr.f32.mxu0 %v6108
        %6913 = vmatmul.mubr.f32.gmra.mrb[0].mxu0 %v6107
        %v6914 = vpop.f32.mrb[0].mxu0
        %v6915 = vadd.f32 %v6432, %v6914
        %v6916 = vpop.f32.mrb[0].mxu0
        %v6917 = vadd.f32 %v6436, %v6916
        %6918 = vmatprep.mubr.f32.mxu0 %v6110
        %6919 = vmatmul.mubr.f32.gmra.mrb[0].mxu0 %v6109
        %v6920 = vpop.f32.mrb[0].mxu0
        %v6921 = vadd.f32 %v6432, %v6920
        %v6922 = vpop.f32.mrb[0].mxu0
        %v6923 = vadd.f32 %v6436, %v6922
        %6924 = vmatprep.mubr.f32.mxu0 %v6112
        %6925 = vmatmul.mubr.f32.gmra.mrb[0].mxu0 %v6111
        %v6926 = vpop.f32.mrb[0].mxu0
        %v6927 = vadd.f32 %v6432, %v6926
        %v6928 = vpop.f32.mrb[0].mxu0
        %v6929 = vadd.f32 %v6436, %v6928
        %6930 = vmatprep.mubr.f32.mxu0 %v6114
        %6931 = vmatmul.mubr.f32.gmra.mrb[0].mxu0 %v6113
        %v6932 = vpop.f32.mrb[0].mxu0
        %v6933 = vadd.f32 %v6432, %v6932
        %v6934 = vpop.f32.mrb[0].mxu0
        %v6935 = vadd.f32 %v6436, %v6934
        %6936 = vmatprep.mubr.f32.mxu0 %v6116
        %6937 = vmatmul.mubr.f32.gmra.mrb[0].mxu0 %v6115
        %v6938 = vpop.f32.mrb[0].mxu0
        %v6939 = vadd.f32 %v6432, %v6938
        %v6940 = vpop.f32.mrb[0].mxu0
        %v6941 = vadd.f32 %v6436, %v6940
        %6942 = vmatprep.mubr.f32.mxu0 %v6118
        %6943 = vmatmul.mubr.f32.gmra.mrb[0].mxu0 %v6117
        %v6944 = vpop.f32.mrb[0].mxu0
        %v6945 = vadd.f32 %v6432, %v6944
        %v6946 = vpop.f32.mrb[0].mxu0
        %v6947 = vadd.f32 %v6436, %v6946
        %6948 = vmatprep.mubr.f32.mxu0 %v6120
        %6949 = vmatmul.mubr.f32.gmra.mrb[0].mxu0 %v6119
        %v6950 = vpop.f32.mrb[0].mxu0
        %v6951 = vadd.f32 %v6432, %v6950
        %v6952 = vpop.f32.mrb[0].mxu0
        %v6953 = vadd.f32 %v6436, %v6952
        %6954 = vmatprep.mubr.f32.mxu0 %v6122
        %6955 = vmatmul.mubr.f32.gmra.mrb[0].mxu0 %v6121
        %v6956 = vpop.f32.mrb[0].mxu0
        %v6957 = vadd.f32 %v6432, %v6956
        %v6958 = vpop.f32.mrb[0].mxu0
        %v6959 = vadd.f32 %v6436, %v6958
        %6960 = vmatprep.mubr.f32.mxu0 %v6124
        %6961 = vmatmul.mubr.f32.gmra.mrb[0].mxu0 %v6123
        %v6962 = vpop.f32.mrb[0].mxu0
        %v6963 = vadd.f32 %v6432, %v6962
        %v6964 = vpop.f32.mrb[0].mxu0
        %v6965 = vadd.f32 %v6436, %v6964
        %6966 = vdwg.mxu0
        %6967 = vmatprep.subr.mxu0 %v6130
        %6968 = vmatpush1.msra.mxu0 %v6129
        %6969 = vmatprep.subr.mxu0 %v6138
        %6970 = vmatpush1.msra.mxu0 %v6137
        %6971 = vmatprep.subr.mxu0 %v6146
        %6972 = vmatpush1.msra.mxu0 %v6145
        %6973 = vmatprep.subr.mxu0 %v6154
        %6974 = vmatpush1.msra.mxu0 %v6153
        %6975 = vmatprep.subr.mxu0 %v6162
        %6976 = vmatpush1.msra.mxu0 %v6161
        %6977 = vmatprep.subr.mxu0 %v6170
        %6978 = vmatpush1.msra.mxu0 %v6169
        %6979 = vmatprep.subr.mxu0 %v6178
        %6980 = vmatpush1.msra.mxu0 %v6177
        %6981 = vmatprep.subr.mxu0 %v6186
        %6982 = vmatpush1.msra.mxu0 %v6185
        %6983 = vmatprep.subr.mxu0 %v6194
        %6984 = vmatpush1.msra.mxu0 %v6193
        %6985 = vmatprep.subr.mxu0 %v6202
        %6986 = vmatpush1.msra.mxu0 %v6201
        %6987 = vmatprep.subr.mxu0 %v6210
        %6988 = vmatpush1.msra.mxu0 %v6209
        %6989 = vmatprep.subr.mxu0 %v6218
        %6990 = vmatpush1.msra.mxu0 %v6217
        %6991 = vmatprep.subr.mxu0 %v6226
        %6992 = vmatpush1.msra.mxu0 %v6225
        %6993 = vmatprep.subr.mxu0 %v6234
        %6994 = vmatpush1.msra.mxu0 %v6233
        %6995 = vmatprep.subr.mxu0 %v6242
        %6996 = vmatpush1.msra.mxu0 %v6241
        %6997 = vmatprep.subr.mxu0 %v6250
        %6998 = vmatpush1.msra.mxu0 %v6249
        %6999 = vmatprep.subr.mxu0 %v6258
        %7000 = vmatpush1.msra.mxu0 %v6257
        %7001 = vmatprep.subr.mxu0 %v6266
        %7002 = vmatpush1.msra.mxu0 %v6265
        %7003 = vmatprep.subr.mxu0 %v6274
        %7004 = vmatpush1.msra.mxu0 %v6273
        %7005 = vmatprep.subr.mxu0 %v6282
        %7006 = vmatpush1.msra.mxu0 %v6281
        %7007 = vmatprep.subr.mxu0 %v6290
        %7008 = vmatpush1.msra.mxu0 %v6289
        %7009 = vmatprep.subr.mxu0 %v6298
        %7010 = vmatpush1.msra.mxu0 %v6297
        %7011 = vmatprep.subr.mxu0 %v6306
        %7012 = vmatpush1.msra.mxu0 %v6305
        %7013 = vmatprep.subr.mxu0 %v6314
        %7014 = vmatpush1.msra.mxu0 %v6313
        %7015 = vmatprep.subr.mxu0 %v6322
        %7016 = vmatpush1.msra.mxu0 %v6321
        %7017 = vmatprep.subr.mxu0 %v6330
        %7018 = vmatpush1.msra.mxu0 %v6329
        %7019 = vmatprep.subr.mxu0 %v6338
        %7020 = vmatpush1.msra.mxu0 %v6337
        %7021 = vmatprep.subr.mxu0 %v6346
        %7022 = vmatpush1.msra.mxu0 %v6345
        %7023 = vmatprep.subr.mxu0 %v6354
        %7024 = vmatpush1.msra.mxu0 %v6353
        %7025 = vmatprep.subr.mxu0 %v6362
        %7026 = vmatpush1.msra.mxu0 %v6361
        %7027 = vmatprep.subr.mxu0 %v6370
        %7028 = vmatpush1.msra.mxu0 %v6369
        %7029 = vmatprep.subr.mxu0 %v6378
        %7030 = vmatpush1.msra.mxu0 %v6377
        %7031 = vmatprep.mubr.f32.mxu0 %v6062
        %7032 = vmatmul.mubr.f32.gmra.mrb[0].mxu0 %v6061
        %v7033 = vpop.f32.mrb[0].mxu0
        %v7034 = vadd.f32 %v6440, %v7033
        %v7035 = vpop.f32.mrb[0].mxu0
        %v7036 = vadd.f32 %v6444, %v7035
        %7037 = vmatprep.mubr.f32.mxu0 %v6064
        %7038 = vmatmul.mubr.f32.gmra.mrb[0].mxu0 %v6063
        %v7039 = vpop.f32.mrb[0].mxu0
        %v7040 = vadd.f32 %v6440, %v7039
        %v7041 = vpop.f32.mrb[0].mxu0
        %v7042 = vadd.f32 %v6444, %v7041
        %7043 = vmatprep.mubr.f32.mxu0 %v6066
        %7044 = vmatmul.mubr.f32.gmra.mrb[0].mxu0 %v6065
        %v7045 = vpop.f32.mrb[0].mxu0
        %v7046 = vadd.f32 %v6440, %v7045
        %v7047 = vpop.f32.mrb[0].mxu0
        %v7048 = vadd.f32 %v6444, %v7047
        %7049 = vmatprep.mubr.f32.mxu0 %v6068
        %7050 = vmatmul.mubr.f32.gmra.mrb[0].mxu0 %v6067
        %v7051 = vpop.f32.mrb[0].mxu0
        %v7052 = vadd.f32 %v6440, %v7051
        %v7053 = vpop.f32.mrb[0].mxu0
        %v7054 = vadd.f32 %v6444, %v7053
        %7055 = vmatprep.mubr.f32.mxu0 %v6070
        %7056 = vmatmul.mubr.f32.gmra.mrb[0].mxu0 %v6069
        %v7057 = vpop.f32.mrb[0].mxu0
        %v7058 = vadd.f32 %v6440, %v7057
        %v7059 = vpop.f32.mrb[0].mxu0
        %v7060 = vadd.f32 %v6444, %v7059
        %7061 = vmatprep.mubr.f32.mxu0 %v6072
        %7062 = vmatmul.mubr.f32.gmra.mrb[0].mxu0 %v6071
        %v7063 = vpop.f32.mrb[0].mxu0
        %v7064 = vadd.f32 %v6440, %v7063
        %v7065 = vpop.f32.mrb[0].mxu0
        %v7066 = vadd.f32 %v6444, %v7065
        %7067 = vmatprep.mubr.f32.mxu0 %v6074
        %7068 = vmatmul.mubr.f32.gmra.mrb[0].mxu0 %v6073
        %v7069 = vpop.f32.mrb[0].mxu0
        %v7070 = vadd.f32 %v6440, %v7069
        %v7071 = vpop.f32.mrb[0].mxu0
        %v7072 = vadd.f32 %v6444, %v7071
        %7073 = vmatprep.mubr.f32.mxu0 %v6076
        %7074 = vmatmul.mubr.f32.gmra.mrb[0].mxu0 %v6075
        %v7075 = vpop.f32.mrb[0].mxu0
        %v7076 = vadd.f32 %v6440, %v7075
        %v7077 = vpop.f32.mrb[0].mxu0
        %v7078 = vadd.f32 %v6444, %v7077
        %7079 = vmatprep.mubr.f32.mxu0 %v6078
        %7080 = vmatmul.mubr.f32.gmra.mrb[0].mxu0 %v6077
        %v7081 = vpop.f32.mrb[0].mxu0
        %v7082 = vadd.f32 %v6440, %v7081
        %v7083 = vpop.f32.mrb[0].mxu0
        %v7084 = vadd.f32 %v6444, %v7083
        %7085 = vmatprep.mubr.f32.mxu0 %v6080
        %7086 = vmatmul.mubr.f32.gmra.mrb[0].mxu0 %v6079
        %v7087 = vpop.f32.mrb[0].mxu0
        %v7088 = vadd.f32 %v6440, %v7087
        %v7089 = vpop.f32.mrb[0].mxu0
        %v7090 = vadd.f32 %v6444, %v7089
        %7091 = vmatprep.mubr.f32.mxu0 %v6082
        %7092 = vmatmul.mubr.f32.gmra.mrb[0].mxu0 %v6081
        %v7093 = vpop.f32.mrb[0].mxu0
        %v7094 = vadd.f32 %v6440, %v7093
        %v7095 = vpop.f32.mrb[0].mxu0
        %v7096 = vadd.f32 %v6444, %v7095
        %7097 = vmatprep.mubr.f32.mxu0 %v6084
        %7098 = vmatmul.mubr.f32.gmra.mrb[0].mxu0 %v6083
        %v7099 = vpop.f32.mrb[0].mxu0
        %v7100 = vadd.f32 %v6440, %v7099
        %v7101 = vpop.f32.mrb[0].mxu0
        %v7102 = vadd.f32 %v6444, %v7101
        %7103 = vmatprep.mubr.f32.mxu0 %v6086
        %7104 = vmatmul.mubr.f32.gmra.mrb[0].mxu0 %v6085
        %v7105 = vpop.f32.mrb[0].mxu0
        %v7106 = vadd.f32 %v6440, %v7105
        %v7107 = vpop.f32.mrb[0].mxu0
        %v7108 = vadd.f32 %v6444, %v7107
        %7109 = vmatprep.mubr.f32.mxu0 %v6088
        %7110 = vmatmul.mubr.f32.gmra.mrb[0].mxu0 %v6087
        %v7111 = vpop.f32.mrb[0].mxu0
        %v7112 = vadd.f32 %v6440, %v7111
        %v7113 = vpop.f32.mrb[0].mxu0
        %v7114 = vadd.f32 %v6444, %v7113
        %7115 = vmatprep.mubr.f32.mxu0 %v6090
        %7116 = vmatmul.mubr.f32.gmra.mrb[0].mxu0 %v6089
        %v7117 = vpop.f32.mrb[0].mxu0
        %v7118 = vadd.f32 %v6440, %v7117
        %v7119 = vpop.f32.mrb[0].mxu0
        %v7120 = vadd.f32 %v6444, %v7119
        %7121 = vmatprep.mubr.f32.mxu0 %v6092
        %7122 = vmatmul.mubr.f32.gmra.mrb[0].mxu0 %v6091
        %v7123 = vpop.f32.mrb[0].mxu0
        %v7124 = vadd.f32 %v6440, %v7123
        %v7125 = vpop.f32.mrb[0].mxu0
        %v7126 = vadd.f32 %v6444, %v7125
        %7127 = vmatprep.mubr.f32.mxu0 %v6094
        %7128 = vmatmul.mubr.f32.gmra.mrb[0].mxu0 %v6093
        %v7129 = vpop.f32.mrb[0].mxu0
        %v7130 = vadd.f32 %v6440, %v7129
        %v7131 = vpop.f32.mrb[0].mxu0
        %v7132 = vadd.f32 %v6444, %v7131
        %7133 = vmatprep.mubr.f32.mxu0 %v6096
        %7134 = vmatmul.mubr.f32.gmra.mrb[0].mxu0 %v6095
        %v7135 = vpop.f32.mrb[0].mxu0
        %v7136 = vadd.f32 %v6440, %v7135
        %v7137 = vpop.f32.mrb[0].mxu0
        %v7138 = vadd.f32 %v6444, %v7137
        %7139 = vmatprep.mubr.f32.mxu0 %v6098
        %7140 = vmatmul.mubr.f32.gmra.mrb[0].mxu0 %v6097
        %v7141 = vpop.f32.mrb[0].mxu0
        %v7142 = vadd.f32 %v6440, %v7141
        %v7143 = vpop.f32.mrb[0].mxu0
        %v7144 = vadd.f32 %v6444, %v7143
        %7145 = vmatprep.mubr.f32.mxu0 %v6100
        %7146 = vmatmul.mubr.f32.gmra.mrb[0].mxu0 %v6099
        %v7147 = vpop.f32.mrb[0].mxu0
        %v7148 = vadd.f32 %v6440, %v7147
        %v7149 = vpop.f32.mrb[0].mxu0
        %v7150 = vadd.f32 %v6444, %v7149
        %7151 = vmatprep.mubr.f32.mxu0 %v6102
        %7152 = vmatmul.mubr.f32.gmra.mrb[0].mxu0 %v6101
        %v7153 = vpop.f32.mrb[0].mxu0
        %v7154 = vadd.f32 %v6440, %v7153
        %v7155 = vpop.f32.mrb[0].mxu0
        %v7156 = vadd.f32 %v6444, %v7155
        %7157 = vmatprep.mubr.f32.mxu0 %v6104
        %7158 = vmatmul.mubr.f32.gmra.mrb[0].mxu0 %v6103
        %v7159 = vpop.f32.mrb[0].mxu0
        %v7160 = vadd.f32 %v6440, %v7159
        %v7161 = vpop.f32.mrb[0].mxu0
        %v7162 = vadd.f32 %v6444, %v7161
        %7163 = vmatprep.mubr.f32.mxu0 %v6106
        %7164 = vmatmul.mubr.f32.gmra.mrb[0].mxu0 %v6105
        %v7165 = vpop.f32.mrb[0].mxu0
        %v7166 = vadd.f32 %v6440, %v7165
        %v7167 = vpop.f32.mrb[0].mxu0
        %v7168 = vadd.f32 %v6444, %v7167
        %7169 = vmatprep.mubr.f32.mxu0 %v6108
        %7170 = vmatmul.mubr.f32.gmra.mrb[0].mxu0 %v6107
        %v7171 = vpop.f32.mrb[0].mxu0
        %v7172 = vadd.f32 %v6440, %v7171
        %v7173 = vpop.f32.mrb[0].mxu0
        %v7174 = vadd.f32 %v6444, %v7173
        %7175 = vmatprep.mubr.f32.mxu0 %v6110
        %7176 = vmatmul.mubr.f32.gmra.mrb[0].mxu0 %v6109
        %v7177 = vpop.f32.mrb[0].mxu0
        %v7178 = vadd.f32 %v6440, %v7177
        %v7179 = vpop.f32.mrb[0].mxu0
        %v7180 = vadd.f32 %v6444, %v7179
        %7181 = vmatprep.mubr.f32.mxu0 %v6112
        %7182 = vmatmul.mubr.f32.gmra.mrb[0].mxu0 %v6111
        %v7183 = vpop.f32.mrb[0].mxu0
        %v7184 = vadd.f32 %v6440, %v7183
        %v7185 = vpop.f32.mrb[0].mxu0
        %v7186 = vadd.f32 %v6444, %v7185
        %7187 = vmatprep.mubr.f32.mxu0 %v6114
        %7188 = vmatmul.mubr.f32.gmra.mrb[0].mxu0 %v6113
        %v7189 = vpop.f32.mrb[0].mxu0
        %v7190 = vadd.f32 %v6440, %v7189
        %v7191 = vpop.f32.mrb[0].mxu0
        %v7192 = vadd.f32 %v6444, %v7191
        %7193 = vmatprep.mubr.f32.mxu0 %v6116
        %7194 = vmatmul.mubr.f32.gmra.mrb[0].mxu0 %v6115
        %v7195 = vpop.f32.mrb[0].mxu0
        %v7196 = vadd.f32 %v6440, %v7195
        %v7197 = vpop.f32.mrb[0].mxu0
        %v7198 = vadd.f32 %v6444, %v7197
        %7199 = vmatprep.mubr.f32.mxu0 %v6118
        %7200 = vmatmul.mubr.f32.gmra.mrb[0].mxu0 %v6117
        %v7201 = vpop.f32.mrb[0].mxu0
        %v7202 = vadd.f32 %v6440, %v7201
        %v7203 = vpop.f32.mrb[0].mxu0
        %v7204 = vadd.f32 %v6444, %v7203
        %7205 = vmatprep.mubr.f32.mxu0 %v6120
        %7206 = vmatmul.mubr.f32.gmra.mrb[0].mxu0 %v6119
        %v7207 = vpop.f32.mrb[0].mxu0
        %v7208 = vadd.f32 %v6440, %v7207
        %v7209 = vpop.f32.mrb[0].mxu0
        %v7210 = vadd.f32 %v6444, %v7209
        %7211 = vmatprep.mubr.f32.mxu0 %v6122
        %7212 = vmatmul.mubr.f32.gmra.mrb[0].mxu0 %v6121
        %v7213 = vpop.f32.mrb[0].mxu0
        %v7214 = vadd.f32 %v6440, %v7213
        %v7215 = vpop.f32.mrb[0].mxu0
        %v7216 = vadd.f32 %v6444, %v7215
        %7217 = vmatprep.mubr.f32.mxu0 %v6124
        %7218 = vmatmul.mubr.f32.gmra.mrb[0].mxu0 %v6123
        %v7219 = vpop.f32.mrb[0].mxu0
        %v7220 = vadd.f32 %v6440, %v7219
        %v7221 = vpop.f32.mrb[0].mxu0
        %v7222 = vadd.f32 %v6444, %v7221
        %7223 = vdwg.mxu0
        %7224 = vmatprep.subr.mxu0 %v6132
        %7225 = vmatpush1.msra.mxu0 %v6131
        %7226 = vmatprep.subr.mxu0 %v6140
        %7227 = vmatpush1.msra.mxu0 %v6139
        %7228 = vmatprep.subr.mxu0 %v6148
        %7229 = vmatpush1.msra.mxu0 %v6147
        %7230 = vmatprep.subr.mxu0 %v6156
        %7231 = vmatpush1.msra.mxu0 %v6155
        %7232 = vmatprep.subr.mxu0 %v6164
        %7233 = vmatpush1.msra.mxu0 %v6163
        %7234 = vmatprep.subr.mxu0 %v6172
        %7235 = vmatpush1.msra.mxu0 %v6171
        %7236 = vmatprep.subr.mxu0 %v6180
        %7237 = vmatpush1.msra.mxu0 %v6179
        %7238 = vmatprep.subr.mxu0 %v6188
        %7239 = vmatpush1.msra.mxu0 %v6187
        %7240 = vmatprep.subr.mxu0 %v6196
        %7241 = vmatpush1.msra.mxu0 %v6195
        %7242 = vmatprep.subr.mxu0 %v6204
        %7243 = vmatpush1.msra.mxu0 %v6203
        %7244 = vmatprep.subr.mxu0 %v6212
        %7245 = vmatpush1.msra.mxu0 %v6211
        %7246 = vmatprep.subr.mxu0 %v6220
        %7247 = vmatpush1.msra.mxu0 %v6219
        %7248 = vmatprep.subr.mxu0 %v6228
        %7249 = vmatpush1.msra.mxu0 %v6227
        %7250 = vmatprep.subr.mxu0 %v6236
        %7251 = vmatpush1.msra.mxu0 %v6235
        %7252 = vmatprep.subr.mxu0 %v6244
        %7253 = vmatpush1.msra.mxu0 %v6243
        %7254 = vmatprep.subr.mxu0 %v6252
        %7255 = vmatpush1.msra.mxu0 %v6251
        %7256 = vmatprep.subr.mxu0 %v6260
        %7257 = vmatpush1.msra.mxu0 %v6259
        %7258 = vmatprep.subr.mxu0 %v6268
        %7259 = vmatpush1.msra.mxu0 %v6267
        %7260 = vmatprep.subr.mxu0 %v6276
        %7261 = vmatpush1.msra.mxu0 %v6275
        %7262 = vmatprep.subr.mxu0 %v6284
        %7263 = vmatpush1.msra.mxu0 %v6283
        %7264 = vmatprep.subr.mxu0 %v6292
        %7265 = vmatpush1.msra.mxu0 %v6291
        %7266 = vmatprep.subr.mxu0 %v6300
        %7267 = vmatpush1.msra.mxu0 %v6299
        %7268 = vmatprep.subr.mxu0 %v6308
        %7269 = vmatpush1.msra.mxu0 %v6307
        %7270 = vmatprep.subr.mxu0 %v6316
        %7271 = vmatpush1.msra.mxu0 %v6315
        %7272 = vmatprep.subr.mxu0 %v6324
        %7273 = vmatpush1.msra.mxu0 %v6323
        %7274 = vmatprep.subr.mxu0 %v6332
        %7275 = vmatpush1.msra.mxu0 %v6331
        %7276 = vmatprep.subr.mxu0 %v6340
        %7277 = vmatpush1.msra.mxu0 %v6339
        %7278 = vmatprep.subr.mxu0 %v6348
        %7279 = vmatpush1.msra.mxu0 %v6347
        %7280 = vmatprep.subr.mxu0 %v6356
        %7281 = vmatpush1.msra.mxu0 %v6355
        %7282 = vmatprep.subr.mxu0 %v6364
        %7283 = vmatpush1.msra.mxu0 %v6363
        %7284 = vmatprep.subr.mxu0 %v6372
        %7285 = vmatpush1.msra.mxu0 %v6371
        %7286 = vmatprep.subr.mxu0 %v6380
        %7287 = vmatpush1.msra.mxu0 %v6379
        %7288 = vmatprep.mubr.f32.mxu0 %v6062
        %7289 = vmatmul.mubr.f32.gmra.mrb[0].mxu0 %v6061
        %v7290 = vpop.f32.mrb[0].mxu0
        %v7291 = vadd.f32 %v6448, %v7290
        %v7292 = vpop.f32.mrb[0].mxu0
        %v7293 = vadd.f32 %v6452, %v7292
        %7294 = vmatprep.mubr.f32.mxu0 %v6064
        %7295 = vmatmul.mubr.f32.gmra.mrb[0].mxu0 %v6063
        %v7296 = vpop.f32.mrb[0].mxu0
        %v7297 = vadd.f32 %v6448, %v7296
        %v7298 = vpop.f32.mrb[0].mxu0
        %v7299 = vadd.f32 %v6452, %v7298
        %7300 = vmatprep.mubr.f32.mxu0 %v6066
        %7301 = vmatmul.mubr.f32.gmra.mrb[0].mxu0 %v6065
        %v7302 = vpop.f32.mrb[0].mxu0
        %v7303 = vadd.f32 %v6448, %v7302
        %v7304 = vpop.f32.mrb[0].mxu0
        %v7305 = vadd.f32 %v6452, %v7304
        %7306 = vmatprep.mubr.f32.mxu0 %v6068
        %7307 = vmatmul.mubr.f32.gmra.mrb[0].mxu0 %v6067
        %v7308 = vpop.f32.mrb[0].mxu0
        %v7309 = vadd.f32 %v6448, %v7308
        %v7310 = vpop.f32.mrb[0].mxu0
        %v7311 = vadd.f32 %v6452, %v7310
        %7312 = vmatprep.mubr.f32.mxu0 %v6070
        %7313 = vmatmul.mubr.f32.gmra.mrb[0].mxu0 %v6069
        %v7314 = vpop.f32.mrb[0].mxu0
        %v7315 = vadd.f32 %v6448, %v7314
        %v7316 = vpop.f32.mrb[0].mxu0
        %v7317 = vadd.f32 %v6452, %v7316
        %7318 = vmatprep.mubr.f32.mxu0 %v6072
        %7319 = vmatmul.mubr.f32.gmra.mrb[0].mxu0 %v6071
        %v7320 = vpop.f32.mrb[0].mxu0
        %v7321 = vadd.f32 %v6448, %v7320
        %v7322 = vpop.f32.mrb[0].mxu0
        %v7323 = vadd.f32 %v6452, %v7322
        %7324 = vmatprep.mubr.f32.mxu0 %v6074
        %7325 = vmatmul.mubr.f32.gmra.mrb[0].mxu0 %v6073
        %v7326 = vpop.f32.mrb[0].mxu0
        %v7327 = vadd.f32 %v6448, %v7326
        %v7328 = vpop.f32.mrb[0].mxu0
        %v7329 = vadd.f32 %v6452, %v7328
        %7330 = vmatprep.mubr.f32.mxu0 %v6076
        %7331 = vmatmul.mubr.f32.gmra.mrb[0].mxu0 %v6075
        %v7332 = vpop.f32.mrb[0].mxu0
        %v7333 = vadd.f32 %v6448, %v7332
        %v7334 = vpop.f32.mrb[0].mxu0
        %v7335 = vadd.f32 %v6452, %v7334
        %7336 = vmatprep.mubr.f32.mxu0 %v6078
        %7337 = vmatmul.mubr.f32.gmra.mrb[0].mxu0 %v6077
        %v7338 = vpop.f32.mrb[0].mxu0
        %v7339 = vadd.f32 %v6448, %v7338
        %v7340 = vpop.f32.mrb[0].mxu0
        %v7341 = vadd.f32 %v6452, %v7340
        %7342 = vmatprep.mubr.f32.mxu0 %v6080
        %7343 = vmatmul.mubr.f32.gmra.mrb[0].mxu0 %v6079
        %v7344 = vpop.f32.mrb[0].mxu0
        %v7345 = vadd.f32 %v6448, %v7344
        %v7346 = vpop.f32.mrb[0].mxu0
        %v7347 = vadd.f32 %v6452, %v7346
        %7348 = vmatprep.mubr.f32.mxu0 %v6082
        %7349 = vmatmul.mubr.f32.gmra.mrb[0].mxu0 %v6081
        %v7350 = vpop.f32.mrb[0].mxu0
        %v7351 = vadd.f32 %v6448, %v7350
        %v7352 = vpop.f32.mrb[0].mxu0
        %v7353 = vadd.f32 %v6452, %v7352
        %7354 = vmatprep.mubr.f32.mxu0 %v6084
        %7355 = vmatmul.mubr.f32.gmra.mrb[0].mxu0 %v6083
        %v7356 = vpop.f32.mrb[0].mxu0
        %v7357 = vadd.f32 %v6448, %v7356
        %v7358 = vpop.f32.mrb[0].mxu0
        %v7359 = vadd.f32 %v6452, %v7358
        %7360 = vmatprep.mubr.f32.mxu0 %v6086
        %7361 = vmatmul.mubr.f32.gmra.mrb[0].mxu0 %v6085
        %v7362 = vpop.f32.mrb[0].mxu0
        %v7363 = vadd.f32 %v6448, %v7362
        %v7364 = vpop.f32.mrb[0].mxu0
        %v7365 = vadd.f32 %v6452, %v7364
        %7366 = vmatprep.mubr.f32.mxu0 %v6088
        %7367 = vmatmul.mubr.f32.gmra.mrb[0].mxu0 %v6087
        %v7368 = vpop.f32.mrb[0].mxu0
        %v7369 = vadd.f32 %v6448, %v7368
        %v7370 = vpop.f32.mrb[0].mxu0
        %v7371 = vadd.f32 %v6452, %v7370
        %7372 = vmatprep.mubr.f32.mxu0 %v6090
        %7373 = vmatmul.mubr.f32.gmra.mrb[0].mxu0 %v6089
        %v7374 = vpop.f32.mrb[0].mxu0
        %v7375 = vadd.f32 %v6448, %v7374
        %v7376 = vpop.f32.mrb[0].mxu0
        %v7377 = vadd.f32 %v6452, %v7376
        %7378 = vmatprep.mubr.f32.mxu0 %v6092
        %7379 = vmatmul.mubr.f32.gmra.mrb[0].mxu0 %v6091
        %v7380 = vpop.f32.mrb[0].mxu0
        %v7381 = vadd.f32 %v6448, %v7380
        %v7382 = vpop.f32.mrb[0].mxu0
        %v7383 = vadd.f32 %v6452, %v7382
        %7384 = vmatprep.mubr.f32.mxu0 %v6094
        %7385 = vmatmul.mubr.f32.gmra.mrb[0].mxu0 %v6093
        %v7386 = vpop.f32.mrb[0].mxu0
        %v7387 = vadd.f32 %v6448, %v7386
        %v7388 = vpop.f32.mrb[0].mxu0
        %v7389 = vadd.f32 %v6452, %v7388
        %7390 = vmatprep.mubr.f32.mxu0 %v6096
        %7391 = vmatmul.mubr.f32.gmra.mrb[0].mxu0 %v6095
        %v7392 = vpop.f32.mrb[0].mxu0
        %v7393 = vadd.f32 %v6448, %v7392
        %v7394 = vpop.f32.mrb[0].mxu0
        %v7395 = vadd.f32 %v6452, %v7394
        %7396 = vmatprep.mubr.f32.mxu0 %v6098
        %7397 = vmatmul.mubr.f32.gmra.mrb[0].mxu0 %v6097
        %v7398 = vpop.f32.mrb[0].mxu0
        %v7399 = vadd.f32 %v6448, %v7398
        %v7400 = vpop.f32.mrb[0].mxu0
        %v7401 = vadd.f32 %v6452, %v7400
        %7402 = vmatprep.mubr.f32.mxu0 %v6100
        %7403 = vmatmul.mubr.f32.gmra.mrb[0].mxu0 %v6099
        %v7404 = vpop.f32.mrb[0].mxu0
        %v7405 = vadd.f32 %v6448, %v7404
        %v7406 = vpop.f32.mrb[0].mxu0
        %v7407 = vadd.f32 %v6452, %v7406
        %7408 = vmatprep.mubr.f32.mxu0 %v6102
        %7409 = vmatmul.mubr.f32.gmra.mrb[0].mxu0 %v6101
        %v7410 = vpop.f32.mrb[0].mxu0
        %v7411 = vadd.f32 %v6448, %v7410
        %v7412 = vpop.f32.mrb[0].mxu0
        %v7413 = vadd.f32 %v6452, %v7412
        %7414 = vmatprep.mubr.f32.mxu0 %v6104
        %7415 = vmatmul.mubr.f32.gmra.mrb[0].mxu0 %v6103
        %v7416 = vpop.f32.mrb[0].mxu0
        %v7417 = vadd.f32 %v6448, %v7416
        %v7418 = vpop.f32.mrb[0].mxu0
        %v7419 = vadd.f32 %v6452, %v7418
        %7420 = vmatprep.mubr.f32.mxu0 %v6106
        %7421 = vmatmul.mubr.f32.gmra.mrb[0].mxu0 %v6105
        %v7422 = vpop.f32.mrb[0].mxu0
        %v7423 = vadd.f32 %v6448, %v7422
        %v7424 = vpop.f32.mrb[0].mxu0
        %v7425 = vadd.f32 %v6452, %v7424
        %7426 = vmatprep.mubr.f32.mxu0 %v6108
        %7427 = vmatmul.mubr.f32.gmra.mrb[0].mxu0 %v6107
        %v7428 = vpop.f32.mrb[0].mxu0
        %v7429 = vadd.f32 %v6448, %v7428
        %v7430 = vpop.f32.mrb[0].mxu0
        %v7431 = vadd.f32 %v6452, %v7430
        %7432 = vmatprep.mubr.f32.mxu0 %v6110
        %7433 = vmatmul.mubr.f32.gmra.mrb[0].mxu0 %v6109
        %v7434 = vpop.f32.mrb[0].mxu0
        %v7435 = vadd.f32 %v6448, %v7434
        %v7436 = vpop.f32.mrb[0].mxu0
        %v7437 = vadd.f32 %v6452, %v7436
        %7438 = vmatprep.mubr.f32.mxu0 %v6112
        %7439 = vmatmul.mubr.f32.gmra.mrb[0].mxu0 %v6111
        %v7440 = vpop.f32.mrb[0].mxu0
        %v7441 = vadd.f32 %v6448, %v7440
        %v7442 = vpop.f32.mrb[0].mxu0
        %v7443 = vadd.f32 %v6452, %v7442
        %7444 = vmatprep.mubr.f32.mxu0 %v6114
        %7445 = vmatmul.mubr.f32.gmra.mrb[0].mxu0 %v6113
        %v7446 = vpop.f32.mrb[0].mxu0
        %v7447 = vadd.f32 %v6448, %v7446
        %v7448 = vpop.f32.mrb[0].mxu0
        %v7449 = vadd.f32 %v6452, %v7448
        %7450 = vmatprep.mubr.f32.mxu0 %v6116
        %7451 = vmatmul.mubr.f32.gmra.mrb[0].mxu0 %v6115
        %v7452 = vpop.f32.mrb[0].mxu0
        %v7453 = vadd.f32 %v6448, %v7452
        %v7454 = vpop.f32.mrb[0].mxu0
        %v7455 = vadd.f32 %v6452, %v7454
        %7456 = vmatprep.mubr.f32.mxu0 %v6118
        %7457 = vmatmul.mubr.f32.gmra.mrb[0].mxu0 %v6117
        %v7458 = vpop.f32.mrb[0].mxu0
        %v7459 = vadd.f32 %v6448, %v7458
        %v7460 = vpop.f32.mrb[0].mxu0
        %v7461 = vadd.f32 %v6452, %v7460
        %7462 = vmatprep.mubr.f32.mxu0 %v6120
        %7463 = vmatmul.mubr.f32.gmra.mrb[0].mxu0 %v6119
        %v7464 = vpop.f32.mrb[0].mxu0
        %v7465 = vadd.f32 %v6448, %v7464
        %v7466 = vpop.f32.mrb[0].mxu0
        %v7467 = vadd.f32 %v6452, %v7466
        %7468 = vmatprep.mubr.f32.mxu0 %v6122
        %7469 = vmatmul.mubr.f32.gmra.mrb[0].mxu0 %v6121
        %v7470 = vpop.f32.mrb[0].mxu0
        %v7471 = vadd.f32 %v6448, %v7470
        %v7472 = vpop.f32.mrb[0].mxu0
        %v7473 = vadd.f32 %v6452, %v7472
        %7474 = vmatprep.mubr.f32.mxu0 %v6124
        %7475 = vmatmul.mubr.f32.gmra.mrb[0].mxu0 %v6123
        %v7476 = vpop.f32.mrb[0].mxu0
        %v7477 = vadd.f32 %v6448, %v7476
        %v7478 = vpop.f32.mrb[0].mxu0
        %v7479 = vadd.f32 %v6452, %v7478
        %7480 = vdwg.mxu0
        %v7481 = vmax.f32 %v6520, 0.0
        %v7482 = vmax.f32 %v6522, 0.0
        %v7483 = vmax.f32 %v6777, 0.0
        %v7484 = vmax.f32 %v6779, 0.0
        %v7485 = vmax.f32 %v7034, 0.0
        %v7486 = vmax.f32 %v7036, 0.0
        %v7487 = vmax.f32 %v7291, 0.0
        %v7488 = vmax.f32 %v7293, 0.0
        %v7489 = vmax.f32 %v6526, 0.0
        %v7490 = vmax.f32 %v6528, 0.0
        %v7491 = vmax.f32 %v6783, 0.0
        %v7492 = vmax.f32 %v6785, 0.0
        %v7493 = vmax.f32 %v7040, 0.0
        %v7494 = vmax.f32 %v7042, 0.0
        %v7495 = vmax.f32 %v7297, 0.0
        %v7496 = vmax.f32 %v7299, 0.0
        %v7497 = vmax.f32 %v6532, 0.0
        %v7498 = vmax.f32 %v6534, 0.0
        %v7499 = vmax.f32 %v6789, 0.0
        %v7500 = vmax.f32 %v6791, 0.0
        %v7501 = vmax.f32 %v7046, 0.0
        %v7502 = vmax.f32 %v7048, 0.0
        %v7503 = vmax.f32 %v7303, 0.0
        %v7504 = vmax.f32 %v7305, 0.0
        %v7505 = vmax.f32 %v6538, 0.0
        %v7506 = vmax.f32 %v6540, 0.0
        %v7507 = vmax.f32 %v6795, 0.0
        %v7508 = vmax.f32 %v6797, 0.0
        %v7509 = vmax.f32 %v7052, 0.0
        %v7510 = vmax.f32 %v7054, 0.0
        %v7511 = vmax.f32 %v7309, 0.0
        %v7512 = vmax.f32 %v7311, 0.0
        %v7513 = vmax.f32 %v6544, 0.0
        %v7514 = vmax.f32 %v6546, 0.0
        %v7515 = vmax.f32 %v6801, 0.0
        %v7516 = vmax.f32 %v6803, 0.0
        %v7517 = vmax.f32 %v7058, 0.0
        %v7518 = vmax.f32 %v7060, 0.0
        %v7519 = vmax.f32 %v7315, 0.0
        %v7520 = vmax.f32 %v7317, 0.0
        %v7521 = vmax.f32 %v6550, 0.0
        %v7522 = vmax.f32 %v6552, 0.0
        %v7523 = vmax.f32 %v6807, 0.0
        %v7524 = vmax.f32 %v6809, 0.0
        %v7525 = vmax.f32 %v7064, 0.0
        %v7526 = vmax.f32 %v7066, 0.0
        %v7527 = vmax.f32 %v7321, 0.0
        %v7528 = vmax.f32 %v7323, 0.0
        %v7529 = vmax.f32 %v6556, 0.0
        %v7530 = vmax.f32 %v6558, 0.0
        %v7531 = vmax.f32 %v6813, 0.0
        %v7532 = vmax.f32 %v6815, 0.0
        %v7533 = vmax.f32 %v7070, 0.0
        %v7534 = vmax.f32 %v7072, 0.0
        %v7535 = vmax.f32 %v7327, 0.0
        %v7536 = vmax.f32 %v7329, 0.0
        %v7537 = vmax.f32 %v6562, 0.0
        %v7538 = vmax.f32 %v6564, 0.0
        %v7539 = vmax.f32 %v6819, 0.0
        %v7540 = vmax.f32 %v6821, 0.0
        %v7541 = vmax.f32 %v7076, 0.0
        %v7542 = vmax.f32 %v7078, 0.0
        %v7543 = vmax.f32 %v7333, 0.0
        %v7544 = vmax.f32 %v7335, 0.0
        %v7545 = vmax.f32 %v6568, 0.0
        %v7546 = vmax.f32 %v6570, 0.0
        %v7547 = vmax.f32 %v6825, 0.0
        %v7548 = vmax.f32 %v6827, 0.0
        %v7549 = vmax.f32 %v7082, 0.0
        %v7550 = vmax.f32 %v7084, 0.0
        %v7551 = vmax.f32 %v7339, 0.0
        %v7552 = vmax.f32 %v7341, 0.0
        %v7553 = vmax.f32 %v6574, 0.0
        %v7554 = vmax.f32 %v6576, 0.0
        %v7555 = vmax.f32 %v6831, 0.0
        %v7556 = vmax.f32 %v6833, 0.0
        %v7557 = vmax.f32 %v7088, 0.0
        %v7558 = vmax.f32 %v7090, 0.0
        %v7559 = vmax.f32 %v7345, 0.0
        %v7560 = vmax.f32 %v7347, 0.0
        %v7561 = vmax.f32 %v6580, 0.0
        %v7562 = vmax.f32 %v6582, 0.0
        %v7563 = vmax.f32 %v6837, 0.0
        %v7564 = vmax.f32 %v6839, 0.0
        %v7565 = vmax.f32 %v7094, 0.0
        %v7566 = vmax.f32 %v7096, 0.0
        %v7567 = vmax.f32 %v7351, 0.0
        %v7568 = vmax.f32 %v7353, 0.0
        %v7569 = vmax.f32 %v6586, 0.0
        %v7570 = vmax.f32 %v6588, 0.0
        %v7571 = vmax.f32 %v6843, 0.0
        %v7572 = vmax.f32 %v6845, 0.0
        %v7573 = vmax.f32 %v7100, 0.0
        %v7574 = vmax.f32 %v7102, 0.0
        %v7575 = vmax.f32 %v7357, 0.0
        %v7576 = vmax.f32 %v7359, 0.0
        %v7577 = vmax.f32 %v6592, 0.0
        %v7578 = vmax.f32 %v6594, 0.0
        %v7579 = vmax.f32 %v6849, 0.0
        %v7580 = vmax.f32 %v6851, 0.0
        %v7581 = vmax.f32 %v7106, 0.0
        %v7582 = vmax.f32 %v7108, 0.0
        %v7583 = vmax.f32 %v7363, 0.0
        %v7584 = vmax.f32 %v7365, 0.0
        %v7585 = vmax.f32 %v6598, 0.0
        %v7586 = vmax.f32 %v6600, 0.0
        %v7587 = vmax.f32 %v6855, 0.0
        %v7588 = vmax.f32 %v6857, 0.0
        %v7589 = vmax.f32 %v7112, 0.0
        %v7590 = vmax.f32 %v7114, 0.0
        %v7591 = vmax.f32 %v7369, 0.0
        %v7592 = vmax.f32 %v7371, 0.0
        %v7593 = vmax.f32 %v6604, 0.0
        %v7594 = vmax.f32 %v6606, 0.0
        %v7595 = vmax.f32 %v6861, 0.0
        %v7596 = vmax.f32 %v6863, 0.0
        %v7597 = vmax.f32 %v7118, 0.0
        %v7598 = vmax.f32 %v7120, 0.0
        %v7599 = vmax.f32 %v7375, 0.0
        %v7600 = vmax.f32 %v7377, 0.0
        %v7601 = vmax.f32 %v6610, 0.0
        %v7602 = vmax.f32 %v6612, 0.0
        %v7603 = vmax.f32 %v6867, 0.0
        %v7604 = vmax.f32 %v6869, 0.0
        %v7605 = vmax.f32 %v7124, 0.0
        %v7606 = vmax.f32 %v7126, 0.0
        %v7607 = vmax.f32 %v7381, 0.0
        %v7608 = vmax.f32 %v7383, 0.0
        %v7609 = vmax.f32 %v6616, 0.0
        %v7610 = vmax.f32 %v6618, 0.0
        %v7611 = vmax.f32 %v6873, 0.0
        %v7612 = vmax.f32 %v6875, 0.0
        %v7613 = vmax.f32 %v7130, 0.0
        %v7614 = vmax.f32 %v7132, 0.0
        %v7615 = vmax.f32 %v7387, 0.0
        %v7616 = vmax.f32 %v7389, 0.0
        %v7617 = vmax.f32 %v6622, 0.0
        %v7618 = vmax.f32 %v6624, 0.0
        %v7619 = vmax.f32 %v6879, 0.0
        %v7620 = vmax.f32 %v6881, 0.0
        %v7621 = vmax.f32 %v7136, 0.0
        %v7622 = vmax.f32 %v7138, 0.0
        %v7623 = vmax.f32 %v7393, 0.0
        %v7624 = vmax.f32 %v7395, 0.0
        %v7625 = vmax.f32 %v6628, 0.0
        %v7626 = vmax.f32 %v6630, 0.0
        %v7627 = vmax.f32 %v6885, 0.0
        %v7628 = vmax.f32 %v6887, 0.0
        %v7629 = vmax.f32 %v7142, 0.0
        %v7630 = vmax.f32 %v7144, 0.0
        %v7631 = vmax.f32 %v7399, 0.0
        %v7632 = vmax.f32 %v7401, 0.0
        %v7633 = vmax.f32 %v6634, 0.0
        %v7634 = vmax.f32 %v6636, 0.0
        %v7635 = vmax.f32 %v6891, 0.0
        %v7636 = vmax.f32 %v6893, 0.0
        %v7637 = vmax.f32 %v7148, 0.0
        %v7638 = vmax.f32 %v7150, 0.0
        %v7639 = vmax.f32 %v7405, 0.0
        %v7640 = vmax.f32 %v7407, 0.0
        %v7641 = vmax.f32 %v6640, 0.0
        %v7642 = vmax.f32 %v6642, 0.0
        %v7643 = vmax.f32 %v6897, 0.0
        %v7644 = vmax.f32 %v6899, 0.0
        %v7645 = vmax.f32 %v7154, 0.0
        %v7646 = vmax.f32 %v7156, 0.0
        %v7647 = vmax.f32 %v7411, 0.0
        %v7648 = vmax.f32 %v7413, 0.0
        %v7649 = vmax.f32 %v6646, 0.0
        %v7650 = vmax.f32 %v6648, 0.0
        %v7651 = vmax.f32 %v6903, 0.0
        %v7652 = vmax.f32 %v6905, 0.0
        %v7653 = vmax.f32 %v7160, 0.0
        %v7654 = vmax.f32 %v7162, 0.0
        %v7655 = vmax.f32 %v7417, 0.0
        %v7656 = vmax.f32 %v7419, 0.0
        %v7657 = vmax.f32 %v6652, 0.0
        %v7658 = vmax.f32 %v6654, 0.0
        %v7659 = vmax.f32 %v6909, 0.0
        %v7660 = vmax.f32 %v6911, 0.0
        %v7661 = vmax.f32 %v7166, 0.0
        %v7662 = vmax.f32 %v7168, 0.0
        %v7663 = vmax.f32 %v7423, 0.0
        %v7664 = vmax.f32 %v7425, 0.0
        %v7665 = vmax.f32 %v6658, 0.0
        %v7666 = vmax.f32 %v6660, 0.0
        %v7667 = vmax.f32 %v6915, 0.0
        %v7668 = vmax.f32 %v6917, 0.0
        %v7669 = vmax.f32 %v7172, 0.0
        %v7670 = vmax.f32 %v7174, 0.0
        %v7671 = vmax.f32 %v7429, 0.0
        %v7672 = vmax.f32 %v7431, 0.0
        %v7673 = vmax.f32 %v6664, 0.0
        %v7674 = vmax.f32 %v6666, 0.0
        %v7675 = vmax.f32 %v6921, 0.0
        %v7676 = vmax.f32 %v6923, 0.0
        %v7677 = vmax.f32 %v7178, 0.0
        %v7678 = vmax.f32 %v7180, 0.0
        %v7679 = vmax.f32 %v7435, 0.0
        %v7680 = vmax.f32 %v7437, 0.0
        %v7681 = vmax.f32 %v6670, 0.0
        %v7682 = vmax.f32 %v6672, 0.0
        %v7683 = vmax.f32 %v6927, 0.0
        %v7684 = vmax.f32 %v6929, 0.0
        %v7685 = vmax.f32 %v7184, 0.0
        %v7686 = vmax.f32 %v7186, 0.0
        %v7687 = vmax.f32 %v7441, 0.0
        %v7688 = vmax.f32 %v7443, 0.0
        %v7689 = vmax.f32 %v6676, 0.0
        %v7690 = vmax.f32 %v6678, 0.0
        %v7691 = vmax.f32 %v6933, 0.0
        %v7692 = vmax.f32 %v6935, 0.0
        %v7693 = vmax.f32 %v7190, 0.0
        %v7694 = vmax.f32 %v7192, 0.0
        %v7695 = vmax.f32 %v7447, 0.0
        %v7696 = vmax.f32 %v7449, 0.0
        %v7697 = vmax.f32 %v6682, 0.0
        %v7698 = vmax.f32 %v6684, 0.0
        %v7699 = vmax.f32 %v6939, 0.0
        %v7700 = vmax.f32 %v6941, 0.0
        %v7701 = vmax.f32 %v7196, 0.0
        %v7702 = vmax.f32 %v7198, 0.0
        %v7703 = vmax.f32 %v7453, 0.0
        %v7704 = vmax.f32 %v7455, 0.0
        %v7705 = vmax.f32 %v6688, 0.0
        %v7706 = vmax.f32 %v6690, 0.0
        %v7707 = vmax.f32 %v6945, 0.0
        %v7708 = vmax.f32 %v6947, 0.0
        %v7709 = vmax.f32 %v7202, 0.0
        %v7710 = vmax.f32 %v7204, 0.0
        %v7711 = vmax.f32 %v7459, 0.0
        %v7712 = vmax.f32 %v7461, 0.0
        %v7713 = vmax.f32 %v6694, 0.0
        %v7714 = vmax.f32 %v6696, 0.0
        %v7715 = vmax.f32 %v6951, 0.0
        %v7716 = vmax.f32 %v6953, 0.0
        %v7717 = vmax.f32 %v7208, 0.0
        %v7718 = vmax.f32 %v7210, 0.0
        %v7719 = vmax.f32 %v7465, 0.0
        %v7720 = vmax.f32 %v7467, 0.0
        %v7721 = vmax.f32 %v6700, 0.0
        %v7722 = vmax.f32 %v6702, 0.0
        %v7723 = vmax.f32 %v6957, 0.0
        %v7724 = vmax.f32 %v6959, 0.0
        %v7725 = vmax.f32 %v7214, 0.0
        %v7726 = vmax.f32 %v7216, 0.0
        %v7727 = vmax.f32 %v7471, 0.0
        %v7728 = vmax.f32 %v7473, 0.0
        %v7729 = vmax.f32 %v6706, 0.0
        %v7730 = vmax.f32 %v6708, 0.0
        %v7731 = vmax.f32 %v6963, 0.0
        %v7732 = vmax.f32 %v6965, 0.0
        %v7733 = vmax.f32 %v7220, 0.0
        %v7734 = vmax.f32 %v7222, 0.0
        %v7735 = vmax.f32 %v7477, 0.0
        %v7736 = vmax.f32 %v7479, 0.0
        %v7737 = vld [vmem:[#allocation10] sm:$0xff]
        %v7738 = vld [vmem:[#allocation10 + $0x8] sm:$0xff]
        %v7739 = vld [vmem:[#allocation10 + $0x10] sm:$0xff]
        %v7740 = vld [vmem:[#allocation10 + $0x18] sm:$0xff]
        %v7741 = vld [vmem:[#allocation10 + $0x20] sm:$0xff]
        %v7742 = vld [vmem:[#allocation10 + $0x28] sm:$0xff]
        %v7743 = vld [vmem:[#allocation10 + $0x30] sm:$0xff]
        %v7744 = vld [vmem:[#allocation10 + $0x38] sm:$0xff]
        %v7745 = vld [vmem:[#allocation10 + $0x40] sm:$0xff]
        %v7746 = vld [vmem:[#allocation10 + $0x48] sm:$0xff]
        %v7747 = vld [vmem:[#allocation10 + $0x50] sm:$0xff]
        %v7748 = vld [vmem:[#allocation10 + $0x58] sm:$0xff]
        %v7749 = vld [vmem:[#allocation10 + $0x60] sm:$0xff]
        %v7750 = vld [vmem:[#allocation10 + $0x68] sm:$0xff]
        %v7751 = vld [vmem:[#allocation10 + $0x70] sm:$0xff]
        %v7752 = vld [vmem:[#allocation10 + $0x78] sm:$0xff]
        %v7753 = vld [vmem:[#allocation10 + $0x80] sm:$0xff]
        %v7754 = vld [vmem:[#allocation10 + $0x88] sm:$0xff]
        %v7755 = vld [vmem:[#allocation10 + $0x90] sm:$0xff]
        %v7756 = vld [vmem:[#allocation10 + $0x98] sm:$0xff]
        %v7757 = vld [vmem:[#allocation10 + $0xa0] sm:$0xff]
        %v7758 = vld [vmem:[#allocation10 + $0xa8] sm:$0xff]
        %v7759 = vld [vmem:[#allocation10 + $0xb0] sm:$0xff]
        %v7760 = vld [vmem:[#allocation10 + $0xb8] sm:$0xff]
        %v7761 = vld [vmem:[#allocation10 + $0xc0] sm:$0xff]
        %v7762 = vld [vmem:[#allocation10 + $0xc8] sm:$0xff]
        %v7763 = vld [vmem:[#allocation10 + $0xd0] sm:$0xff]
        %v7764 = vld [vmem:[#allocation10 + $0xd8] sm:$0xff]
        %v7765 = vld [vmem:[#allocation10 + $0xe0] sm:$0xff]
        %v7766 = vld [vmem:[#allocation10 + $0xe8] sm:$0xff]
        %v7767 = vld [vmem:[#allocation10 + $0xf0] sm:$0xff]
        %v7768 = vld [vmem:[#allocation10 + $0xf8] sm:$0xff]
        %v7769 = vld [vmem:[#allocation10 + $0x100] sm:$0xff]
        %v7770 = vld [vmem:[#allocation10 + $0x108] sm:$0xff]
        %v7771 = vld [vmem:[#allocation10 + $0x110] sm:$0xff]
        %v7772 = vld [vmem:[#allocation10 + $0x118] sm:$0xff]
        %v7773 = vld [vmem:[#allocation10 + $0x120] sm:$0xff]
        %v7774 = vld [vmem:[#allocation10 + $0x128] sm:$0xff]
        %v7775 = vld [vmem:[#allocation10 + $0x130] sm:$0xff]
        %v7776 = vld [vmem:[#allocation10 + $0x138] sm:$0xff]
        %v7777 = vld [vmem:[#allocation10 + $0x140] sm:$0xff]
        %v7778 = vld [vmem:[#allocation10 + $0x148] sm:$0xff]
        %v7779 = vld [vmem:[#allocation10 + $0x150] sm:$0xff]
        %v7780 = vld [vmem:[#allocation10 + $0x158] sm:$0xff]
        %v7781 = vld [vmem:[#allocation10 + $0x160] sm:$0xff]
        %v7782 = vld [vmem:[#allocation10 + $0x168] sm:$0xff]
        %v7783 = vld [vmem:[#allocation10 + $0x170] sm:$0xff]
        %v7784 = vld [vmem:[#allocation10 + $0x178] sm:$0xff]
        %v7785 = vld [vmem:[#allocation10 + $0x180] sm:$0xff]
        %v7786 = vld [vmem:[#allocation10 + $0x188] sm:$0xff]
        %v7787 = vld [vmem:[#allocation10 + $0x190] sm:$0xff]
        %v7788 = vld [vmem:[#allocation10 + $0x198] sm:$0xff]
        %v7789 = vld [vmem:[#allocation10 + $0x1a0] sm:$0xff]
        %v7790 = vld [vmem:[#allocation10 + $0x1a8] sm:$0xff]
        %v7791 = vld [vmem:[#allocation10 + $0x1b0] sm:$0xff]
        %v7792 = vld [vmem:[#allocation10 + $0x1b8] sm:$0xff]
        %v7793 = vld [vmem:[#allocation10 + $0x1c0] sm:$0xff]
        %v7794 = vld [vmem:[#allocation10 + $0x1c8] sm:$0xff]
        %v7795 = vld [vmem:[#allocation10 + $0x1d0] sm:$0xff]
        %v7796 = vld [vmem:[#allocation10 + $0x1d8] sm:$0xff]
        %v7797 = vld [vmem:[#allocation10 + $0x1e0] sm:$0xff]
        %v7798 = vld [vmem:[#allocation10 + $0x1e8] sm:$0xff]
        %v7799 = vld [vmem:[#allocation10 + $0x1f0] sm:$0xff]
        %v7800 = vld [vmem:[#allocation10 + $0x1f8] sm:$0xff]
        %v7801 = vld [vmem:[#allocation10 + $0x200] sm:$0xff]
        %v7802 = vld [vmem:[#allocation10 + $0x208] sm:$0xff]
        %v7803 = vld [vmem:[#allocation10 + $0x210] sm:$0xff]
        %v7804 = vld [vmem:[#allocation10 + $0x218] sm:$0xff]
        %v7805 = vld [vmem:[#allocation10 + $0x220] sm:$0xff]
        %v7806 = vld [vmem:[#allocation10 + $0x228] sm:$0xff]
        %v7807 = vld [vmem:[#allocation10 + $0x230] sm:$0xff]
        %v7808 = vld [vmem:[#allocation10 + $0x238] sm:$0xff]
        %v7809 = vld [vmem:[#allocation10 + $0x240] sm:$0xff]
        %v7810 = vld [vmem:[#allocation10 + $0x248] sm:$0xff]
        %v7811 = vld [vmem:[#allocation10 + $0x250] sm:$0xff]
        %v7812 = vld [vmem:[#allocation10 + $0x258] sm:$0xff]
        %v7813 = vld [vmem:[#allocation10 + $0x260] sm:$0xff]
        %v7814 = vld [vmem:[#allocation10 + $0x268] sm:$0xff]
        %v7815 = vld [vmem:[#allocation10 + $0x270] sm:$0xff]
        %v7816 = vld [vmem:[#allocation10 + $0x278] sm:$0xff]
        %v7817 = vld [vmem:[#allocation10 + $0x280] sm:$0xff]
        %v7818 = vld [vmem:[#allocation10 + $0x288] sm:$0xff]
        %v7819 = vld [vmem:[#allocation10 + $0x290] sm:$0xff]
        %v7820 = vld [vmem:[#allocation10 + $0x298] sm:$0xff]
        %v7821 = vld [vmem:[#allocation10 + $0x2a0] sm:$0xff]
        %v7822 = vld [vmem:[#allocation10 + $0x2a8] sm:$0xff]
        %v7823 = vld [vmem:[#allocation10 + $0x2b0] sm:$0xff]
        %v7824 = vld [vmem:[#allocation10 + $0x2b8] sm:$0xff]
        %v7825 = vld [vmem:[#allocation10 + $0x2c0] sm:$0xff]
        %v7826 = vld [vmem:[#allocation10 + $0x2c8] sm:$0xff]
        %v7827 = vld [vmem:[#allocation10 + $0x2d0] sm:$0xff]
        %v7828 = vld [vmem:[#allocation10 + $0x2d8] sm:$0xff]
        %v7829 = vld [vmem:[#allocation10 + $0x2e0] sm:$0xff]
        %v7830 = vld [vmem:[#allocation10 + $0x2e8] sm:$0xff]
        %v7831 = vld [vmem:[#allocation10 + $0x2f0] sm:$0xff]
        %v7832 = vld [vmem:[#allocation10 + $0x2f8] sm:$0xff]
        %v7833 = vld [vmem:[#allocation10 + $0x300] sm:$0xff]
        %v7834 = vld [vmem:[#allocation10 + $0x308] sm:$0xff]
        %v7835 = vld [vmem:[#allocation10 + $0x310] sm:$0xff]
        %v7836 = vld [vmem:[#allocation10 + $0x318] sm:$0xff]
        %v7837 = vld [vmem:[#allocation10 + $0x320] sm:$0xff]
        %v7838 = vld [vmem:[#allocation10 + $0x328] sm:$0xff]
        %v7839 = vld [vmem:[#allocation10 + $0x330] sm:$0xff]
        %v7840 = vld [vmem:[#allocation10 + $0x338] sm:$0xff]
        %v7841 = vld [vmem:[#allocation10 + $0x340] sm:$0xff]
        %v7842 = vld [vmem:[#allocation10 + $0x348] sm:$0xff]
        %v7843 = vld [vmem:[#allocation10 + $0x350] sm:$0xff]
        %v7844 = vld [vmem:[#allocation10 + $0x358] sm:$0xff]
        %v7845 = vld [vmem:[#allocation10 + $0x360] sm:$0xff]
        %v7846 = vld [vmem:[#allocation10 + $0x368] sm:$0xff]
        %v7847 = vld [vmem:[#allocation10 + $0x370] sm:$0xff]
        %v7848 = vld [vmem:[#allocation10 + $0x378] sm:$0xff]
        %v7849 = vld [vmem:[#allocation10 + $0x380] sm:$0xff]
        %v7850 = vld [vmem:[#allocation10 + $0x388] sm:$0xff]
        %v7851 = vld [vmem:[#allocation10 + $0x390] sm:$0xff]
        %v7852 = vld [vmem:[#allocation10 + $0x398] sm:$0xff]
        %v7853 = vld [vmem:[#allocation10 + $0x3a0] sm:$0xff]
        %v7854 = vld [vmem:[#allocation10 + $0x3a8] sm:$0xff]
        %v7855 = vld [vmem:[#allocation10 + $0x3b0] sm:$0xff]
        %v7856 = vld [vmem:[#allocation10 + $0x3b8] sm:$0xff]
        %v7857 = vld [vmem:[#allocation10 + $0x3c0] sm:$0xff]
        %v7858 = vld [vmem:[#allocation10 + $0x3c8] sm:$0xff]
        %v7859 = vld [vmem:[#allocation10 + $0x3d0] sm:$0xff]
        %v7860 = vld [vmem:[#allocation10 + $0x3d8] sm:$0xff]
        %v7861 = vld [vmem:[#allocation10 + $0x3e0] sm:$0xff]
        %v7862 = vld [vmem:[#allocation10 + $0x3e8] sm:$0xff]
        %v7863 = vld [vmem:[#allocation10 + $0x3f0] sm:$0xff]
        %v7864 = vld [vmem:[#allocation10 + $0x3f8] sm:$0xff]
        %v7865 = vld [vmem:[#allocation10 + $0x400] sm:$0xff]
        %v7866 = vld [vmem:[#allocation10 + $0x408] sm:$0xff]
        %v7867 = vld [vmem:[#allocation10 + $0x410] sm:$0xff]
        %v7868 = vld [vmem:[#allocation10 + $0x418] sm:$0xff]
        %v7869 = vld [vmem:[#allocation10 + $0x420] sm:$0xff]
        %v7870 = vld [vmem:[#allocation10 + $0x428] sm:$0xff]
        %v7871 = vld [vmem:[#allocation10 + $0x430] sm:$0xff]
        %v7872 = vld [vmem:[#allocation10 + $0x438] sm:$0xff]
        %v7873 = vld [vmem:[#allocation10 + $0x440] sm:$0xff]
        %v7874 = vld [vmem:[#allocation10 + $0x448] sm:$0xff]
        %v7875 = vld [vmem:[#allocation10 + $0x450] sm:$0xff]
        %v7876 = vld [vmem:[#allocation10 + $0x458] sm:$0xff]
        %v7877 = vld [vmem:[#allocation10 + $0x460] sm:$0xff]
        %v7878 = vld [vmem:[#allocation10 + $0x468] sm:$0xff]
        %v7879 = vld [vmem:[#allocation10 + $0x470] sm:$0xff]
        %v7880 = vld [vmem:[#allocation10 + $0x478] sm:$0xff]
        %v7881 = vld [vmem:[#allocation10 + $0x480] sm:$0xff]
        %v7882 = vld [vmem:[#allocation10 + $0x488] sm:$0xff]
        %v7883 = vld [vmem:[#allocation10 + $0x490] sm:$0xff]
        %v7884 = vld [vmem:[#allocation10 + $0x498] sm:$0xff]
        %v7885 = vld [vmem:[#allocation10 + $0x4a0] sm:$0xff]
        %v7886 = vld [vmem:[#allocation10 + $0x4a8] sm:$0xff]
        %v7887 = vld [vmem:[#allocation10 + $0x4b0] sm:$0xff]
        %v7888 = vld [vmem:[#allocation10 + $0x4b8] sm:$0xff]
        %v7889 = vld [vmem:[#allocation10 + $0x4c0] sm:$0xff]
        %v7890 = vld [vmem:[#allocation10 + $0x4c8] sm:$0xff]
        %v7891 = vld [vmem:[#allocation10 + $0x4d0] sm:$0xff]
        %v7892 = vld [vmem:[#allocation10 + $0x4d8] sm:$0xff]
        %v7893 = vld [vmem:[#allocation10 + $0x4e0] sm:$0xff]
        %v7894 = vld [vmem:[#allocation10 + $0x4e8] sm:$0xff]
        %v7895 = vld [vmem:[#allocation10 + $0x4f0] sm:$0xff]
        %v7896 = vld [vmem:[#allocation10 + $0x4f8] sm:$0xff]
        %v7897 = vld [vmem:[#allocation10 + $0x500] sm:$0xff]
        %v7898 = vld [vmem:[#allocation10 + $0x508] sm:$0xff]
        %v7899 = vld [vmem:[#allocation10 + $0x510] sm:$0xff]
        %v7900 = vld [vmem:[#allocation10 + $0x518] sm:$0xff]
        %v7901 = vld [vmem:[#allocation10 + $0x520] sm:$0xff]
        %v7902 = vld [vmem:[#allocation10 + $0x528] sm:$0xff]
        %v7903 = vld [vmem:[#allocation10 + $0x530] sm:$0xff]
        %v7904 = vld [vmem:[#allocation10 + $0x538] sm:$0xff]
        %v7905 = vld [vmem:[#allocation10 + $0x540] sm:$0xff]
        %v7906 = vld [vmem:[#allocation10 + $0x548] sm:$0xff]
        %v7907 = vld [vmem:[#allocation10 + $0x550] sm:$0xff]
        %v7908 = vld [vmem:[#allocation10 + $0x558] sm:$0xff]
        %v7909 = vld [vmem:[#allocation10 + $0x560] sm:$0xff]
        %v7910 = vld [vmem:[#allocation10 + $0x568] sm:$0xff]
        %v7911 = vld [vmem:[#allocation10 + $0x570] sm:$0xff]
        %v7912 = vld [vmem:[#allocation10 + $0x578] sm:$0xff]
        %v7913 = vld [vmem:[#allocation10 + $0x580] sm:$0xff]
        %v7914 = vld [vmem:[#allocation10 + $0x588] sm:$0xff]
        %v7915 = vld [vmem:[#allocation10 + $0x590] sm:$0xff]
        %v7916 = vld [vmem:[#allocation10 + $0x598] sm:$0xff]
        %v7917 = vld [vmem:[#allocation10 + $0x5a0] sm:$0xff]
        %v7918 = vld [vmem:[#allocation10 + $0x5a8] sm:$0xff]
        %v7919 = vld [vmem:[#allocation10 + $0x5b0] sm:$0xff]
        %v7920 = vld [vmem:[#allocation10 + $0x5b8] sm:$0xff]
        %v7921 = vld [vmem:[#allocation10 + $0x5c0] sm:$0xff]
        %v7922 = vld [vmem:[#allocation10 + $0x5c8] sm:$0xff]
        %v7923 = vld [vmem:[#allocation10 + $0x5d0] sm:$0xff]
        %v7924 = vld [vmem:[#allocation10 + $0x5d8] sm:$0xff]
        %v7925 = vld [vmem:[#allocation10 + $0x5e0] sm:$0xff]
        %v7926 = vld [vmem:[#allocation10 + $0x5e8] sm:$0xff]
        %v7927 = vld [vmem:[#allocation10 + $0x5f0] sm:$0xff]
        %v7928 = vld [vmem:[#allocation10 + $0x5f8] sm:$0xff]
        %v7929 = vld [vmem:[#allocation10 + $0x600] sm:$0xff]
        %v7930 = vld [vmem:[#allocation10 + $0x608] sm:$0xff]
        %v7931 = vld [vmem:[#allocation10 + $0x610] sm:$0xff]
        %v7932 = vld [vmem:[#allocation10 + $0x618] sm:$0xff]
        %v7933 = vld [vmem:[#allocation10 + $0x620] sm:$0xff]
        %v7934 = vld [vmem:[#allocation10 + $0x628] sm:$0xff]
        %v7935 = vld [vmem:[#allocation10 + $0x630] sm:$0xff]
        %v7936 = vld [vmem:[#allocation10 + $0x638] sm:$0xff]
        %v7937 = vld [vmem:[#allocation10 + $0x640] sm:$0xff]
        %v7938 = vld [vmem:[#allocation10 + $0x648] sm:$0xff]
        %v7939 = vld [vmem:[#allocation10 + $0x650] sm:$0xff]
        %v7940 = vld [vmem:[#allocation10 + $0x658] sm:$0xff]
        %v7941 = vld [vmem:[#allocation10 + $0x660] sm:$0xff]
        %v7942 = vld [vmem:[#allocation10 + $0x668] sm:$0xff]
        %v7943 = vld [vmem:[#allocation10 + $0x670] sm:$0xff]
        %v7944 = vld [vmem:[#allocation10 + $0x678] sm:$0xff]
        %v7945 = vld [vmem:[#allocation10 + $0x680] sm:$0xff]
        %v7946 = vld [vmem:[#allocation10 + $0x688] sm:$0xff]
        %v7947 = vld [vmem:[#allocation10 + $0x690] sm:$0xff]
        %v7948 = vld [vmem:[#allocation10 + $0x698] sm:$0xff]
        %v7949 = vld [vmem:[#allocation10 + $0x6a0] sm:$0xff]
        %v7950 = vld [vmem:[#allocation10 + $0x6a8] sm:$0xff]
        %v7951 = vld [vmem:[#allocation10 + $0x6b0] sm:$0xff]
        %v7952 = vld [vmem:[#allocation10 + $0x6b8] sm:$0xff]
        %v7953 = vld [vmem:[#allocation10 + $0x6c0] sm:$0xff]
        %v7954 = vld [vmem:[#allocation10 + $0x6c8] sm:$0xff]
        %v7955 = vld [vmem:[#allocation10 + $0x6d0] sm:$0xff]
        %v7956 = vld [vmem:[#allocation10 + $0x6d8] sm:$0xff]
        %v7957 = vld [vmem:[#allocation10 + $0x6e0] sm:$0xff]
        %v7958 = vld [vmem:[#allocation10 + $0x6e8] sm:$0xff]
        %v7959 = vld [vmem:[#allocation10 + $0x6f0] sm:$0xff]
        %v7960 = vld [vmem:[#allocation10 + $0x6f8] sm:$0xff]
        %v7961 = vld [vmem:[#allocation10 + $0x700] sm:$0xff]
        %v7962 = vld [vmem:[#allocation10 + $0x708] sm:$0xff]
        %v7963 = vld [vmem:[#allocation10 + $0x710] sm:$0xff]
        %v7964 = vld [vmem:[#allocation10 + $0x718] sm:$0xff]
        %v7965 = vld [vmem:[#allocation10 + $0x720] sm:$0xff]
        %v7966 = vld [vmem:[#allocation10 + $0x728] sm:$0xff]
        %v7967 = vld [vmem:[#allocation10 + $0x730] sm:$0xff]
        %v7968 = vld [vmem:[#allocation10 + $0x738] sm:$0xff]
        %v7969 = vld [vmem:[#allocation10 + $0x740] sm:$0xff]
        %v7970 = vld [vmem:[#allocation10 + $0x748] sm:$0xff]
        %v7971 = vld [vmem:[#allocation10 + $0x750] sm:$0xff]
        %v7972 = vld [vmem:[#allocation10 + $0x758] sm:$0xff]
        %v7973 = vld [vmem:[#allocation10 + $0x760] sm:$0xff]
        %v7974 = vld [vmem:[#allocation10 + $0x768] sm:$0xff]
        %v7975 = vld [vmem:[#allocation10 + $0x770] sm:$0xff]
        %v7976 = vld [vmem:[#allocation10 + $0x778] sm:$0xff]
        %v7977 = vld [vmem:[#allocation10 + $0x780] sm:$0xff]
        %v7978 = vld [vmem:[#allocation10 + $0x788] sm:$0xff]
        %v7979 = vld [vmem:[#allocation10 + $0x790] sm:$0xff]
        %v7980 = vld [vmem:[#allocation10 + $0x798] sm:$0xff]
        %v7981 = vld [vmem:[#allocation10 + $0x7a0] sm:$0xff]
        %v7982 = vld [vmem:[#allocation10 + $0x7a8] sm:$0xff]
        %v7983 = vld [vmem:[#allocation10 + $0x7b0] sm:$0xff]
        %v7984 = vld [vmem:[#allocation10 + $0x7b8] sm:$0xff]
        %v7985 = vld [vmem:[#allocation10 + $0x7c0] sm:$0xff]
        %v7986 = vld [vmem:[#allocation10 + $0x7c8] sm:$0xff]
        %v7987 = vld [vmem:[#allocation10 + $0x7d0] sm:$0xff]
        %v7988 = vld [vmem:[#allocation10 + $0x7d8] sm:$0xff]
        %v7989 = vld [vmem:[#allocation10 + $0x7e0] sm:$0xff]
        %v7990 = vld [vmem:[#allocation10 + $0x7e8] sm:$0xff]
        %v7991 = vld [vmem:[#allocation10 + $0x7f0] sm:$0xff]
        %v7992 = vld [vmem:[#allocation10 + $0x7f8] sm:$0xff]
        %v7993 = vlaneseq
        %v7994 = vshrl.u32 %v7993, 7
        %v7995 = vsub.s32 3, %v7994
        %v7996 = vrot.slane %v371, %v7995
        %v7997 = vlaneseq
        %v7998 = vshrl.u32 %v7997, 7
        %v7999 = vsub.s32 3, %v7998
        %v8000 = vrot.slane %v372, %v7999
        %8001 = vmatprep.subr.mxu0 %v7738
        %8002 = vmatpush1.msra.mxu0 %v7737
        %8003 = vmatprep.subr.mxu0 %v7740
        %8004 = vmatpush1.msra.mxu0 %v7739
        %8005 = vmatprep.subr.mxu0 %v7742
        %8006 = vmatpush1.msra.mxu0 %v7741
        %8007 = vmatprep.subr.mxu0 %v7744
        %8008 = vmatpush1.msra.mxu0 %v7743
        %8009 = vmatprep.subr.mxu0 %v7746
        %8010 = vmatpush1.msra.mxu0 %v7745
        %8011 = vmatprep.subr.mxu0 %v7748
        %8012 = vmatpush1.msra.mxu0 %v7747
        %8013 = vmatprep.subr.mxu0 %v7750
        %8014 = vmatpush1.msra.mxu0 %v7749
        %8015 = vmatprep.subr.mxu0 %v7752
        %8016 = vmatpush1.msra.mxu0 %v7751
        %8017 = vmatprep.subr.mxu0 %v7754
        %8018 = vmatpush1.msra.mxu0 %v7753
        %8019 = vmatprep.subr.mxu0 %v7756
        %8020 = vmatpush1.msra.mxu0 %v7755
        %8021 = vmatprep.subr.mxu0 %v7758
        %8022 = vmatpush1.msra.mxu0 %v7757
        %8023 = vmatprep.subr.mxu0 %v7760
        %8024 = vmatpush1.msra.mxu0 %v7759
        %8025 = vmatprep.subr.mxu0 %v7762
        %8026 = vmatpush1.msra.mxu0 %v7761
        %8027 = vmatprep.subr.mxu0 %v7764
        %8028 = vmatpush1.msra.mxu0 %v7763
        %8029 = vmatprep.subr.mxu0 %v7766
        %8030 = vmatpush1.msra.mxu0 %v7765
        %8031 = vmatprep.subr.mxu0 %v7768
        %8032 = vmatpush1.msra.mxu0 %v7767
        %8033 = vmatprep.subr.mxu0 %v7770
        %8034 = vmatpush1.msra.mxu0 %v7769
        %8035 = vmatprep.subr.mxu0 %v7772
        %8036 = vmatpush1.msra.mxu0 %v7771
        %8037 = vmatprep.subr.mxu0 %v7774
        %8038 = vmatpush1.msra.mxu0 %v7773
        %8039 = vmatprep.subr.mxu0 %v7776
        %8040 = vmatpush1.msra.mxu0 %v7775
        %8041 = vmatprep.subr.mxu0 %v7778
        %8042 = vmatpush1.msra.mxu0 %v7777
        %8043 = vmatprep.subr.mxu0 %v7780
        %8044 = vmatpush1.msra.mxu0 %v7779
        %8045 = vmatprep.subr.mxu0 %v7782
        %8046 = vmatpush1.msra.mxu0 %v7781
        %8047 = vmatprep.subr.mxu0 %v7784
        %8048 = vmatpush1.msra.mxu0 %v7783
        %8049 = vmatprep.subr.mxu0 %v7786
        %8050 = vmatpush1.msra.mxu0 %v7785
        %8051 = vmatprep.subr.mxu0 %v7788
        %8052 = vmatpush1.msra.mxu0 %v7787
        %8053 = vmatprep.subr.mxu0 %v7790
        %8054 = vmatpush1.msra.mxu0 %v7789
        %8055 = vmatprep.subr.mxu0 %v7792
        %8056 = vmatpush1.msra.mxu0 %v7791
        %8057 = vmatprep.subr.mxu0 %v7794
        %8058 = vmatpush1.msra.mxu0 %v7793
        %8059 = vmatprep.subr.mxu0 %v7796
        %8060 = vmatpush1.msra.mxu0 %v7795
        %8061 = vmatprep.subr.mxu0 %v7798
        %8062 = vmatpush1.msra.mxu0 %v7797
        %8063 = vmatprep.subr.mxu0 %v7800
        %8064 = vmatpush1.msra.mxu0 %v7799
        %8065 = vmatprep.mubr.f32.mxu0 %v7482
        %8066 = vmatmul.mubr.f32.gmra.mrb[0].mxu0 %v7481
        %v8067 = vpop.f32.mrb[0].mxu0
        %v8068 = vadd.f32 %v7996, %v8067
        %v8069 = vpop.f32.mrb[0].mxu0
        %v8070 = vadd.f32 %v8000, %v8069
        %8071 = vmatprep.mubr.f32.mxu0 %v7490
        %8072 = vmatmul.mubr.f32.gmra.mrb[0].mxu0 %v7489
        %v8073 = vpop.f32.mrb[0].mxu0
        %v8074 = vadd.f32 %v7996, %v8073
        %v8075 = vpop.f32.mrb[0].mxu0
        %v8076 = vadd.f32 %v8000, %v8075
        %8077 = vmatprep.mubr.f32.mxu0 %v7498
        %8078 = vmatmul.mubr.f32.gmra.mrb[0].mxu0 %v7497
        %v8079 = vpop.f32.mrb[0].mxu0
        %v8080 = vadd.f32 %v7996, %v8079
        %v8081 = vpop.f32.mrb[0].mxu0
        %v8082 = vadd.f32 %v8000, %v8081
        %8083 = vmatprep.mubr.f32.mxu0 %v7506
        %8084 = vmatmul.mubr.f32.gmra.mrb[0].mxu0 %v7505
        %v8085 = vpop.f32.mrb[0].mxu0
        %v8086 = vadd.f32 %v7996, %v8085
        %v8087 = vpop.f32.mrb[0].mxu0
        %v8088 = vadd.f32 %v8000, %v8087
        %8089 = vmatprep.mubr.f32.mxu0 %v7514
        %8090 = vmatmul.mubr.f32.gmra.mrb[0].mxu0 %v7513
        %v8091 = vpop.f32.mrb[0].mxu0
        %v8092 = vadd.f32 %v7996, %v8091
        %v8093 = vpop.f32.mrb[0].mxu0
        %v8094 = vadd.f32 %v8000, %v8093
        %8095 = vmatprep.mubr.f32.mxu0 %v7522
        %8096 = vmatmul.mubr.f32.gmra.mrb[0].mxu0 %v7521
        %v8097 = vpop.f32.mrb[0].mxu0
        %v8098 = vadd.f32 %v7996, %v8097
        %v8099 = vpop.f32.mrb[0].mxu0
        %v8100 = vadd.f32 %v8000, %v8099
        %8101 = vmatprep.mubr.f32.mxu0 %v7530
        %8102 = vmatmul.mubr.f32.gmra.mrb[0].mxu0 %v7529
        %v8103 = vpop.f32.mrb[0].mxu0
        %v8104 = vadd.f32 %v7996, %v8103
        %v8105 = vpop.f32.mrb[0].mxu0
        %v8106 = vadd.f32 %v8000, %v8105
        %8107 = vmatprep.mubr.f32.mxu0 %v7538
        %8108 = vmatmul.mubr.f32.gmra.mrb[0].mxu0 %v7537
        %v8109 = vpop.f32.mrb[0].mxu0
        %v8110 = vadd.f32 %v7996, %v8109
        %v8111 = vpop.f32.mrb[0].mxu0
        %v8112 = vadd.f32 %v8000, %v8111
        %8113 = vmatprep.mubr.f32.mxu0 %v7546
        %8114 = vmatmul.mubr.f32.gmra.mrb[0].mxu0 %v7545
        %v8115 = vpop.f32.mrb[0].mxu0
        %v8116 = vadd.f32 %v7996, %v8115
        %v8117 = vpop.f32.mrb[0].mxu0
        %v8118 = vadd.f32 %v8000, %v8117
        %8119 = vmatprep.mubr.f32.mxu0 %v7554
        %8120 = vmatmul.mubr.f32.gmra.mrb[0].mxu0 %v7553
        %v8121 = vpop.f32.mrb[0].mxu0
        %v8122 = vadd.f32 %v7996, %v8121
        %v8123 = vpop.f32.mrb[0].mxu0
        %v8124 = vadd.f32 %v8000, %v8123
        %8125 = vmatprep.mubr.f32.mxu0 %v7562
        %8126 = vmatmul.mubr.f32.gmra.mrb[0].mxu0 %v7561
        %v8127 = vpop.f32.mrb[0].mxu0
        %v8128 = vadd.f32 %v7996, %v8127
        %v8129 = vpop.f32.mrb[0].mxu0
        %v8130 = vadd.f32 %v8000, %v8129
        %8131 = vmatprep.mubr.f32.mxu0 %v7570
        %8132 = vmatmul.mubr.f32.gmra.mrb[0].mxu0 %v7569
        %v8133 = vpop.f32.mrb[0].mxu0
        %v8134 = vadd.f32 %v7996, %v8133
        %v8135 = vpop.f32.mrb[0].mxu0
        %v8136 = vadd.f32 %v8000, %v8135
        %8137 = vmatprep.mubr.f32.mxu0 %v7578
        %8138 = vmatmul.mubr.f32.gmra.mrb[0].mxu0 %v7577
        %v8139 = vpop.f32.mrb[0].mxu0
        %v8140 = vadd.f32 %v7996, %v8139
        %v8141 = vpop.f32.mrb[0].mxu0
        %v8142 = vadd.f32 %v8000, %v8141
        %8143 = vmatprep.mubr.f32.mxu0 %v7586
        %8144 = vmatmul.mubr.f32.gmra.mrb[0].mxu0 %v7585
        %v8145 = vpop.f32.mrb[0].mxu0
        %v8146 = vadd.f32 %v7996, %v8145
        %v8147 = vpop.f32.mrb[0].mxu0
        %v8148 = vadd.f32 %v8000, %v8147
        %8149 = vmatprep.mubr.f32.mxu0 %v7594
        %8150 = vmatmul.mubr.f32.gmra.mrb[0].mxu0 %v7593
        %v8151 = vpop.f32.mrb[0].mxu0
        %v8152 = vadd.f32 %v7996, %v8151
        %v8153 = vpop.f32.mrb[0].mxu0
        %v8154 = vadd.f32 %v8000, %v8153
        %8155 = vmatprep.mubr.f32.mxu0 %v7602
        %8156 = vmatmul.mubr.f32.gmra.mrb[0].mxu0 %v7601
        %v8157 = vpop.f32.mrb[0].mxu0
        %v8158 = vadd.f32 %v7996, %v8157
        %v8159 = vpop.f32.mrb[0].mxu0
        %v8160 = vadd.f32 %v8000, %v8159
        %8161 = vmatprep.mubr.f32.mxu0 %v7610
        %8162 = vmatmul.mubr.f32.gmra.mrb[0].mxu0 %v7609
        %v8163 = vpop.f32.mrb[0].mxu0
        %v8164 = vadd.f32 %v7996, %v8163
        %v8165 = vpop.f32.mrb[0].mxu0
        %v8166 = vadd.f32 %v8000, %v8165
        %8167 = vmatprep.mubr.f32.mxu0 %v7618
        %8168 = vmatmul.mubr.f32.gmra.mrb[0].mxu0 %v7617
        %v8169 = vpop.f32.mrb[0].mxu0
        %v8170 = vadd.f32 %v7996, %v8169
        %v8171 = vpop.f32.mrb[0].mxu0
        %v8172 = vadd.f32 %v8000, %v8171
        %8173 = vmatprep.mubr.f32.mxu0 %v7626
        %8174 = vmatmul.mubr.f32.gmra.mrb[0].mxu0 %v7625
        %v8175 = vpop.f32.mrb[0].mxu0
        %v8176 = vadd.f32 %v7996, %v8175
        %v8177 = vpop.f32.mrb[0].mxu0
        %v8178 = vadd.f32 %v8000, %v8177
        %8179 = vmatprep.mubr.f32.mxu0 %v7634
        %8180 = vmatmul.mubr.f32.gmra.mrb[0].mxu0 %v7633
        %v8181 = vpop.f32.mrb[0].mxu0
        %v8182 = vadd.f32 %v7996, %v8181
        %v8183 = vpop.f32.mrb[0].mxu0
        %v8184 = vadd.f32 %v8000, %v8183
        %8185 = vmatprep.mubr.f32.mxu0 %v7642
        %8186 = vmatmul.mubr.f32.gmra.mrb[0].mxu0 %v7641
        %v8187 = vpop.f32.mrb[0].mxu0
        %v8188 = vadd.f32 %v7996, %v8187
        %v8189 = vpop.f32.mrb[0].mxu0
        %v8190 = vadd.f32 %v8000, %v8189
        %8191 = vmatprep.mubr.f32.mxu0 %v7650
        %8192 = vmatmul.mubr.f32.gmra.mrb[0].mxu0 %v7649
        %v8193 = vpop.f32.mrb[0].mxu0
        %v8194 = vadd.f32 %v7996, %v8193
        %v8195 = vpop.f32.mrb[0].mxu0
        %v8196 = vadd.f32 %v8000, %v8195
        %8197 = vmatprep.mubr.f32.mxu0 %v7658
        %8198 = vmatmul.mubr.f32.gmra.mrb[0].mxu0 %v7657
        %v8199 = vpop.f32.mrb[0].mxu0
        %v8200 = vadd.f32 %v7996, %v8199
        %v8201 = vpop.f32.mrb[0].mxu0
        %v8202 = vadd.f32 %v8000, %v8201
        %8203 = vmatprep.mubr.f32.mxu0 %v7666
        %8204 = vmatmul.mubr.f32.gmra.mrb[0].mxu0 %v7665
        %v8205 = vpop.f32.mrb[0].mxu0
        %v8206 = vadd.f32 %v7996, %v8205
        %v8207 = vpop.f32.mrb[0].mxu0
        %v8208 = vadd.f32 %v8000, %v8207
        %8209 = vmatprep.mubr.f32.mxu0 %v7674
        %8210 = vmatmul.mubr.f32.gmra.mrb[0].mxu0 %v7673
        %v8211 = vpop.f32.mrb[0].mxu0
        %v8212 = vadd.f32 %v7996, %v8211
        %v8213 = vpop.f32.mrb[0].mxu0
        %v8214 = vadd.f32 %v8000, %v8213
        %8215 = vmatprep.mubr.f32.mxu0 %v7682
        %8216 = vmatmul.mubr.f32.gmra.mrb[0].mxu0 %v7681
        %v8217 = vpop.f32.mrb[0].mxu0
        %v8218 = vadd.f32 %v7996, %v8217
        %v8219 = vpop.f32.mrb[0].mxu0
        %v8220 = vadd.f32 %v8000, %v8219
        %8221 = vmatprep.mubr.f32.mxu0 %v7690
        %8222 = vmatmul.mubr.f32.gmra.mrb[0].mxu0 %v7689
        %v8223 = vpop.f32.mrb[0].mxu0
        %v8224 = vadd.f32 %v7996, %v8223
        %v8225 = vpop.f32.mrb[0].mxu0
        %v8226 = vadd.f32 %v8000, %v8225
        %8227 = vmatprep.mubr.f32.mxu0 %v7698
        %8228 = vmatmul.mubr.f32.gmra.mrb[0].mxu0 %v7697
        %v8229 = vpop.f32.mrb[0].mxu0
        %v8230 = vadd.f32 %v7996, %v8229
        %v8231 = vpop.f32.mrb[0].mxu0
        %v8232 = vadd.f32 %v8000, %v8231
        %8233 = vmatprep.mubr.f32.mxu0 %v7706
        %8234 = vmatmul.mubr.f32.gmra.mrb[0].mxu0 %v7705
        %v8235 = vpop.f32.mrb[0].mxu0
        %v8236 = vadd.f32 %v7996, %v8235
        %v8237 = vpop.f32.mrb[0].mxu0
        %v8238 = vadd.f32 %v8000, %v8237
        %8239 = vmatprep.mubr.f32.mxu0 %v7714
        %8240 = vmatmul.mubr.f32.gmra.mrb[0].mxu0 %v7713
        %v8241 = vpop.f32.mrb[0].mxu0
        %v8242 = vadd.f32 %v7996, %v8241
        %v8243 = vpop.f32.mrb[0].mxu0
        %v8244 = vadd.f32 %v8000, %v8243
        %8245 = vmatprep.mubr.f32.mxu0 %v7722
        %8246 = vmatmul.mubr.f32.gmra.mrb[0].mxu0 %v7721
        %v8247 = vpop.f32.mrb[0].mxu0
        %v8248 = vadd.f32 %v7996, %v8247
        %v8249 = vpop.f32.mrb[0].mxu0
        %v8250 = vadd.f32 %v8000, %v8249
        %8251 = vmatprep.mubr.f32.mxu0 %v7730
        %8252 = vmatmul.mubr.f32.gmra.mrb[0].mxu0 %v7729
        %v8253 = vpop.f32.mrb[0].mxu0
        %v8254 = vadd.f32 %v7996, %v8253
        %v8255 = vpop.f32.mrb[0].mxu0
        %v8256 = vadd.f32 %v8000, %v8255
        %8257 = vdwg.mxu0
        %8258 = vmatprep.subr.mxu0 %v7802
        %8259 = vmatpush1.msra.mxu0 %v7801
        %8260 = vmatprep.subr.mxu0 %v7804
        %8261 = vmatpush1.msra.mxu0 %v7803
        %8262 = vmatprep.subr.mxu0 %v7806
        %8263 = vmatpush1.msra.mxu0 %v7805
        %8264 = vmatprep.subr.mxu0 %v7808
        %8265 = vmatpush1.msra.mxu0 %v7807
        %8266 = vmatprep.subr.mxu0 %v7810
        %8267 = vmatpush1.msra.mxu0 %v7809
        %8268 = vmatprep.subr.mxu0 %v7812
        %8269 = vmatpush1.msra.mxu0 %v7811
        %8270 = vmatprep.subr.mxu0 %v7814
        %8271 = vmatpush1.msra.mxu0 %v7813
        %8272 = vmatprep.subr.mxu0 %v7816
        %8273 = vmatpush1.msra.mxu0 %v7815
        %8274 = vmatprep.subr.mxu0 %v7818
        %8275 = vmatpush1.msra.mxu0 %v7817
        %8276 = vmatprep.subr.mxu0 %v7820
        %8277 = vmatpush1.msra.mxu0 %v7819
        %8278 = vmatprep.subr.mxu0 %v7822
        %8279 = vmatpush1.msra.mxu0 %v7821
        %8280 = vmatprep.subr.mxu0 %v7824
        %8281 = vmatpush1.msra.mxu0 %v7823
        %8282 = vmatprep.subr.mxu0 %v7826
        %8283 = vmatpush1.msra.mxu0 %v7825
        %8284 = vmatprep.subr.mxu0 %v7828
        %8285 = vmatpush1.msra.mxu0 %v7827
        %8286 = vmatprep.subr.mxu0 %v7830
        %8287 = vmatpush1.msra.mxu0 %v7829
        %8288 = vmatprep.subr.mxu0 %v7832
        %8289 = vmatpush1.msra.mxu0 %v7831
        %8290 = vmatprep.subr.mxu0 %v7834
        %8291 = vmatpush1.msra.mxu0 %v7833
        %8292 = vmatprep.subr.mxu0 %v7836
        %8293 = vmatpush1.msra.mxu0 %v7835
        %8294 = vmatprep.subr.mxu0 %v7838
        %8295 = vmatpush1.msra.mxu0 %v7837
        %8296 = vmatprep.subr.mxu0 %v7840
        %8297 = vmatpush1.msra.mxu0 %v7839
        %8298 = vmatprep.subr.mxu0 %v7842
        %8299 = vmatpush1.msra.mxu0 %v7841
        %8300 = vmatprep.subr.mxu0 %v7844
        %8301 = vmatpush1.msra.mxu0 %v7843
        %8302 = vmatprep.subr.mxu0 %v7846
        %8303 = vmatpush1.msra.mxu0 %v7845
        %8304 = vmatprep.subr.mxu0 %v7848
        %8305 = vmatpush1.msra.mxu0 %v7847
        %8306 = vmatprep.subr.mxu0 %v7850
        %8307 = vmatpush1.msra.mxu0 %v7849
        %8308 = vmatprep.subr.mxu0 %v7852
        %8309 = vmatpush1.msra.mxu0 %v7851
        %8310 = vmatprep.subr.mxu0 %v7854
        %8311 = vmatpush1.msra.mxu0 %v7853
        %8312 = vmatprep.subr.mxu0 %v7856
        %8313 = vmatpush1.msra.mxu0 %v7855
        %8314 = vmatprep.subr.mxu0 %v7858
        %8315 = vmatpush1.msra.mxu0 %v7857
        %8316 = vmatprep.subr.mxu0 %v7860
        %8317 = vmatpush1.msra.mxu0 %v7859
        %8318 = vmatprep.subr.mxu0 %v7862
        %8319 = vmatpush1.msra.mxu0 %v7861
        %8320 = vmatprep.subr.mxu0 %v7864
        %8321 = vmatpush1.msra.mxu0 %v7863
        %8322 = vmatprep.mubr.f32.mxu0 %v7484
        %8323 = vmatmul.mubr.f32.gmra.mrb[0].mxu0 %v7483
        %v8324 = vpop.f32.mrb[0].mxu0
        %v8325 = vadd.f32 %v8068, %v8324
        %v8326 = vpop.f32.mrb[0].mxu0
        %v8327 = vadd.f32 %v8070, %v8326
        %8328 = vmatprep.mubr.f32.mxu0 %v7492
        %8329 = vmatmul.mubr.f32.gmra.mrb[0].mxu0 %v7491
        %v8330 = vpop.f32.mrb[0].mxu0
        %v8331 = vadd.f32 %v8074, %v8330
        %v8332 = vpop.f32.mrb[0].mxu0
        %v8333 = vadd.f32 %v8076, %v8332
        %8334 = vmatprep.mubr.f32.mxu0 %v7500
        %8335 = vmatmul.mubr.f32.gmra.mrb[0].mxu0 %v7499
        %v8336 = vpop.f32.mrb[0].mxu0
        %v8337 = vadd.f32 %v8080, %v8336
        %v8338 = vpop.f32.mrb[0].mxu0
        %v8339 = vadd.f32 %v8082, %v8338
        %8340 = vmatprep.mubr.f32.mxu0 %v7508
        %8341 = vmatmul.mubr.f32.gmra.mrb[0].mxu0 %v7507
        %v8342 = vpop.f32.mrb[0].mxu0
        %v8343 = vadd.f32 %v8086, %v8342
        %v8344 = vpop.f32.mrb[0].mxu0
        %v8345 = vadd.f32 %v8088, %v8344
        %8346 = vmatprep.mubr.f32.mxu0 %v7516
        %8347 = vmatmul.mubr.f32.gmra.mrb[0].mxu0 %v7515
        %v8348 = vpop.f32.mrb[0].mxu0
        %v8349 = vadd.f32 %v8092, %v8348
        %v8350 = vpop.f32.mrb[0].mxu0
        %v8351 = vadd.f32 %v8094, %v8350
        %8352 = vmatprep.mubr.f32.mxu0 %v7524
        %8353 = vmatmul.mubr.f32.gmra.mrb[0].mxu0 %v7523
        %v8354 = vpop.f32.mrb[0].mxu0
        %v8355 = vadd.f32 %v8098, %v8354
        %v8356 = vpop.f32.mrb[0].mxu0
        %v8357 = vadd.f32 %v8100, %v8356
        %8358 = vmatprep.mubr.f32.mxu0 %v7532
        %8359 = vmatmul.mubr.f32.gmra.mrb[0].mxu0 %v7531
        %v8360 = vpop.f32.mrb[0].mxu0
        %v8361 = vadd.f32 %v8104, %v8360
        %v8362 = vpop.f32.mrb[0].mxu0
        %v8363 = vadd.f32 %v8106, %v8362
        %8364 = vmatprep.mubr.f32.mxu0 %v7540
        %8365 = vmatmul.mubr.f32.gmra.mrb[0].mxu0 %v7539
        %v8366 = vpop.f32.mrb[0].mxu0
        %v8367 = vadd.f32 %v8110, %v8366
        %v8368 = vpop.f32.mrb[0].mxu0
        %v8369 = vadd.f32 %v8112, %v8368
        %8370 = vmatprep.mubr.f32.mxu0 %v7548
        %8371 = vmatmul.mubr.f32.gmra.mrb[0].mxu0 %v7547
        %v8372 = vpop.f32.mrb[0].mxu0
        %v8373 = vadd.f32 %v8116, %v8372
        %v8374 = vpop.f32.mrb[0].mxu0
        %v8375 = vadd.f32 %v8118, %v8374
        %8376 = vmatprep.mubr.f32.mxu0 %v7556
        %8377 = vmatmul.mubr.f32.gmra.mrb[0].mxu0 %v7555
        %v8378 = vpop.f32.mrb[0].mxu0
        %v8379 = vadd.f32 %v8122, %v8378
        %v8380 = vpop.f32.mrb[0].mxu0
        %v8381 = vadd.f32 %v8124, %v8380
        %8382 = vmatprep.mubr.f32.mxu0 %v7564
        %8383 = vmatmul.mubr.f32.gmra.mrb[0].mxu0 %v7563
        %v8384 = vpop.f32.mrb[0].mxu0
        %v8385 = vadd.f32 %v8128, %v8384
        %v8386 = vpop.f32.mrb[0].mxu0
        %v8387 = vadd.f32 %v8130, %v8386
        %8388 = vmatprep.mubr.f32.mxu0 %v7572
        %8389 = vmatmul.mubr.f32.gmra.mrb[0].mxu0 %v7571
        %v8390 = vpop.f32.mrb[0].mxu0
        %v8391 = vadd.f32 %v8134, %v8390
        %v8392 = vpop.f32.mrb[0].mxu0
        %v8393 = vadd.f32 %v8136, %v8392
        %8394 = vmatprep.mubr.f32.mxu0 %v7580
        %8395 = vmatmul.mubr.f32.gmra.mrb[0].mxu0 %v7579
        %v8396 = vpop.f32.mrb[0].mxu0
        %v8397 = vadd.f32 %v8140, %v8396
        %v8398 = vpop.f32.mrb[0].mxu0
        %v8399 = vadd.f32 %v8142, %v8398
        %8400 = vmatprep.mubr.f32.mxu0 %v7588
        %8401 = vmatmul.mubr.f32.gmra.mrb[0].mxu0 %v7587
        %v8402 = vpop.f32.mrb[0].mxu0
        %v8403 = vadd.f32 %v8146, %v8402
        %v8404 = vpop.f32.mrb[0].mxu0
        %v8405 = vadd.f32 %v8148, %v8404
        %8406 = vmatprep.mubr.f32.mxu0 %v7596
        %8407 = vmatmul.mubr.f32.gmra.mrb[0].mxu0 %v7595
        %v8408 = vpop.f32.mrb[0].mxu0
        %v8409 = vadd.f32 %v8152, %v8408
        %v8410 = vpop.f32.mrb[0].mxu0
        %v8411 = vadd.f32 %v8154, %v8410
        %8412 = vmatprep.mubr.f32.mxu0 %v7604
        %8413 = vmatmul.mubr.f32.gmra.mrb[0].mxu0 %v7603
        %v8414 = vpop.f32.mrb[0].mxu0
        %v8415 = vadd.f32 %v8158, %v8414
        %v8416 = vpop.f32.mrb[0].mxu0
        %v8417 = vadd.f32 %v8160, %v8416
        %8418 = vmatprep.mubr.f32.mxu0 %v7612
        %8419 = vmatmul.mubr.f32.gmra.mrb[0].mxu0 %v7611
        %v8420 = vpop.f32.mrb[0].mxu0
        %v8421 = vadd.f32 %v8164, %v8420
        %v8422 = vpop.f32.mrb[0].mxu0
        %v8423 = vadd.f32 %v8166, %v8422
        %8424 = vmatprep.mubr.f32.mxu0 %v7620
        %8425 = vmatmul.mubr.f32.gmra.mrb[0].mxu0 %v7619
        %v8426 = vpop.f32.mrb[0].mxu0
        %v8427 = vadd.f32 %v8170, %v8426
        %v8428 = vpop.f32.mrb[0].mxu0
        %v8429 = vadd.f32 %v8172, %v8428
        %8430 = vmatprep.mubr.f32.mxu0 %v7628
        %8431 = vmatmul.mubr.f32.gmra.mrb[0].mxu0 %v7627
        %v8432 = vpop.f32.mrb[0].mxu0
        %v8433 = vadd.f32 %v8176, %v8432
        %v8434 = vpop.f32.mrb[0].mxu0
        %v8435 = vadd.f32 %v8178, %v8434
        %8436 = vmatprep.mubr.f32.mxu0 %v7636
        %8437 = vmatmul.mubr.f32.gmra.mrb[0].mxu0 %v7635
        %v8438 = vpop.f32.mrb[0].mxu0
        %v8439 = vadd.f32 %v8182, %v8438
        %v8440 = vpop.f32.mrb[0].mxu0
        %v8441 = vadd.f32 %v8184, %v8440
        %8442 = vmatprep.mubr.f32.mxu0 %v7644
        %8443 = vmatmul.mubr.f32.gmra.mrb[0].mxu0 %v7643
        %v8444 = vpop.f32.mrb[0].mxu0
        %v8445 = vadd.f32 %v8188, %v8444
        %v8446 = vpop.f32.mrb[0].mxu0
        %v8447 = vadd.f32 %v8190, %v8446
        %8448 = vmatprep.mubr.f32.mxu0 %v7652
        %8449 = vmatmul.mubr.f32.gmra.mrb[0].mxu0 %v7651
        %v8450 = vpop.f32.mrb[0].mxu0
        %v8451 = vadd.f32 %v8194, %v8450
        %v8452 = vpop.f32.mrb[0].mxu0
        %v8453 = vadd.f32 %v8196, %v8452
        %8454 = vmatprep.mubr.f32.mxu0 %v7660
        %8455 = vmatmul.mubr.f32.gmra.mrb[0].mxu0 %v7659
        %v8456 = vpop.f32.mrb[0].mxu0
        %v8457 = vadd.f32 %v8200, %v8456
        %v8458 = vpop.f32.mrb[0].mxu0
        %v8459 = vadd.f32 %v8202, %v8458
        %8460 = vmatprep.mubr.f32.mxu0 %v7668
        %8461 = vmatmul.mubr.f32.gmra.mrb[0].mxu0 %v7667
        %v8462 = vpop.f32.mrb[0].mxu0
        %v8463 = vadd.f32 %v8206, %v8462
        %v8464 = vpop.f32.mrb[0].mxu0
        %v8465 = vadd.f32 %v8208, %v8464
        %8466 = vmatprep.mubr.f32.mxu0 %v7676
        %8467 = vmatmul.mubr.f32.gmra.mrb[0].mxu0 %v7675
        %v8468 = vpop.f32.mrb[0].mxu0
        %v8469 = vadd.f32 %v8212, %v8468
        %v8470 = vpop.f32.mrb[0].mxu0
        %v8471 = vadd.f32 %v8214, %v8470
        %8472 = vmatprep.mubr.f32.mxu0 %v7684
        %8473 = vmatmul.mubr.f32.gmra.mrb[0].mxu0 %v7683
        %v8474 = vpop.f32.mrb[0].mxu0
        %v8475 = vadd.f32 %v8218, %v8474
        %v8476 = vpop.f32.mrb[0].mxu0
        %v8477 = vadd.f32 %v8220, %v8476
        %8478 = vmatprep.mubr.f32.mxu0 %v7692
        %8479 = vmatmul.mubr.f32.gmra.mrb[0].mxu0 %v7691
        %v8480 = vpop.f32.mrb[0].mxu0
        %v8481 = vadd.f32 %v8224, %v8480
        %v8482 = vpop.f32.mrb[0].mxu0
        %v8483 = vadd.f32 %v8226, %v8482
        %8484 = vmatprep.mubr.f32.mxu0 %v7700
        %8485 = vmatmul.mubr.f32.gmra.mrb[0].mxu0 %v7699
        %v8486 = vpop.f32.mrb[0].mxu0
        %v8487 = vadd.f32 %v8230, %v8486
        %v8488 = vpop.f32.mrb[0].mxu0
        %v8489 = vadd.f32 %v8232, %v8488
        %8490 = vmatprep.mubr.f32.mxu0 %v7708
        %8491 = vmatmul.mubr.f32.gmra.mrb[0].mxu0 %v7707
        %v8492 = vpop.f32.mrb[0].mxu0
        %v8493 = vadd.f32 %v8236, %v8492
        %v8494 = vpop.f32.mrb[0].mxu0
        %v8495 = vadd.f32 %v8238, %v8494
        %8496 = vmatprep.mubr.f32.mxu0 %v7716
        %8497 = vmatmul.mubr.f32.gmra.mrb[0].mxu0 %v7715
        %v8498 = vpop.f32.mrb[0].mxu0
        %v8499 = vadd.f32 %v8242, %v8498
        %v8500 = vpop.f32.mrb[0].mxu0
        %v8501 = vadd.f32 %v8244, %v8500
        %8502 = vmatprep.mubr.f32.mxu0 %v7724
        %8503 = vmatmul.mubr.f32.gmra.mrb[0].mxu0 %v7723
        %v8504 = vpop.f32.mrb[0].mxu0
        %v8505 = vadd.f32 %v8248, %v8504
        %v8506 = vpop.f32.mrb[0].mxu0
        %v8507 = vadd.f32 %v8250, %v8506
        %8508 = vmatprep.mubr.f32.mxu0 %v7732
        %8509 = vmatmul.mubr.f32.gmra.mrb[0].mxu0 %v7731
        %v8510 = vpop.f32.mrb[0].mxu0
        %v8511 = vadd.f32 %v8254, %v8510
        %v8512 = vpop.f32.mrb[0].mxu0
        %v8513 = vadd.f32 %v8256, %v8512
        %8514 = vdwg.mxu0
        %8515 = vmatprep.subr.mxu0 %v7866
        %8516 = vmatpush1.msra.mxu0 %v7865
        %8517 = vmatprep.subr.mxu0 %v7868
        %8518 = vmatpush1.msra.mxu0 %v7867
        %8519 = vmatprep.subr.mxu0 %v7870
        %8520 = vmatpush1.msra.mxu0 %v7869
        %8521 = vmatprep.subr.mxu0 %v7872
        %8522 = vmatpush1.msra.mxu0 %v7871
        %8523 = vmatprep.subr.mxu0 %v7874
        %8524 = vmatpush1.msra.mxu0 %v7873
        %8525 = vmatprep.subr.mxu0 %v7876
        %8526 = vmatpush1.msra.mxu0 %v7875
        %8527 = vmatprep.subr.mxu0 %v7878
        %8528 = vmatpush1.msra.mxu0 %v7877
        %8529 = vmatprep.subr.mxu0 %v7880
        %8530 = vmatpush1.msra.mxu0 %v7879
        %8531 = vmatprep.subr.mxu0 %v7882
        %8532 = vmatpush1.msra.mxu0 %v7881
        %8533 = vmatprep.subr.mxu0 %v7884
        %8534 = vmatpush1.msra.mxu0 %v7883
        %8535 = vmatprep.subr.mxu0 %v7886
        %8536 = vmatpush1.msra.mxu0 %v7885
        %8537 = vmatprep.subr.mxu0 %v7888
        %8538 = vmatpush1.msra.mxu0 %v7887
        %8539 = vmatprep.subr.mxu0 %v7890
        %8540 = vmatpush1.msra.mxu0 %v7889
        %8541 = vmatprep.subr.mxu0 %v7892
        %8542 = vmatpush1.msra.mxu0 %v7891
        %8543 = vmatprep.subr.mxu0 %v7894
        %8544 = vmatpush1.msra.mxu0 %v7893
        %8545 = vmatprep.subr.mxu0 %v7896
        %8546 = vmatpush1.msra.mxu0 %v7895
        %8547 = vmatprep.subr.mxu0 %v7898
        %8548 = vmatpush1.msra.mxu0 %v7897
        %8549 = vmatprep.subr.mxu0 %v7900
        %8550 = vmatpush1.msra.mxu0 %v7899
        %8551 = vmatprep.subr.mxu0 %v7902
        %8552 = vmatpush1.msra.mxu0 %v7901
        %8553 = vmatprep.subr.mxu0 %v7904
        %8554 = vmatpush1.msra.mxu0 %v7903
        %8555 = vmatprep.subr.mxu0 %v7906
        %8556 = vmatpush1.msra.mxu0 %v7905
        %8557 = vmatprep.subr.mxu0 %v7908
        %8558 = vmatpush1.msra.mxu0 %v7907
        %8559 = vmatprep.subr.mxu0 %v7910
        %8560 = vmatpush1.msra.mxu0 %v7909
        %8561 = vmatprep.subr.mxu0 %v7912
        %8562 = vmatpush1.msra.mxu0 %v7911
        %8563 = vmatprep.subr.mxu0 %v7914
        %8564 = vmatpush1.msra.mxu0 %v7913
        %8565 = vmatprep.subr.mxu0 %v7916
        %8566 = vmatpush1.msra.mxu0 %v7915
        %8567 = vmatprep.subr.mxu0 %v7918
        %8568 = vmatpush1.msra.mxu0 %v7917
        %8569 = vmatprep.subr.mxu0 %v7920
        %8570 = vmatpush1.msra.mxu0 %v7919
        %8571 = vmatprep.subr.mxu0 %v7922
        %8572 = vmatpush1.msra.mxu0 %v7921
        %8573 = vmatprep.subr.mxu0 %v7924
        %8574 = vmatpush1.msra.mxu0 %v7923
        %8575 = vmatprep.subr.mxu0 %v7926
        %8576 = vmatpush1.msra.mxu0 %v7925
        %8577 = vmatprep.subr.mxu0 %v7928
        %8578 = vmatpush1.msra.mxu0 %v7927
        %8579 = vmatprep.mubr.f32.mxu0 %v7486
        %8580 = vmatmul.mubr.f32.gmra.mrb[0].mxu0 %v7485
        %v8581 = vpop.f32.mrb[0].mxu0
        %v8582 = vadd.f32 %v8325, %v8581
        %v8583 = vpop.f32.mrb[0].mxu0
        %v8584 = vadd.f32 %v8327, %v8583
        %8585 = vmatprep.mubr.f32.mxu0 %v7494
        %8586 = vmatmul.mubr.f32.gmra.mrb[0].mxu0 %v7493
        %v8587 = vpop.f32.mrb[0].mxu0
        %v8588 = vadd.f32 %v8331, %v8587
        %v8589 = vpop.f32.mrb[0].mxu0
        %v8590 = vadd.f32 %v8333, %v8589
        %8591 = vmatprep.mubr.f32.mxu0 %v7502
        %8592 = vmatmul.mubr.f32.gmra.mrb[0].mxu0 %v7501
        %v8593 = vpop.f32.mrb[0].mxu0
        %v8594 = vadd.f32 %v8337, %v8593
        %v8595 = vpop.f32.mrb[0].mxu0
        %v8596 = vadd.f32 %v8339, %v8595
        %8597 = vmatprep.mubr.f32.mxu0 %v7510
        %8598 = vmatmul.mubr.f32.gmra.mrb[0].mxu0 %v7509
        %v8599 = vpop.f32.mrb[0].mxu0
        %v8600 = vadd.f32 %v8343, %v8599
        %v8601 = vpop.f32.mrb[0].mxu0
        %v8602 = vadd.f32 %v8345, %v8601
        %8603 = vmatprep.mubr.f32.mxu0 %v7518
        %8604 = vmatmul.mubr.f32.gmra.mrb[0].mxu0 %v7517
        %v8605 = vpop.f32.mrb[0].mxu0
        %v8606 = vadd.f32 %v8349, %v8605
        %v8607 = vpop.f32.mrb[0].mxu0
        %v8608 = vadd.f32 %v8351, %v8607
        %8609 = vmatprep.mubr.f32.mxu0 %v7526
        %8610 = vmatmul.mubr.f32.gmra.mrb[0].mxu0 %v7525
        %v8611 = vpop.f32.mrb[0].mxu0
        %v8612 = vadd.f32 %v8355, %v8611
        %v8613 = vpop.f32.mrb[0].mxu0
        %v8614 = vadd.f32 %v8357, %v8613
        %8615 = vmatprep.mubr.f32.mxu0 %v7534
        %8616 = vmatmul.mubr.f32.gmra.mrb[0].mxu0 %v7533
        %v8617 = vpop.f32.mrb[0].mxu0
        %v8618 = vadd.f32 %v8361, %v8617
        %v8619 = vpop.f32.mrb[0].mxu0
        %v8620 = vadd.f32 %v8363, %v8619
        %8621 = vmatprep.mubr.f32.mxu0 %v7542
        %8622 = vmatmul.mubr.f32.gmra.mrb[0].mxu0 %v7541
        %v8623 = vpop.f32.mrb[0].mxu0
        %v8624 = vadd.f32 %v8367, %v8623
        %v8625 = vpop.f32.mrb[0].mxu0
        %v8626 = vadd.f32 %v8369, %v8625
        %8627 = vmatprep.mubr.f32.mxu0 %v7550
        %8628 = vmatmul.mubr.f32.gmra.mrb[0].mxu0 %v7549
        %v8629 = vpop.f32.mrb[0].mxu0
        %v8630 = vadd.f32 %v8373, %v8629
        %v8631 = vpop.f32.mrb[0].mxu0
        %v8632 = vadd.f32 %v8375, %v8631
        %8633 = vmatprep.mubr.f32.mxu0 %v7558
        %8634 = vmatmul.mubr.f32.gmra.mrb[0].mxu0 %v7557
        %v8635 = vpop.f32.mrb[0].mxu0
        %v8636 = vadd.f32 %v8379, %v8635
        %v8637 = vpop.f32.mrb[0].mxu0
        %v8638 = vadd.f32 %v8381, %v8637
        %8639 = vmatprep.mubr.f32.mxu0 %v7566
        %8640 = vmatmul.mubr.f32.gmra.mrb[0].mxu0 %v7565
        %v8641 = vpop.f32.mrb[0].mxu0
        %v8642 = vadd.f32 %v8385, %v8641
        %v8643 = vpop.f32.mrb[0].mxu0
        %v8644 = vadd.f32 %v8387, %v8643
        %8645 = vmatprep.mubr.f32.mxu0 %v7574
        %8646 = vmatmul.mubr.f32.gmra.mrb[0].mxu0 %v7573
        %v8647 = vpop.f32.mrb[0].mxu0
        %v8648 = vadd.f32 %v8391, %v8647
        %v8649 = vpop.f32.mrb[0].mxu0
        %v8650 = vadd.f32 %v8393, %v8649
        %8651 = vmatprep.mubr.f32.mxu0 %v7582
        %8652 = vmatmul.mubr.f32.gmra.mrb[0].mxu0 %v7581
        %v8653 = vpop.f32.mrb[0].mxu0
        %v8654 = vadd.f32 %v8397, %v8653
        %v8655 = vpop.f32.mrb[0].mxu0
        %v8656 = vadd.f32 %v8399, %v8655
        %8657 = vmatprep.mubr.f32.mxu0 %v7590
        %8658 = vmatmul.mubr.f32.gmra.mrb[0].mxu0 %v7589
        %v8659 = vpop.f32.mrb[0].mxu0
        %v8660 = vadd.f32 %v8403, %v8659
        %v8661 = vpop.f32.mrb[0].mxu0
        %v8662 = vadd.f32 %v8405, %v8661
        %8663 = vmatprep.mubr.f32.mxu0 %v7598
        %8664 = vmatmul.mubr.f32.gmra.mrb[0].mxu0 %v7597
        %v8665 = vpop.f32.mrb[0].mxu0
        %v8666 = vadd.f32 %v8409, %v8665
        %v8667 = vpop.f32.mrb[0].mxu0
        %v8668 = vadd.f32 %v8411, %v8667
        %8669 = vmatprep.mubr.f32.mxu0 %v7606
        %8670 = vmatmul.mubr.f32.gmra.mrb[0].mxu0 %v7605
        %v8671 = vpop.f32.mrb[0].mxu0
        %v8672 = vadd.f32 %v8415, %v8671
        %v8673 = vpop.f32.mrb[0].mxu0
        %v8674 = vadd.f32 %v8417, %v8673
        %8675 = vmatprep.mubr.f32.mxu0 %v7614
        %8676 = vmatmul.mubr.f32.gmra.mrb[0].mxu0 %v7613
        %v8677 = vpop.f32.mrb[0].mxu0
        %v8678 = vadd.f32 %v8421, %v8677
        %v8679 = vpop.f32.mrb[0].mxu0
        %v8680 = vadd.f32 %v8423, %v8679
        %8681 = vmatprep.mubr.f32.mxu0 %v7622
        %8682 = vmatmul.mubr.f32.gmra.mrb[0].mxu0 %v7621
        %v8683 = vpop.f32.mrb[0].mxu0
        %v8684 = vadd.f32 %v8427, %v8683
        %v8685 = vpop.f32.mrb[0].mxu0
        %v8686 = vadd.f32 %v8429, %v8685
        %8687 = vmatprep.mubr.f32.mxu0 %v7630
        %8688 = vmatmul.mubr.f32.gmra.mrb[0].mxu0 %v7629
        %v8689 = vpop.f32.mrb[0].mxu0
        %v8690 = vadd.f32 %v8433, %v8689
        %v8691 = vpop.f32.mrb[0].mxu0
        %v8692 = vadd.f32 %v8435, %v8691
        %8693 = vmatprep.mubr.f32.mxu0 %v7638
        %8694 = vmatmul.mubr.f32.gmra.mrb[0].mxu0 %v7637
        %v8695 = vpop.f32.mrb[0].mxu0
        %v8696 = vadd.f32 %v8439, %v8695
        %v8697 = vpop.f32.mrb[0].mxu0
        %v8698 = vadd.f32 %v8441, %v8697
        %8699 = vmatprep.mubr.f32.mxu0 %v7646
        %8700 = vmatmul.mubr.f32.gmra.mrb[0].mxu0 %v7645
        %v8701 = vpop.f32.mrb[0].mxu0
        %v8702 = vadd.f32 %v8445, %v8701
        %v8703 = vpop.f32.mrb[0].mxu0
        %v8704 = vadd.f32 %v8447, %v8703
        %8705 = vmatprep.mubr.f32.mxu0 %v7654
        %8706 = vmatmul.mubr.f32.gmra.mrb[0].mxu0 %v7653
        %v8707 = vpop.f32.mrb[0].mxu0
        %v8708 = vadd.f32 %v8451, %v8707
        %v8709 = vpop.f32.mrb[0].mxu0
        %v8710 = vadd.f32 %v8453, %v8709
        %8711 = vmatprep.mubr.f32.mxu0 %v7662
        %8712 = vmatmul.mubr.f32.gmra.mrb[0].mxu0 %v7661
        %v8713 = vpop.f32.mrb[0].mxu0
        %v8714 = vadd.f32 %v8457, %v8713
        %v8715 = vpop.f32.mrb[0].mxu0
        %v8716 = vadd.f32 %v8459, %v8715
        %8717 = vmatprep.mubr.f32.mxu0 %v7670
        %8718 = vmatmul.mubr.f32.gmra.mrb[0].mxu0 %v7669
        %v8719 = vpop.f32.mrb[0].mxu0
        %v8720 = vadd.f32 %v8463, %v8719
        %v8721 = vpop.f32.mrb[0].mxu0
        %v8722 = vadd.f32 %v8465, %v8721
        %8723 = vmatprep.mubr.f32.mxu0 %v7678
        %8724 = vmatmul.mubr.f32.gmra.mrb[0].mxu0 %v7677
        %v8725 = vpop.f32.mrb[0].mxu0
        %v8726 = vadd.f32 %v8469, %v8725
        %v8727 = vpop.f32.mrb[0].mxu0
        %v8728 = vadd.f32 %v8471, %v8727
        %8729 = vmatprep.mubr.f32.mxu0 %v7686
        %8730 = vmatmul.mubr.f32.gmra.mrb[0].mxu0 %v7685
        %v8731 = vpop.f32.mrb[0].mxu0
        %v8732 = vadd.f32 %v8475, %v8731
        %v8733 = vpop.f32.mrb[0].mxu0
        %v8734 = vadd.f32 %v8477, %v8733
        %8735 = vmatprep.mubr.f32.mxu0 %v7694
        %8736 = vmatmul.mubr.f32.gmra.mrb[0].mxu0 %v7693
        %v8737 = vpop.f32.mrb[0].mxu0
        %v8738 = vadd.f32 %v8481, %v8737
        %v8739 = vpop.f32.mrb[0].mxu0
        %v8740 = vadd.f32 %v8483, %v8739
        %8741 = vmatprep.mubr.f32.mxu0 %v7702
        %8742 = vmatmul.mubr.f32.gmra.mrb[0].mxu0 %v7701
        %v8743 = vpop.f32.mrb[0].mxu0
        %v8744 = vadd.f32 %v8487, %v8743
        %v8745 = vpop.f32.mrb[0].mxu0
        %v8746 = vadd.f32 %v8489, %v8745
        %8747 = vmatprep.mubr.f32.mxu0 %v7710
        %8748 = vmatmul.mubr.f32.gmra.mrb[0].mxu0 %v7709
        %v8749 = vpop.f32.mrb[0].mxu0
        %v8750 = vadd.f32 %v8493, %v8749
        %v8751 = vpop.f32.mrb[0].mxu0
        %v8752 = vadd.f32 %v8495, %v8751
        %8753 = vmatprep.mubr.f32.mxu0 %v7718
        %8754 = vmatmul.mubr.f32.gmra.mrb[0].mxu0 %v7717
        %v8755 = vpop.f32.mrb[0].mxu0
        %v8756 = vadd.f32 %v8499, %v8755
        %v8757 = vpop.f32.mrb[0].mxu0
        %v8758 = vadd.f32 %v8501, %v8757
        %8759 = vmatprep.mubr.f32.mxu0 %v7726
        %8760 = vmatmul.mubr.f32.gmra.mrb[0].mxu0 %v7725
        %v8761 = vpop.f32.mrb[0].mxu0
        %v8762 = vadd.f32 %v8505, %v8761
        %v8763 = vpop.f32.mrb[0].mxu0
        %v8764 = vadd.f32 %v8507, %v8763
        %8765 = vmatprep.mubr.f32.mxu0 %v7734
        %8766 = vmatmul.mubr.f32.gmra.mrb[0].mxu0 %v7733
        %v8767 = vpop.f32.mrb[0].mxu0
        %v8768 = vadd.f32 %v8511, %v8767
        %v8769 = vpop.f32.mrb[0].mxu0
        %v8770 = vadd.f32 %v8513, %v8769
        %8771 = vdwg.mxu0
        %8772 = vmatprep.subr.mxu0 %v7930
        %8773 = vmatpush1.msra.mxu0 %v7929
        %8774 = vmatprep.subr.mxu0 %v7932
        %8775 = vmatpush1.msra.mxu0 %v7931
        %8776 = vmatprep.subr.mxu0 %v7934
        %8777 = vmatpush1.msra.mxu0 %v7933
        %8778 = vmatprep.subr.mxu0 %v7936
        %8779 = vmatpush1.msra.mxu0 %v7935
        %8780 = vmatprep.subr.mxu0 %v7938
        %8781 = vmatpush1.msra.mxu0 %v7937
        %8782 = vmatprep.subr.mxu0 %v7940
        %8783 = vmatpush1.msra.mxu0 %v7939
        %8784 = vmatprep.subr.mxu0 %v7942
        %8785 = vmatpush1.msra.mxu0 %v7941
        %8786 = vmatprep.subr.mxu0 %v7944
        %8787 = vmatpush1.msra.mxu0 %v7943
        %8788 = vmatprep.subr.mxu0 %v7946
        %8789 = vmatpush1.msra.mxu0 %v7945
        %8790 = vmatprep.subr.mxu0 %v7948
        %8791 = vmatpush1.msra.mxu0 %v7947
        %8792 = vmatprep.subr.mxu0 %v7950
        %8793 = vmatpush1.msra.mxu0 %v7949
        %8794 = vmatprep.subr.mxu0 %v7952
        %8795 = vmatpush1.msra.mxu0 %v7951
        %8796 = vmatprep.subr.mxu0 %v7954
        %8797 = vmatpush1.msra.mxu0 %v7953
        %8798 = vmatprep.subr.mxu0 %v7956
        %8799 = vmatpush1.msra.mxu0 %v7955
        %8800 = vmatprep.subr.mxu0 %v7958
        %8801 = vmatpush1.msra.mxu0 %v7957
        %8802 = vmatprep.subr.mxu0 %v7960
        %8803 = vmatpush1.msra.mxu0 %v7959
        %8804 = vmatprep.subr.mxu0 %v7962
        %8805 = vmatpush1.msra.mxu0 %v7961
        %8806 = vmatprep.subr.mxu0 %v7964
        %8807 = vmatpush1.msra.mxu0 %v7963
        %8808 = vmatprep.subr.mxu0 %v7966
        %8809 = vmatpush1.msra.mxu0 %v7965
        %8810 = vmatprep.subr.mxu0 %v7968
        %8811 = vmatpush1.msra.mxu0 %v7967
        %8812 = vmatprep.subr.mxu0 %v7970
        %8813 = vmatpush1.msra.mxu0 %v7969
        %8814 = vmatprep.subr.mxu0 %v7972
        %8815 = vmatpush1.msra.mxu0 %v7971
        %8816 = vmatprep.subr.mxu0 %v7974
        %8817 = vmatpush1.msra.mxu0 %v7973
        %8818 = vmatprep.subr.mxu0 %v7976
        %8819 = vmatpush1.msra.mxu0 %v7975
        %8820 = vmatprep.subr.mxu0 %v7978
        %8821 = vmatpush1.msra.mxu0 %v7977
        %8822 = vmatprep.subr.mxu0 %v7980
        %8823 = vmatpush1.msra.mxu0 %v7979
        %8824 = vmatprep.subr.mxu0 %v7982
        %8825 = vmatpush1.msra.mxu0 %v7981
        %8826 = vmatprep.subr.mxu0 %v7984
        %8827 = vmatpush1.msra.mxu0 %v7983
        %8828 = vmatprep.subr.mxu0 %v7986
        %8829 = vmatpush1.msra.mxu0 %v7985
        %8830 = vmatprep.subr.mxu0 %v7988
        %8831 = vmatpush1.msra.mxu0 %v7987
        %8832 = vmatprep.subr.mxu0 %v7990
        %8833 = vmatpush1.msra.mxu0 %v7989
        %8834 = vmatprep.subr.mxu0 %v7992
        %8835 = vmatpush1.msra.mxu0 %v7991
        %8836 = vmatprep.mubr.f32.mxu0 %v7488
        %8837 = vmatmul.mubr.f32.gmra.mrb[0].mxu0 %v7487
        %v8838 = vpop.f32.mrb[0].mxu0
        %v8839 = vadd.f32 %v8582, %v8838
        %v8840 = vpop.f32.mrb[0].mxu0
        %v8841 = vadd.f32 %v8584, %v8840
        %8842 = vmatprep.mubr.f32.mxu0 %v7496
        %8843 = vmatmul.mubr.f32.gmra.mrb[0].mxu0 %v7495
        %v8844 = vpop.f32.mrb[0].mxu0
        %v8845 = vadd.f32 %v8588, %v8844
        %v8846 = vpop.f32.mrb[0].mxu0
        %v8847 = vadd.f32 %v8590, %v8846
        %8848 = vmatprep.mubr.f32.mxu0 %v7504
        %8849 = vmatmul.mubr.f32.gmra.mrb[0].mxu0 %v7503
        %v8850 = vpop.f32.mrb[0].mxu0
        %v8851 = vadd.f32 %v8594, %v8850
        %v8852 = vpop.f32.mrb[0].mxu0
        %v8853 = vadd.f32 %v8596, %v8852
        %8854 = vmatprep.mubr.f32.mxu0 %v7512
        %8855 = vmatmul.mubr.f32.gmra.mrb[0].mxu0 %v7511
        %v8856 = vpop.f32.mrb[0].mxu0
        %v8857 = vadd.f32 %v8600, %v8856
        %v8858 = vpop.f32.mrb[0].mxu0
        %v8859 = vadd.f32 %v8602, %v8858
        %8860 = vmatprep.mubr.f32.mxu0 %v7520
        %8861 = vmatmul.mubr.f32.gmra.mrb[0].mxu0 %v7519
        %v8862 = vpop.f32.mrb[0].mxu0
        %v8863 = vadd.f32 %v8606, %v8862
        %v8864 = vpop.f32.mrb[0].mxu0
        %v8865 = vadd.f32 %v8608, %v8864
        %8866 = vmatprep.mubr.f32.mxu0 %v7528
        %8867 = vmatmul.mubr.f32.gmra.mrb[0].mxu0 %v7527
        %v8868 = vpop.f32.mrb[0].mxu0
        %v8869 = vadd.f32 %v8612, %v8868
        %v8870 = vpop.f32.mrb[0].mxu0
        %v8871 = vadd.f32 %v8614, %v8870
        %8872 = vmatprep.mubr.f32.mxu0 %v7536
        %8873 = vmatmul.mubr.f32.gmra.mrb[0].mxu0 %v7535
        %v8874 = vpop.f32.mrb[0].mxu0
        %v8875 = vadd.f32 %v8618, %v8874
        %v8876 = vpop.f32.mrb[0].mxu0
        %v8877 = vadd.f32 %v8620, %v8876
        %8878 = vmatprep.mubr.f32.mxu0 %v7544
        %8879 = vmatmul.mubr.f32.gmra.mrb[0].mxu0 %v7543
        %v8880 = vpop.f32.mrb[0].mxu0
        %v8881 = vadd.f32 %v8624, %v8880
        %v8882 = vpop.f32.mrb[0].mxu0
        %v8883 = vadd.f32 %v8626, %v8882
        %8884 = vmatprep.mubr.f32.mxu0 %v7552
        %8885 = vmatmul.mubr.f32.gmra.mrb[0].mxu0 %v7551
        %v8886 = vpop.f32.mrb[0].mxu0
        %v8887 = vadd.f32 %v8630, %v8886
        %v8888 = vpop.f32.mrb[0].mxu0
        %v8889 = vadd.f32 %v8632, %v8888
        %8890 = vmatprep.mubr.f32.mxu0 %v7560
        %8891 = vmatmul.mubr.f32.gmra.mrb[0].mxu0 %v7559
        %v8892 = vpop.f32.mrb[0].mxu0
        %v8893 = vadd.f32 %v8636, %v8892
        %v8894 = vpop.f32.mrb[0].mxu0
        %v8895 = vadd.f32 %v8638, %v8894
        %8896 = vmatprep.mubr.f32.mxu0 %v7568
        %8897 = vmatmul.mubr.f32.gmra.mrb[0].mxu0 %v7567
        %v8898 = vpop.f32.mrb[0].mxu0
        %v8899 = vadd.f32 %v8642, %v8898
        %v8900 = vpop.f32.mrb[0].mxu0
        %v8901 = vadd.f32 %v8644, %v8900
        %8902 = vmatprep.mubr.f32.mxu0 %v7576
        %8903 = vmatmul.mubr.f32.gmra.mrb[0].mxu0 %v7575
        %v8904 = vpop.f32.mrb[0].mxu0
        %v8905 = vadd.f32 %v8648, %v8904
        %v8906 = vpop.f32.mrb[0].mxu0
        %v8907 = vadd.f32 %v8650, %v8906
        %8908 = vmatprep.mubr.f32.mxu0 %v7584
        %8909 = vmatmul.mubr.f32.gmra.mrb[0].mxu0 %v7583
        %v8910 = vpop.f32.mrb[0].mxu0
        %v8911 = vadd.f32 %v8654, %v8910
        %v8912 = vpop.f32.mrb[0].mxu0
        %v8913 = vadd.f32 %v8656, %v8912
        %8914 = vmatprep.mubr.f32.mxu0 %v7592
        %8915 = vmatmul.mubr.f32.gmra.mrb[0].mxu0 %v7591
        %v8916 = vpop.f32.mrb[0].mxu0
        %v8917 = vadd.f32 %v8660, %v8916
        %v8918 = vpop.f32.mrb[0].mxu0
        %v8919 = vadd.f32 %v8662, %v8918
        %8920 = vmatprep.mubr.f32.mxu0 %v7600
        %8921 = vmatmul.mubr.f32.gmra.mrb[0].mxu0 %v7599
        %v8922 = vpop.f32.mrb[0].mxu0
        %v8923 = vadd.f32 %v8666, %v8922
        %v8924 = vpop.f32.mrb[0].mxu0
        %v8925 = vadd.f32 %v8668, %v8924
        %8926 = vmatprep.mubr.f32.mxu0 %v7608
        %8927 = vmatmul.mubr.f32.gmra.mrb[0].mxu0 %v7607
        %v8928 = vpop.f32.mrb[0].mxu0
        %v8929 = vadd.f32 %v8672, %v8928
        %v8930 = vpop.f32.mrb[0].mxu0
        %v8931 = vadd.f32 %v8674, %v8930
        %8932 = vmatprep.mubr.f32.mxu0 %v7616
        %8933 = vmatmul.mubr.f32.gmra.mrb[0].mxu0 %v7615
        %v8934 = vpop.f32.mrb[0].mxu0
        %v8935 = vadd.f32 %v8678, %v8934
        %v8936 = vpop.f32.mrb[0].mxu0
        %v8937 = vadd.f32 %v8680, %v8936
        %8938 = vmatprep.mubr.f32.mxu0 %v7624
        %8939 = vmatmul.mubr.f32.gmra.mrb[0].mxu0 %v7623
        %v8940 = vpop.f32.mrb[0].mxu0
        %v8941 = vadd.f32 %v8684, %v8940
        %v8942 = vpop.f32.mrb[0].mxu0
        %v8943 = vadd.f32 %v8686, %v8942
        %8944 = vmatprep.mubr.f32.mxu0 %v7632
        %8945 = vmatmul.mubr.f32.gmra.mrb[0].mxu0 %v7631
        %v8946 = vpop.f32.mrb[0].mxu0
        %v8947 = vadd.f32 %v8690, %v8946
        %v8948 = vpop.f32.mrb[0].mxu0
        %v8949 = vadd.f32 %v8692, %v8948
        %8950 = vmatprep.mubr.f32.mxu0 %v7640
        %8951 = vmatmul.mubr.f32.gmra.mrb[0].mxu0 %v7639
        %v8952 = vpop.f32.mrb[0].mxu0
        %v8953 = vadd.f32 %v8696, %v8952
        %v8954 = vpop.f32.mrb[0].mxu0
        %v8955 = vadd.f32 %v8698, %v8954
        %8956 = vmatprep.mubr.f32.mxu0 %v7648
        %8957 = vmatmul.mubr.f32.gmra.mrb[0].mxu0 %v7647
        %v8958 = vpop.f32.mrb[0].mxu0
        %v8959 = vadd.f32 %v8702, %v8958
        %v8960 = vpop.f32.mrb[0].mxu0
        %v8961 = vadd.f32 %v8704, %v8960
        %8962 = vmatprep.mubr.f32.mxu0 %v7656
        %8963 = vmatmul.mubr.f32.gmra.mrb[0].mxu0 %v7655
        %v8964 = vpop.f32.mrb[0].mxu0
        %v8965 = vadd.f32 %v8708, %v8964
        %v8966 = vpop.f32.mrb[0].mxu0
        %v8967 = vadd.f32 %v8710, %v8966
        %8968 = vmatprep.mubr.f32.mxu0 %v7664
        %8969 = vmatmul.mubr.f32.gmra.mrb[0].mxu0 %v7663
        %v8970 = vpop.f32.mrb[0].mxu0
        %v8971 = vadd.f32 %v8714, %v8970
        %v8972 = vpop.f32.mrb[0].mxu0
        %v8973 = vadd.f32 %v8716, %v8972
        %8974 = vmatprep.mubr.f32.mxu0 %v7672
        %8975 = vmatmul.mubr.f32.gmra.mrb[0].mxu0 %v7671
        %v8976 = vpop.f32.mrb[0].mxu0
        %v8977 = vadd.f32 %v8720, %v8976
        %v8978 = vpop.f32.mrb[0].mxu0
        %v8979 = vadd.f32 %v8722, %v8978
        %8980 = vmatprep.mubr.f32.mxu0 %v7680
        %8981 = vmatmul.mubr.f32.gmra.mrb[0].mxu0 %v7679
        %v8982 = vpop.f32.mrb[0].mxu0
        %v8983 = vadd.f32 %v8726, %v8982
        %v8984 = vpop.f32.mrb[0].mxu0
        %v8985 = vadd.f32 %v8728, %v8984
        %8986 = vmatprep.mubr.f32.mxu0 %v7688
        %8987 = vmatmul.mubr.f32.gmra.mrb[0].mxu0 %v7687
        %v8988 = vpop.f32.mrb[0].mxu0
        %v8989 = vadd.f32 %v8732, %v8988
        %v8990 = vpop.f32.mrb[0].mxu0
        %v8991 = vadd.f32 %v8734, %v8990
        %8992 = vmatprep.mubr.f32.mxu0 %v7696
        %8993 = vmatmul.mubr.f32.gmra.mrb[0].mxu0 %v7695
        %v8994 = vpop.f32.mrb[0].mxu0
        %v8995 = vadd.f32 %v8738, %v8994
        %v8996 = vpop.f32.mrb[0].mxu0
        %v8997 = vadd.f32 %v8740, %v8996
        %8998 = vmatprep.mubr.f32.mxu0 %v7704
        %8999 = vmatmul.mubr.f32.gmra.mrb[0].mxu0 %v7703
        %v9000 = vpop.f32.mrb[0].mxu0
        %v9001 = vadd.f32 %v8744, %v9000
        %v9002 = vpop.f32.mrb[0].mxu0
        %v9003 = vadd.f32 %v8746, %v9002
        %9004 = vmatprep.mubr.f32.mxu0 %v7712
        %9005 = vmatmul.mubr.f32.gmra.mrb[0].mxu0 %v7711
        %v9006 = vpop.f32.mrb[0].mxu0
        %v9007 = vadd.f32 %v8750, %v9006
        %v9008 = vpop.f32.mrb[0].mxu0
        %v9009 = vadd.f32 %v8752, %v9008
        %9010 = vmatprep.mubr.f32.mxu0 %v7720
        %9011 = vmatmul.mubr.f32.gmra.mrb[0].mxu0 %v7719
        %v9012 = vpop.f32.mrb[0].mxu0
        %v9013 = vadd.f32 %v8756, %v9012
        %v9014 = vpop.f32.mrb[0].mxu0
        %v9015 = vadd.f32 %v8758, %v9014
        %9016 = vmatprep.mubr.f32.mxu0 %v7728
        %9017 = vmatmul.mubr.f32.gmra.mrb[0].mxu0 %v7727
        %v9018 = vpop.f32.mrb[0].mxu0
        %v9019 = vadd.f32 %v8762, %v9018
        %v9020 = vpop.f32.mrb[0].mxu0
        %v9021 = vadd.f32 %v8764, %v9020
        %9022 = vmatprep.mubr.f32.mxu0 %v7736
        %9023 = vmatmul.mubr.f32.gmra.mrb[0].mxu0 %v7735
        %v9024 = vpop.f32.mrb[0].mxu0
        %v9025 = vadd.f32 %v8768, %v9024
        %v9026 = vpop.f32.mrb[0].mxu0
        %v9027 = vadd.f32 %v8770, %v9026
        %9028 = vdwg.mxu0
        %v9029 = vadd.f32 %v6061, %v8839
        %v9030 = vadd.f32 %v6062, %v8841
        %v9031 = vadd.f32 %v6063, %v8845
        %v9032 = vadd.f32 %v6064, %v8847
        %v9033 = vadd.f32 %v6065, %v8851
        %v9034 = vadd.f32 %v6066, %v8853
        %v9035 = vadd.f32 %v6067, %v8857
        %v9036 = vadd.f32 %v6068, %v8859
        %v9037 = vadd.f32 %v6069, %v8863
        %v9038 = vadd.f32 %v6070, %v8865
        %v9039 = vadd.f32 %v6071, %v8869
        %v9040 = vadd.f32 %v6072, %v8871
        %v9041 = vadd.f32 %v6073, %v8875
        %v9042 = vadd.f32 %v6074, %v8877
        %v9043 = vadd.f32 %v6075, %v8881
        %v9044 = vadd.f32 %v6076, %v8883
        %v9045 = vadd.f32 %v6077, %v8887
        %v9046 = vadd.f32 %v6078, %v8889
        %v9047 = vadd.f32 %v6079, %v8893
        %v9048 = vadd.f32 %v6080, %v8895
        %v9049 = vadd.f32 %v6081, %v8899
        %v9050 = vadd.f32 %v6082, %v8901
        %v9051 = vadd.f32 %v6083, %v8905
        %v9052 = vadd.f32 %v6084, %v8907
        %v9053 = vadd.f32 %v6085, %v8911
        %v9054 = vadd.f32 %v6086, %v8913
        %v9055 = vadd.f32 %v6087, %v8917
        %v9056 = vadd.f32 %v6088, %v8919
        %v9057 = vadd.f32 %v6089, %v8923
        %v9058 = vadd.f32 %v6090, %v8925
        %v9059 = vadd.f32 %v6091, %v8929
        %v9060 = vadd.f32 %v6092, %v8931
        %v9061 = vadd.f32 %v6093, %v8935
        %v9062 = vadd.f32 %v6094, %v8937
        %v9063 = vadd.f32 %v6095, %v8941
        %v9064 = vadd.f32 %v6096, %v8943
        %v9065 = vadd.f32 %v6097, %v8947
        %v9066 = vadd.f32 %v6098, %v8949
        %v9067 = vadd.f32 %v6099, %v8953
        %v9068 = vadd.f32 %v6100, %v8955
        %v9069 = vadd.f32 %v6101, %v8959
        %v9070 = vadd.f32 %v6102, %v8961
        %v9071 = vadd.f32 %v6103, %v8965
        %v9072 = vadd.f32 %v6104, %v8967
        %v9073 = vadd.f32 %v6105, %v8971
        %v9074 = vadd.f32 %v6106, %v8973
        %v9075 = vadd.f32 %v6107, %v8977
        %v9076 = vadd.f32 %v6108, %v8979
        %v9077 = vadd.f32 %v6109, %v8983
        %v9078 = vadd.f32 %v6110, %v8985
        %v9079 = vadd.f32 %v6111, %v8989
        %v9080 = vadd.f32 %v6112, %v8991
        %v9081 = vadd.f32 %v6113, %v8995
        %v9082 = vadd.f32 %v6114, %v8997
        %v9083 = vadd.f32 %v6115, %v9001
        %v9084 = vadd.f32 %v6116, %v9003
        %v9085 = vadd.f32 %v6117, %v9007
        %v9086 = vadd.f32 %v6118, %v9009
        %v9087 = vadd.f32 %v6119, %v9013
        %v9088 = vadd.f32 %v6120, %v9015
        %v9089 = vadd.f32 %v6121, %v9019
        %v9090 = vadd.f32 %v6122, %v9021
        %v9091 = vadd.f32 %v6123, %v9025
        %v9092 = vadd.f32 %v6124, %v9027
        %v9093 = vadd.f32 %v9029, %v9030
        %9094 = vadd.xlane.f32.xlu0 %v9093
        %v9095 = vpop.xlane.xlu0 %9094
        %v9096 = vadd.f32 %v9031, %v9032
        %9097 = vadd.xlane.f32.xlu0 %v9096
        %v9098 = vpop.xlane.xlu0 %9097
        %v9099 = vadd.f32 %v9033, %v9034
        %9100 = vadd.xlane.f32.xlu0 %v9099
        %v9101 = vpop.xlane.xlu0 %9100
        %v9102 = vadd.f32 %v9035, %v9036
        %9103 = vadd.xlane.f32.xlu0 %v9102
        %v9104 = vpop.xlane.xlu0 %9103
        %v9105 = vadd.f32 %v9037, %v9038
        %9106 = vadd.xlane.f32.xlu0 %v9105
        %v9107 = vpop.xlane.xlu0 %9106
        %v9108 = vadd.f32 %v9039, %v9040
        %9109 = vadd.xlane.f32.xlu0 %v9108
        %v9110 = vpop.xlane.xlu0 %9109
        %v9111 = vadd.f32 %v9041, %v9042
        %9112 = vadd.xlane.f32.xlu0 %v9111
        %v9113 = vpop.xlane.xlu0 %9112
        %v9114 = vadd.f32 %v9043, %v9044
        %9115 = vadd.xlane.f32.xlu0 %v9114
        %v9116 = vpop.xlane.xlu0 %9115
        %v9117 = vadd.f32 %v9045, %v9046
        %9118 = vadd.xlane.f32.xlu0 %v9117
        %v9119 = vpop.xlane.xlu0 %9118
        %v9120 = vadd.f32 %v9047, %v9048
        %9121 = vadd.xlane.f32.xlu0 %v9120
        %v9122 = vpop.xlane.xlu0 %9121
        %v9123 = vadd.f32 %v9049, %v9050
        %9124 = vadd.xlane.f32.xlu0 %v9123
        %v9125 = vpop.xlane.xlu0 %9124
        %v9126 = vadd.f32 %v9051, %v9052
        %9127 = vadd.xlane.f32.xlu0 %v9126
        %v9128 = vpop.xlane.xlu0 %9127
        %v9129 = vadd.f32 %v9053, %v9054
        %9130 = vadd.xlane.f32.xlu0 %v9129
        %v9131 = vpop.xlane.xlu0 %9130
        %v9132 = vadd.f32 %v9055, %v9056
        %9133 = vadd.xlane.f32.xlu0 %v9132
        %v9134 = vpop.xlane.xlu0 %9133
        %v9135 = vadd.f32 %v9057, %v9058
        %9136 = vadd.xlane.f32.xlu0 %v9135
        %v9137 = vpop.xlane.xlu0 %9136
        %v9138 = vadd.f32 %v9059, %v9060
        %9139 = vadd.xlane.f32.xlu0 %v9138
        %v9140 = vpop.xlane.xlu0 %9139
        %v9141 = vadd.f32 %v9061, %v9062
        %9142 = vadd.xlane.f32.xlu0 %v9141
        %v9143 = vpop.xlane.xlu0 %9142
        %v9144 = vadd.f32 %v9063, %v9064
        %9145 = vadd.xlane.f32.xlu0 %v9144
        %v9146 = vpop.xlane.xlu0 %9145
        %v9147 = vadd.f32 %v9065, %v9066
        %9148 = vadd.xlane.f32.xlu0 %v9147
        %v9149 = vpop.xlane.xlu0 %9148
        %v9150 = vadd.f32 %v9067, %v9068
        %9151 = vadd.xlane.f32.xlu0 %v9150
        %v9152 = vpop.xlane.xlu0 %9151
        %v9153 = vadd.f32 %v9069, %v9070
        %9154 = vadd.xlane.f32.xlu0 %v9153
        %v9155 = vpop.xlane.xlu0 %9154
        %v9156 = vadd.f32 %v9071, %v9072
        %9157 = vadd.xlane.f32.xlu0 %v9156
        %v9158 = vpop.xlane.xlu0 %9157
        %v9159 = vadd.f32 %v9073, %v9074
        %9160 = vadd.xlane.f32.xlu0 %v9159
        %v9161 = vpop.xlane.xlu0 %9160
        %v9162 = vadd.f32 %v9075, %v9076
        %9163 = vadd.xlane.f32.xlu0 %v9162
        %v9164 = vpop.xlane.xlu0 %9163
        %v9165 = vadd.f32 %v9077, %v9078
        %9166 = vadd.xlane.f32.xlu0 %v9165
        %v9167 = vpop.xlane.xlu0 %9166
        %v9168 = vadd.f32 %v9079, %v9080
        %9169 = vadd.xlane.f32.xlu0 %v9168
        %v9170 = vpop.xlane.xlu0 %9169
        %v9171 = vadd.f32 %v9081, %v9082
        %9172 = vadd.xlane.f32.xlu0 %v9171
        %v9173 = vpop.xlane.xlu0 %9172
        %v9174 = vadd.f32 %v9083, %v9084
        %9175 = vadd.xlane.f32.xlu0 %v9174
        %v9176 = vpop.xlane.xlu0 %9175
        %v9177 = vadd.f32 %v9085, %v9086
        %9178 = vadd.xlane.f32.xlu0 %v9177
        %v9179 = vpop.xlane.xlu0 %9178
        %v9180 = vadd.f32 %v9087, %v9088
        %9181 = vadd.xlane.f32.xlu0 %v9180
        %v9182 = vpop.xlane.xlu0 %9181
        %v9183 = vadd.f32 %v9089, %v9090
        %9184 = vadd.xlane.f32.xlu0 %v9183
        %v9185 = vpop.xlane.xlu0 %9184
        %v9186 = vadd.f32 %v9091, %v9092
        %9187 = vadd.xlane.f32.xlu0 %v9186
        %v9188 = vpop.xlane.xlu0 %9187
        %v9189 = vmul.f32 %v9095, %v5564
        %v9190 = vmul.f32 %v9098, %v5564
        %v9191 = vmul.f32 %v9101, %v5564
        %v9192 = vmul.f32 %v9104, %v5564
        %v9193 = vmul.f32 %v9107, %v5564
        %v9194 = vmul.f32 %v9110, %v5564
        %v9195 = vmul.f32 %v9113, %v5564
        %v9196 = vmul.f32 %v9116, %v5564
        %v9197 = vmul.f32 %v9119, %v5564
        %v9198 = vmul.f32 %v9122, %v5564
        %v9199 = vmul.f32 %v9125, %v5564
        %v9200 = vmul.f32 %v9128, %v5564
        %v9201 = vmul.f32 %v9131, %v5564
        %v9202 = vmul.f32 %v9134, %v5564
        %v9203 = vmul.f32 %v9137, %v5564
        %v9204 = vmul.f32 %v9140, %v5564
        %v9205 = vmul.f32 %v9143, %v5564
        %v9206 = vmul.f32 %v9146, %v5564
        %v9207 = vmul.f32 %v9149, %v5564
        %v9208 = vmul.f32 %v9152, %v5564
        %v9209 = vmul.f32 %v9155, %v5564
        %v9210 = vmul.f32 %v9158, %v5564
        %v9211 = vmul.f32 %v9161, %v5564
        %v9212 = vmul.f32 %v9164, %v5564
        %v9213 = vmul.f32 %v9167, %v5564
        %v9214 = vmul.f32 %v9170, %v5564
        %v9215 = vmul.f32 %v9173, %v5564
        %v9216 = vmul.f32 %v9176, %v5564
        %v9217 = vmul.f32 %v9179, %v5564
        %v9218 = vmul.f32 %v9182, %v5564
        %v9219 = vmul.f32 %v9185, %v5564
        %v9220 = vmul.f32 %v9188, %v5564
        %v9221 = vsub.f32 %v9029, %v9189
        %v9222 = vsub.f32 %v9030, %v9189
        %v9223 = vsub.f32 %v9031, %v9190
        %v9224 = vsub.f32 %v9032, %v9190
        %v9225 = vsub.f32 %v9033, %v9191
        %v9226 = vsub.f32 %v9034, %v9191
        %v9227 = vsub.f32 %v9035, %v9192
        %v9228 = vsub.f32 %v9036, %v9192
        %v9229 = vsub.f32 %v9037, %v9193
        %v9230 = vsub.f32 %v9038, %v9193
        %v9231 = vsub.f32 %v9039, %v9194
        %v9232 = vsub.f32 %v9040, %v9194
        %v9233 = vsub.f32 %v9041, %v9195
        %v9234 = vsub.f32 %v9042, %v9195
        %v9235 = vsub.f32 %v9043, %v9196
        %v9236 = vsub.f32 %v9044, %v9196
        %v9237 = vsub.f32 %v9045, %v9197
        %v9238 = vsub.f32 %v9046, %v9197
        %v9239 = vsub.f32 %v9047, %v9198
        %v9240 = vsub.f32 %v9048, %v9198
        %v9241 = vsub.f32 %v9049, %v9199
        %v9242 = vsub.f32 %v9050, %v9199
        %v9243 = vsub.f32 %v9051, %v9200
        %v9244 = vsub.f32 %v9052, %v9200
        %v9245 = vsub.f32 %v9053, %v9201
        %v9246 = vsub.f32 %v9054, %v9201
        %v9247 = vsub.f32 %v9055, %v9202
        %v9248 = vsub.f32 %v9056, %v9202
        %v9249 = vsub.f32 %v9057, %v9203
        %v9250 = vsub.f32 %v9058, %v9203
        %v9251 = vsub.f32 %v9059, %v9204
        %v9252 = vsub.f32 %v9060, %v9204
        %v9253 = vsub.f32 %v9061, %v9205
        %v9254 = vsub.f32 %v9062, %v9205
        %v9255 = vsub.f32 %v9063, %v9206
        %v9256 = vsub.f32 %v9064, %v9206
        %v9257 = vsub.f32 %v9065, %v9207
        %v9258 = vsub.f32 %v9066, %v9207
        %v9259 = vsub.f32 %v9067, %v9208
        %v9260 = vsub.f32 %v9068, %v9208
        %v9261 = vsub.f32 %v9069, %v9209
        %v9262 = vsub.f32 %v9070, %v9209
        %v9263 = vsub.f32 %v9071, %v9210
        %v9264 = vsub.f32 %v9072, %v9210
        %v9265 = vsub.f32 %v9073, %v9211
        %v9266 = vsub.f32 %v9074, %v9211
        %v9267 = vsub.f32 %v9075, %v9212
        %v9268 = vsub.f32 %v9076, %v9212
        %v9269 = vsub.f32 %v9077, %v9213
        %v9270 = vsub.f32 %v9078, %v9213
        %v9271 = vsub.f32 %v9079, %v9214
        %v9272 = vsub.f32 %v9080, %v9214
        %v9273 = vsub.f32 %v9081, %v9215
        %v9274 = vsub.f32 %v9082, %v9215
        %v9275 = vsub.f32 %v9083, %v9216
        %v9276 = vsub.f32 %v9084, %v9216
        %v9277 = vsub.f32 %v9085, %v9217
        %v9278 = vsub.f32 %v9086, %v9217
        %v9279 = vsub.f32 %v9087, %v9218
        %v9280 = vsub.f32 %v9088, %v9218
        %v9281 = vsub.f32 %v9089, %v9219
        %v9282 = vsub.f32 %v9090, %v9219
        %v9283 = vsub.f32 %v9091, %v9220
        %v9284 = vsub.f32 %v9092, %v9220
        %v9285 = vmul.f32 %v9221, %v9221
        %v9286 = vmul.f32 %v9222, %v9222
        %v9287 = vmul.f32 %v9223, %v9223
        %v9288 = vmul.f32 %v9224, %v9224
        %v9289 = vmul.f32 %v9225, %v9225
        %v9290 = vmul.f32 %v9226, %v9226
        %v9291 = vmul.f32 %v9227, %v9227
        %v9292 = vmul.f32 %v9228, %v9228
        %v9293 = vmul.f32 %v9229, %v9229
        %v9294 = vmul.f32 %v9230, %v9230
        %v9295 = vmul.f32 %v9231, %v9231
        %v9296 = vmul.f32 %v9232, %v9232
        %v9297 = vmul.f32 %v9233, %v9233
        %v9298 = vmul.f32 %v9234, %v9234
        %v9299 = vmul.f32 %v9235, %v9235
        %v9300 = vmul.f32 %v9236, %v9236
        %v9301 = vmul.f32 %v9237, %v9237
        %v9302 = vmul.f32 %v9238, %v9238
        %v9303 = vmul.f32 %v9239, %v9239
        %v9304 = vmul.f32 %v9240, %v9240
        %v9305 = vmul.f32 %v9241, %v9241
        %v9306 = vmul.f32 %v9242, %v9242
        %v9307 = vmul.f32 %v9243, %v9243
        %v9308 = vmul.f32 %v9244, %v9244
        %v9309 = vmul.f32 %v9245, %v9245
        %v9310 = vmul.f32 %v9246, %v9246
        %v9311 = vmul.f32 %v9247, %v9247
        %v9312 = vmul.f32 %v9248, %v9248
        %v9313 = vmul.f32 %v9249, %v9249
        %v9314 = vmul.f32 %v9250, %v9250
        %v9315 = vmul.f32 %v9251, %v9251
        %v9316 = vmul.f32 %v9252, %v9252
        %v9317 = vmul.f32 %v9253, %v9253
        %v9318 = vmul.f32 %v9254, %v9254
        %v9319 = vmul.f32 %v9255, %v9255
        %v9320 = vmul.f32 %v9256, %v9256
        %v9321 = vmul.f32 %v9257, %v9257
        %v9322 = vmul.f32 %v9258, %v9258
        %v9323 = vmul.f32 %v9259, %v9259
        %v9324 = vmul.f32 %v9260, %v9260
        %v9325 = vmul.f32 %v9261, %v9261
        %v9326 = vmul.f32 %v9262, %v9262
        %v9327 = vmul.f32 %v9263, %v9263
        %v9328 = vmul.f32 %v9264, %v9264
        %v9329 = vmul.f32 %v9265, %v9265
        %v9330 = vmul.f32 %v9266, %v9266
        %v9331 = vmul.f32 %v9267, %v9267
        %v9332 = vmul.f32 %v9268, %v9268
        %v9333 = vmul.f32 %v9269, %v9269
        %v9334 = vmul.f32 %v9270, %v9270
        %v9335 = vmul.f32 %v9271, %v9271
        %v9336 = vmul.f32 %v9272, %v9272
        %v9337 = vmul.f32 %v9273, %v9273
        %v9338 = vmul.f32 %v9274, %v9274
        %v9339 = vmul.f32 %v9275, %v9275
        %v9340 = vmul.f32 %v9276, %v9276
        %v9341 = vmul.f32 %v9277, %v9277
        %v9342 = vmul.f32 %v9278, %v9278
        %v9343 = vmul.f32 %v9279, %v9279
        %v9344 = vmul.f32 %v9280, %v9280
        %v9345 = vmul.f32 %v9281, %v9281
        %v9346 = vmul.f32 %v9282, %v9282
        %v9347 = vmul.f32 %v9283, %v9283
        %v9348 = vmul.f32 %v9284, %v9284
        %v9349 = vadd.f32 %v9285, %v9286
        %9350 = vadd.xlane.f32.xlu0 %v9349
        %v9351 = vpop.xlane.xlu0 %9350
        %v9352 = vadd.f32 %v9287, %v9288
        %9353 = vadd.xlane.f32.xlu0 %v9352
        %v9354 = vpop.xlane.xlu0 %9353
        %v9355 = vadd.f32 %v9289, %v9290
        %9356 = vadd.xlane.f32.xlu0 %v9355
        %v9357 = vpop.xlane.xlu0 %9356
        %v9358 = vadd.f32 %v9291, %v9292
        %9359 = vadd.xlane.f32.xlu0 %v9358
        %v9360 = vpop.xlane.xlu0 %9359
        %v9361 = vadd.f32 %v9293, %v9294
        %9362 = vadd.xlane.f32.xlu0 %v9361
        %v9363 = vpop.xlane.xlu0 %9362
        %v9364 = vadd.f32 %v9295, %v9296
        %9365 = vadd.xlane.f32.xlu0 %v9364
        %v9366 = vpop.xlane.xlu0 %9365
        %v9367 = vadd.f32 %v9297, %v9298
        %9368 = vadd.xlane.f32.xlu0 %v9367
        %v9369 = vpop.xlane.xlu0 %9368
        %v9370 = vadd.f32 %v9299, %v9300
        %9371 = vadd.xlane.f32.xlu0 %v9370
        %v9372 = vpop.xlane.xlu0 %9371
        %v9373 = vadd.f32 %v9301, %v9302
        %9374 = vadd.xlane.f32.xlu0 %v9373
        %v9375 = vpop.xlane.xlu0 %9374
        %v9376 = vadd.f32 %v9303, %v9304
        %9377 = vadd.xlane.f32.xlu0 %v9376
        %v9378 = vpop.xlane.xlu0 %9377
        %v9379 = vadd.f32 %v9305, %v9306
        %9380 = vadd.xlane.f32.xlu0 %v9379
        %v9381 = vpop.xlane.xlu0 %9380
        %v9382 = vadd.f32 %v9307, %v9308
        %9383 = vadd.xlane.f32.xlu0 %v9382
        %v9384 = vpop.xlane.xlu0 %9383
        %v9385 = vadd.f32 %v9309, %v9310
        %9386 = vadd.xlane.f32.xlu0 %v9385
        %v9387 = vpop.xlane.xlu0 %9386
        %v9388 = vadd.f32 %v9311, %v9312
        %9389 = vadd.xlane.f32.xlu0 %v9388
        %v9390 = vpop.xlane.xlu0 %9389
        %v9391 = vadd.f32 %v9313, %v9314
        %9392 = vadd.xlane.f32.xlu0 %v9391
        %v9393 = vpop.xlane.xlu0 %9392
        %v9394 = vadd.f32 %v9315, %v9316
        %9395 = vadd.xlane.f32.xlu0 %v9394
        %v9396 = vpop.xlane.xlu0 %9395
        %v9397 = vadd.f32 %v9317, %v9318
        %9398 = vadd.xlane.f32.xlu0 %v9397
        %v9399 = vpop.xlane.xlu0 %9398
        %v9400 = vadd.f32 %v9319, %v9320
        %9401 = vadd.xlane.f32.xlu0 %v9400
        %v9402 = vpop.xlane.xlu0 %9401
        %v9403 = vadd.f32 %v9321, %v9322
        %9404 = vadd.xlane.f32.xlu0 %v9403
        %v9405 = vpop.xlane.xlu0 %9404
        %v9406 = vadd.f32 %v9323, %v9324
        %9407 = vadd.xlane.f32.xlu0 %v9406
        %v9408 = vpop.xlane.xlu0 %9407
        %v9409 = vadd.f32 %v9325, %v9326
        %9410 = vadd.xlane.f32.xlu0 %v9409
        %v9411 = vpop.xlane.xlu0 %9410
        %v9412 = vadd.f32 %v9327, %v9328
        %9413 = vadd.xlane.f32.xlu0 %v9412
        %v9414 = vpop.xlane.xlu0 %9413
        %v9415 = vadd.f32 %v9329, %v9330
        %9416 = vadd.xlane.f32.xlu0 %v9415
        %v9417 = vpop.xlane.xlu0 %9416
        %v9418 = vadd.f32 %v9331, %v9332
        %9419 = vadd.xlane.f32.xlu0 %v9418
        %v9420 = vpop.xlane.xlu0 %9419
        %v9421 = vadd.f32 %v9333, %v9334
        %9422 = vadd.xlane.f32.xlu0 %v9421
        %v9423 = vpop.xlane.xlu0 %9422
        %v9424 = vadd.f32 %v9335, %v9336
        %9425 = vadd.xlane.f32.xlu0 %v9424
        %v9426 = vpop.xlane.xlu0 %9425
        %v9427 = vadd.f32 %v9337, %v9338
        %9428 = vadd.xlane.f32.xlu0 %v9427
        %v9429 = vpop.xlane.xlu0 %9428
        %v9430 = vadd.f32 %v9339, %v9340
        %9431 = vadd.xlane.f32.xlu0 %v9430
        %v9432 = vpop.xlane.xlu0 %9431
        %v9433 = vadd.f32 %v9341, %v9342
        %9434 = vadd.xlane.f32.xlu0 %v9433
        %v9435 = vpop.xlane.xlu0 %9434
        %v9436 = vadd.f32 %v9343, %v9344
        %9437 = vadd.xlane.f32.xlu0 %v9436
        %v9438 = vpop.xlane.xlu0 %9437
        %v9439 = vadd.f32 %v9345, %v9346
        %9440 = vadd.xlane.f32.xlu0 %v9439
        %v9441 = vpop.xlane.xlu0 %9440
        %v9442 = vadd.f32 %v9347, %v9348
        %9443 = vadd.xlane.f32.xlu0 %v9442
        %v9444 = vpop.xlane.xlu0 %9443
        %v9445 = vmul.f32 %v9351, %v5564
        %v9446 = vmul.f32 %v9354, %v5564
        %v9447 = vmul.f32 %v9357, %v5564
        %v9448 = vmul.f32 %v9360, %v5564
        %v9449 = vmul.f32 %v9363, %v5564
        %v9450 = vmul.f32 %v9366, %v5564
        %v9451 = vmul.f32 %v9369, %v5564
        %v9452 = vmul.f32 %v9372, %v5564
        %v9453 = vmul.f32 %v9375, %v5564
        %v9454 = vmul.f32 %v9378, %v5564
        %v9455 = vmul.f32 %v9381, %v5564
        %v9456 = vmul.f32 %v9384, %v5564
        %v9457 = vmul.f32 %v9387, %v5564
        %v9458 = vmul.f32 %v9390, %v5564
        %v9459 = vmul.f32 %v9393, %v5564
        %v9460 = vmul.f32 %v9396, %v5564
        %v9461 = vmul.f32 %v9399, %v5564
        %v9462 = vmul.f32 %v9402, %v5564
        %v9463 = vmul.f32 %v9405, %v5564
        %v9464 = vmul.f32 %v9408, %v5564
        %v9465 = vmul.f32 %v9411, %v5564
        %v9466 = vmul.f32 %v9414, %v5564
        %v9467 = vmul.f32 %v9417, %v5564
        %v9468 = vmul.f32 %v9420, %v5564
        %v9469 = vmul.f32 %v9423, %v5564
        %v9470 = vmul.f32 %v9426, %v5564
        %v9471 = vmul.f32 %v9429, %v5564
        %v9472 = vmul.f32 %v9432, %v5564
        %v9473 = vmul.f32 %v9435, %v5564
        %v9474 = vmul.f32 %v9438, %v5564
        %v9475 = vmul.f32 %v9441, %v5564
        %v9476 = vmul.f32 %v9444, %v5564
        %v9477 = vadd.f32 %v9445, 1e-05
        %v9478 = vadd.f32 %v9446, 1e-05
        %v9479 = vadd.f32 %v9447, 1e-05
        %v9480 = vadd.f32 %v9448, 1e-05
        %v9481 = vadd.f32 %v9449, 1e-05
        %v9482 = vadd.f32 %v9450, 1e-05
        %v9483 = vadd.f32 %v9451, 1e-05
        %v9484 = vadd.f32 %v9452, 1e-05
        %v9485 = vadd.f32 %v9453, 1e-05
        %v9486 = vadd.f32 %v9454, 1e-05
        %v9487 = vadd.f32 %v9455, 1e-05
        %v9488 = vadd.f32 %v9456, 1e-05
        %v9489 = vadd.f32 %v9457, 1e-05
        %v9490 = vadd.f32 %v9458, 1e-05
        %v9491 = vadd.f32 %v9459, 1e-05
        %v9492 = vadd.f32 %v9460, 1e-05
        %v9493 = vadd.f32 %v9461, 1e-05
        %v9494 = vadd.f32 %v9462, 1e-05
        %v9495 = vadd.f32 %v9463, 1e-05
        %v9496 = vadd.f32 %v9464, 1e-05
        %v9497 = vadd.f32 %v9465, 1e-05
        %v9498 = vadd.f32 %v9466, 1e-05
        %v9499 = vadd.f32 %v9467, 1e-05
        %v9500 = vadd.f32 %v9468, 1e-05
        %v9501 = vadd.f32 %v9469, 1e-05
        %v9502 = vadd.f32 %v9470, 1e-05
        %v9503 = vadd.f32 %v9471, 1e-05
        %v9504 = vadd.f32 %v9472, 1e-05
        %v9505 = vadd.f32 %v9473, 1e-05
        %v9506 = vadd.f32 %v9474, 1e-05
        %v9507 = vadd.f32 %v9475, 1e-05
        %v9508 = vadd.f32 %v9476, 1e-05
        %v9509 = vrsqrt.pop %v9477
        %v9510 = vrsqrt.pop %v9478
        %v9511 = vrsqrt.pop %v9479
        %v9512 = vrsqrt.pop %v9480
        %v9513 = vrsqrt.pop %v9481
        %v9514 = vrsqrt.pop %v9482
        %v9515 = vrsqrt.pop %v9483
        %v9516 = vrsqrt.pop %v9484
        %v9517 = vrsqrt.pop %v9485
        %v9518 = vrsqrt.pop %v9486
        %v9519 = vrsqrt.pop %v9487
        %v9520 = vrsqrt.pop %v9488
        %v9521 = vrsqrt.pop %v9489
        %v9522 = vrsqrt.pop %v9490
        %v9523 = vrsqrt.pop %v9491
        %v9524 = vrsqrt.pop %v9492
        %v9525 = vrsqrt.pop %v9493
        %v9526 = vrsqrt.pop %v9494
        %v9527 = vrsqrt.pop %v9495
        %v9528 = vrsqrt.pop %v9496
        %v9529 = vrsqrt.pop %v9497
        %v9530 = vrsqrt.pop %v9498
        %v9531 = vrsqrt.pop %v9499
        %v9532 = vrsqrt.pop %v9500
        %v9533 = vrsqrt.pop %v9501
        %v9534 = vrsqrt.pop %v9502
        %v9535 = vrsqrt.pop %v9503
        %v9536 = vrsqrt.pop %v9504
        %v9537 = vrsqrt.pop %v9505
        %v9538 = vrsqrt.pop %v9506
        %v9539 = vrsqrt.pop %v9507
        %v9540 = vrsqrt.pop %v9508
        %v9541 = vmul.f32 %v9221, %v9509
        %v9542 = vmul.f32 %v9222, %v9509
        %v9543 = vmul.f32 %v9223, %v9510
        %v9544 = vmul.f32 %v9224, %v9510
        %v9545 = vmul.f32 %v9225, %v9511
        %v9546 = vmul.f32 %v9226, %v9511
        %v9547 = vmul.f32 %v9227, %v9512
        %v9548 = vmul.f32 %v9228, %v9512
        %v9549 = vmul.f32 %v9229, %v9513
        %v9550 = vmul.f32 %v9230, %v9513
        %v9551 = vmul.f32 %v9231, %v9514
        %v9552 = vmul.f32 %v9232, %v9514
        %v9553 = vmul.f32 %v9233, %v9515
        %v9554 = vmul.f32 %v9234, %v9515
        %v9555 = vmul.f32 %v9235, %v9516
        %v9556 = vmul.f32 %v9236, %v9516
        %v9557 = vmul.f32 %v9237, %v9517
        %v9558 = vmul.f32 %v9238, %v9517
        %v9559 = vmul.f32 %v9239, %v9518
        %v9560 = vmul.f32 %v9240, %v9518
        %v9561 = vmul.f32 %v9241, %v9519
        %v9562 = vmul.f32 %v9242, %v9519
        %v9563 = vmul.f32 %v9243, %v9520
        %v9564 = vmul.f32 %v9244, %v9520
        %v9565 = vmul.f32 %v9245, %v9521
        %v9566 = vmul.f32 %v9246, %v9521
        %v9567 = vmul.f32 %v9247, %v9522
        %v9568 = vmul.f32 %v9248, %v9522
        %v9569 = vmul.f32 %v9249, %v9523
        %v9570 = vmul.f32 %v9250, %v9523
        %v9571 = vmul.f32 %v9251, %v9524
        %v9572 = vmul.f32 %v9252, %v9524
        %v9573 = vmul.f32 %v9253, %v9525
        %v9574 = vmul.f32 %v9254, %v9525
        %v9575 = vmul.f32 %v9255, %v9526
        %v9576 = vmul.f32 %v9256, %v9526
        %v9577 = vmul.f32 %v9257, %v9527
        %v9578 = vmul.f32 %v9258, %v9527
        %v9579 = vmul.f32 %v9259, %v9528
        %v9580 = vmul.f32 %v9260, %v9528
        %v9581 = vmul.f32 %v9261, %v9529
        %v9582 = vmul.f32 %v9262, %v9529
        %v9583 = vmul.f32 %v9263, %v9530
        %v9584 = vmul.f32 %v9264, %v9530
        %v9585 = vmul.f32 %v9265, %v9531
        %v9586 = vmul.f32 %v9266, %v9531
        %v9587 = vmul.f32 %v9267, %v9532
        %v9588 = vmul.f32 %v9268, %v9532
        %v9589 = vmul.f32 %v9269, %v9533
        %v9590 = vmul.f32 %v9270, %v9533
        %v9591 = vmul.f32 %v9271, %v9534
        %v9592 = vmul.f32 %v9272, %v9534
        %v9593 = vmul.f32 %v9273, %v9535
        %v9594 = vmul.f32 %v9274, %v9535
        %v9595 = vmul.f32 %v9275, %v9536
        %v9596 = vmul.f32 %v9276, %v9536
        %v9597 = vmul.f32 %v9277, %v9537
        %v9598 = vmul.f32 %v9278, %v9537
        %v9599 = vmul.f32 %v9279, %v9538
        %v9600 = vmul.f32 %v9280, %v9538
        %v9601 = vmul.f32 %v9281, %v9539
        %v9602 = vmul.f32 %v9282, %v9539
        %v9603 = vmul.f32 %v9283, %v9540
        %v9604 = vmul.f32 %v9284, %v9540
        %v9605 = vlaneseq
        %v9606 = vshrl.u32 %v9605, 7
        %v9607 = vsub.s32 4, %v9606
        %v9608 = vrot.slane %v371, %v9607
        %v9609 = vlaneseq
        %v9610 = vshrl.u32 %v9609, 7
        %v9611 = vsub.s32 4, %v9610
        %v9612 = vrot.slane %v372, %v9611
        %v9613 = vmul.f32 %v9541, %v9608
        %v9614 = vmul.f32 %v9542, %v9612
        %v9615 = vmul.f32 %v9543, %v9608
        %v9616 = vmul.f32 %v9544, %v9612
        %v9617 = vmul.f32 %v9545, %v9608
        %v9618 = vmul.f32 %v9546, %v9612
        %v9619 = vmul.f32 %v9547, %v9608
        %v9620 = vmul.f32 %v9548, %v9612
        %v9621 = vmul.f32 %v9549, %v9608
        %v9622 = vmul.f32 %v9550, %v9612
        %v9623 = vmul.f32 %v9551, %v9608
        %v9624 = vmul.f32 %v9552, %v9612
        %v9625 = vmul.f32 %v9553, %v9608
        %v9626 = vmul.f32 %v9554, %v9612
        %v9627 = vmul.f32 %v9555, %v9608
        %v9628 = vmul.f32 %v9556, %v9612
        %v9629 = vmul.f32 %v9557, %v9608
        %v9630 = vmul.f32 %v9558, %v9612
        %v9631 = vmul.f32 %v9559, %v9608
        %v9632 = vmul.f32 %v9560, %v9612
        %v9633 = vmul.f32 %v9561, %v9608
        %v9634 = vmul.f32 %v9562, %v9612
        %v9635 = vmul.f32 %v9563, %v9608
        %v9636 = vmul.f32 %v9564, %v9612
        %v9637 = vmul.f32 %v9565, %v9608
        %v9638 = vmul.f32 %v9566, %v9612
        %v9639 = vmul.f32 %v9567, %v9608
        %v9640 = vmul.f32 %v9568, %v9612
        %v9641 = vmul.f32 %v9569, %v9608
        %v9642 = vmul.f32 %v9570, %v9612
        %v9643 = vmul.f32 %v9571, %v9608
        %v9644 = vmul.f32 %v9572, %v9612
        %v9645 = vmul.f32 %v9573, %v9608
        %v9646 = vmul.f32 %v9574, %v9612
        %v9647 = vmul.f32 %v9575, %v9608
        %v9648 = vmul.f32 %v9576, %v9612
        %v9649 = vmul.f32 %v9577, %v9608
        %v9650 = vmul.f32 %v9578, %v9612
        %v9651 = vmul.f32 %v9579, %v9608
        %v9652 = vmul.f32 %v9580, %v9612
        %v9653 = vmul.f32 %v9581, %v9608
        %v9654 = vmul.f32 %v9582, %v9612
        %v9655 = vmul.f32 %v9583, %v9608
        %v9656 = vmul.f32 %v9584, %v9612
        %v9657 = vmul.f32 %v9585, %v9608
        %v9658 = vmul.f32 %v9586, %v9612
        %v9659 = vmul.f32 %v9587, %v9608
        %v9660 = vmul.f32 %v9588, %v9612
        %v9661 = vmul.f32 %v9589, %v9608
        %v9662 = vmul.f32 %v9590, %v9612
        %v9663 = vmul.f32 %v9591, %v9608
        %v9664 = vmul.f32 %v9592, %v9612
        %v9665 = vmul.f32 %v9593, %v9608
        %v9666 = vmul.f32 %v9594, %v9612
        %v9667 = vmul.f32 %v9595, %v9608
        %v9668 = vmul.f32 %v9596, %v9612
        %v9669 = vmul.f32 %v9597, %v9608
        %v9670 = vmul.f32 %v9598, %v9612
        %v9671 = vmul.f32 %v9599, %v9608
        %v9672 = vmul.f32 %v9600, %v9612
        %v9673 = vmul.f32 %v9601, %v9608
        %v9674 = vmul.f32 %v9602, %v9612
        %v9675 = vmul.f32 %v9603, %v9608
        %v9676 = vmul.f32 %v9604, %v9612
        %v9677 = vlaneseq
        %v9678 = vshrl.u32 %v9677, 7
        %v9679 = vsub.s32 5, %v9678
        %v9680 = vrot.slane %v371, %v9679
        %v9681 = vlaneseq
        %v9682 = vshrl.u32 %v9681, 7
        %v9683 = vsub.s32 5, %v9682
        %v9684 = vrot.slane %v372, %v9683
        %v9685 = vadd.f32 %v9613, %v9680
        %v9686 = vadd.f32 %v9614, %v9684
        %v9687 = vadd.f32 %v9615, %v9680
        %v9688 = vadd.f32 %v9616, %v9684
        %v9689 = vadd.f32 %v9617, %v9680
        %v9690 = vadd.f32 %v9618, %v9684
        %v9691 = vadd.f32 %v9619, %v9680
        %v9692 = vadd.f32 %v9620, %v9684
        %v9693 = vadd.f32 %v9621, %v9680
        %v9694 = vadd.f32 %v9622, %v9684
        %v9695 = vadd.f32 %v9623, %v9680
        %v9696 = vadd.f32 %v9624, %v9684
        %v9697 = vadd.f32 %v9625, %v9680
        %v9698 = vadd.f32 %v9626, %v9684
        %v9699 = vadd.f32 %v9627, %v9680
        %v9700 = vadd.f32 %v9628, %v9684
        %v9701 = vadd.f32 %v9629, %v9680
        %v9702 = vadd.f32 %v9630, %v9684
        %v9703 = vadd.f32 %v9631, %v9680
        %v9704 = vadd.f32 %v9632, %v9684
        %v9705 = vadd.f32 %v9633, %v9680
        %v9706 = vadd.f32 %v9634, %v9684
        %v9707 = vadd.f32 %v9635, %v9680
        %v9708 = vadd.f32 %v9636, %v9684
        %v9709 = vadd.f32 %v9637, %v9680
        %v9710 = vadd.f32 %v9638, %v9684
        %v9711 = vadd.f32 %v9639, %v9680
        %v9712 = vadd.f32 %v9640, %v9684
        %v9713 = vadd.f32 %v9641, %v9680
        %v9714 = vadd.f32 %v9642, %v9684
        %v9715 = vadd.f32 %v9643, %v9680
        %v9716 = vadd.f32 %v9644, %v9684
        %v9717 = vadd.f32 %v9645, %v9680
        %v9718 = vadd.f32 %v9646, %v9684
        %v9719 = vadd.f32 %v9647, %v9680
        %v9720 = vadd.f32 %v9648, %v9684
        %v9721 = vadd.f32 %v9649, %v9680
        %v9722 = vadd.f32 %v9650, %v9684
        %v9723 = vadd.f32 %v9651, %v9680
        %v9724 = vadd.f32 %v9652, %v9684
        %v9725 = vadd.f32 %v9653, %v9680
        %v9726 = vadd.f32 %v9654, %v9684
        %v9727 = vadd.f32 %v9655, %v9680
        %v9728 = vadd.f32 %v9656, %v9684
        %v9729 = vadd.f32 %v9657, %v9680
        %v9730 = vadd.f32 %v9658, %v9684
        %v9731 = vadd.f32 %v9659, %v9680
        %v9732 = vadd.f32 %v9660, %v9684
        %v9733 = vadd.f32 %v9661, %v9680
        %v9734 = vadd.f32 %v9662, %v9684
        %v9735 = vadd.f32 %v9663, %v9680
        %v9736 = vadd.f32 %v9664, %v9684
        %v9737 = vadd.f32 %v9665, %v9680
        %v9738 = vadd.f32 %v9666, %v9684
        %v9739 = vadd.f32 %v9667, %v9680
        %v9740 = vadd.f32 %v9668, %v9684
        %v9741 = vadd.f32 %v9669, %v9680
        %v9742 = vadd.f32 %v9670, %v9684
        %v9743 = vadd.f32 %v9671, %v9680
        %v9744 = vadd.f32 %v9672, %v9684
        %v9745 = vadd.f32 %v9673, %v9680
        %v9746 = vadd.f32 %v9674, %v9684
        %v9747 = vadd.f32 %v9675, %v9680
        %v9748 = vadd.f32 %v9676, %v9684
        %9749 = vst [vmem:[%s368] sm:$0xff] %v9685
        %9750 = vst [vmem:[%s368 + $0x8] sm:$0xff] %v9686
        %9751 = vst [vmem:[%s368 + $0x10] sm:$0xff] %v9687
        %9752 = vst [vmem:[%s368 + $0x18] sm:$0xff] %v9688
        %9753 = vst [vmem:[%s368 + $0x20] sm:$0xff] %v9689
        %9754 = vst [vmem:[%s368 + $0x28] sm:$0xff] %v9690
        %9755 = vst [vmem:[%s368 + $0x30] sm:$0xff] %v9691
        %9756 = vst [vmem:[%s368 + $0x38] sm:$0xff] %v9692
        %9757 = vst [vmem:[%s368 + $0x40] sm:$0xff] %v9693
        %9758 = vst [vmem:[%s368 + $0x48] sm:$0xff] %v9694
        %9759 = vst [vmem:[%s368 + $0x50] sm:$0xff] %v9695
        %9760 = vst [vmem:[%s368 + $0x58] sm:$0xff] %v9696
        %9761 = vst [vmem:[%s368 + $0x60] sm:$0xff] %v9697
        %9762 = vst [vmem:[%s368 + $0x68] sm:$0xff] %v9698
        %9763 = vst [vmem:[%s368 + $0x70] sm:$0xff] %v9699
        %9764 = vst [vmem:[%s368 + $0x78] sm:$0xff] %v9700
        %9765 = vst [vmem:[%s368 + $0x80] sm:$0xff] %v9701
        %9766 = vst [vmem:[%s368 + $0x88] sm:$0xff] %v9702
        %9767 = vst [vmem:[%s368 + $0x90] sm:$0xff] %v9703
        %9768 = vst [vmem:[%s368 + $0x98] sm:$0xff] %v9704
        %9769 = vst [vmem:[%s368 + $0xa0] sm:$0xff] %v9705
        %9770 = vst [vmem:[%s368 + $0xa8] sm:$0xff] %v9706
        %9771 = vst [vmem:[%s368 + $0xb0] sm:$0xff] %v9707
        %9772 = vst [vmem:[%s368 + $0xb8] sm:$0xff] %v9708
        %9773 = vst [vmem:[%s368 + $0xc0] sm:$0xff] %v9709
        %9774 = vst [vmem:[%s368 + $0xc8] sm:$0xff] %v9710
        %9775 = vst [vmem:[%s368 + $0xd0] sm:$0xff] %v9711
        %9776 = vst [vmem:[%s368 + $0xd8] sm:$0xff] %v9712
        %9777 = vst [vmem:[%s368 + $0xe0] sm:$0xff] %v9713
        %9778 = vst [vmem:[%s368 + $0xe8] sm:$0xff] %v9714
        %9779 = vst [vmem:[%s368 + $0xf0] sm:$0xff] %v9715
        %9780 = vst [vmem:[%s368 + $0xf8] sm:$0xff] %v9716
        %9781 = vst [vmem:[%s368 + $0x100] sm:$0xff] %v9717
        %9782 = vst [vmem:[%s368 + $0x108] sm:$0xff] %v9718
        %9783 = vst [vmem:[%s368 + $0x110] sm:$0xff] %v9719
        %9784 = vst [vmem:[%s368 + $0x118] sm:$0xff] %v9720
        %9785 = vst [vmem:[%s368 + $0x120] sm:$0xff] %v9721
        %9786 = vst [vmem:[%s368 + $0x128] sm:$0xff] %v9722
        %9787 = vst [vmem:[%s368 + $0x130] sm:$0xff] %v9723
        %9788 = vst [vmem:[%s368 + $0x138] sm:$0xff] %v9724
        %9789 = vst [vmem:[%s368 + $0x140] sm:$0xff] %v9725
        %9790 = vst [vmem:[%s368 + $0x148] sm:$0xff] %v9726
        %9791 = vst [vmem:[%s368 + $0x150] sm:$0xff] %v9727
        %9792 = vst [vmem:[%s368 + $0x158] sm:$0xff] %v9728
        %9793 = vst [vmem:[%s368 + $0x160] sm:$0xff] %v9729
        %9794 = vst [vmem:[%s368 + $0x168] sm:$0xff] %v9730
        %9795 = vst [vmem:[%s368 + $0x170] sm:$0xff] %v9731
        %9796 = vst [vmem:[%s368 + $0x178] sm:$0xff] %v9732
        %9797 = vst [vmem:[%s368 + $0x180] sm:$0xff] %v9733
        %9798 = vst [vmem:[%s368 + $0x188] sm:$0xff] %v9734
        %9799 = vst [vmem:[%s368 + $0x190] sm:$0xff] %v9735
        %9800 = vst [vmem:[%s368 + $0x198] sm:$0xff] %v9736
        %9801 = vst [vmem:[%s368 + $0x1a0] sm:$0xff] %v9737
        %9802 = vst [vmem:[%s368 + $0x1a8] sm:$0xff] %v9738
        %9803 = vst [vmem:[%s368 + $0x1b0] sm:$0xff] %v9739
        %9804 = vst [vmem:[%s368 + $0x1b8] sm:$0xff] %v9740
        %9805 = vst [vmem:[%s368 + $0x1c0] sm:$0xff] %v9741
        %9806 = vst [vmem:[%s368 + $0x1c8] sm:$0xff] %v9742
        %9807 = vst [vmem:[%s368 + $0x1d0] sm:$0xff] %v9743
        %9808 = vst [vmem:[%s368 + $0x1d8] sm:$0xff] %v9744
        %9809 = vst [vmem:[%s368 + $0x1e0] sm:$0xff] %v9745
        %9810 = vst [vmem:[%s368 + $0x1e8] sm:$0xff] %v9746
        %9811 = vst [vmem:[%s368 + $0x1f0] sm:$0xff] %v9747
        %9812 = vst [vmem:[%s368 + $0x1f8] sm:$0xff] %v9748
        %s9813 = sand.u32 %s187, 1
        %s9814 = scalar_lea.sflag [#allocation4], %s9813
        %s9815 = sand.u32 %s187, 1
        %s9816 = smul.addr %s9815, 512
        %s9817 = scalar_lea.vmem [#allocation13], %s9816
        // Predicated region
        $region73: #{tpu_custom_call.1} parent=47 // pred_check
          %p9818 = pneg %p197
        $region74: #{tpu_custom_call.1} parent=47 // pred_check_branch
          %9820 = sbr.rel (%p9818) target = $region76
        $region75: #{tpu_custom_call.1} parent=47 // pred_region
          %s9821 = smul.u32 8, %s27
          %s9823 = ssub.s32 8192, 8192
          %9824 = vsyncadd %s9814, %s9823
          %s9825 = smul.addr %s9821, 8
          %s9826 = smul.addr %s9825, 128
          %s9827 = scalar_lea.hbm %s7, %s9826
          %s9828 = sshll.u32 %s9817, 4
          %s9829 = int_to_ptr.vmem [resolvable:$true] %s9828
          %9834 = dma.vmem_to_hbm [thread:$0]  %s9829, 8192, %s9827, %s9814, 256, 256, 16
        $region76: #{tpu_custom_call.1} parent=47 // pred_fallthru
          _
      $region48: #{tpu_custom_call.1} parent=5 // pred_fallthru
        _
      %p9835 = scmp.le.s32.totalorder 2, %s22
      // Predicated region
      $region77: #{tpu_custom_call.1} parent=5 // pred_check
        %p9836 = pneg %p9835
      $region78: #{tpu_custom_call.1} parent=5 // pred_check_branch
        %9838 = sbr.rel (%p9836) target = $region80
      $region79: #{tpu_custom_call.1} parent=5 // pred_region
        %s9839 = ssub.s32 %s22, 2
        // Predicated region
        $region81: #{tpu_custom_call.1} parent=79 // pred_check
          %p9840 = pneg %p203
        $region82: #{tpu_custom_call.1} parent=79 // pred_check_branch
          %9842 = sbr.rel (%p9840) target = $region84
        $region83: #{tpu_custom_call.1} parent=79 // pred_region
          %s9843 = sand.u32 %s188, 1
          %s9844 = scalar_lea.sflag [#allocation4], %s9843
          %s9845 = sand.u32 %s188, 1
          %s9846 = smul.addr %s9845, 512
          %s9847 = scalar_lea.vmem [#allocation13], %s9846
          %9848 = dma.done %s9844, 8192
        $region84: #{tpu_custom_call.1} parent=79 // pred_fallthru
          _
      $region80: #{tpu_custom_call.1} parent=5 // pred_fallthru
        _
    $region6: #{tpu_custom_call.1} parent=1 // loop_footer
      %s26 = sadd.s32 1, %s22
    $region7: #{tpu_custom_call.1} parent=1 // loop_footer_branch
      %21 = sbr.rel target = $region3
    $region8: #{tpu_custom_call.1} parent=1 // loop_exit
      _
    %9849 = vsyncpa [#allocation3], 1
    %s9850 = scalar_lea.sflag [#allocation3], 1
    %9851 = vsyncpa %s9850, 1
    %9852 = vsyncpa [#allocation6], 1
    %9853 = vsyncpa [#allocation9], 1
    %9854 = vsyncpa [#allocation12], 1
    %9855 = vsyncpa [#allocation4], 1
    %s9856 = scalar_lea.sflag [#allocation4], 1
    %9857 = vsyncpa %s9856, 1

</llo_original>
